<compile_context>
chip_gen: v7x
topology: tpu7x:2x2x1
jax: 0.10.0
libtpu: 0.0.40
codegen_flags: <defaults>
</compile_context>

<pallas_src>
import numpy as np

import jax
import jax.numpy as jnp
from jax.experimental import pallas as pl
from jax.experimental.pallas import tpu as pltpu

_BN_EPS = 1e-5
_FC_H = 500                    # hidden width of fc1 in the PyTorch module
_FC_HP = 512                   # padded hidden width (lane aligned)
_FC_O = 5                      # fc1 output width
_FC_OP = 128                   # padded output width (lane aligned)
_VMEM_LIMIT = 48 * 1024 * 1024         # > 32 MiB default, < v7x 64 MiB per core
_FC_MAX_TILE_BYTES = 8 << 20           # w1 K-tile cap; x2 double-buffered = 16 MiB


# ---------------------------------------------------------------------------
# Fused cnn1 kernel: grid=(2 towers,), activations resident in VMEM
# ---------------------------------------------------------------------------
def _make_cnn_kernel(b, h, w):
    """b = per-tower batch. Activation layout: rows=(image, padded y),
    lanes=(interior x 0..w-1 | left pad | right pad) x channels."""
    hp = h + 2
    m = b * hp - 2                       # batched conv rows per tower
    cnt = float(b * h * w)               # BN count per tower: (N, H, W)

    def kernel(xp_ref, mrow_ref,
               t1, c1, s1, r1, t2, c2, s2, r2,
               t3, c3, s3, r3, t4, c4, s4, r4,
               o_ref, pad1, pad2, pad3):
        layers = (
            # (toeplitz, bias, sel, rsel, cout, relu_before_bn, dst_scratch)
            (t1, c1, s1, r1, 4, True, pad1),
            (t2, c2, s2, r2, 6, True, pad2),
            (t3, c3, s3, r3, 8, False, pad3),
            (t4, c4, s4, r4, 8, False, None),
        )
        mrow = mrow_ref[...]             # (1, m) 1.0 on valid rows, 0.0 on garbage
        src = xp_ref
        for (t_ref, b_ref, s_ref, r_ref, cout, relu_first, dst) in layers:
            wc = w * cout

            # --- 3x3 conv: 3 row-shifted block-Toeplitz matmuls, batched over
            # the whole tower (M rows) for near-full MXU fill; bf16 operands,
            # f32 accumulation.
            acc = jnp.dot(src[0:m, :].astype(jnp.bfloat16), t_ref[0],
                          preferred_element_type=jnp.float32)
            acc = acc + jnp.dot(src[1:1 + m, :].astype(jnp.bfloat16), t_ref[1],
                                preferred_element_type=jnp.float32)
            acc = acc + jnp.dot(src[2:2 + m, :].astype(jnp.bfloat16), t_ref[2],
                                preferred_element_type=jnp.float32)
            acc = acc + b_ref[...]
            if relu_first:                                 # Conv -> ReLU -> BN
                acc = jnp.maximum(acc, 0.0)

            # --- training-mode BatchNorm over this tower's (N, H, W).
            # Garbage (image-boundary) rows are excluded by the mask-row matmul;
            # per-channel sums via selector matmuls, broadcast back via rsel.
            colsum = jnp.dot(mrow, acc, preferred_element_type=jnp.float32)
            mean_w = jnp.dot(jnp.dot(colsum, s_ref[...],
                                     preferred_element_type=jnp.float32) / cnt,
                             r_ref[...], preferred_element_type=jnp.float32)
            d = acc - mean_w
            sqcol = jnp.dot(mrow, d * d, preferred_element_type=jnp.float32)
            var_c = jnp.dot(sqcol, s_ref[...],
                            preferred_element_type=jnp.float32) / cnt   # biased
            inv_w = jnp.dot(jax.lax.rsqrt(var_c + _BN_EPS), r_ref[...],
                            preferred_element_type=jnp.float32)
            y = d * inv_w                                  # gamma=1, beta=0
            if not relu_first:                             # Conv -> BN -> ReLU
                y = jnp.maximum(y, 0.0)

            if dst is None:
                # Final feature map: keep only the valid (interior) rows.
                for img in range(b):
                    o_ref[img * h:(img + 1) * h, :] = y[img * hp:img * hp + h, :]
            else:
                # ReflectionPad2d(1) into the next layer's scratch.
                # One lane-aligned interior store at lane offset 0 (garbage rows
                # land in pad-row slots and are overwritten just below).
                dst[1:1 + m, 0:wc] = y
                for img in range(b):
                    rb = img * hp
                    dst[rb:rb + 1, 0:wc] = y[img * hp + 1:img * hp + 2, :]      # top
                    dst[rb + hp - 1:rb + hp, 0:wc] = \
                        y[img * hp + h - 2:img * hp + h - 1, :]                 # bottom
                # Left / right pad columns live in the tail lane blocks; copying
                # over all rows after the row writes resolves the corners.
                dst[:, w * cout:(w + 1) * cout] = dst[:, cout:2 * cout]
                dst[:, (w + 1) * cout:(w + 2) * cout] = \
                    dst[:, (w - 2) * cout:(w - 1) * cout]
                src = dst

    return kernel


def conv_chain(x_nchw, cparams):
    """x_nchw: (2B, 3, H, W) -> lane-dense feature map (2, B*H, W*8)."""
    nt, _, h, w = x_nchw.shape
    assert nt % 2 == 0
    b = nt // 2
    hp, wp = h + 2, w + 2
    m = b * hp - 2
    kernel = _make_cnn_kernel(b, h, w)

    # Reflect-pad and relayout the (tiny) input: rows=(tower, image, padded y),
    # lanes=[interior x | left pad | right pad] x channels.
    xpad = jnp.pad(x_nchw, ((0, 0), (0, 0), (1, 1), (1, 1)), mode="reflect")
    xpad = jnp.transpose(xpad, (0, 2, 3, 1))                     # (2B, hp, wp, 3)
    perm = np.array(list(range(1, w + 1)) + [0, w + 1], np.int32)
    xpad = xpad[:, :, perm, :]
    xp3 = xpad.reshape(2, b * hp, wp * 3).astype(jnp.float32)

    # Row-validity mask over the batched conv rows (0 on image-boundary rows).
    mrow_np = np.zeros((1, m), np.float32)
    for i in range(m):
        if (i % hp) < h:
            mrow_np[0, i] = 1.0
    mrow = jnp.asarray(mrow_np)

    layer_args = []
    in_specs = [
        pl.BlockSpec((None, b * hp, wp * 3), lambda t: (t, 0, 0)),
        pl.BlockSpec((1, m), lambda t: (0, 0)),
    ]
    flops = 0
    bytes_accessed = int(xp3.size) * 4 + int(mrow.size) * 4
    for t_mat, bias, sel, rsel in cparams["layers"]:
        layer_args += [t_mat, bias, sel, rsel]
        in_specs += [
            pl.BlockSpec(t_mat.shape, lambda t: (0, 0, 0)),
            pl.BlockSpec(bias.shape, lambda t: (0, 0)),
            pl.BlockSpec(sel.shape, lambda t: (0, 0)),
            pl.BlockSpec(rsel.shape, lambda t: (0, 0)),
        ]
        flops += 2 * 2 * m * t_mat.shape[1] * t_mat.shape[2] * 3
        bytes_accessed += int(t_mat.size) * 2 + int(bias.size + sel.size + rsel.size) * 4
    bytes_accessed += 2 * b * h * w * 8 * 4

    return pl.pallas_call(
        kernel,
        out_shape=jax.ShapeDtypeStruct((2, b * h, w * 8), jnp.float32),
        grid_spec=pltpu.PrefetchScalarGridSpec(
            num_scalar_prefetch=0,
            grid=(2,),                                    # one program per tower
            in_specs=in_specs,
            out_specs=pl.BlockSpec((None, b * h, w * 8), lambda t: (t, 0, 0)),
            scratch_shapes=[
                pltpu.VMEM((b * hp, wp * 4), jnp.float32),
                pltpu.VMEM((b * hp, wp * 6), jnp.float32),
                pltpu.VMEM((b * hp, wp * 8), jnp.float32),
            ]),
        compiler_params=pltpu.CompilerParams(
            dimension_semantics=("parallel",),            # 2x on v7x megacore
            vmem_limit_bytes=_VMEM_LIMIT),
        cost_estimate=pl.CostEstimate(flops=int(flops), transcendentals=64,
                                      bytes_accessed=int(bytes_accessed)),
    )(xp3, mrow, *layer_args)


# ---------------------------------------------------------------------------
# fc1 stack: K-tiled Linear(8*H*W -> 512) + ReLU + Linear + ReLU + Linear
# ---------------------------------------------------------------------------
def fc_kernel(x_ref, w1_ref, b1_ref, w2_ref, b2_ref, w3_ref, b3_ref,
              o_ref, acc_ref):
    k = pl.program_id(0)

    @pl.when(k == 0)
    def _():
        acc_ref[...] = jnp.zeros_like(acc_ref)

    # Streamed bf16 K-tile of the (permuted, K-padded) first FC weight.
    acc_ref[...] += jnp.dot(x_ref[...].astype(jnp.bfloat16), w1_ref[...],
                            preferred_element_type=jnp.float32)

    @pl.when(k == pl.num_programs(0) - 1)
    def _():
        h1 = jnp.maximum(acc_ref[...] + b1_ref[...], 0.0)
        h2 = jnp.maximum(
            jnp.dot(h1.astype(jnp.bfloat16), w2_ref[...],
                    preferred_element_type=jnp.float32) + b2_ref[...], 0.0)
        o_ref[...] = jnp.dot(h2.astype(jnp.bfloat16), w3_ref[...],
                             preferred_element_type=jnp.float32) + b3_ref[...]


def _fc_k_tiling(k_total, n_cols=_FC_HP, elt_bytes=2,
                 max_tile_bytes=_FC_MAX_TILE_BYTES):
    """Byte-capped K tile (multiple of 128); K is zero-padded to steps*tk."""
    tk_cap = max(128, (max_tile_bytes // (n_cols * elt_bytes)) // 128 * 128)
    tk = min(tk_cap, pl.cdiv(k_total, 128) * 128)
    steps = pl.cdiv(k_total, tk)
    return tk, steps, tk * steps


def fc_stack(feat, fp):
    nt, k_total = feat.shape
    tk, steps, k_pad = _fc_k_tiling(k_total)
    assert fp["w1"].shape[0] == k_pad, "w1 K padding mismatch"
    if k_pad > k_total:
        feat = jnp.pad(feat, ((0, 0), (0, k_pad - k_total)))   # zero K rows

    flops = 2 * nt * (k_pad * _FC_HP + _FC_HP * _FC_HP + _FC_HP * _FC_OP)
    bytes_accessed = (4 * int(feat.size) +
                      2 * int(fp["w1"].size + fp["w2"].size + fp["w3"].size) +
                      4 * int(fp["b1"].size + fp["b2"].size + fp["b3"].size) +
                      4 * nt * _FC_OP)

    out = pl.pallas_call(
        fc_kernel,
        out_shape=jax.ShapeDtypeStruct((nt, _FC_OP), jnp.float32),
        grid_spec=pltpu.PrefetchScalarGridSpec(
            num_scalar_prefetch=0,
            grid=(steps,),
            in_specs=[
                pl.BlockSpec((nt, tk), lambda i: (0, i)),
                pl.BlockSpec((tk, _FC_HP), lambda i: (i, 0)),
                pl.BlockSpec((1, _FC_HP), lambda i: (0, 0)),
                pl.BlockSpec((_FC_HP, _FC_HP), lambda i: (0, 0)),
                pl.BlockSpec((1, _FC_HP), lambda i: (0, 0)),
                pl.BlockSpec((_FC_HP, _FC_OP), lambda i: (0, 0)),
                pl.BlockSpec((1, _FC_OP), lambda i: (0, 0)),
            ],
            out_specs=pl.BlockSpec((nt, _FC_OP), lambda i: (0, 0)),
            scratch_shapes=[pltpu.VMEM((nt, _FC_HP), jnp.float32)],
        ),
        compiler_params=pltpu.CompilerParams(
            dimension_semantics=("arbitrary",),           # K is a reduction axis
            vmem_limit_bytes=_VMEM_LIMIT),
        cost_estimate=pl.CostEstimate(flops=int(flops), transcendentals=0,
                                      bytes_accessed=int(bytes_accessed)),
    )(feat, fp["w1"], fp["b1"], fp["w2"], fp["b2"], fp["w3"], fp["b3"])
    return out[:, :_FC_O]            # drop zero padding (5 real logits)


# ---------------------------------------------------------------------------
# Forward
# ---------------------------------------------------------------------------
def siamese_forward(input1, input2, kparams):
    """forward(input1, input2) -> (output1, output2), each (B, 5)."""
    assert input1.shape == input2.shape
    b = input1.shape[0]
    h, w = input1.shape[2], input1.shape[3]
    x = jnp.concatenate([input1, input2], axis=0)     # one batched pass
    fmap = conv_chain(x, kparams["cnn"])              # (2, B*H, W*8) lane-dense
    feat = fmap.reshape(2 * b, h * w * 8)             # row-major flatten (y,x,c)
    out = fc_stack(feat, kparams["fc"])               # (2B, 5)
    return out[:b], out[b:]


# ---------------------------------------------------------------------------
# Parameters: synthetic PyTorch-layout weights + host re-layout for kernels
# ---------------------------------------------------------------------------
def init_params(h, w):
    key = jax.random.PRNGKey(42)
    keys = jax.random.split(key, 14)

    def conv_p(kw, kb, cin, cout):               # (kh, kw, cin, cout)
        return (jax.random.normal(kw, (3, 3, cin, cout), jnp.float32) * 0.1,
                jax.random.normal(kb, (cout,), jnp.float32) * 0.1)

    def lin_p(kw, kb, din, dout):                # (in, out); nn.Linear is (out,in)
        return (jax.random.normal(kw, (din, dout), jnp.float32) * 0.02,
                jax.random.normal(kb, (dout,), jnp.float32) * 0.02)

    p = {}
    p["cw1"], p["cb1"] = conv_p(keys[0], keys[1], 3, 4)
    p["cw2"], p["cb2"] = conv_p(keys[2], keys[3], 4, 6)
    p["cw3"], p["cb3"] = conv_p(keys[4], keys[5], 6, 8)
    p["cw4"], p["cb4"] = conv_p(keys[6], keys[7], 8, 8)
    fc_in = 8 * h * w                            # 8*100*100 in the original module
    p["fw1"], p["fb1"] = lin_p(keys[8], keys[9], fc_in, _FC_H)   # rows in (c,y,x) order
    p["fw2"], p["fb2"] = lin_p(keys[10], keys[11], _FC_H, _FC_H)
    p["fw3"], p["fb3"] = lin_p(keys[12], keys[13], _FC_H, _FC_O)
    return p


def _toeplitz_conv_weight(wk, w):
    """(3,3,cin,cout) kernel -> 3 banded bf16 (Wp*cin, W*cout) matrices matching
    the [interior | left pad | right pad] source lane layout."""
    wk = np.asarray(wk, np.float32)
    _, _, cin, cout = wk.shape
    wp = w + 2

    def src_blk(xi):          # padded x position -> source lane block
        if xi == 0:
            return w          # left pad block
        if xi == w + 1:
            return w + 1      # right pad block
        return xi - 1         # interior x = xi - 1

    t = np.zeros((3, wp * cin, w * cout), np.float32)
    for ky in range(3):
        for kx in range(3):
            for xo in range(w):
                sb = src_blk(xo + kx)
                t[ky, sb * cin:(sb + 1) * cin, xo * cout:(xo + 1) * cout] = wk[ky, kx]
    return jnp.asarray(t, jnp.bfloat16)


def _selectors(w, cout):
    """(W*cout, cout) channel-sum selector and its transpose (broadcast back)."""
    s = np.zeros((w * cout, cout), np.float32)
    for x in range(w):
        for c in range(cout):
            s[x * cout + c, c] = 1.0
    return jnp.asarray(s), jnp.asarray(s.T)


def prepare_params(p, h, w):
    layers = []
    for wk, bk in ((p["cw1"], p["cb1"]), (p["cw2"], p["cb2"]),
                   (p["cw3"], p["cb3"]), (p["cw4"], p["cb4"])):
        cout = wk.shape[-1]
        t = _toeplitz_conv_weight(wk, w)                       # bf16
        bias = jnp.asarray(np.tile(np.asarray(bk, np.float32), w).reshape(1, w * cout))
        sel, rsel = _selectors(w, cout)
        layers.append((t, bias, sel, rsel))

    # Fold the NHWC -> NCHW flatten transpose into fw1's rows, pad K to the tile
    # multiple and the FC dims (500 -> 512, 5 -> 128); weights stored as bf16.
    k_total = 8 * h * w
    _, _, k_pad = _fc_k_tiling(k_total)
    w1 = np.asarray(p["fw1"], np.float32).reshape(8, h, w, _FC_H)
    w1 = w1.transpose(1, 2, 0, 3).reshape(k_total, _FC_H)
    w1 = np.pad(w1, ((0, k_pad - k_total), (0, _FC_HP - _FC_H)))
    b1 = np.pad(np.asarray(p["fb1"], np.float32), (0, _FC_HP - _FC_H)).reshape(1, _FC_HP)
    w2 = np.pad(np.asarray(p["fw2"], np.float32),
                ((0, _FC_HP - _FC_H), (0, _FC_HP - _FC_H)))
    b2 = np.pad(np.asarray(p["fb2"], np.float32), (0, _FC_HP - _FC_H)).reshape(1, _FC_HP)
    w3 = np.pad(np.asarray(p["fw3"], np.float32),
                ((0, _FC_HP - _FC_H), (0, _FC_OP - _FC_O)))
    b3 = np.pad(np.asarray(p["fb3"], np.float32), (0, _FC_OP - _FC_O)).reshape(1, _FC_OP)

    fc = {"w1": jnp.asarray(w1, jnp.bfloat16), "b1": jnp.asarray(b1),
          "w2": jnp.asarray(w2, jnp.bfloat16), "b2": jnp.asarray(b2),
          "w3": jnp.asarray(w3, jnp.bfloat16), "b3": jnp.asarray(b3)}
    return {"cnn": {"layers": layers}, "fc": fc}


if __name__ == "__main__":
    B, C, H, W = 2, 3, 16, 16
    params = init_params(H, W)
    kparams = prepare_params(params, H, W)

    k1, k2 = jax.random.split(jax.random.PRNGKey(0))
    input1 = jax.random.normal(k1, (B, C, H, W), jnp.float32)
    input2 = jax.random.normal(k2, (B, C, H, W), jnp.float32)

    fwd = jax.jit(siamese_forward)
    out1, out2 = fwd(input1, input2, kparams)
    out1 = jax.block_until_ready(out1)
    out2 = jax.block_until_ready(out2)

    assert out1.shape == (B, 5) and out2.shape == (B, 5)
    assert jnp.all(jnp.isfinite(out1)) and jnp.all(jnp.isfinite(out2))
    print("KERNEL_OK")
</pallas_src>

<mosaic_0001>
module attributes {stable_mosaic.version = 11 : i64} {
  func.func @kernel(%arg0: i32, %arg1: memref<1x36x54xf32, #tpu.memory_space<vmem>>, %arg2: memref<1x34xf32, #tpu.memory_space<vmem>>, %arg3: memref<3x54x64xbf16, #tpu.memory_space<vmem>>, %arg4: memref<1x64xf32, #tpu.memory_space<vmem>>, %arg5: memref<64x4xf32, #tpu.memory_space<vmem>>, %arg6: memref<4x64xf32, #tpu.memory_space<vmem>>, %arg7: memref<3x72x96xbf16, #tpu.memory_space<vmem>>, %arg8: memref<1x96xf32, #tpu.memory_space<vmem>>, %arg9: memref<96x6xf32, #tpu.memory_space<vmem>>, %arg10: memref<6x96xf32, #tpu.memory_space<vmem>>, %arg11: memref<3x108x128xbf16, #tpu.memory_space<vmem>>, %arg12: memref<1x128xf32, #tpu.memory_space<vmem>>, %arg13: memref<128x8xf32, #tpu.memory_space<vmem>>, %arg14: memref<8x128xf32, #tpu.memory_space<vmem>>, %arg15: memref<3x144x128xbf16, #tpu.memory_space<vmem>>, %arg16: memref<1x128xf32, #tpu.memory_space<vmem>>, %arg17: memref<128x8xf32, #tpu.memory_space<vmem>>, %arg18: memref<8x128xf32, #tpu.memory_space<vmem>>, %arg19: memref<1x32x128xf32, #tpu.memory_space<vmem>>, %arg20: memref<36x72xf32, #tpu.memory_space<vmem>>, %arg21: memref<36x108xf32, #tpu.memory_space<vmem>>, %arg22: memref<36x144xf32, #tpu.memory_space<vmem>>) attributes {dimension_semantics = [#tpu.dimension_semantics<parallel>], iteration_bounds = array<i64: 2>, scalar_prefetch = 0 : i64, scratch_operands = 3 : i64, tpu.core_type = #tpu.core_type<tc>, window_params = [{transform_indices = @transform_0, window_bounds = array<i64: 1, 36, 54>}, {pipeline_mode = #tpu.pipeline_mode<synchronous>, transform_indices = @transform_1, window_bounds = array<i64: 1, 34>}, {pipeline_mode = #tpu.pipeline_mode<synchronous>, transform_indices = @transform_2, window_bounds = array<i64: 3, 54, 64>}, {pipeline_mode = #tpu.pipeline_mode<synchronous>, transform_indices = @transform_3, window_bounds = array<i64: 1, 64>}, {pipeline_mode = #tpu.pipeline_mode<synchronous>, transform_indices = @transform_4, window_bounds = array<i64: 64, 4>}, {pipeline_mode = #tpu.pipeline_mode<synchronous>, transform_indices = @transform_5, window_bounds = array<i64: 4, 64>}, {pipeline_mode = #tpu.pipeline_mode<synchronous>, transform_indices = @transform_6, window_bounds = array<i64: 3, 72, 96>}, {pipeline_mode = #tpu.pipeline_mode<synchronous>, transform_indices = @transform_7, window_bounds = array<i64: 1, 96>}, {pipeline_mode = #tpu.pipeline_mode<synchronous>, transform_indices = @transform_8, window_bounds = array<i64: 96, 6>}, {pipeline_mode = #tpu.pipeline_mode<synchronous>, transform_indices = @transform_9, window_bounds = array<i64: 6, 96>}, {pipeline_mode = #tpu.pipeline_mode<synchronous>, transform_indices = @transform_10, window_bounds = array<i64: 3, 108, 128>}, {pipeline_mode = #tpu.pipeline_mode<synchronous>, transform_indices = @transform_11, window_bounds = array<i64: 1, 128>}, {pipeline_mode = #tpu.pipeline_mode<synchronous>, transform_indices = @transform_12, window_bounds = array<i64: 128, 8>}, {pipeline_mode = #tpu.pipeline_mode<synchronous>, transform_indices = @transform_13, window_bounds = array<i64: 8, 128>}, {pipeline_mode = #tpu.pipeline_mode<synchronous>, transform_indices = @transform_14, window_bounds = array<i64: 3, 144, 128>}, {pipeline_mode = #tpu.pipeline_mode<synchronous>, transform_indices = @transform_15, window_bounds = array<i64: 1, 128>}, {pipeline_mode = #tpu.pipeline_mode<synchronous>, transform_indices = @transform_16, window_bounds = array<i64: 128, 8>}, {pipeline_mode = #tpu.pipeline_mode<synchronous>, transform_indices = @transform_17, window_bounds = array<i64: 8, 128>}, {transform_indices = @transform_18, window_bounds = array<i64: 1, 32, 128>}]} {
    %c0 = arith.constant 0 : index
    %c0_0 = arith.constant 0 : index
    %0 = vector.load %arg2[%c0, %c0_0] : memref<1x34xf32, #tpu.memory_space<vmem>>, vector<1x34xf32>
    %c0_1 = arith.constant 0 : index
    %c0_2 = arith.constant 0 : index
    %c0_3 = arith.constant 0 : index
    %1 = vector.load %arg1[%c0_1, %c0_2, %c0_3] : memref<1x36x54xf32, #tpu.memory_space<vmem>>, vector<1x34x54xf32>
    %2 = vector.shape_cast %1 : vector<1x34x54xf32> to vector<34x54xf32>
    %3 = arith.truncf %2 : vector<34x54xf32> to vector<34x54xbf16>
    %c0_4 = arith.constant 0 : index
    %c0_5 = arith.constant 0 : index
    %c0_6 = arith.constant 0 : index
    %4 = vector.load %arg3[%c0_4, %c0_5, %c0_6] : memref<3x54x64xbf16, #tpu.memory_space<vmem>>, vector<1x54x64xbf16>
    %5 = vector.shape_cast %4 : vector<1x54x64xbf16> to vector<54x64xbf16>
    %cst = arith.constant dense<0.000000e+00> : vector<34x64xf32>
    %6 = tpu.matmul %3, %5, %cst {dimension_numbers = #tpu.dot_dimension_numbers<[1], [0], [0], [1], [0, 0, 1, 1], [], []>} : vector<34x54xbf16>, vector<54x64xbf16>, vector<34x64xf32> -> vector<34x64xf32>
    %c0_7 = arith.constant 0 : index
    %c1 = arith.constant 1 : index
    %c0_8 = arith.constant 0 : index
    %7 = vector.load %arg1[%c0_7, %c1, %c0_8] : memref<1x36x54xf32, #tpu.memory_space<vmem>>, vector<1x34x54xf32>
    %8 = vector.shape_cast %7 : vector<1x34x54xf32> to vector<34x54xf32>
    %9 = arith.truncf %8 : vector<34x54xf32> to vector<34x54xbf16>
    %c1_9 = arith.constant 1 : index
    %c0_10 = arith.constant 0 : index
    %c0_11 = arith.constant 0 : index
    %10 = vector.load %arg3[%c1_9, %c0_10, %c0_11] : memref<3x54x64xbf16, #tpu.memory_space<vmem>>, vector<1x54x64xbf16>
    %11 = vector.shape_cast %10 : vector<1x54x64xbf16> to vector<54x64xbf16>
    %cst_12 = arith.constant dense<0.000000e+00> : vector<34x64xf32>
    %12 = tpu.matmul %9, %11, %cst_12 {dimension_numbers = #tpu.dot_dimension_numbers<[1], [0], [0], [1], [0, 0, 1, 1], [], []>} : vector<34x54xbf16>, vector<54x64xbf16>, vector<34x64xf32> -> vector<34x64xf32>
    %13 = arith.addf %6, %12 : vector<34x64xf32>
    %c0_13 = arith.constant 0 : index
    %c2 = arith.constant 2 : index
    %c0_14 = arith.constant 0 : index
    %14 = vector.load %arg1[%c0_13, %c2, %c0_14] : memref<1x36x54xf32, #tpu.memory_space<vmem>>, vector<1x34x54xf32>
    %15 = vector.shape_cast %14 : vector<1x34x54xf32> to vector<34x54xf32>
    %16 = arith.truncf %15 : vector<34x54xf32> to vector<34x54xbf16>
    %c2_15 = arith.constant 2 : index
    %c0_16 = arith.constant 0 : index
    %c0_17 = arith.constant 0 : index
    %17 = vector.load %arg3[%c2_15, %c0_16, %c0_17] : memref<3x54x64xbf16, #tpu.memory_space<vmem>>, vector<1x54x64xbf16>
    %18 = vector.shape_cast %17 : vector<1x54x64xbf16> to vector<54x64xbf16>
    %cst_18 = arith.constant dense<0.000000e+00> : vector<34x64xf32>
    %19 = tpu.matmul %16, %18, %cst_18 {dimension_numbers = #tpu.dot_dimension_numbers<[1], [0], [0], [1], [0, 0, 1, 1], [], []>} : vector<34x54xbf16>, vector<54x64xbf16>, vector<34x64xf32> -> vector<34x64xf32>
    %20 = arith.addf %13, %19 : vector<34x64xf32>
    %c0_19 = arith.constant 0 : index
    %c0_20 = arith.constant 0 : index
    %21 = vector.load %arg4[%c0_19, %c0_20] : memref<1x64xf32, #tpu.memory_space<vmem>>, vector<1x64xf32>
    %22 = vector.broadcast %21 : vector<1x64xf32> to vector<34x64xf32>
    %23 = arith.addf %20, %22 : vector<34x64xf32>
    %cst_21 = arith.constant 0.000000e+00 : f32
    %24 = vector.broadcast %cst_21 : f32 to vector<34x64xf32>
    %25 = arith.maximumf %23, %24 : vector<34x64xf32>
    %cst_22 = arith.constant dense<0.000000e+00> : vector<1x64xf32>
    %26 = tpu.matmul %0, %25, %cst_22 {dimension_numbers = #tpu.dot_dimension_numbers<[1], [0], [0], [1], [0, 0, 1, 1], [], []>} : vector<1x34xf32>, vector<34x64xf32>, vector<1x64xf32> -> vector<1x64xf32>
    %c0_23 = arith.constant 0 : index
    %c0_24 = arith.constant 0 : index
    %27 = vector.load %arg5[%c0_23, %c0_24] : memref<64x4xf32, #tpu.memory_space<vmem>>, vector<64x4xf32>
    %cst_25 = arith.constant dense<0.000000e+00> : vector<1x4xf32>
    %28 = tpu.matmul %26, %27, %cst_25 {dimension_numbers = #tpu.dot_dimension_numbers<[1], [0], [0], [1], [0, 0, 1, 1], [], []>} : vector<1x64xf32>, vector<64x4xf32>, vector<1x4xf32> -> vector<1x4xf32>
    %cst_26 = arith.constant 5.120000e+02 : f32
    %29 = vector.broadcast %cst_26 : f32 to vector<1x4xf32>
    %30 = arith.divf %28, %29 : vector<1x4xf32>
    %c0_27 = arith.constant 0 : index
    %c0_28 = arith.constant 0 : index
    %31 = vector.load %arg6[%c0_27, %c0_28] : memref<4x64xf32, #tpu.memory_space<vmem>>, vector<4x64xf32>
    %cst_29 = arith.constant dense<0.000000e+00> : vector<1x64xf32>
    %32 = tpu.matmul %30, %31, %cst_29 {dimension_numbers = #tpu.dot_dimension_numbers<[1], [0], [0], [1], [0, 0, 1, 1], [], []>} : vector<1x4xf32>, vector<4x64xf32>, vector<1x64xf32> -> vector<1x64xf32>
    %33 = vector.broadcast %32 : vector<1x64xf32> to vector<34x64xf32>
    %34 = arith.subf %25, %33 : vector<34x64xf32>
    %35 = arith.mulf %34, %34 : vector<34x64xf32>
    %cst_30 = arith.constant dense<0.000000e+00> : vector<1x64xf32>
    %36 = tpu.matmul %0, %35, %cst_30 {dimension_numbers = #tpu.dot_dimension_numbers<[1], [0], [0], [1], [0, 0, 1, 1], [], []>} : vector<1x34xf32>, vector<34x64xf32>, vector<1x64xf32> -> vector<1x64xf32>
    %c0_31 = arith.constant 0 : index
    %c0_32 = arith.constant 0 : index
    %37 = vector.load %arg5[%c0_31, %c0_32] : memref<64x4xf32, #tpu.memory_space<vmem>>, vector<64x4xf32>
    %cst_33 = arith.constant dense<0.000000e+00> : vector<1x4xf32>
    %38 = tpu.matmul %36, %37, %cst_33 {dimension_numbers = #tpu.dot_dimension_numbers<[1], [0], [0], [1], [0, 0, 1, 1], [], []>} : vector<1x64xf32>, vector<64x4xf32>, vector<1x4xf32> -> vector<1x4xf32>
    %cst_34 = arith.constant 5.120000e+02 : f32
    %39 = vector.broadcast %cst_34 : f32 to vector<1x4xf32>
    %40 = arith.divf %38, %39 : vector<1x4xf32>
    %cst_35 = arith.constant 9.99999974E-6 : f32
    %41 = vector.broadcast %cst_35 : f32 to vector<1x4xf32>
    %42 = arith.addf %40, %41 : vector<1x4xf32>
    %43 = math.rsqrt %42 : vector<1x4xf32>
    %c0_36 = arith.constant 0 : index
    %c0_37 = arith.constant 0 : index
    %44 = vector.load %arg6[%c0_36, %c0_37] : memref<4x64xf32, #tpu.memory_space<vmem>>, vector<4x64xf32>
    %cst_38 = arith.constant dense<0.000000e+00> : vector<1x64xf32>
    %45 = tpu.matmul %43, %44, %cst_38 {dimension_numbers = #tpu.dot_dimension_numbers<[1], [0], [0], [1], [0, 0, 1, 1], [], []>} : vector<1x4xf32>, vector<4x64xf32>, vector<1x64xf32> -> vector<1x64xf32>
    %46 = vector.broadcast %45 : vector<1x64xf32> to vector<34x64xf32>
    %47 = arith.mulf %34, %46 : vector<34x64xf32>
    %c1_39 = arith.constant 1 : index
    %c0_40 = arith.constant 0 : index
    %48 = vector.load %arg20[%c1_39, %c0_40] : memref<36x72xf32, #tpu.memory_space<vmem>>, vector<34x64xf32>
    tpu.vector_store %arg20[%c1_39, %c0_40], %47 {strides = array<i32>} : memref<36x72xf32, #tpu.memory_space<vmem>>, vector<34x64xf32>,
    %49 = vector.extract_strided_slice %47 {offsets = [1, 0], sizes = [1, 64], strides = [1, 1]} : vector<34x64xf32> to vector<1x64xf32>
    %c0_41 = arith.constant 0 : index
    %c0_42 = arith.constant 0 : index
    %50 = vector.load %arg20[%c0_41, %c0_42] : memref<36x72xf32, #tpu.memory_space<vmem>>, vector<1x64xf32>
    tpu.vector_store %arg20[%c0_41, %c0_42], %49 {strides = array<i32>} : memref<36x72xf32, #tpu.memory_space<vmem>>, vector<1x64xf32>,
    %51 = vector.extract_strided_slice %47 {offsets = [14, 0], sizes = [1, 64], strides = [1, 1]} : vector<34x64xf32> to vector<1x64xf32>
    %c17 = arith.constant 17 : index
    %c0_43 = arith.constant 0 : index
    %52 = vector.load %arg20[%c17, %c0_43] : memref<36x72xf32, #tpu.memory_space<vmem>>, vector<1x64xf32>
    tpu.vector_store %arg20[%c17, %c0_43], %51 {strides = array<i32>} : memref<36x72xf32, #tpu.memory_space<vmem>>, vector<1x64xf32>,
    %53 = vector.extract_strided_slice %47 {offsets = [19, 0], sizes = [1, 64], strides = [1, 1]} : vector<34x64xf32> to vector<1x64xf32>
    %c18 = arith.constant 18 : index
    %c0_44 = arith.constant 0 : index
    %54 = vector.load %arg20[%c18, %c0_44] : memref<36x72xf32, #tpu.memory_space<vmem>>, vector<1x64xf32>
    tpu.vector_store %arg20[%c18, %c0_44], %53 {strides = array<i32>} : memref<36x72xf32, #tpu.memory_space<vmem>>, vector<1x64xf32>,
    %55 = vector.extract_strided_slice %47 {offsets = [32, 0], sizes = [1, 64], strides = [1, 1]} : vector<34x64xf32> to vector<1x64xf32>
    %c35 = arith.constant 35 : index
    %c0_45 = arith.constant 0 : index
    %56 = vector.load %arg20[%c35, %c0_45] : memref<36x72xf32, #tpu.memory_space<vmem>>, vector<1x64xf32>
    tpu.vector_store %arg20[%c35, %c0_45], %55 {strides = array<i32>} : memref<36x72xf32, #tpu.memory_space<vmem>>, vector<1x64xf32>,
    %c0_46 = arith.constant 0 : index
    %c4 = arith.constant 4 : index
    %57 = vector.load %arg20[%c0_46, %c4] : memref<36x72xf32, #tpu.memory_space<vmem>>, vector<36x4xf32>
    %c0_47 = arith.constant 0 : index
    %c64 = arith.constant 64 : index
    %58 = vector.load %arg20[%c0_47, %c64] : memref<36x72xf32, #tpu.memory_space<vmem>>, vector<36x4xf32>
    tpu.vector_store %arg20[%c0_47, %c64], %57 {strides = array<i32>} : memref<36x72xf32, #tpu.memory_space<vmem>>, vector<36x4xf32>,
    %c0_48 = arith.constant 0 : index
    %c56 = arith.constant 56 : index
    %59 = vector.load %arg20[%c0_48, %c56] : memref<36x72xf32, #tpu.memory_space<vmem>>, vector<36x4xf32>
    %c0_49 = arith.constant 0 : index
    %c68 = arith.constant 68 : index
    %60 = vector.load %arg20[%c0_49, %c68] : memref<36x72xf32, #tpu.memory_space<vmem>>, vector<36x4xf32>
    tpu.vector_store %arg20[%c0_49, %c68], %59 {strides = array<i32>} : memref<36x72xf32, #tpu.memory_space<vmem>>, vector<36x4xf32>,
    %c0_50 = arith.constant 0 : index
    %c0_51 = arith.constant 0 : index
    %61 = vector.load %arg20[%c0_50, %c0_51] : memref<36x72xf32, #tpu.memory_space<vmem>>, vector<34x72xf32>
    %62 = arith.truncf %61 : vector<34x72xf32> to vector<34x72xbf16>
    %c0_52 = arith.constant 0 : index
    %c0_53 = arith.constant 0 : index
    %c0_54 = arith.constant 0 : index
    %63 = vector.load %arg7[%c0_52, %c0_53, %c0_54] : memref<3x72x96xbf16, #tpu.memory_space<vmem>>, vector<1x72x96xbf16>
    %64 = vector.shape_cast %63 : vector<1x72x96xbf16> to vector<72x96xbf16>
    %cst_55 = arith.constant dense<0.000000e+00> : vector<34x96xf32>
    %65 = tpu.matmul %62, %64, %cst_55 {dimension_numbers = #tpu.dot_dimension_numbers<[1], [0], [0], [1], [0, 0, 1, 1], [], []>} : vector<34x72xbf16>, vector<72x96xbf16>, vector<34x96xf32> -> vector<34x96xf32>
    %c1_56 = arith.constant 1 : index
    %c0_57 = arith.constant 0 : index
    %66 = vector.load %arg20[%c1_56, %c0_57] : memref<36x72xf32, #tpu.memory_space<vmem>>, vector<34x72xf32>
    %67 = arith.truncf %66 : vector<34x72xf32> to vector<34x72xbf16>
    %c1_58 = arith.constant 1 : index
    %c0_59 = arith.constant 0 : index
    %c0_60 = arith.constant 0 : index
    %68 = vector.load %arg7[%c1_58, %c0_59, %c0_60] : memref<3x72x96xbf16, #tpu.memory_space<vmem>>, vector<1x72x96xbf16>
    %69 = vector.shape_cast %68 : vector<1x72x96xbf16> to vector<72x96xbf16>
    %cst_61 = arith.constant dense<0.000000e+00> : vector<34x96xf32>
    %70 = tpu.matmul %67, %69, %cst_61 {dimension_numbers = #tpu.dot_dimension_numbers<[1], [0], [0], [1], [0, 0, 1, 1], [], []>} : vector<34x72xbf16>, vector<72x96xbf16>, vector<34x96xf32> -> vector<34x96xf32>
    %71 = arith.addf %65, %70 : vector<34x96xf32>
    %c2_62 = arith.constant 2 : index
    %c0_63 = arith.constant 0 : index
    %72 = vector.load %arg20[%c2_62, %c0_63] : memref<36x72xf32, #tpu.memory_space<vmem>>, vector<34x72xf32>
    %73 = arith.truncf %72 : vector<34x72xf32> to vector<34x72xbf16>
    %c2_64 = arith.constant 2 : index
    %c0_65 = arith.constant 0 : index
    %c0_66 = arith.constant 0 : index
    %74 = vector.load %arg7[%c2_64, %c0_65, %c0_66] : memref<3x72x96xbf16, #tpu.memory_space<vmem>>, vector<1x72x96xbf16>
    %75 = vector.shape_cast %74 : vector<1x72x96xbf16> to vector<72x96xbf16>
    %cst_67 = arith.constant dense<0.000000e+00> : vector<34x96xf32>
    %76 = tpu.matmul %73, %75, %cst_67 {dimension_numbers = #tpu.dot_dimension_numbers<[1], [0], [0], [1], [0, 0, 1, 1], [], []>} : vector<34x72xbf16>, vector<72x96xbf16>, vector<34x96xf32> -> vector<34x96xf32>
    %77 = arith.addf %71, %76 : vector<34x96xf32>
    %c0_68 = arith.constant 0 : index
    %c0_69 = arith.constant 0 : index
    %78 = vector.load %arg8[%c0_68, %c0_69] : memref<1x96xf32, #tpu.memory_space<vmem>>, vector<1x96xf32>
    %79 = vector.broadcast %78 : vector<1x96xf32> to vector<34x96xf32>
    %80 = arith.addf %77, %79 : vector<34x96xf32>
    %cst_70 = arith.constant 0.000000e+00 : f32
    %81 = vector.broadcast %cst_70 : f32 to vector<34x96xf32>
    %82 = arith.maximumf %80, %81 : vector<34x96xf32>
    %cst_71 = arith.constant dense<0.000000e+00> : vector<1x96xf32>
    %83 = tpu.matmul %0, %82, %cst_71 {dimension_numbers = #tpu.dot_dimension_numbers<[1], [0], [0], [1], [0, 0, 1, 1], [], []>} : vector<1x34xf32>, vector<34x96xf32>, vector<1x96xf32> -> vector<1x96xf32>
    %c0_72 = arith.constant 0 : index
    %c0_73 = arith.constant 0 : index
    %84 = vector.load %arg9[%c0_72, %c0_73] : memref<96x6xf32, #tpu.memory_space<vmem>>, vector<96x6xf32>
    %cst_74 = arith.constant dense<0.000000e+00> : vector<1x6xf32>
    %85 = tpu.matmul %83, %84, %cst_74 {dimension_numbers = #tpu.dot_dimension_numbers<[1], [0], [0], [1], [0, 0, 1, 1], [], []>} : vector<1x96xf32>, vector<96x6xf32>, vector<1x6xf32> -> vector<1x6xf32>
    %cst_75 = arith.constant 5.120000e+02 : f32
    %86 = vector.broadcast %cst_75 : f32 to vector<1x6xf32>
    %87 = arith.divf %85, %86 : vector<1x6xf32>
    %c0_76 = arith.constant 0 : index
    %c0_77 = arith.constant 0 : index
    %88 = vector.load %arg10[%c0_76, %c0_77] : memref<6x96xf32, #tpu.memory_space<vmem>>, vector<6x96xf32>
    %cst_78 = arith.constant dense<0.000000e+00> : vector<1x96xf32>
    %89 = tpu.matmul %87, %88, %cst_78 {dimension_numbers = #tpu.dot_dimension_numbers<[1], [0], [0], [1], [0, 0, 1, 1], [], []>} : vector<1x6xf32>, vector<6x96xf32>, vector<1x96xf32> -> vector<1x96xf32>
    %90 = vector.broadcast %89 : vector<1x96xf32> to vector<34x96xf32>
    %91 = arith.subf %82, %90 : vector<34x96xf32>
    %92 = arith.mulf %91, %91 : vector<34x96xf32>
    %cst_79 = arith.constant dense<0.000000e+00> : vector<1x96xf32>
    %93 = tpu.matmul %0, %92, %cst_79 {dimension_numbers = #tpu.dot_dimension_numbers<[1], [0], [0], [1], [0, 0, 1, 1], [], []>} : vector<1x34xf32>, vector<34x96xf32>, vector<1x96xf32> -> vector<1x96xf32>
    %c0_80 = arith.constant 0 : index
    %c0_81 = arith.constant 0 : index
    %94 = vector.load %arg9[%c0_80, %c0_81] : memref<96x6xf32, #tpu.memory_space<vmem>>, vector<96x6xf32>
    %cst_82 = arith.constant dense<0.000000e+00> : vector<1x6xf32>
    %95 = tpu.matmul %93, %94, %cst_82 {dimension_numbers = #tpu.dot_dimension_numbers<[1], [0], [0], [1], [0, 0, 1, 1], [], []>} : vector<1x96xf32>, vector<96x6xf32>, vector<1x6xf32> -> vector<1x6xf32>
    %cst_83 = arith.constant 5.120000e+02 : f32
    %96 = vector.broadcast %cst_83 : f32 to vector<1x6xf32>
    %97 = arith.divf %95, %96 : vector<1x6xf32>
    %cst_84 = arith.constant 9.99999974E-6 : f32
    %98 = vector.broadcast %cst_84 : f32 to vector<1x6xf32>
    %99 = arith.addf %97, %98 : vector<1x6xf32>
    %100 = math.rsqrt %99 : vector<1x6xf32>
    %c0_85 = arith.constant 0 : index
    %c0_86 = arith.constant 0 : index
    %101 = vector.load %arg10[%c0_85, %c0_86] : memref<6x96xf32, #tpu.memory_space<vmem>>, vector<6x96xf32>
    %cst_87 = arith.constant dense<0.000000e+00> : vector<1x96xf32>
    %102 = tpu.matmul %100, %101, %cst_87 {dimension_numbers = #tpu.dot_dimension_numbers<[1], [0], [0], [1], [0, 0, 1, 1], [], []>} : vector<1x6xf32>, vector<6x96xf32>, vector<1x96xf32> -> vector<1x96xf32>
    %103 = vector.broadcast %102 : vector<1x96xf32> to vector<34x96xf32>
    %104 = arith.mulf %91, %103 : vector<34x96xf32>
    %c1_88 = arith.constant 1 : index
    %c0_89 = arith.constant 0 : index
    %105 = vector.load %arg21[%c1_88, %c0_89] : memref<36x108xf32, #tpu.memory_space<vmem>>, vector<34x96xf32>
    tpu.vector_store %arg21[%c1_88, %c0_89], %104 {strides = array<i32>} : memref<36x108xf32, #tpu.memory_space<vmem>>, vector<34x96xf32>,
    %106 = vector.extract_strided_slice %104 {offsets = [1, 0], sizes = [1, 96], strides = [1, 1]} : vector<34x96xf32> to vector<1x96xf32>
    %c0_90 = arith.constant 0 : index
    %c0_91 = arith.constant 0 : index
    %107 = vector.load %arg21[%c0_90, %c0_91] : memref<36x108xf32, #tpu.memory_space<vmem>>, vector<1x96xf32>
    tpu.vector_store %arg21[%c0_90, %c0_91], %106 {strides = array<i32>} : memref<36x108xf32, #tpu.memory_space<vmem>>, vector<1x96xf32>,
    %108 = vector.extract_strided_slice %104 {offsets = [14, 0], sizes = [1, 96], strides = [1, 1]} : vector<34x96xf32> to vector<1x96xf32>
    %c17_92 = arith.constant 17 : index
    %c0_93 = arith.constant 0 : index
    %109 = vector.load %arg21[%c17_92, %c0_93] : memref<36x108xf32, #tpu.memory_space<vmem>>, vector<1x96xf32>
    tpu.vector_store %arg21[%c17_92, %c0_93], %108 {strides = array<i32>} : memref<36x108xf32, #tpu.memory_space<vmem>>, vector<1x96xf32>,
    %110 = vector.extract_strided_slice %104 {offsets = [19, 0], sizes = [1, 96], strides = [1, 1]} : vector<34x96xf32> to vector<1x96xf32>
    %c18_94 = arith.constant 18 : index
    %c0_95 = arith.constant 0 : index
    %111 = vector.load %arg21[%c18_94, %c0_95] : memref<36x108xf32, #tpu.memory_space<vmem>>, vector<1x96xf32>
    tpu.vector_store %arg21[%c18_94, %c0_95], %110 {strides = array<i32>} : memref<36x108xf32, #tpu.memory_space<vmem>>, vector<1x96xf32>,
    %112 = vector.extract_strided_slice %104 {offsets = [32, 0], sizes = [1, 96], strides = [1, 1]} : vector<34x96xf32> to vector<1x96xf32>
    %c35_96 = arith.constant 35 : index
    %c0_97 = arith.constant 0 : index
    %113 = vector.load %arg21[%c35_96, %c0_97] : memref<36x108xf32, #tpu.memory_space<vmem>>, vector<1x96xf32>
    tpu.vector_store %arg21[%c35_96, %c0_97], %112 {strides = array<i32>} : memref<36x108xf32, #tpu.memory_space<vmem>>, vector<1x96xf32>,
    %c0_98 = arith.constant 0 : index
    %c6 = arith.constant 6 : index
    %114 = vector.load %arg21[%c0_98, %c6] : memref<36x108xf32, #tpu.memory_space<vmem>>, vector<36x6xf32>
    %c0_99 = arith.constant 0 : index
    %c96 = arith.constant 96 : index
    %115 = vector.load %arg21[%c0_99, %c96] : memref<36x108xf32, #tpu.memory_space<vmem>>, vector<36x6xf32>
    tpu.vector_store %arg21[%c0_99, %c96], %114 {strides = array<i32>} : memref<36x108xf32, #tpu.memory_space<vmem>>, vector<36x6xf32>,
    %c0_100 = arith.constant 0 : index
    %c84 = arith.constant 84 : index
    %116 = vector.load %arg21[%c0_100, %c84] : memref<36x108xf32, #tpu.memory_space<vmem>>, vector<36x6xf32>
    %c0_101 = arith.constant 0 : index
    %c102 = arith.constant 102 : index
    %117 = vector.load %arg21[%c0_101, %c102] : memref<36x108xf32, #tpu.memory_space<vmem>>, vector<36x6xf32>
    tpu.vector_store %arg21[%c0_101, %c102], %116 {strides = array<i32>} : memref<36x108xf32, #tpu.memory_space<vmem>>, vector<36x6xf32>,
    %c0_102 = arith.constant 0 : index
    %c0_103 = arith.constant 0 : index
    %118 = vector.load %arg21[%c0_102, %c0_103] : memref<36x108xf32, #tpu.memory_space<vmem>>, vector<34x108xf32>
    %119 = arith.truncf %118 : vector<34x108xf32> to vector<34x108xbf16>
    %c0_104 = arith.constant 0 : index
    %c0_105 = arith.constant 0 : index
    %c0_106 = arith.constant 0 : index
    %120 = vector.load %arg11[%c0_104, %c0_105, %c0_106] : memref<3x108x128xbf16, #tpu.memory_space<vmem>>, vector<1x108x128xbf16>
    %121 = vector.shape_cast %120 : vector<1x108x128xbf16> to vector<108x128xbf16>
    %cst_107 = arith.constant dense<0.000000e+00> : vector<34x128xf32>
    %122 = tpu.matmul %119, %121, %cst_107 {dimension_numbers = #tpu.dot_dimension_numbers<[1], [0], [0], [1], [0, 0, 1, 1], [], []>} : vector<34x108xbf16>, vector<108x128xbf16>, vector<34x128xf32> -> vector<34x128xf32>
    %c1_108 = arith.constant 1 : index
    %c0_109 = arith.constant 0 : index
    %123 = vector.load %arg21[%c1_108, %c0_109] : memref<36x108xf32, #tpu.memory_space<vmem>>, vector<34x108xf32>
    %124 = arith.truncf %123 : vector<34x108xf32> to vector<34x108xbf16>
    %c1_110 = arith.constant 1 : index
    %c0_111 = arith.constant 0 : index
    %c0_112 = arith.constant 0 : index
    %125 = vector.load %arg11[%c1_110, %c0_111, %c0_112] : memref<3x108x128xbf16, #tpu.memory_space<vmem>>, vector<1x108x128xbf16>
    %126 = vector.shape_cast %125 : vector<1x108x128xbf16> to vector<108x128xbf16>
    %cst_113 = arith.constant dense<0.000000e+00> : vector<34x128xf32>
    %127 = tpu.matmul %124, %126, %cst_113 {dimension_numbers = #tpu.dot_dimension_numbers<[1], [0], [0], [1], [0, 0, 1, 1], [], []>} : vector<34x108xbf16>, vector<108x128xbf16>, vector<34x128xf32> -> vector<34x128xf32>
    %128 = arith.addf %122, %127 : vector<34x128xf32>
    %c2_114 = arith.constant 2 : index
    %c0_115 = arith.constant 0 : index
    %129 = vector.load %arg21[%c2_114, %c0_115] : memref<36x108xf32, #tpu.memory_space<vmem>>, vector<34x108xf32>
    %130 = arith.truncf %129 : vector<34x108xf32> to vector<34x108xbf16>
    %c2_116 = arith.constant 2 : index
    %c0_117 = arith.constant 0 : index
    %c0_118 = arith.constant 0 : index
    %131 = vector.load %arg11[%c2_116, %c0_117, %c0_118] : memref<3x108x128xbf16, #tpu.memory_space<vmem>>, vector<1x108x128xbf16>
    %132 = vector.shape_cast %131 : vector<1x108x128xbf16> to vector<108x128xbf16>
    %cst_119 = arith.constant dense<0.000000e+00> : vector<34x128xf32>
    %133 = tpu.matmul %130, %132, %cst_119 {dimension_numbers = #tpu.dot_dimension_numbers<[1], [0], [0], [1], [0, 0, 1, 1], [], []>} : vector<34x108xbf16>, vector<108x128xbf16>, vector<34x128xf32> -> vector<34x128xf32>
    %134 = arith.addf %128, %133 : vector<34x128xf32>
    %c0_120 = arith.constant 0 : index
    %c0_121 = arith.constant 0 : index
    %135 = vector.load %arg12[%c0_120, %c0_121] : memref<1x128xf32, #tpu.memory_space<vmem>>, vector<1x128xf32>
    %136 = vector.broadcast %135 : vector<1x128xf32> to vector<34x128xf32>
    %137 = arith.addf %134, %136 : vector<34x128xf32>
    %cst_122 = arith.constant dense<0.000000e+00> : vector<1x128xf32>
    %138 = tpu.matmul %0, %137, %cst_122 {dimension_numbers = #tpu.dot_dimension_numbers<[1], [0], [0], [1], [0, 0, 1, 1], [], []>} : vector<1x34xf32>, vector<34x128xf32>, vector<1x128xf32> -> vector<1x128xf32>
    %c0_123 = arith.constant 0 : index
    %c0_124 = arith.constant 0 : index
    %139 = vector.load %arg13[%c0_123, %c0_124] : memref<128x8xf32, #tpu.memory_space<vmem>>, vector<128x8xf32>
    %cst_125 = arith.constant dense<0.000000e+00> : vector<1x8xf32>
    %140 = tpu.matmul %138, %139, %cst_125 {dimension_numbers = #tpu.dot_dimension_numbers<[1], [0], [0], [1], [0, 0, 1, 1], [], []>} : vector<1x128xf32>, vector<128x8xf32>, vector<1x8xf32> -> vector<1x8xf32>
    %cst_126 = arith.constant 5.120000e+02 : f32
    %141 = vector.broadcast %cst_126 : f32 to vector<1x8xf32>
    %142 = arith.divf %140, %141 : vector<1x8xf32>
    %c0_127 = arith.constant 0 : index
    %c0_128 = arith.constant 0 : index
    %143 = vector.load %arg14[%c0_127, %c0_128] : memref<8x128xf32, #tpu.memory_space<vmem>>, vector<8x128xf32>
    %cst_129 = arith.constant dense<0.000000e+00> : vector<1x128xf32>
    %144 = tpu.matmul %142, %143, %cst_129 {dimension_numbers = #tpu.dot_dimension_numbers<[1], [0], [0], [1], [0, 0, 1, 1], [], []>} : vector<1x8xf32>, vector<8x128xf32>, vector<1x128xf32> -> vector<1x128xf32>
    %145 = vector.broadcast %144 : vector<1x128xf32> to vector<34x128xf32>
    %146 = arith.subf %137, %145 : vector<34x128xf32>
    %147 = arith.mulf %146, %146 : vector<34x128xf32>
    %cst_130 = arith.constant dense<0.000000e+00> : vector<1x128xf32>
    %148 = tpu.matmul %0, %147, %cst_130 {dimension_numbers = #tpu.dot_dimension_numbers<[1], [0], [0], [1], [0, 0, 1, 1], [], []>} : vector<1x34xf32>, vector<34x128xf32>, vector<1x128xf32> -> vector<1x128xf32>
    %c0_131 = arith.constant 0 : index
    %c0_132 = arith.constant 0 : index
    %149 = vector.load %arg13[%c0_131, %c0_132] : memref<128x8xf32, #tpu.memory_space<vmem>>, vector<128x8xf32>
    %cst_133 = arith.constant dense<0.000000e+00> : vector<1x8xf32>
    %150 = tpu.matmul %148, %149, %cst_133 {dimension_numbers = #tpu.dot_dimension_numbers<[1], [0], [0], [1], [0, 0, 1, 1], [], []>} : vector<1x128xf32>, vector<128x8xf32>, vector<1x8xf32> -> vector<1x8xf32>
    %cst_134 = arith.constant 5.120000e+02 : f32
    %151 = vector.broadcast %cst_134 : f32 to vector<1x8xf32>
    %152 = arith.divf %150, %151 : vector<1x8xf32>
    %cst_135 = arith.constant 9.99999974E-6 : f32
    %153 = vector.broadcast %cst_135 : f32 to vector<1x8xf32>
    %154 = arith.addf %152, %153 : vector<1x8xf32>
    %155 = math.rsqrt %154 : vector<1x8xf32>
    %c0_136 = arith.constant 0 : index
    %c0_137 = arith.constant 0 : index
    %156 = vector.load %arg14[%c0_136, %c0_137] : memref<8x128xf32, #tpu.memory_space<vmem>>, vector<8x128xf32>
    %cst_138 = arith.constant dense<0.000000e+00> : vector<1x128xf32>
    %157 = tpu.matmul %155, %156, %cst_138 {dimension_numbers = #tpu.dot_dimension_numbers<[1], [0], [0], [1], [0, 0, 1, 1], [], []>} : vector<1x8xf32>, vector<8x128xf32>, vector<1x128xf32> -> vector<1x128xf32>
    %158 = vector.broadcast %157 : vector<1x128xf32> to vector<34x128xf32>
    %159 = arith.mulf %146, %158 : vector<34x128xf32>
    %cst_139 = arith.constant 0.000000e+00 : f32
    %160 = vector.broadcast %cst_139 : f32 to vector<34x128xf32>
    %161 = arith.maximumf %159, %160 : vector<34x128xf32>
    %c1_140 = arith.constant 1 : index
    %c0_141 = arith.constant 0 : index
    %162 = vector.load %arg22[%c1_140, %c0_141] : memref<36x144xf32, #tpu.memory_space<vmem>>, vector<34x128xf32>
    tpu.vector_store %arg22[%c1_140, %c0_141], %161 {strides = array<i32>} : memref<36x144xf32, #tpu.memory_space<vmem>>, vector<34x128xf32>,
    %163 = vector.extract_strided_slice %161 {offsets = [1, 0], sizes = [1, 128], strides = [1, 1]} : vector<34x128xf32> to vector<1x128xf32>
    %c0_142 = arith.constant 0 : index
    %c0_143 = arith.constant 0 : index
    %164 = vector.load %arg22[%c0_142, %c0_143] : memref<36x144xf32, #tpu.memory_space<vmem>>, vector<1x128xf32>
    tpu.vector_store %arg22[%c0_142, %c0_143], %163 {strides = array<i32>} : memref<36x144xf32, #tpu.memory_space<vmem>>, vector<1x128xf32>,
    %165 = vector.extract_strided_slice %161 {offsets = [14, 0], sizes = [1, 128], strides = [1, 1]} : vector<34x128xf32> to vector<1x128xf32>
    %c17_144 = arith.constant 17 : index
    %c0_145 = arith.constant 0 : index
    %166 = vector.load %arg22[%c17_144, %c0_145] : memref<36x144xf32, #tpu.memory_space<vmem>>, vector<1x128xf32>
    tpu.vector_store %arg22[%c17_144, %c0_145], %165 {strides = array<i32>} : memref<36x144xf32, #tpu.memory_space<vmem>>, vector<1x128xf32>,
    %167 = vector.extract_strided_slice %161 {offsets = [19, 0], sizes = [1, 128], strides = [1, 1]} : vector<34x128xf32> to vector<1x128xf32>
    %c18_146 = arith.constant 18 : index
    %c0_147 = arith.constant 0 : index
    %168 = vector.load %arg22[%c18_146, %c0_147] : memref<36x144xf32, #tpu.memory_space<vmem>>, vector<1x128xf32>
    tpu.vector_store %arg22[%c18_146, %c0_147], %167 {strides = array<i32>} : memref<36x144xf32, #tpu.memory_space<vmem>>, vector<1x128xf32>,
    %169 = vector.extract_strided_slice %161 {offsets = [32, 0], sizes = [1, 128], strides = [1, 1]} : vector<34x128xf32> to vector<1x128xf32>
    %c35_148 = arith.constant 35 : index
    %c0_149 = arith.constant 0 : index
    %170 = vector.load %arg22[%c35_148, %c0_149] : memref<36x144xf32, #tpu.memory_space<vmem>>, vector<1x128xf32>
    tpu.vector_store %arg22[%c35_148, %c0_149], %169 {strides = array<i32>} : memref<36x144xf32, #tpu.memory_space<vmem>>, vector<1x128xf32>,
    %c0_150 = arith.constant 0 : index
    %c8 = arith.constant 8 : index
    %171 = vector.load %arg22[%c0_150, %c8] : memref<36x144xf32, #tpu.memory_space<vmem>>, vector<36x8xf32>
    %c0_151 = arith.constant 0 : index
    %c128 = arith.constant 128 : index
    %172 = vector.load %arg22[%c0_151, %c128] : memref<36x144xf32, #tpu.memory_space<vmem>>, vector<36x8xf32>
    tpu.vector_store %arg22[%c0_151, %c128], %171 {strides = array<i32>} : memref<36x144xf32, #tpu.memory_space<vmem>>, vector<36x8xf32>,
    %c0_152 = arith.constant 0 : index
    %c112 = arith.constant 112 : index
    %173 = vector.load %arg22[%c0_152, %c112] : memref<36x144xf32, #tpu.memory_space<vmem>>, vector<36x8xf32>
    %c0_153 = arith.constant 0 : index
    %c136 = arith.constant 136 : index
    %174 = vector.load %arg22[%c0_153, %c136] : memref<36x144xf32, #tpu.memory_space<vmem>>, vector<36x8xf32>
    tpu.vector_store %arg22[%c0_153, %c136], %173 {strides = array<i32>} : memref<36x144xf32, #tpu.memory_space<vmem>>, vector<36x8xf32>,
    %c0_154 = arith.constant 0 : index
    %c0_155 = arith.constant 0 : index
    %175 = vector.load %arg22[%c0_154, %c0_155] : memref<36x144xf32, #tpu.memory_space<vmem>>, vector<34x144xf32>
    %176 = arith.truncf %175 : vector<34x144xf32> to vector<34x144xbf16>
    %c0_156 = arith.constant 0 : index
    %c0_157 = arith.constant 0 : index
    %c0_158 = arith.constant 0 : index
    %177 = vector.load %arg15[%c0_156, %c0_157, %c0_158] : memref<3x144x128xbf16, #tpu.memory_space<vmem>>, vector<1x144x128xbf16>
    %178 = vector.shape_cast %177 : vector<1x144x128xbf16> to vector<144x128xbf16>
    %cst_159 = arith.constant dense<0.000000e+00> : vector<34x128xf32>
    %179 = tpu.matmul %176, %178, %cst_159 {dimension_numbers = #tpu.dot_dimension_numbers<[1], [0], [0], [1], [0, 0, 1, 1], [], []>} : vector<34x144xbf16>, vector<144x128xbf16>, vector<34x128xf32> -> vector<34x128xf32>
    %c1_160 = arith.constant 1 : index
    %c0_161 = arith.constant 0 : index
    %180 = vector.load %arg22[%c1_160, %c0_161] : memref<36x144xf32, #tpu.memory_space<vmem>>, vector<34x144xf32>
    %181 = arith.truncf %180 : vector<34x144xf32> to vector<34x144xbf16>
    %c1_162 = arith.constant 1 : index
    %c0_163 = arith.constant 0 : index
    %c0_164 = arith.constant 0 : index
    %182 = vector.load %arg15[%c1_162, %c0_163, %c0_164] : memref<3x144x128xbf16, #tpu.memory_space<vmem>>, vector<1x144x128xbf16>
    %183 = vector.shape_cast %182 : vector<1x144x128xbf16> to vector<144x128xbf16>
    %cst_165 = arith.constant dense<0.000000e+00> : vector<34x128xf32>
    %184 = tpu.matmul %181, %183, %cst_165 {dimension_numbers = #tpu.dot_dimension_numbers<[1], [0], [0], [1], [0, 0, 1, 1], [], []>} : vector<34x144xbf16>, vector<144x128xbf16>, vector<34x128xf32> -> vector<34x128xf32>
    %185 = arith.addf %179, %184 : vector<34x128xf32>
    %c2_166 = arith.constant 2 : index
    %c0_167 = arith.constant 0 : index
    %186 = vector.load %arg22[%c2_166, %c0_167] : memref<36x144xf32, #tpu.memory_space<vmem>>, vector<34x144xf32>
    %187 = arith.truncf %186 : vector<34x144xf32> to vector<34x144xbf16>
    %c2_168 = arith.constant 2 : index
    %c0_169 = arith.constant 0 : index
    %c0_170 = arith.constant 0 : index
    %188 = vector.load %arg15[%c2_168, %c0_169, %c0_170] : memref<3x144x128xbf16, #tpu.memory_space<vmem>>, vector<1x144x128xbf16>
    %189 = vector.shape_cast %188 : vector<1x144x128xbf16> to vector<144x128xbf16>
    %cst_171 = arith.constant dense<0.000000e+00> : vector<34x128xf32>
    %190 = tpu.matmul %187, %189, %cst_171 {dimension_numbers = #tpu.dot_dimension_numbers<[1], [0], [0], [1], [0, 0, 1, 1], [], []>} : vector<34x144xbf16>, vector<144x128xbf16>, vector<34x128xf32> -> vector<34x128xf32>
    %191 = arith.addf %185, %190 : vector<34x128xf32>
    %c0_172 = arith.constant 0 : index
    %c0_173 = arith.constant 0 : index
    %192 = vector.load %arg16[%c0_172, %c0_173] : memref<1x128xf32, #tpu.memory_space<vmem>>, vector<1x128xf32>
    %193 = vector.broadcast %192 : vector<1x128xf32> to vector<34x128xf32>
    %194 = arith.addf %191, %193 : vector<34x128xf32>
    %cst_174 = arith.constant dense<0.000000e+00> : vector<1x128xf32>
    %195 = tpu.matmul %0, %194, %cst_174 {dimension_numbers = #tpu.dot_dimension_numbers<[1], [0], [0], [1], [0, 0, 1, 1], [], []>} : vector<1x34xf32>, vector<34x128xf32>, vector<1x128xf32> -> vector<1x128xf32>
    %c0_175 = arith.constant 0 : index
    %c0_176 = arith.constant 0 : index
    %196 = vector.load %arg17[%c0_175, %c0_176] : memref<128x8xf32, #tpu.memory_space<vmem>>, vector<128x8xf32>
    %cst_177 = arith.constant dense<0.000000e+00> : vector<1x8xf32>
    %197 = tpu.matmul %195, %196, %cst_177 {dimension_numbers = #tpu.dot_dimension_numbers<[1], [0], [0], [1], [0, 0, 1, 1], [], []>} : vector<1x128xf32>, vector<128x8xf32>, vector<1x8xf32> -> vector<1x8xf32>
    %cst_178 = arith.constant 5.120000e+02 : f32
    %198 = vector.broadcast %cst_178 : f32 to vector<1x8xf32>
    %199 = arith.divf %197, %198 : vector<1x8xf32>
    %c0_179 = arith.constant 0 : index
    %c0_180 = arith.constant 0 : index
    %200 = vector.load %arg18[%c0_179, %c0_180] : memref<8x128xf32, #tpu.memory_space<vmem>>, vector<8x128xf32>
    %cst_181 = arith.constant dense<0.000000e+00> : vector<1x128xf32>
    %201 = tpu.matmul %199, %200, %cst_181 {dimension_numbers = #tpu.dot_dimension_numbers<[1], [0], [0], [1], [0, 0, 1, 1], [], []>} : vector<1x8xf32>, vector<8x128xf32>, vector<1x128xf32> -> vector<1x128xf32>
    %202 = vector.broadcast %201 : vector<1x128xf32> to vector<34x128xf32>
    %203 = arith.subf %194, %202 : vector<34x128xf32>
    %204 = arith.mulf %203, %203 : vector<34x128xf32>
    %cst_182 = arith.constant dense<0.000000e+00> : vector<1x128xf32>
    %205 = tpu.matmul %0, %204, %cst_182 {dimension_numbers = #tpu.dot_dimension_numbers<[1], [0], [0], [1], [0, 0, 1, 1], [], []>} : vector<1x34xf32>, vector<34x128xf32>, vector<1x128xf32> -> vector<1x128xf32>
    %c0_183 = arith.constant 0 : index
    %c0_184 = arith.constant 0 : index
    %206 = vector.load %arg17[%c0_183, %c0_184] : memref<128x8xf32, #tpu.memory_space<vmem>>, vector<128x8xf32>
    %cst_185 = arith.constant dense<0.000000e+00> : vector<1x8xf32>
    %207 = tpu.matmul %205, %206, %cst_185 {dimension_numbers = #tpu.dot_dimension_numbers<[1], [0], [0], [1], [0, 0, 1, 1], [], []>} : vector<1x128xf32>, vector<128x8xf32>, vector<1x8xf32> -> vector<1x8xf32>
    %cst_186 = arith.constant 5.120000e+02 : f32
    %208 = vector.broadcast %cst_186 : f32 to vector<1x8xf32>
    %209 = arith.divf %207, %208 : vector<1x8xf32>
    %cst_187 = arith.constant 9.99999974E-6 : f32
    %210 = vector.broadcast %cst_187 : f32 to vector<1x8xf32>
    %211 = arith.addf %209, %210 : vector<1x8xf32>
    %212 = math.rsqrt %211 : vector<1x8xf32>
    %c0_188 = arith.constant 0 : index
    %c0_189 = arith.constant 0 : index
    %213 = vector.load %arg18[%c0_188, %c0_189] : memref<8x128xf32, #tpu.memory_space<vmem>>, vector<8x128xf32>
    %cst_190 = arith.constant dense<0.000000e+00> : vector<1x128xf32>
    %214 = tpu.matmul %212, %213, %cst_190 {dimension_numbers = #tpu.dot_dimension_numbers<[1], [0], [0], [1], [0, 0, 1, 1], [], []>} : vector<1x8xf32>, vector<8x128xf32>, vector<1x128xf32> -> vector<1x128xf32>
    %215 = vector.broadcast %214 : vector<1x128xf32> to vector<34x128xf32>
    %216 = arith.mulf %203, %215 : vector<34x128xf32>
    %cst_191 = arith.constant 0.000000e+00 : f32
    %217 = vector.broadcast %cst_191 : f32 to vector<34x128xf32>
    %218 = arith.maximumf %216, %217 : vector<34x128xf32>
    %219 = vector.extract_strided_slice %218 {offsets = [0, 0], sizes = [16, 128], strides = [1, 1]} : vector<34x128xf32> to vector<16x128xf32>
    %c0_192 = arith.constant 0 : index
    %c0_193 = arith.constant 0 : index
    %c0_194 = arith.constant 0 : index
    %220 = vector.load %arg19[%c0_192, %c0_193, %c0_194] : memref<1x32x128xf32, #tpu.memory_space<vmem>>, vector<1x16x128xf32>
    %221 = vector.shape_cast %220 : vector<1x16x128xf32> to vector<16x128xf32>
    %222 = vector.shape_cast %219 : vector<16x128xf32> to vector<1x16x128xf32>
    tpu.vector_store %arg19[%c0_192, %c0_193, %c0_194], %222 {strides = array<i32>} : memref<1x32x128xf32, #tpu.memory_space<vmem>>, vector<1x16x128xf32>,
    %223 = vector.extract_strided_slice %218 {offsets = [18, 0], sizes = [16, 128], strides = [1, 1]} : vector<34x128xf32> to vector<16x128xf32>
    %c0_195 = arith.constant 0 : index
    %c16 = arith.constant 16 : index
    %c0_196 = arith.constant 0 : index
    %224 = vector.load %arg19[%c0_195, %c16, %c0_196] : memref<1x32x128xf32, #tpu.memory_space<vmem>>, vector<1x16x128xf32>
    %225 = vector.shape_cast %224 : vector<1x16x128xf32> to vector<16x128xf32>
    %226 = vector.shape_cast %223 : vector<16x128xf32> to vector<1x16x128xf32>
    tpu.vector_store %arg19[%c0_195, %c16, %c0_196], %226 {strides = array<i32>} : memref<1x32x128xf32, #tpu.memory_space<vmem>>, vector<1x16x128xf32>,
    return
  }
  func.func @transform_0(%arg0: i32) -> (i32, i32, i32) {
    %c0_i32 = arith.constant 0 : i32
    %c0_i32_0 = arith.constant 0 : i32
    %c0_i32_1 = arith.constant 0 : i32
    return %arg0, %c0_i32, %c0_i32_0 : i32, i32, i32
  }
  func.func @transform_1(%arg0: i32) -> (i32, i32) {
    %c0_i32 = arith.constant 0 : i32
    %c0_i32_0 = arith.constant 0 : i32
    %c0_i32_1 = arith.constant 0 : i32
    return %c0_i32, %c0_i32_0 : i32, i32
  }
  func.func @transform_2(%arg0: i32) -> (i32, i32, i32) {
    %c0_i32 = arith.constant 0 : i32
    %c0_i32_0 = arith.constant 0 : i32
    %c0_i32_1 = arith.constant 0 : i32
    %c0_i32_2 = arith.constant 0 : i32
    return %c0_i32, %c0_i32_0, %c0_i32_1 : i32, i32, i32
  }
  func.func @transform_3(%arg0: i32) -> (i32, i32) {
    %c0_i32 = arith.constant 0 : i32
    %c0_i32_0 = arith.constant 0 : i32
    %c0_i32_1 = arith.constant 0 : i32
    return %c0_i32, %c0_i32_0 : i32, i32
  }
  func.func @transform_4(%arg0: i32) -> (i32, i32) {
    %c0_i32 = arith.constant 0 : i32
    %c0_i32_0 = arith.constant 0 : i32
    %c0_i32_1 = arith.constant 0 : i32
    return %c0_i32, %c0_i32_0 : i32, i32
  }
  func.func @transform_5(%arg0: i32) -> (i32, i32) {
    %c0_i32 = arith.constant 0 : i32
    %c0_i32_0 = arith.constant 0 : i32
    %c0_i32_1 = arith.constant 0 : i32
    return %c0_i32, %c0_i32_0 : i32, i32
  }
  func.func @transform_6(%arg0: i32) -> (i32, i32, i32) {
    %c0_i32 = arith.constant 0 : i32
    %c0_i32_0 = arith.constant 0 : i32
    %c0_i32_1 = arith.constant 0 : i32
    %c0_i32_2 = arith.constant 0 : i32
    return %c0_i32, %c0_i32_0, %c0_i32_1 : i32, i32, i32
  }
  func.func @transform_7(%arg0: i32) -> (i32, i32) {
    %c0_i32 = arith.constant 0 : i32
    %c0_i32_0 = arith.constant 0 : i32
    %c0_i32_1 = arith.constant 0 : i32
    return %c0_i32, %c0_i32_0 : i32, i32
  }
  func.func @transform_8(%arg0: i32) -> (i32, i32) {
    %c0_i32 = arith.constant 0 : i32
    %c0_i32_0 = arith.constant 0 : i32
    %c0_i32_1 = arith.constant 0 : i32
    return %c0_i32, %c0_i32_0 : i32, i32
  }
  func.func @transform_9(%arg0: i32) -> (i32, i32) {
    %c0_i32 = arith.constant 0 : i32
    %c0_i32_0 = arith.constant 0 : i32
    %c0_i32_1 = arith.constant 0 : i32
    return %c0_i32, %c0_i32_0 : i32, i32
  }
  func.func @transform_10(%arg0: i32) -> (i32, i32, i32) {
    %c0_i32 = arith.constant 0 : i32
    %c0_i32_0 = arith.constant 0 : i32
    %c0_i32_1 = arith.constant 0 : i32
    %c0_i32_2 = arith.constant 0 : i32
    return %c0_i32, %c0_i32_0, %c0_i32_1 : i32, i32, i32
  }
  func.func @transform_11(%arg0: i32) -> (i32, i32) {
    %c0_i32 = arith.constant 0 : i32
    %c0_i32_0 = arith.constant 0 : i32
    %c0_i32_1 = arith.constant 0 : i32
    return %c0_i32, %c0_i32_0 : i32, i32
  }
  func.func @transform_12(%arg0: i32) -> (i32, i32) {
    %c0_i32 = arith.constant 0 : i32
    %c0_i32_0 = arith.constant 0 : i32
    %c0_i32_1 = arith.constant 0 : i32
    return %c0_i32, %c0_i32_0 : i32, i32
  }
  func.func @transform_13(%arg0: i32) -> (i32, i32) {
    %c0_i32 = arith.constant 0 : i32
    %c0_i32_0 = arith.constant 0 : i32
    %c0_i32_1 = arith.constant 0 : i32
    return %c0_i32, %c0_i32_0 : i32, i32
  }
  func.func @transform_14(%arg0: i32) -> (i32, i32, i32) {
    %c0_i32 = arith.constant 0 : i32
    %c0_i32_0 = arith.constant 0 : i32
    %c0_i32_1 = arith.constant 0 : i32
    %c0_i32_2 = arith.constant 0 : i32
    return %c0_i32, %c0_i32_0, %c0_i32_1 : i32, i32, i32
  }
  func.func @transform_15(%arg0: i32) -> (i32, i32) {
    %c0_i32 = arith.constant 0 : i32
    %c0_i32_0 = arith.constant 0 : i32
    %c0_i32_1 = arith.constant 0 : i32
    return %c0_i32, %c0_i32_0 : i32, i32
  }
  func.func @transform_16(%arg0: i32) -> (i32, i32) {
    %c0_i32 = arith.constant 0 : i32
    %c0_i32_0 = arith.constant 0 : i32
    %c0_i32_1 = arith.constant 0 : i32
    return %c0_i32, %c0_i32_0 : i32, i32
  }
  func.func @transform_17(%arg0: i32) -> (i32, i32) {
    %c0_i32 = arith.constant 0 : i32
    %c0_i32_0 = arith.constant 0 : i32
    %c0_i32_1 = arith.constant 0 : i32
    return %c0_i32, %c0_i32_0 : i32, i32
  }
  func.func @transform_18(%arg0: i32) -> (i32, i32, i32) {
    %c0_i32 = arith.constant 0 : i32
    %c0_i32_0 = arith.constant 0 : i32
    %c0_i32_1 = arith.constant 0 : i32
    return %arg0, %c0_i32, %c0_i32_0 : i32, i32, i32
  }
}

module attributes {stable_mosaic.version = 11 : i64} {
  func.func @fc_kernel(%arg0: i32, %arg1: memref<4x2048xf32, #tpu.memory_space<vmem>>, %arg2: memref<2048x512xbf16, #tpu.memory_space<vmem>>, %arg3: memref<1x512xf32, #tpu.memory_space<vmem>>, %arg4: memref<512x512xbf16, #tpu.memory_space<vmem>>, %arg5: memref<1x512xf32, #tpu.memory_space<vmem>>, %arg6: memref<512x128xbf16, #tpu.memory_space<vmem>>, %arg7: memref<1x128xf32, #tpu.memory_space<vmem>>, %arg8: memref<4x128xf32, #tpu.memory_space<vmem>>, %arg9: memref<4x512xf32, #tpu.memory_space<vmem>>) attributes {dimension_semantics = [#tpu.dimension_semantics<arbitrary>], iteration_bounds = array<i64: 1>, scalar_prefetch = 0 : i64, scratch_operands = 1 : i64, tpu.core_type = #tpu.core_type<tc>, window_params = [{transform_indices = @transform_0, window_bounds = array<i64: 4, 2048>}, {transform_indices = @transform_1, window_bounds = array<i64: 2048, 512>}, {pipeline_mode = #tpu.pipeline_mode<synchronous>, transform_indices = @transform_2, window_bounds = array<i64: 1, 512>}, {pipeline_mode = #tpu.pipeline_mode<synchronous>, transform_indices = @transform_3, window_bounds = array<i64: 512, 512>}, {pipeline_mode = #tpu.pipeline_mode<synchronous>, transform_indices = @transform_4, window_bounds = array<i64: 1, 512>}, {pipeline_mode = #tpu.pipeline_mode<synchronous>, transform_indices = @transform_5, window_bounds = array<i64: 512, 128>}, {pipeline_mode = #tpu.pipeline_mode<synchronous>, transform_indices = @transform_6, window_bounds = array<i64: 1, 128>}, {pipeline_mode = #tpu.pipeline_mode<synchronous>, transform_indices = @transform_7, window_bounds = array<i64: 4, 128>}]} {
    %c0_i32 = arith.constant 0 : i32
    %0 = arith.cmpi eq, %arg0, %c0_i32 : i32
    %1 = arith.extui %0 : i1 to i32
    %c0_i32_0 = arith.constant 0 : i32
    %2 = arith.cmpi ne, %1, %c0_i32_0 : i32
    scf.if %2 {
      %cst_10 = arith.constant 0.000000e+00 : f32
      %13 = vector.broadcast %cst_10 : f32 to vector<4x512xf32>
      %c0_11 = arith.constant 0 : index
      %c0_12 = arith.constant 0 : index
      %14 = vector.load %arg9[%c0_11, %c0_12] : memref<4x512xf32, #tpu.memory_space<vmem>>, vector<4x512xf32>
      tpu.vector_store %arg9[%c0_11, %c0_12], %13 {strides = array<i32>} : memref<4x512xf32, #tpu.memory_space<vmem>>, vector<4x512xf32>,
    } else {
    }
    %c0 = arith.constant 0 : index
    %c0_1 = arith.constant 0 : index
    %3 = vector.load %arg9[%c0, %c0_1] : memref<4x512xf32, #tpu.memory_space<vmem>>, vector<4x512xf32>
    %c0_2 = arith.constant 0 : index
    %c0_3 = arith.constant 0 : index
    %4 = vector.load %arg1[%c0_2, %c0_3] : memref<4x2048xf32, #tpu.memory_space<vmem>>, vector<4x2048xf32>
    %5 = arith.truncf %4 : vector<4x2048xf32> to vector<4x2048xbf16>
    %c0_4 = arith.constant 0 : index
    %c0_5 = arith.constant 0 : index
    %6 = vector.load %arg2[%c0_4, %c0_5] : memref<2048x512xbf16, #tpu.memory_space<vmem>>, vector<2048x512xbf16>
    %cst = arith.constant dense<0.000000e+00> : vector<4x512xf32>
    %7 = tpu.matmul %5, %6, %cst {dimension_numbers = #tpu.dot_dimension_numbers<[1], [0], [0], [1], [0, 0, 1, 1], [], []>} : vector<4x2048xbf16>, vector<2048x512xbf16>, vector<4x512xf32> -> vector<4x512xf32>
    %8 = arith.addf %3, %7 : vector<4x512xf32>
    %c0_6 = arith.constant 0 : index
    %c0_7 = arith.constant 0 : index
    %9 = vector.load %arg9[%c0_6, %c0_7] : memref<4x512xf32, #tpu.memory_space<vmem>>, vector<4x512xf32>
    tpu.vector_store %arg9[%c0_6, %c0_7], %8 {strides = array<i32>} : memref<4x512xf32, #tpu.memory_space<vmem>>, vector<4x512xf32>,
    %c0_i32_8 = arith.constant 0 : i32
    %10 = arith.cmpi eq, %arg0, %c0_i32_8 : i32
    %11 = arith.extui %10 : i1 to i32
    %c0_i32_9 = arith.constant 0 : i32
    %12 = arith.cmpi ne, %11, %c0_i32_9 : i32
    scf.if %12 {
      %c0_10 = arith.constant 0 : index
      %c0_11 = arith.constant 0 : index
      %13 = vector.load %arg9[%c0_10, %c0_11] : memref<4x512xf32, #tpu.memory_space<vmem>>, vector<4x512xf32>
      %c0_12 = arith.constant 0 : index
      %c0_13 = arith.constant 0 : index
      %14 = vector.load %arg3[%c0_12, %c0_13] : memref<1x512xf32, #tpu.memory_space<vmem>>, vector<1x512xf32>
      %15 = vector.broadcast %14 : vector<1x512xf32> to vector<4x512xf32>
      %16 = arith.addf %13, %15 : vector<4x512xf32>
      %cst_14 = arith.constant 0.000000e+00 : f32
      %17 = vector.broadcast %cst_14 : f32 to vector<4x512xf32>
      %18 = arith.maximumf %16, %17 : vector<4x512xf32>
      %19 = arith.truncf %18 : vector<4x512xf32> to vector<4x512xbf16>
      %c0_15 = arith.constant 0 : index
      %c0_16 = arith.constant 0 : index
      %20 = vector.load %arg4[%c0_15, %c0_16] : memref<512x512xbf16, #tpu.memory_space<vmem>>, vector<512x512xbf16>
      %cst_17 = arith.constant dense<0.000000e+00> : vector<4x512xf32>
      %21 = tpu.matmul %19, %20, %cst_17 {dimension_numbers = #tpu.dot_dimension_numbers<[1], [0], [0], [1], [0, 0, 1, 1], [], []>} : vector<4x512xbf16>, vector<512x512xbf16>, vector<4x512xf32> -> vector<4x512xf32>
      %c0_18 = arith.constant 0 : index
      %c0_19 = arith.constant 0 : index
      %22 = vector.load %arg5[%c0_18, %c0_19] : memref<1x512xf32, #tpu.memory_space<vmem>>, vector<1x512xf32>
      %23 = vector.broadcast %22 : vector<1x512xf32> to vector<4x512xf32>
      %24 = arith.addf %21, %23 : vector<4x512xf32>
      %cst_20 = arith.constant 0.000000e+00 : f32
      %25 = vector.broadcast %cst_20 : f32 to vector<4x512xf32>
      %26 = arith.maximumf %24, %25 : vector<4x512xf32>
      %27 = arith.truncf %26 : vector<4x512xf32> to vector<4x512xbf16>
      %c0_21 = arith.constant 0 : index
      %c0_22 = arith.constant 0 : index
      %28 = vector.load %arg6[%c0_21, %c0_22] : memref<512x128xbf16, #tpu.memory_space<vmem>>, vector<512x128xbf16>
      %cst_23 = arith.constant dense<0.000000e+00> : vector<4x128xf32>
      %29 = tpu.matmul %27, %28, %cst_23 {dimension_numbers = #tpu.dot_dimension_numbers<[1], [0], [0], [1], [0, 0, 1, 1], [], []>} : vector<4x512xbf16>, vector<512x128xbf16>, vector<4x128xf32> -> vector<4x128xf32>
      %c0_24 = arith.constant 0 : index
      %c0_25 = arith.constant 0 : index
      %30 = vector.load %arg7[%c0_24, %c0_25] : memref<1x128xf32, #tpu.memory_space<vmem>>, vector<1x128xf32>
      %31 = vector.broadcast %30 : vector<1x128xf32> to vector<4x128xf32>
      %32 = arith.addf %29, %31 : vector<4x128xf32>
      %c0_26 = arith.constant 0 : index
      %c0_27 = arith.constant 0 : index
      %33 = vector.load %arg8[%c0_26, %c0_27] : memref<4x128xf32, #tpu.memory_space<vmem>>, vector<4x128xf32>
      tpu.vector_store %arg8[%c0_26, %c0_27], %32 {strides = array<i32>} : memref<4x128xf32, #tpu.memory_space<vmem>>, vector<4x128xf32>,
    } else {
    }
    return
  }
  func.func @transform_0(%arg0: i32) -> (i32, i32) {
    %c0_i32 = arith.constant 0 : i32
    %c0_i32_0 = arith.constant 0 : i32
    return %c0_i32, %arg0 : i32, i32
  }
  func.func @transform_1(%arg0: i32) -> (i32, i32) {
    %c0_i32 = arith.constant 0 : i32
    %c0_i32_0 = arith.constant 0 : i32
    return %arg0, %c0_i32 : i32, i32
  }
  func.func @transform_2(%arg0: i32) -> (i32, i32) {
    %c0_i32 = arith.constant 0 : i32
    %c0_i32_0 = arith.constant 0 : i32
    %c0_i32_1 = arith.constant 0 : i32
    return %c0_i32, %c0_i32_0 : i32, i32
  }
  func.func @transform_3(%arg0: i32) -> (i32, i32) {
    %c0_i32 = arith.constant 0 : i32
    %c0_i32_0 = arith.constant 0 : i32
    %c0_i32_1 = arith.constant 0 : i32
    return %c0_i32, %c0_i32_0 : i32, i32
  }
  func.func @transform_4(%arg0: i32) -> (i32, i32) {
    %c0_i32 = arith.constant 0 : i32
    %c0_i32_0 = arith.constant 0 : i32
    %c0_i32_1 = arith.constant 0 : i32
    return %c0_i32, %c0_i32_0 : i32, i32
  }
  func.func @transform_5(%arg0: i32) -> (i32, i32) {
    %c0_i32 = arith.constant 0 : i32
    %c0_i32_0 = arith.constant 0 : i32
    %c0_i32_1 = arith.constant 0 : i32
    return %c0_i32, %c0_i32_0 : i32, i32
  }
  func.func @transform_6(%arg0: i32) -> (i32, i32) {
    %c0_i32 = arith.constant 0 : i32
    %c0_i32_0 = arith.constant 0 : i32
    %c0_i32_1 = arith.constant 0 : i32
    return %c0_i32, %c0_i32_0 : i32, i32
  }
  func.func @transform_7(%arg0: i32) -> (i32, i32) {
    %c0_i32 = arith.constant 0 : i32
    %c0_i32_0 = arith.constant 0 : i32
    %c0_i32_1 = arith.constant 0 : i32
    return %c0_i32, %c0_i32_0 : i32, i32
  }
}

</mosaic_0001>

<llo_original>
// kernel: siamese_forward.2
$region0: #{siamese_forward.2}
  #allocation0 [shape = 'u32[]', space=smem, size = 0x4, offset = 0x4, fixed_abs, tag = 'smem constant byte address 0x4 - core index']
  #allocation1 [shape = 'u32[144,128]{1,0:T(1,128)}', space=vmem, size = 0x12000, scoped, tag = 'internal scratch']
  #allocation2 [shape = 'f32[36,72]{1,0:T(8,128)}', space=vmem, size = 0x5000, scoped, tag = 'scratch operand']
  #allocation3 [shape = 'f32[36,108]{1,0:T(8,128)}', space=vmem, size = 0x5000, scoped, tag = 'scratch operand']
  #allocation4 [shape = 'f32[36,144]{1,0:T(8,128)}', space=vmem, size = 0xa000, scoped, tag = 'scratch operand']
  %s0 = inlined_call_operand.vmem [shape: f32[2,36,54], index: 0, kind: input, shape index: {}]
  %s1 = inlined_call_operand.vmem [shape: f32[1,34], index: 1, kind: input, shape index: {}]
  %s2 = inlined_call_operand.vmem [shape: bf16[3,54,64], index: 2, kind: input, shape index: {}]
  %s3 = inlined_call_operand.vmem [shape: f32[1,64], index: 3, kind: input, shape index: {}]
  %s4 = inlined_call_operand.vmem [shape: f32[64,4], index: 4, kind: input, shape index: {}]
  %s5 = inlined_call_operand.vmem [shape: f32[4,64], index: 5, kind: input, shape index: {}]
  %s6 = inlined_call_operand.vmem [shape: bf16[3,72,96], index: 6, kind: input, shape index: {}]
  %s7 = inlined_call_operand.vmem [shape: f32[1,96], index: 7, kind: input, shape index: {}]
  %s8 = inlined_call_operand.vmem [shape: f32[96,6], index: 8, kind: input, shape index: {}]
  %s9 = inlined_call_operand.vmem [shape: f32[6,96], index: 9, kind: input, shape index: {}]
  %s10 = inlined_call_operand.vmem [shape: bf16[3,108,128], index: 10, kind: input, shape index: {}]
  %s11 = inlined_call_operand.vmem [shape: f32[1,128], index: 11, kind: input, shape index: {}]
  %s12 = inlined_call_operand.vmem [shape: f32[128,8], index: 12, kind: input, shape index: {}]
  %s13 = inlined_call_operand.vmem [shape: f32[8,128], index: 13, kind: input, shape index: {}]
  %s14 = inlined_call_operand.vmem [shape: bf16[3,144,128], index: 14, kind: input, shape index: {}]
  %s15 = inlined_call_operand.vmem [shape: f32[1,128], index: 15, kind: input, shape index: {}]
  %s16 = inlined_call_operand.vmem [shape: f32[128,8], index: 16, kind: input, shape index: {}]
  %s17 = inlined_call_operand.vmem [shape: f32[8,128], index: 17, kind: input, shape index: {}]
  %s18 = inlined_call_operand.vmem [shape: f32[2,32,128], index: 18, kind: output, shape index: {}]
  %s19 = sld [smem:[#allocation0]]
  $region105: #{siamese_forward.2} parent=0
    _
  %s21 = ssub.s32 1, %s19
  %s22 = scalar_select 0, %s21, %s19
  loop: start=0, step=1, limit=4
  $region2: #{siamese_forward.2} parent=0 // loop_pre_header
    _
  $region3: #{siamese_forward.2} parent=0 // loop_header
    %s24 = sphi 0, %s28
    %p25 = scmp.ge.s32.totalorder %s24, 4
    %s34 = sphi 0, %s36
    %s37 = sphi 0, %s34
    %s38 = sphi 0, %s37
    %s54 = sphi 0, %s38
    %s58 = sphi 0, %s58
    %s60 = sphi 0, %s58
    %s61 = sphi 0, %s60
    %s75 = sphi 0, %s61
    %s79 = sphi 0, %s79
    %s81 = sphi 0, %s79
    %s82 = sphi 0, %s81
    %s96 = sphi 0, %s82
    %s100 = sphi 0, %s100
    %s102 = sphi 0, %s100
    %s103 = sphi 0, %s102
    %s117 = sphi 0, %s103
    %s121 = sphi 0, %s121
    %s123 = sphi 0, %s121
    %s124 = sphi 0, %s123
    %s138 = sphi 0, %s124
    %s142 = sphi 0, %s142
    %s144 = sphi 0, %s142
    %s145 = sphi 0, %s144
    %s159 = sphi 0, %s145
    %s163 = sphi 0, %s163
    %s165 = sphi 0, %s163
    %s166 = sphi 0, %s165
    %s180 = sphi 0, %s166
    %s184 = sphi 0, %s184
    %s186 = sphi 0, %s184
    %s187 = sphi 0, %s186
    %s201 = sphi 0, %s187
    %s205 = sphi 0, %s205
    %s207 = sphi 0, %s205
    %s208 = sphi 0, %s207
    %s222 = sphi 0, %s208
    %s226 = sphi 0, %s226
    %s228 = sphi 0, %s226
    %s229 = sphi 0, %s228
    %s243 = sphi 0, %s229
    %s247 = sphi 0, %s247
    %s249 = sphi 0, %s247
    %s250 = sphi 0, %s249
    %s264 = sphi 0, %s250
    %s268 = sphi 0, %s268
    %s270 = sphi 0, %s268
    %s271 = sphi 0, %s270
    %s285 = sphi 0, %s271
    %s289 = sphi 0, %s289
    %s291 = sphi 0, %s289
    %s292 = sphi 0, %s291
    %s306 = sphi 0, %s292
    %s310 = sphi 0, %s310
    %s312 = sphi 0, %s310
    %s313 = sphi 0, %s312
    %s327 = sphi 0, %s313
    %s331 = sphi 0, %s331
    %s333 = sphi 0, %s331
    %s334 = sphi 0, %s333
    %s348 = sphi 0, %s334
    %s352 = sphi 0, %s352
    %s354 = sphi 0, %s352
    %s355 = sphi 0, %s354
    %s369 = sphi 0, %s355
    %s373 = sphi 0, %s373
    %s375 = sphi 0, %s373
    %s376 = sphi 0, %s375
    %s390 = sphi 0, %s376
    %s394 = sphi 0, %s394
    %s396 = sphi 0, %s394
    %s397 = sphi 0, %s396
    %s411 = sphi 0, %s397
    %s417 = sphi 0, %s419
    %s420 = sphi 0, %s417
    %s421 = sphi 0, %s420
    %s437 = sphi 0, %s421
  $region4: #{siamese_forward.2} parent=0 // loop_header_branch
    %27 = sbr.rel (%p25) target = $region8
  $region5: #{siamese_forward.2} parent=0 // loop_body
    %s29 = ssub.s32 %s24, 1
    %s30 = ssub.s32 %s24, 2
    %s31 = sadd.s32 %s24, 1
    %s32 = ssub.s32 %s24, %s31
    %p33 = scmp.eq.s32.totalorder %s32, 0
    %s35 = sadd.s32 %s34, 1
    %s36 = scalar_select %p33, %s34, %s35
    %p39 = pneg %p33
    %p40 = scmp.eq.s32.totalorder %s24, 1
    %p41 = por %p39, %p40
    %p42 = scmp.ne.s32.totalorder %s34, %s37
    %p43 = scmp.eq.s32.totalorder %s24, 0
    %p44 = por %p42, %p43
    %p45 = scmp.ne.s32.totalorder %s34, %s37
    %p46 = scmp.eq.s32.totalorder %s29, 1
    %p47 = por %p45, %p46
    %p48 = scmp.ne.s32.totalorder %s37, %s38
    %p49 = scmp.eq.s32.totalorder %s29, 0
    %p50 = por %p48, %p49
    %p51 = scmp.ne.s32.totalorder %s37, %s38
    %p52 = scmp.eq.s32.totalorder %s30, 1
    %p53 = por %p51, %p52
    %p55 = scmp.ne.s32.totalorder %s38, %s54
    %p56 = scmp.eq.s32.totalorder %s30, 0
    %p57 = por %p55, %p56
    %s59 = sadd.s32 %s58, 1
    %p62 = scmp.eq.s32.totalorder %s24, 1
    %p63 = scmp.ne.s32.totalorder %s58, %s60
    %p64 = scmp.eq.s32.totalorder %s24, 0
    %p65 = por %p63, %p64
    %p66 = scmp.ne.s32.totalorder %s58, %s60
    %p67 = scmp.eq.s32.totalorder %s29, 1
    %p68 = por %p66, %p67
    %p69 = scmp.ne.s32.totalorder %s60, %s61
    %p70 = scmp.eq.s32.totalorder %s29, 0
    %p71 = por %p69, %p70
    %p72 = scmp.ne.s32.totalorder %s60, %s61
    %p73 = scmp.eq.s32.totalorder %s30, 1
    %p74 = por %p72, %p73
    %p76 = scmp.ne.s32.totalorder %s61, %s75
    %p77 = scmp.eq.s32.totalorder %s30, 0
    %p78 = por %p76, %p77
    %s80 = sadd.s32 %s79, 1
    %p83 = scmp.eq.s32.totalorder %s24, 1
    %p84 = scmp.ne.s32.totalorder %s79, %s81
    %p85 = scmp.eq.s32.totalorder %s24, 0
    %p86 = por %p84, %p85
    %p87 = scmp.ne.s32.totalorder %s79, %s81
    %p88 = scmp.eq.s32.totalorder %s29, 1
    %p89 = por %p87, %p88
    %p90 = scmp.ne.s32.totalorder %s81, %s82
    %p91 = scmp.eq.s32.totalorder %s29, 0
    %p92 = por %p90, %p91
    %p93 = scmp.ne.s32.totalorder %s81, %s82
    %p94 = scmp.eq.s32.totalorder %s30, 1
    %p95 = por %p93, %p94
    %p97 = scmp.ne.s32.totalorder %s82, %s96
    %p98 = scmp.eq.s32.totalorder %s30, 0
    %p99 = por %p97, %p98
    %s101 = sadd.s32 %s100, 1
    %p104 = scmp.eq.s32.totalorder %s24, 1
    %p105 = scmp.ne.s32.totalorder %s100, %s102
    %p106 = scmp.eq.s32.totalorder %s24, 0
    %p107 = por %p105, %p106
    %p108 = scmp.ne.s32.totalorder %s100, %s102
    %p109 = scmp.eq.s32.totalorder %s29, 1
    %p110 = por %p108, %p109
    %p111 = scmp.ne.s32.totalorder %s102, %s103
    %p112 = scmp.eq.s32.totalorder %s29, 0
    %p113 = por %p111, %p112
    %p114 = scmp.ne.s32.totalorder %s102, %s103
    %p115 = scmp.eq.s32.totalorder %s30, 1
    %p116 = por %p114, %p115
    %p118 = scmp.ne.s32.totalorder %s103, %s117
    %p119 = scmp.eq.s32.totalorder %s30, 0
    %p120 = por %p118, %p119
    %s122 = sadd.s32 %s121, 1
    %p125 = scmp.eq.s32.totalorder %s24, 1
    %p126 = scmp.ne.s32.totalorder %s121, %s123
    %p127 = scmp.eq.s32.totalorder %s24, 0
    %p128 = por %p126, %p127
    %p129 = scmp.ne.s32.totalorder %s121, %s123
    %p130 = scmp.eq.s32.totalorder %s29, 1
    %p131 = por %p129, %p130
    %p132 = scmp.ne.s32.totalorder %s123, %s124
    %p133 = scmp.eq.s32.totalorder %s29, 0
    %p134 = por %p132, %p133
    %p135 = scmp.ne.s32.totalorder %s123, %s124
    %p136 = scmp.eq.s32.totalorder %s30, 1
    %p137 = por %p135, %p136
    %p139 = scmp.ne.s32.totalorder %s124, %s138
    %p140 = scmp.eq.s32.totalorder %s30, 0
    %p141 = por %p139, %p140
    %s143 = sadd.s32 %s142, 1
    %p146 = scmp.eq.s32.totalorder %s24, 1
    %p147 = scmp.ne.s32.totalorder %s142, %s144
    %p148 = scmp.eq.s32.totalorder %s24, 0
    %p149 = por %p147, %p148
    %p150 = scmp.ne.s32.totalorder %s142, %s144
    %p151 = scmp.eq.s32.totalorder %s29, 1
    %p152 = por %p150, %p151
    %p153 = scmp.ne.s32.totalorder %s144, %s145
    %p154 = scmp.eq.s32.totalorder %s29, 0
    %p155 = por %p153, %p154
    %p156 = scmp.ne.s32.totalorder %s144, %s145
    %p157 = scmp.eq.s32.totalorder %s30, 1
    %p158 = por %p156, %p157
    %p160 = scmp.ne.s32.totalorder %s145, %s159
    %p161 = scmp.eq.s32.totalorder %s30, 0
    %p162 = por %p160, %p161
    %s164 = sadd.s32 %s163, 1
    %p167 = scmp.eq.s32.totalorder %s24, 1
    %p168 = scmp.ne.s32.totalorder %s163, %s165
    %p169 = scmp.eq.s32.totalorder %s24, 0
    %p170 = por %p168, %p169
    %p171 = scmp.ne.s32.totalorder %s163, %s165
    %p172 = scmp.eq.s32.totalorder %s29, 1
    %p173 = por %p171, %p172
    %p174 = scmp.ne.s32.totalorder %s165, %s166
    %p175 = scmp.eq.s32.totalorder %s29, 0
    %p176 = por %p174, %p175
    %p177 = scmp.ne.s32.totalorder %s165, %s166
    %p178 = scmp.eq.s32.totalorder %s30, 1
    %p179 = por %p177, %p178
    %p181 = scmp.ne.s32.totalorder %s166, %s180
    %p182 = scmp.eq.s32.totalorder %s30, 0
    %p183 = por %p181, %p182
    %s185 = sadd.s32 %s184, 1
    %p188 = scmp.eq.s32.totalorder %s24, 1
    %p189 = scmp.ne.s32.totalorder %s184, %s186
    %p190 = scmp.eq.s32.totalorder %s24, 0
    %p191 = por %p189, %p190
    %p192 = scmp.ne.s32.totalorder %s184, %s186
    %p193 = scmp.eq.s32.totalorder %s29, 1
    %p194 = por %p192, %p193
    %p195 = scmp.ne.s32.totalorder %s186, %s187
    %p196 = scmp.eq.s32.totalorder %s29, 0
    %p197 = por %p195, %p196
    %p198 = scmp.ne.s32.totalorder %s186, %s187
    %p199 = scmp.eq.s32.totalorder %s30, 1
    %p200 = por %p198, %p199
    %p202 = scmp.ne.s32.totalorder %s187, %s201
    %p203 = scmp.eq.s32.totalorder %s30, 0
    %p204 = por %p202, %p203
    %s206 = sadd.s32 %s205, 1
    %p209 = scmp.eq.s32.totalorder %s24, 1
    %p210 = scmp.ne.s32.totalorder %s205, %s207
    %p211 = scmp.eq.s32.totalorder %s24, 0
    %p212 = por %p210, %p211
    %p213 = scmp.ne.s32.totalorder %s205, %s207
    %p214 = scmp.eq.s32.totalorder %s29, 1
    %p215 = por %p213, %p214
    %p216 = scmp.ne.s32.totalorder %s207, %s208
    %p217 = scmp.eq.s32.totalorder %s29, 0
    %p218 = por %p216, %p217
    %p219 = scmp.ne.s32.totalorder %s207, %s208
    %p220 = scmp.eq.s32.totalorder %s30, 1
    %p221 = por %p219, %p220
    %p223 = scmp.ne.s32.totalorder %s208, %s222
    %p224 = scmp.eq.s32.totalorder %s30, 0
    %p225 = por %p223, %p224
    %s227 = sadd.s32 %s226, 1
    %p230 = scmp.eq.s32.totalorder %s24, 1
    %p231 = scmp.ne.s32.totalorder %s226, %s228
    %p232 = scmp.eq.s32.totalorder %s24, 0
    %p233 = por %p231, %p232
    %p234 = scmp.ne.s32.totalorder %s226, %s228
    %p235 = scmp.eq.s32.totalorder %s29, 1
    %p236 = por %p234, %p235
    %p237 = scmp.ne.s32.totalorder %s228, %s229
    %p238 = scmp.eq.s32.totalorder %s29, 0
    %p239 = por %p237, %p238
    %p240 = scmp.ne.s32.totalorder %s228, %s229
    %p241 = scmp.eq.s32.totalorder %s30, 1
    %p242 = por %p240, %p241
    %p244 = scmp.ne.s32.totalorder %s229, %s243
    %p245 = scmp.eq.s32.totalorder %s30, 0
    %p246 = por %p244, %p245
    %s248 = sadd.s32 %s247, 1
    %p251 = scmp.eq.s32.totalorder %s24, 1
    %p252 = scmp.ne.s32.totalorder %s247, %s249
    %p253 = scmp.eq.s32.totalorder %s24, 0
    %p254 = por %p252, %p253
    %p255 = scmp.ne.s32.totalorder %s247, %s249
    %p256 = scmp.eq.s32.totalorder %s29, 1
    %p257 = por %p255, %p256
    %p258 = scmp.ne.s32.totalorder %s249, %s250
    %p259 = scmp.eq.s32.totalorder %s29, 0
    %p260 = por %p258, %p259
    %p261 = scmp.ne.s32.totalorder %s249, %s250
    %p262 = scmp.eq.s32.totalorder %s30, 1
    %p263 = por %p261, %p262
    %p265 = scmp.ne.s32.totalorder %s250, %s264
    %p266 = scmp.eq.s32.totalorder %s30, 0
    %p267 = por %p265, %p266
    %s269 = sadd.s32 %s268, 1
    %p272 = scmp.eq.s32.totalorder %s24, 1
    %p273 = scmp.ne.s32.totalorder %s268, %s270
    %p274 = scmp.eq.s32.totalorder %s24, 0
    %p275 = por %p273, %p274
    %p276 = scmp.ne.s32.totalorder %s268, %s270
    %p277 = scmp.eq.s32.totalorder %s29, 1
    %p278 = por %p276, %p277
    %p279 = scmp.ne.s32.totalorder %s270, %s271
    %p280 = scmp.eq.s32.totalorder %s29, 0
    %p281 = por %p279, %p280
    %p282 = scmp.ne.s32.totalorder %s270, %s271
    %p283 = scmp.eq.s32.totalorder %s30, 1
    %p284 = por %p282, %p283
    %p286 = scmp.ne.s32.totalorder %s271, %s285
    %p287 = scmp.eq.s32.totalorder %s30, 0
    %p288 = por %p286, %p287
    %s290 = sadd.s32 %s289, 1
    %p293 = scmp.eq.s32.totalorder %s24, 1
    %p294 = scmp.ne.s32.totalorder %s289, %s291
    %p295 = scmp.eq.s32.totalorder %s24, 0
    %p296 = por %p294, %p295
    %p297 = scmp.ne.s32.totalorder %s289, %s291
    %p298 = scmp.eq.s32.totalorder %s29, 1
    %p299 = por %p297, %p298
    %p300 = scmp.ne.s32.totalorder %s291, %s292
    %p301 = scmp.eq.s32.totalorder %s29, 0
    %p302 = por %p300, %p301
    %p303 = scmp.ne.s32.totalorder %s291, %s292
    %p304 = scmp.eq.s32.totalorder %s30, 1
    %p305 = por %p303, %p304
    %p307 = scmp.ne.s32.totalorder %s292, %s306
    %p308 = scmp.eq.s32.totalorder %s30, 0
    %p309 = por %p307, %p308
    %s311 = sadd.s32 %s310, 1
    %p314 = scmp.eq.s32.totalorder %s24, 1
    %p315 = scmp.ne.s32.totalorder %s310, %s312
    %p316 = scmp.eq.s32.totalorder %s24, 0
    %p317 = por %p315, %p316
    %p318 = scmp.ne.s32.totalorder %s310, %s312
    %p319 = scmp.eq.s32.totalorder %s29, 1
    %p320 = por %p318, %p319
    %p321 = scmp.ne.s32.totalorder %s312, %s313
    %p322 = scmp.eq.s32.totalorder %s29, 0
    %p323 = por %p321, %p322
    %p324 = scmp.ne.s32.totalorder %s312, %s313
    %p325 = scmp.eq.s32.totalorder %s30, 1
    %p326 = por %p324, %p325
    %p328 = scmp.ne.s32.totalorder %s313, %s327
    %p329 = scmp.eq.s32.totalorder %s30, 0
    %p330 = por %p328, %p329
    %s332 = sadd.s32 %s331, 1
    %p335 = scmp.eq.s32.totalorder %s24, 1
    %p336 = scmp.ne.s32.totalorder %s331, %s333
    %p337 = scmp.eq.s32.totalorder %s24, 0
    %p338 = por %p336, %p337
    %p339 = scmp.ne.s32.totalorder %s331, %s333
    %p340 = scmp.eq.s32.totalorder %s29, 1
    %p341 = por %p339, %p340
    %p342 = scmp.ne.s32.totalorder %s333, %s334
    %p343 = scmp.eq.s32.totalorder %s29, 0
    %p344 = por %p342, %p343
    %p345 = scmp.ne.s32.totalorder %s333, %s334
    %p346 = scmp.eq.s32.totalorder %s30, 1
    %p347 = por %p345, %p346
    %p349 = scmp.ne.s32.totalorder %s334, %s348
    %p350 = scmp.eq.s32.totalorder %s30, 0
    %p351 = por %p349, %p350
    %s353 = sadd.s32 %s352, 1
    %p356 = scmp.eq.s32.totalorder %s24, 1
    %p357 = scmp.ne.s32.totalorder %s352, %s354
    %p358 = scmp.eq.s32.totalorder %s24, 0
    %p359 = por %p357, %p358
    %p360 = scmp.ne.s32.totalorder %s352, %s354
    %p361 = scmp.eq.s32.totalorder %s29, 1
    %p362 = por %p360, %p361
    %p363 = scmp.ne.s32.totalorder %s354, %s355
    %p364 = scmp.eq.s32.totalorder %s29, 0
    %p365 = por %p363, %p364
    %p366 = scmp.ne.s32.totalorder %s354, %s355
    %p367 = scmp.eq.s32.totalorder %s30, 1
    %p368 = por %p366, %p367
    %p370 = scmp.ne.s32.totalorder %s355, %s369
    %p371 = scmp.eq.s32.totalorder %s30, 0
    %p372 = por %p370, %p371
    %s374 = sadd.s32 %s373, 1
    %p377 = scmp.eq.s32.totalorder %s24, 1
    %p378 = scmp.ne.s32.totalorder %s373, %s375
    %p379 = scmp.eq.s32.totalorder %s24, 0
    %p380 = por %p378, %p379
    %p381 = scmp.ne.s32.totalorder %s373, %s375
    %p382 = scmp.eq.s32.totalorder %s29, 1
    %p383 = por %p381, %p382
    %p384 = scmp.ne.s32.totalorder %s375, %s376
    %p385 = scmp.eq.s32.totalorder %s29, 0
    %p386 = por %p384, %p385
    %p387 = scmp.ne.s32.totalorder %s375, %s376
    %p388 = scmp.eq.s32.totalorder %s30, 1
    %p389 = por %p387, %p388
    %p391 = scmp.ne.s32.totalorder %s376, %s390
    %p392 = scmp.eq.s32.totalorder %s30, 0
    %p393 = por %p391, %p392
    %s395 = sadd.s32 %s394, 1
    %p398 = scmp.eq.s32.totalorder %s24, 1
    %p399 = scmp.ne.s32.totalorder %s394, %s396
    %p400 = scmp.eq.s32.totalorder %s24, 0
    %p401 = por %p399, %p400
    %p402 = scmp.ne.s32.totalorder %s394, %s396
    %p403 = scmp.eq.s32.totalorder %s29, 1
    %p404 = por %p402, %p403
    %p405 = scmp.ne.s32.totalorder %s396, %s397
    %p406 = scmp.eq.s32.totalorder %s29, 0
    %p407 = por %p405, %p406
    %p408 = scmp.ne.s32.totalorder %s396, %s397
    %p409 = scmp.eq.s32.totalorder %s30, 1
    %p410 = por %p408, %p409
    %p412 = scmp.ne.s32.totalorder %s397, %s411
    %p413 = scmp.eq.s32.totalorder %s30, 0
    %p414 = por %p412, %p413
    %s415 = ssub.s32 %s24, %s31
    %p416 = scmp.eq.s32.totalorder %s415, 0
    %s418 = sadd.s32 %s417, 1
    %s419 = scalar_select %p416, %s417, %s418
    %p422 = pneg %p416
    %p423 = scmp.eq.s32.totalorder %s24, 1
    %p424 = por %p422, %p423
    %p425 = scmp.ne.s32.totalorder %s417, %s420
    %p426 = scmp.eq.s32.totalorder %s24, 0
    %p427 = por %p425, %p426
    %p428 = scmp.ne.s32.totalorder %s417, %s420
    %p429 = scmp.eq.s32.totalorder %s29, 1
    %p430 = por %p428, %p429
    %p431 = scmp.ne.s32.totalorder %s420, %s421
    %p432 = scmp.eq.s32.totalorder %s29, 0
    %p433 = por %p431, %p432
    %p434 = scmp.ne.s32.totalorder %s420, %s421
    %p435 = scmp.eq.s32.totalorder %s30, 1
    %p436 = por %p434, %p435
    %p438 = scmp.ne.s32.totalorder %s421, %s437
    %p439 = scmp.eq.s32.totalorder %s30, 0
    %p440 = por %p438, %p439
    %p441 = scmp.le.s32.totalorder 1, %s24
    %p442 = scmp.lt.s32.totalorder %s24, 3
    %p443 = pnand %p441, %p442
    %p444 = pneg %p443
    // Predicated region
    $region9: #{siamese_forward.2} parent=5 // pred_check
      _
    $region10: #{siamese_forward.2} parent=5 // pred_check_branch
      %446 = sbr.rel (%p443) target = $region12
    $region11: #{siamese_forward.2} parent=5 // pred_region
      %s447 = ssub.s32 %s24, 1
      // Predicated region
      $region13: #{siamese_forward.2} parent=11 // pred_check
        %p448 = pneg %p71
      $region14: #{siamese_forward.2} parent=11 // pred_check_branch
        %450 = sbr.rel (%p448) target = $region16
      $region15: #{siamese_forward.2} parent=11 // pred_region
        _
      $region16: #{siamese_forward.2} parent=11 // pred_fallthru
        _
      // Predicated region
      $region17: #{siamese_forward.2} parent=11 // pred_check
        %p451 = pneg %p92
      $region18: #{siamese_forward.2} parent=11 // pred_check_branch
        %453 = sbr.rel (%p451) target = $region20
      $region19: #{siamese_forward.2} parent=11 // pred_region
        _
      $region20: #{siamese_forward.2} parent=11 // pred_fallthru
        _
      // Predicated region
      $region21: #{siamese_forward.2} parent=11 // pred_check
        %p454 = pneg %p113
      $region22: #{siamese_forward.2} parent=11 // pred_check_branch
        %456 = sbr.rel (%p454) target = $region24
      $region23: #{siamese_forward.2} parent=11 // pred_region
        _
      $region24: #{siamese_forward.2} parent=11 // pred_fallthru
        _
      // Predicated region
      $region25: #{siamese_forward.2} parent=11 // pred_check
        %p457 = pneg %p134
      $region26: #{siamese_forward.2} parent=11 // pred_check_branch
        %459 = sbr.rel (%p457) target = $region28
      $region27: #{siamese_forward.2} parent=11 // pred_region
        _
      $region28: #{siamese_forward.2} parent=11 // pred_fallthru
        _
      // Predicated region
      $region29: #{siamese_forward.2} parent=11 // pred_check
        %p460 = pneg %p155
      $region30: #{siamese_forward.2} parent=11 // pred_check_branch
        %462 = sbr.rel (%p460) target = $region32
      $region31: #{siamese_forward.2} parent=11 // pred_region
        _
      $region32: #{siamese_forward.2} parent=11 // pred_fallthru
        _
      // Predicated region
      $region33: #{siamese_forward.2} parent=11 // pred_check
        %p463 = pneg %p176
      $region34: #{siamese_forward.2} parent=11 // pred_check_branch
        %465 = sbr.rel (%p463) target = $region36
      $region35: #{siamese_forward.2} parent=11 // pred_region
        _
      $region36: #{siamese_forward.2} parent=11 // pred_fallthru
        _
      // Predicated region
      $region37: #{siamese_forward.2} parent=11 // pred_check
        %p466 = pneg %p197
      $region38: #{siamese_forward.2} parent=11 // pred_check_branch
        %468 = sbr.rel (%p466) target = $region40
      $region39: #{siamese_forward.2} parent=11 // pred_region
        _
      $region40: #{siamese_forward.2} parent=11 // pred_fallthru
        _
      // Predicated region
      $region41: #{siamese_forward.2} parent=11 // pred_check
        %p469 = pneg %p218
      $region42: #{siamese_forward.2} parent=11 // pred_check_branch
        %471 = sbr.rel (%p469) target = $region44
      $region43: #{siamese_forward.2} parent=11 // pred_region
        _
      $region44: #{siamese_forward.2} parent=11 // pred_fallthru
        _
      // Predicated region
      $region45: #{siamese_forward.2} parent=11 // pred_check
        %p472 = pneg %p239
      $region46: #{siamese_forward.2} parent=11 // pred_check_branch
        %474 = sbr.rel (%p472) target = $region48
      $region47: #{siamese_forward.2} parent=11 // pred_region
        _
      $region48: #{siamese_forward.2} parent=11 // pred_fallthru
        _
      // Predicated region
      $region49: #{siamese_forward.2} parent=11 // pred_check
        %p475 = pneg %p260
      $region50: #{siamese_forward.2} parent=11 // pred_check_branch
        %477 = sbr.rel (%p475) target = $region52
      $region51: #{siamese_forward.2} parent=11 // pred_region
        _
      $region52: #{siamese_forward.2} parent=11 // pred_fallthru
        _
      // Predicated region
      $region53: #{siamese_forward.2} parent=11 // pred_check
        %p478 = pneg %p281
      $region54: #{siamese_forward.2} parent=11 // pred_check_branch
        %480 = sbr.rel (%p478) target = $region56
      $region55: #{siamese_forward.2} parent=11 // pred_region
        _
      $region56: #{siamese_forward.2} parent=11 // pred_fallthru
        _
      // Predicated region
      $region57: #{siamese_forward.2} parent=11 // pred_check
        %p481 = pneg %p302
      $region58: #{siamese_forward.2} parent=11 // pred_check_branch
        %483 = sbr.rel (%p481) target = $region60
      $region59: #{siamese_forward.2} parent=11 // pred_region
        _
      $region60: #{siamese_forward.2} parent=11 // pred_fallthru
        _
      // Predicated region
      $region61: #{siamese_forward.2} parent=11 // pred_check
        %p484 = pneg %p323
      $region62: #{siamese_forward.2} parent=11 // pred_check_branch
        %486 = sbr.rel (%p484) target = $region64
      $region63: #{siamese_forward.2} parent=11 // pred_region
        _
      $region64: #{siamese_forward.2} parent=11 // pred_fallthru
        _
      // Predicated region
      $region65: #{siamese_forward.2} parent=11 // pred_check
        %p487 = pneg %p344
      $region66: #{siamese_forward.2} parent=11 // pred_check_branch
        %489 = sbr.rel (%p487) target = $region68
      $region67: #{siamese_forward.2} parent=11 // pred_region
        _
      $region68: #{siamese_forward.2} parent=11 // pred_fallthru
        _
      // Predicated region
      $region69: #{siamese_forward.2} parent=11 // pred_check
        %p490 = pneg %p365
      $region70: #{siamese_forward.2} parent=11 // pred_check_branch
        %492 = sbr.rel (%p490) target = $region72
      $region71: #{siamese_forward.2} parent=11 // pred_region
        _
      $region72: #{siamese_forward.2} parent=11 // pred_fallthru
        _
      // Predicated region
      $region73: #{siamese_forward.2} parent=11 // pred_check
        %p493 = pneg %p386
      $region74: #{siamese_forward.2} parent=11 // pred_check_branch
        %495 = sbr.rel (%p493) target = $region76
      $region75: #{siamese_forward.2} parent=11 // pred_region
        _
      $region76: #{siamese_forward.2} parent=11 // pred_fallthru
        _
      // Predicated region
      $region77: #{siamese_forward.2} parent=11 // pred_check
        %p496 = pneg %p407
      $region78: #{siamese_forward.2} parent=11 // pred_check_branch
        %498 = sbr.rel (%p496) target = $region80
      $region79: #{siamese_forward.2} parent=11 // pred_region
        _
      $region80: #{siamese_forward.2} parent=11 // pred_fallthru
        _
    $region12: #{siamese_forward.2} parent=5 // pred_fallthru
      _
    %p499 = scmp.lt.s32.totalorder %s24, 2
    // Predicated region
    $region81: #{siamese_forward.2} parent=5 // pred_check
      %p500 = pneg %p499
    $region82: #{siamese_forward.2} parent=5 // pred_check_branch
      %502 = sbr.rel (%p500) target = $region84
    $region83: #{siamese_forward.2} parent=5 // pred_region
      // Predicated region
      $region85: #{siamese_forward.2} parent=83 // pred_check
        %p503 = pneg %p44
      $region86: #{siamese_forward.2} parent=83 // pred_check_branch
        %505 = sbr.rel (%p503) target = $region88
      $region87: #{siamese_forward.2} parent=83 // pred_region
        %p506 = scmp.lt.s32.totalorder %s24, 1
        %s507 = scalar_select %p506, %s24, 1
        %s508 = smul.addr %s507, 5
        %s509 = smul.addr %s508, 8
        %s510 = scalar_lea.vmem %s0, %s509
      $region88: #{siamese_forward.2} parent=83 // pred_fallthru
        _
    $region84: #{siamese_forward.2} parent=5 // pred_fallthru
      _
    %p511 = scmp.le.s32.totalorder 1, %s24
    %p512 = scmp.lt.s32.totalorder %s24, 3
    %p513 = pnand %p511, %p512
    %p514 = pneg %p513
    // Predicated region
    $region89: #{siamese_forward.2} parent=5 // pred_check
      _
    $region90: #{siamese_forward.2} parent=5 // pred_check_branch
      %516 = sbr.rel (%p513) target = $region92
    $region91: #{siamese_forward.2} parent=5 // pred_region
      %s517 = ssub.s32 %s24, 1
      %p518 = scmp.lt.s32.totalorder %s29, 1
      %s519 = scalar_select %p518, %s29, 1
      %s520 = smul.addr %s519, 5
      %s521 = smul.addr %s520, 8
      %s522 = scalar_lea.vmem %s0, %s521
      %p523 = pneg %p50
      %p524 = pneg %p47
      %p525 = pneg %p71
      %p526 = pneg %p68
      %p527 = pneg %p92
      %p528 = pneg %p89
      %p529 = pneg %p113
      %p530 = pneg %p110
      %p531 = pneg %p134
      %p532 = pneg %p131
      %p533 = pneg %p155
      %p534 = pneg %p152
      %p535 = pneg %p176
      %p536 = pneg %p173
      %p537 = pneg %p197
      %p538 = pneg %p194
      %p539 = pneg %p218
      %p540 = pneg %p215
      %p541 = pneg %p239
      %p542 = pneg %p236
      %p543 = pneg %p260
      %p544 = pneg %p257
      %p545 = pneg %p281
      %p546 = pneg %p278
      %p547 = pneg %p302
      %p548 = pneg %p299
      %p549 = pneg %p323
      %p550 = pneg %p320
      %p551 = pneg %p344
      %p552 = pneg %p341
      %p553 = pneg %p365
      %p554 = pneg %p362
      %p555 = pneg %p386
      %p556 = pneg %p383
      %p557 = pneg %p407
      %p558 = pneg %p404
      %p559 = pneg %p433
      %p560 = pneg %p430
      %p561 = scmp.lt.s32.totalorder %s29, 1
      %s562 = scalar_select %p561, %s29, 1
      %s563 = smul.addr %s562, 4
      %s564 = smul.addr %s563, 8
      %s565 = scalar_lea.vmem %s18, %s564
      %p566 = scmp.lt.s32.totalorder %s29, 1
      %s567 = scalar_select %p566, %s29, 1
      %s568 = smul.addr %s567, 5
      %s569 = smul.addr %s568, 8
      %s570 = scalar_lea.vmem %s0, %s569
      %p571 = scmp.lt.s32.totalorder %s29, 1
      %s572 = scalar_select %p571, %s29, 1
      %s573 = smul.addr %s572, 4
      %s574 = smul.addr %s573, 8
      %s575 = scalar_lea.vmem %s18, %s574
      %v577 = vld [vmem:[%s1] sm:$0x1]
      %v578 = vld [vmem:[%s570] sm:$0xff]
      %v579 = vld [vmem:[%s570 + $0x8] sm:$0xff]
      %v580 = vld [vmem:[%s570 + $0x10] sm:$0xff]
      %v581 = vld [vmem:[%s570 + $0x18] sm:$0xff]
      %v582 = vld [vmem:[%s570 + $0x20] sm:$0x3]
      %v583 = vpack.c.bf16 %v579, %v578
      %v584 = vpack.c.bf16 %v581, %v580
      %v585 = vpack.c.bf16 %v582, %v582
      %v586 = vld [vmem:[%s2] sm:$0xf]
      %v587 = vld [vmem:[%s2 + $0x4] sm:$0xf]
      %v588 = vld [vmem:[%s2 + $0x8] sm:$0xf]
      %v589 = vld [vmem:[%s2 + $0xc] sm:$0xf]
      %v590 = vld [vmem:[%s2 + $0x10] sm:$0xf]
      %v591 = vld [vmem:[%s2 + $0x14] sm:$0xf]
      %v592 = vld [vmem:[%s2 + $0x18] sm:$0x7]
      %v593 = vld [vmem:[%s570 + $0x1] sm:$0xff]
      %v594 = vld [vmem:[%s570 + $0x9] sm:$0xff]
      %v595 = vld [vmem:[%s570 + $0x11] sm:$0xff]
      %v596 = vld [vmem:[%s570 + $0x19] sm:$0xff]
      %v597 = vld [vmem:[%s570 + $0x21] sm:$0x3]
      %v598 = vpack.c.bf16 %v594, %v593
      %v599 = vpack.c.bf16 %v596, %v595
      %v600 = vpack.c.bf16 %v597, %v597
      %s601 = scalar_lea.vmem %s2, 28
      %v602 = vld [vmem:[%s601] sm:$0xf]
      %v603 = vld [vmem:[%s601 + $0x4] sm:$0xf]
      %v604 = vld [vmem:[%s601 + $0x8] sm:$0xf]
      %v605 = vld [vmem:[%s601 + $0xc] sm:$0xf]
      %v606 = vld [vmem:[%s601 + $0x10] sm:$0xf]
      %v607 = vld [vmem:[%s601 + $0x14] sm:$0xf]
      %v608 = vld [vmem:[%s601 + $0x18] sm:$0x7]
      %v616 = vunpack.c.l.b16 %v602
      %v617 = vunpack.c.l.b16 %v603
      %v618 = vunpack.c.l.b16 %v604
      %v619 = vunpack.c.l.b16 %v605
      %v620 = vunpack.c.l.b16 %v606
      %v621 = vunpack.c.l.b16 %v607
      %v622 = vunpack.c.l.b16 %v608
      %v623 = vpack.c.b16 %v617, %v616
      %v624 = vpack.c.b16 %v619, %v618
      %v625 = vpack.c.b16 %v621, %v620
      %v626 = vpack.c.b16 %v622, %v622
      %vm630 = vcmask 441344
      %v632 = vsel %vm630, %v598, 0
      %v635 = vsel %vm630, %v599, 0
      %v638 = vsel %vm630, %v600, 0
      %vm640 = vcmask 1042432
      %v642 = vsel %vm640, %v626, 0
      %644 = vmatprep.subr.bf16.mxu0 0
      %645 = vmatpush1.bf16.msra.mxu0 %v623
      %646 = vmatprep.subr.bf16.mxu0 0
      %647 = vmatpush1.bf16.msra.mxu0 %v624
      %648 = vmatprep.subr.bf16.mxu0 0
      %649 = vmatpush1.bf16.msra.mxu0 %v625
      %650 = vmatprep.subr.bf16.mxu0 0
      %651 = vmatpush1.bf16.msra.mxu0 %v642
      %652 = vmatprep.subr.bf16.mxu0 0
      %653 = vmatpush1.bf16.msra.mxu0 0
      %654 = vmatprep.subr.bf16.mxu0 0
      %655 = vmatpush1.bf16.msra.mxu0 0
      %656 = vmatprep.subr.bf16.mxu0 0
      %657 = vmatpush1.bf16.msra.mxu0 0
      %658 = vmatprep.subr.bf16.mxu0 0
      %659 = vmatpush1.bf16.msra.mxu0 0
      %660 = vmatprep.subr.bf16.mxu0 0
      %661 = vmatpush1.bf16.msra.mxu0 0
      %662 = vmatprep.subr.bf16.mxu0 0
      %663 = vmatpush1.bf16.msra.mxu0 0
      %664 = vmatprep.subr.bf16.mxu0 0
      %665 = vmatpush1.bf16.msra.mxu0 0
      %666 = vmatprep.subr.bf16.mxu0 0
      %667 = vmatpush1.bf16.msra.mxu0 0
      %668 = vmatprep.subr.bf16.mxu0 0
      %669 = vmatpush1.bf16.msra.mxu0 0
      %670 = vmatprep.subr.bf16.mxu0 0
      %671 = vmatpush1.bf16.msra.mxu0 0
      %672 = vmatprep.subr.bf16.mxu0 0
      %673 = vmatpush1.bf16.msra.mxu0 0
      %674 = vmatprep.subr.bf16.mxu0 0
      %675 = vmatpush1.bf16.msra.mxu0 0
      %676 = vmatprep.mubr.bf16.mxu0 0
      %677 = vmatmul.mubr.bf16.gmra.mrb[0].mxu0 %v632
      %v678 = vpop.f32.mrb[0].mxu0
      %v679 = vadd.f32 0.0, %v678
      %v680 = vpop.f32.mrb[0].mxu0
      %v681 = vpop.f32.mrb[0].mxu0
      %v682 = vadd.f32 0.0, %v681
      %v683 = vpop.f32.mrb[0].mxu0
      %684 = vmatprep.mubr.bf16.mxu0 0
      %685 = vmatmul.mubr.bf16.gmra.mrb[0].mxu0 %v635
      %v686 = vpop.f32.mrb[0].mxu0
      %v687 = vadd.f32 0.0, %v686
      %v688 = vpop.f32.mrb[0].mxu0
      %v689 = vpop.f32.mrb[0].mxu0
      %v690 = vadd.f32 0.0, %v689
      %v691 = vpop.f32.mrb[0].mxu0
      %692 = vmatprep.mubr.bf16.mxu0 0
      %693 = vmatmul.mubr.bf16.gmra.mrb[0].mxu0 %v638
      %v694 = vpop.f32.mrb[0].mxu0
      %v695 = vadd.f32 0.0, %v694
      %v696 = vpop.f32.mrb[0].mxu0
      %v697 = vpop.f32.mrb[0].mxu0
      %v698 = vpop.f32.mrb[0].mxu0
      %699 = vdwg.mxu0
      %v707 = vunpack.c.l.b16 %v586
      %v708 = vunpack.c.l.b16 %v587
      %v709 = vunpack.c.l.b16 %v588
      %v710 = vunpack.c.l.b16 %v589
      %v711 = vunpack.c.l.b16 %v590
      %v712 = vunpack.c.l.b16 %v591
      %v713 = vunpack.c.l.b16 %v592
      %v714 = vpack.c.b16 %v708, %v707
      %v715 = vpack.c.b16 %v710, %v709
      %v716 = vpack.c.b16 %v712, %v711
      %v717 = vpack.c.b16 %v713, %v713
      %v722 = vsel %vm630, %v583, 0
      %v725 = vsel %vm630, %v584, 0
      %v728 = vsel %vm630, %v585, 0
      %v731 = vsel %vm640, %v717, 0
      %733 = vmatprep.subr.bf16.mxu0 0
      %734 = vmatpush1.bf16.msra.mxu0 %v714
      %735 = vmatprep.subr.bf16.mxu0 0
      %736 = vmatpush1.bf16.msra.mxu0 %v715
      %737 = vmatprep.subr.bf16.mxu0 0
      %738 = vmatpush1.bf16.msra.mxu0 %v716
      %739 = vmatprep.subr.bf16.mxu0 0
      %740 = vmatpush1.bf16.msra.mxu0 %v731
      %741 = vmatprep.subr.bf16.mxu0 0
      %742 = vmatpush1.bf16.msra.mxu0 0
      %743 = vmatprep.subr.bf16.mxu0 0
      %744 = vmatpush1.bf16.msra.mxu0 0
      %745 = vmatprep.subr.bf16.mxu0 0
      %746 = vmatpush1.bf16.msra.mxu0 0
      %747 = vmatprep.subr.bf16.mxu0 0
      %748 = vmatpush1.bf16.msra.mxu0 0
      %749 = vmatprep.subr.bf16.mxu0 0
      %750 = vmatpush1.bf16.msra.mxu0 0
      %751 = vmatprep.subr.bf16.mxu0 0
      %752 = vmatpush1.bf16.msra.mxu0 0
      %753 = vmatprep.subr.bf16.mxu0 0
      %754 = vmatpush1.bf16.msra.mxu0 0
      %755 = vmatprep.subr.bf16.mxu0 0
      %756 = vmatpush1.bf16.msra.mxu0 0
      %757 = vmatprep.subr.bf16.mxu0 0
      %758 = vmatpush1.bf16.msra.mxu0 0
      %759 = vmatprep.subr.bf16.mxu0 0
      %760 = vmatpush1.bf16.msra.mxu0 0
      %761 = vmatprep.subr.bf16.mxu0 0
      %762 = vmatpush1.bf16.msra.mxu0 0
      %763 = vmatprep.subr.bf16.mxu0 0
      %764 = vmatpush1.bf16.msra.mxu0 0
      %765 = vmatprep.mubr.bf16.mxu0 0
      %766 = vmatmul.mubr.bf16.gmra.mrb[0].mxu0 %v722
      %v767 = vpop.f32.mrb[0].mxu0
      %v768 = vadd.f32 %v679, %v767
      %v769 = vpop.f32.mrb[0].mxu0
      %v770 = vpop.f32.mrb[0].mxu0
      %v771 = vadd.f32 %v682, %v770
      %v772 = vpop.f32.mrb[0].mxu0
      %773 = vmatprep.mubr.bf16.mxu0 0
      %774 = vmatmul.mubr.bf16.gmra.mrb[0].mxu0 %v725
      %v775 = vpop.f32.mrb[0].mxu0
      %v776 = vadd.f32 %v687, %v775
      %v777 = vpop.f32.mrb[0].mxu0
      %v778 = vpop.f32.mrb[0].mxu0
      %v779 = vadd.f32 %v690, %v778
      %v780 = vpop.f32.mrb[0].mxu0
      %781 = vmatprep.mubr.bf16.mxu0 0
      %782 = vmatmul.mubr.bf16.gmra.mrb[0].mxu0 %v728
      %v783 = vpop.f32.mrb[0].mxu0
      %v784 = vadd.f32 %v695, %v783
      %v785 = vpop.f32.mrb[0].mxu0
      %v786 = vpop.f32.mrb[0].mxu0
      %v787 = vpop.f32.mrb[0].mxu0
      %788 = vdwg.mxu0
      %v789 = vld [vmem:[%s570 + $0x2] sm:$0xff]
      %v790 = vld [vmem:[%s570 + $0xa] sm:$0xff]
      %v791 = vld [vmem:[%s570 + $0x12] sm:$0xff]
      %v792 = vld [vmem:[%s570 + $0x1a] sm:$0xff]
      %v793 = vld [vmem:[%s570 + $0x22] sm:$0x3]
      %v794 = vpack.c.bf16 %v790, %v789
      %v795 = vpack.c.bf16 %v792, %v791
      %v796 = vpack.c.bf16 %v793, %v793
      %s797 = scalar_lea.vmem %s2, 56
      %v798 = vld [vmem:[%s797] sm:$0xf]
      %v799 = vld [vmem:[%s797 + $0x4] sm:$0xf]
      %v800 = vld [vmem:[%s797 + $0x8] sm:$0xf]
      %v801 = vld [vmem:[%s797 + $0xc] sm:$0xf]
      %v802 = vld [vmem:[%s797 + $0x10] sm:$0xf]
      %v803 = vld [vmem:[%s797 + $0x14] sm:$0xf]
      %v804 = vld [vmem:[%s797 + $0x18] sm:$0x7]
      %v812 = vunpack.c.l.b16 %v798
      %v813 = vunpack.c.l.b16 %v799
      %v814 = vunpack.c.l.b16 %v800
      %v815 = vunpack.c.l.b16 %v801
      %v816 = vunpack.c.l.b16 %v802
      %v817 = vunpack.c.l.b16 %v803
      %v818 = vunpack.c.l.b16 %v804
      %v819 = vpack.c.b16 %v813, %v812
      %v820 = vpack.c.b16 %v815, %v814
      %v821 = vpack.c.b16 %v817, %v816
      %v822 = vpack.c.b16 %v818, %v818
      %v827 = vsel %vm630, %v794, 0
      %v830 = vsel %vm630, %v795, 0
      %v833 = vsel %vm630, %v796, 0
      %v836 = vsel %vm640, %v822, 0
      %838 = vmatprep.subr.bf16.mxu0 0
      %839 = vmatpush1.bf16.msra.mxu0 %v819
      %840 = vmatprep.subr.bf16.mxu0 0
      %841 = vmatpush1.bf16.msra.mxu0 %v820
      %842 = vmatprep.subr.bf16.mxu0 0
      %843 = vmatpush1.bf16.msra.mxu0 %v821
      %844 = vmatprep.subr.bf16.mxu0 0
      %845 = vmatpush1.bf16.msra.mxu0 %v836
      %846 = vmatprep.subr.bf16.mxu0 0
      %847 = vmatpush1.bf16.msra.mxu0 0
      %848 = vmatprep.subr.bf16.mxu0 0
      %849 = vmatpush1.bf16.msra.mxu0 0
      %850 = vmatprep.subr.bf16.mxu0 0
      %851 = vmatpush1.bf16.msra.mxu0 0
      %852 = vmatprep.subr.bf16.mxu0 0
      %853 = vmatpush1.bf16.msra.mxu0 0
      %854 = vmatprep.subr.bf16.mxu0 0
      %855 = vmatpush1.bf16.msra.mxu0 0
      %856 = vmatprep.subr.bf16.mxu0 0
      %857 = vmatpush1.bf16.msra.mxu0 0
      %858 = vmatprep.subr.bf16.mxu0 0
      %859 = vmatpush1.bf16.msra.mxu0 0
      %860 = vmatprep.subr.bf16.mxu0 0
      %861 = vmatpush1.bf16.msra.mxu0 0
      %862 = vmatprep.subr.bf16.mxu0 0
      %863 = vmatpush1.bf16.msra.mxu0 0
      %864 = vmatprep.subr.bf16.mxu0 0
      %865 = vmatpush1.bf16.msra.mxu0 0
      %866 = vmatprep.subr.bf16.mxu0 0
      %867 = vmatpush1.bf16.msra.mxu0 0
      %868 = vmatprep.subr.bf16.mxu0 0
      %869 = vmatpush1.bf16.msra.mxu0 0
      %870 = vmatprep.mubr.bf16.mxu0 0
      %871 = vmatmul.mubr.bf16.gmra.mrb[0].mxu0 %v827
      %v872 = vpop.f32.mrb[0].mxu0
      %v873 = vadd.f32 0.0, %v872
      %v874 = vpop.f32.mrb[0].mxu0
      %v875 = vpop.f32.mrb[0].mxu0
      %v876 = vadd.f32 0.0, %v875
      %v877 = vpop.f32.mrb[0].mxu0
      %878 = vmatprep.mubr.bf16.mxu0 0
      %879 = vmatmul.mubr.bf16.gmra.mrb[0].mxu0 %v830
      %v880 = vpop.f32.mrb[0].mxu0
      %v881 = vadd.f32 0.0, %v880
      %v882 = vpop.f32.mrb[0].mxu0
      %v883 = vpop.f32.mrb[0].mxu0
      %v884 = vadd.f32 0.0, %v883
      %v885 = vpop.f32.mrb[0].mxu0
      %886 = vmatprep.mubr.bf16.mxu0 0
      %887 = vmatmul.mubr.bf16.gmra.mrb[0].mxu0 %v833
      %v888 = vpop.f32.mrb[0].mxu0
      %v889 = vadd.f32 0.0, %v888
      %v890 = vpop.f32.mrb[0].mxu0
      %v891 = vpop.f32.mrb[0].mxu0
      %v892 = vpop.f32.mrb[0].mxu0
      %893 = vdwg.mxu0
      %v894 = vadd.f32 %v768, %v873
      %v895 = vadd.f32 %v771, %v876
      %v896 = vadd.f32 %v776, %v881
      %v897 = vadd.f32 %v779, %v884
      %v898 = vadd.f32 %v784, %v889
      %v899 = vld [vmem:[%s3] sm:$0x1]
      %v901 = vlaneseq
      %v902 = vshrl.u32 %v901, 7
      %v903 = vsub.s32 0, %v902
      %v904 = vrot.slane %v899, %v903
      %v906 = vadd.f32 %v894, %v904
      %v907 = vadd.f32 %v895, %v904
      %v908 = vadd.f32 %v896, %v904
      %v909 = vadd.f32 %v897, %v904
      %v910 = vadd.f32 %v898, %v904
      %v911 = vmax.f32 %v906, 0.0
      %v912 = vmax.f32 %v907, 0.0
      %v913 = vmax.f32 %v908, 0.0
      %v914 = vmax.f32 %v909, 0.0
      %v915 = vmax.f32 %v910, 0.0
      %vm916 = vcmask 277504
      %v918 = vsel %vm916, %v577, 0
      %vm920 = vcmask 1041408
      %v922 = vsel %vm920, %v915, 0
      %924 = vmatprep.subr.mxu0 0.0
      %925 = vmatpush1.msra.mxu0 %v911
      %926 = vmatprep.subr.mxu0 0.0
      %927 = vmatpush1.msra.mxu0 %v912
      %928 = vmatprep.subr.mxu0 0.0
      %929 = vmatpush1.msra.mxu0 %v913
      %930 = vmatprep.subr.mxu0 0.0
      %931 = vmatpush1.msra.mxu0 %v914
      %932 = vmatprep.subr.mxu0 0.0
      %933 = vmatpush1.msra.mxu0 %v922
      %934 = vmatprep.subr.mxu0 0.0
      %935 = vmatpush1.msra.mxu0 0.0
      %936 = vmatprep.subr.mxu0 0.0
      %937 = vmatpush1.msra.mxu0 0.0
      %938 = vmatprep.subr.mxu0 0.0
      %939 = vmatpush1.msra.mxu0 0.0
      %940 = vmatprep.subr.mxu0 0.0
      %941 = vmatpush1.msra.mxu0 0.0
      %942 = vmatprep.subr.mxu0 0.0
      %943 = vmatpush1.msra.mxu0 0.0
      %944 = vmatprep.subr.mxu0 0.0
      %945 = vmatpush1.msra.mxu0 0.0
      %946 = vmatprep.subr.mxu0 0.0
      %947 = vmatpush1.msra.mxu0 0.0
      %948 = vmatprep.subr.mxu0 0.0
      %949 = vmatpush1.msra.mxu0 0.0
      %950 = vmatprep.subr.mxu0 0.0
      %951 = vmatpush1.msra.mxu0 0.0
      %952 = vmatprep.subr.mxu0 0.0
      %953 = vmatpush1.msra.mxu0 0.0
      %954 = vmatprep.subr.mxu0 0.0
      %955 = vmatpush1.msra.mxu0 0.0
      %956 = vmatprep.subr.mxu0 0.0
      %957 = vmatpush1.msra.mxu0 0.0
      %958 = vmatprep.subr.mxu0 0.0
      %959 = vmatpush1.msra.mxu0 0.0
      %960 = vmatprep.subr.mxu0 0.0
      %961 = vmatpush1.msra.mxu0 0.0
      %962 = vmatprep.subr.mxu0 0.0
      %963 = vmatpush1.msra.mxu0 0.0
      %964 = vmatprep.subr.mxu0 0.0
      %965 = vmatpush1.msra.mxu0 0.0
      %966 = vmatprep.subr.mxu0 0.0
      %967 = vmatpush1.msra.mxu0 0.0
      %968 = vmatprep.subr.mxu0 0.0
      %969 = vmatpush1.msra.mxu0 0.0
      %970 = vmatprep.subr.mxu0 0.0
      %971 = vmatpush1.msra.mxu0 0.0
      %972 = vmatprep.subr.mxu0 0.0
      %973 = vmatpush1.msra.mxu0 0.0
      %974 = vmatprep.subr.mxu0 0.0
      %975 = vmatpush1.msra.mxu0 0.0
      %976 = vmatprep.subr.mxu0 0.0
      %977 = vmatpush1.msra.mxu0 0.0
      %978 = vmatprep.subr.mxu0 0.0
      %979 = vmatpush1.msra.mxu0 0.0
      %980 = vmatprep.subr.mxu0 0.0
      %981 = vmatpush1.msra.mxu0 0.0
      %982 = vmatprep.subr.mxu0 0.0
      %983 = vmatpush1.msra.mxu0 0.0
      %984 = vmatprep.subr.mxu0 0.0
      %985 = vmatpush1.msra.mxu0 0.0
      %986 = vmatprep.subr.mxu0 0.0
      %987 = vmatpush1.msra.mxu0 0.0
      %988 = vmatprep.mubr.f32.mxu0 0.0
      %989 = vmatmul.mubr.f32.gmra.mrb[0].mxu0 %v918
      %v990 = vpop.f32.mrb[0].mxu0
      %v991 = vadd.f32 0.0, %v990
      %v992 = vpop.f32.mrb[0].mxu0
      %993 = vdwg.mxu0
      %v994 = vld [vmem:[%s4] sm:$0xff]
      %v995 = vld [vmem:[%s4 + $0x8] sm:$0xff]
      %v996 = vld [vmem:[%s4 + $0x10] sm:$0xff]
      %v997 = vld [vmem:[%s4 + $0x18] sm:$0xff]
      %v998 = vld [vmem:[%s4 + $0x20] sm:$0xff]
      %v999 = vld [vmem:[%s4 + $0x28] sm:$0xff]
      %v1000 = vld [vmem:[%s4 + $0x30] sm:$0xff]
      %v1001 = vld [vmem:[%s4 + $0x38] sm:$0xff]
      %vm1002 = vcmask 523264
      %v1004 = vsel %vm1002, %v991, 0
      %1006 = vmatprep.subr.mxu0 0.0
      %1007 = vmatpush1.msra.mxu0 %v994
      %1008 = vmatprep.subr.mxu0 0.0
      %1009 = vmatpush1.msra.mxu0 %v995
      %1010 = vmatprep.subr.mxu0 0.0
      %1011 = vmatpush1.msra.mxu0 %v996
      %1012 = vmatprep.subr.mxu0 0.0
      %1013 = vmatpush1.msra.mxu0 %v997
      %1014 = vmatprep.subr.mxu0 0.0
      %1015 = vmatpush1.msra.mxu0 %v998
      %1016 = vmatprep.subr.mxu0 0.0
      %1017 = vmatpush1.msra.mxu0 %v999
      %1018 = vmatprep.subr.mxu0 0.0
      %1019 = vmatpush1.msra.mxu0 %v1000
      %1020 = vmatprep.subr.mxu0 0.0
      %1021 = vmatpush1.msra.mxu0 %v1001
      %1022 = vmatprep.subr.mxu0 0.0
      %1023 = vmatpush1.msra.mxu0 0.0
      %1024 = vmatprep.subr.mxu0 0.0
      %1025 = vmatpush1.msra.mxu0 0.0
      %1026 = vmatprep.subr.mxu0 0.0
      %1027 = vmatpush1.msra.mxu0 0.0
      %1028 = vmatprep.subr.mxu0 0.0
      %1029 = vmatpush1.msra.mxu0 0.0
      %1030 = vmatprep.subr.mxu0 0.0
      %1031 = vmatpush1.msra.mxu0 0.0
      %1032 = vmatprep.subr.mxu0 0.0
      %1033 = vmatpush1.msra.mxu0 0.0
      %1034 = vmatprep.subr.mxu0 0.0
      %1035 = vmatpush1.msra.mxu0 0.0
      %1036 = vmatprep.subr.mxu0 0.0
      %1037 = vmatpush1.msra.mxu0 0.0
      %1038 = vmatprep.subr.mxu0 0.0
      %1039 = vmatpush1.msra.mxu0 0.0
      %1040 = vmatprep.subr.mxu0 0.0
      %1041 = vmatpush1.msra.mxu0 0.0
      %1042 = vmatprep.subr.mxu0 0.0
      %1043 = vmatpush1.msra.mxu0 0.0
      %1044 = vmatprep.subr.mxu0 0.0
      %1045 = vmatpush1.msra.mxu0 0.0
      %1046 = vmatprep.subr.mxu0 0.0
      %1047 = vmatpush1.msra.mxu0 0.0
      %1048 = vmatprep.subr.mxu0 0.0
      %1049 = vmatpush1.msra.mxu0 0.0
      %1050 = vmatprep.subr.mxu0 0.0
      %1051 = vmatpush1.msra.mxu0 0.0
      %1052 = vmatprep.subr.mxu0 0.0
      %1053 = vmatpush1.msra.mxu0 0.0
      %1054 = vmatprep.subr.mxu0 0.0
      %1055 = vmatpush1.msra.mxu0 0.0
      %1056 = vmatprep.subr.mxu0 0.0
      %1057 = vmatpush1.msra.mxu0 0.0
      %1058 = vmatprep.subr.mxu0 0.0
      %1059 = vmatpush1.msra.mxu0 0.0
      %1060 = vmatprep.subr.mxu0 0.0
      %1061 = vmatpush1.msra.mxu0 0.0
      %1062 = vmatprep.subr.mxu0 0.0
      %1063 = vmatpush1.msra.mxu0 0.0
      %1064 = vmatprep.subr.mxu0 0.0
      %1065 = vmatpush1.msra.mxu0 0.0
      %1066 = vmatprep.subr.mxu0 0.0
      %1067 = vmatpush1.msra.mxu0 0.0
      %1068 = vmatprep.subr.mxu0 0.0
      %1069 = vmatpush1.msra.mxu0 0.0
      %1070 = vmatprep.mubr.f32.mxu0 0.0
      %1071 = vmatmul.mubr.f32.gmra.mrb[0].mxu0 %v1004
      %v1072 = vpop.f32.mrb[0].mxu0
      %v1073 = vadd.f32 0.0, %v1072
      %v1074 = vpop.f32.mrb[0].mxu0
      %1075 = vdwg.mxu0
      %v1076 = vrcp.pop 512.0
      %v1077 = vmul.f32 %v1073, %v1076
      %v1078 = vld [vmem:[%s5] sm:$0xf]
      %vm1079 = vcmask 31744
      %v1081 = vsel %vm1079, %v1077, 0
      %vm1083 = vcmask 1043456
      %v1085 = vsel %vm1083, %v1078, 0
      %1087 = vmatprep.subr.mxu0 0.0
      %1088 = vmatpush1.msra.mxu0 %v1085
      %1089 = vmatprep.subr.mxu0 0.0
      %1090 = vmatpush1.msra.mxu0 0.0
      %1091 = vmatprep.subr.mxu0 0.0
      %1092 = vmatpush1.msra.mxu0 0.0
      %1093 = vmatprep.subr.mxu0 0.0
      %1094 = vmatpush1.msra.mxu0 0.0
      %1095 = vmatprep.subr.mxu0 0.0
      %1096 = vmatpush1.msra.mxu0 0.0
      %1097 = vmatprep.subr.mxu0 0.0
      %1098 = vmatpush1.msra.mxu0 0.0
      %1099 = vmatprep.subr.mxu0 0.0
      %1100 = vmatpush1.msra.mxu0 0.0
      %1101 = vmatprep.subr.mxu0 0.0
      %1102 = vmatpush1.msra.mxu0 0.0
      %1103 = vmatprep.subr.mxu0 0.0
      %1104 = vmatpush1.msra.mxu0 0.0
      %1105 = vmatprep.subr.mxu0 0.0
      %1106 = vmatpush1.msra.mxu0 0.0
      %1107 = vmatprep.subr.mxu0 0.0
      %1108 = vmatpush1.msra.mxu0 0.0
      %1109 = vmatprep.subr.mxu0 0.0
      %1110 = vmatpush1.msra.mxu0 0.0
      %1111 = vmatprep.subr.mxu0 0.0
      %1112 = vmatpush1.msra.mxu0 0.0
      %1113 = vmatprep.subr.mxu0 0.0
      %1114 = vmatpush1.msra.mxu0 0.0
      %1115 = vmatprep.subr.mxu0 0.0
      %1116 = vmatpush1.msra.mxu0 0.0
      %1117 = vmatprep.subr.mxu0 0.0
      %1118 = vmatpush1.msra.mxu0 0.0
      %1119 = vmatprep.subr.mxu0 0.0
      %1120 = vmatpush1.msra.mxu0 0.0
      %1121 = vmatprep.subr.mxu0 0.0
      %1122 = vmatpush1.msra.mxu0 0.0
      %1123 = vmatprep.subr.mxu0 0.0
      %1124 = vmatpush1.msra.mxu0 0.0
      %1125 = vmatprep.subr.mxu0 0.0
      %1126 = vmatpush1.msra.mxu0 0.0
      %1127 = vmatprep.subr.mxu0 0.0
      %1128 = vmatpush1.msra.mxu0 0.0
      %1129 = vmatprep.subr.mxu0 0.0
      %1130 = vmatpush1.msra.mxu0 0.0
      %1131 = vmatprep.subr.mxu0 0.0
      %1132 = vmatpush1.msra.mxu0 0.0
      %1133 = vmatprep.subr.mxu0 0.0
      %1134 = vmatpush1.msra.mxu0 0.0
      %1135 = vmatprep.subr.mxu0 0.0
      %1136 = vmatpush1.msra.mxu0 0.0
      %1137 = vmatprep.subr.mxu0 0.0
      %1138 = vmatpush1.msra.mxu0 0.0
      %1139 = vmatprep.subr.mxu0 0.0
      %1140 = vmatpush1.msra.mxu0 0.0
      %1141 = vmatprep.subr.mxu0 0.0
      %1142 = vmatpush1.msra.mxu0 0.0
      %1143 = vmatprep.subr.mxu0 0.0
      %1144 = vmatpush1.msra.mxu0 0.0
      %1145 = vmatprep.subr.mxu0 0.0
      %1146 = vmatpush1.msra.mxu0 0.0
      %1147 = vmatprep.subr.mxu0 0.0
      %1148 = vmatpush1.msra.mxu0 0.0
      %1149 = vmatprep.subr.mxu0 0.0
      %1150 = vmatpush1.msra.mxu0 0.0
      %1151 = vmatprep.mubr.f32.mxu0 0.0
      %1152 = vmatmul.mubr.f32.gmra.mrb[0].mxu0 %v1081
      %v1153 = vpop.f32.mrb[0].mxu0
      %v1154 = vadd.f32 0.0, %v1153
      %v1155 = vpop.f32.mrb[0].mxu0
      %1156 = vdwg.mxu0
      %v1157 = vlaneseq
      %v1158 = vshrl.u32 %v1157, 7
      %v1159 = vsub.s32 0, %v1158
      %v1160 = vrot.slane %v1154, %v1159
      %v1161 = vsub.f32 %v911, %v1160
      %v1162 = vsub.f32 %v912, %v1160
      %v1163 = vsub.f32 %v913, %v1160
      %v1164 = vsub.f32 %v914, %v1160
      %v1165 = vsub.f32 %v915, %v1160
      %v1166 = vmul.f32 %v1161, %v1161
      %v1167 = vmul.f32 %v1162, %v1162
      %v1168 = vmul.f32 %v1163, %v1163
      %v1169 = vmul.f32 %v1164, %v1164
      %v1170 = vmul.f32 %v1165, %v1165
      %v1172 = vsel %vm920, %v1170, 0
      %1174 = vmatprep.subr.mxu0 0.0
      %1175 = vmatpush1.msra.mxu0 %v1166
      %1176 = vmatprep.subr.mxu0 0.0
      %1177 = vmatpush1.msra.mxu0 %v1167
      %1178 = vmatprep.subr.mxu0 0.0
      %1179 = vmatpush1.msra.mxu0 %v1168
      %1180 = vmatprep.subr.mxu0 0.0
      %1181 = vmatpush1.msra.mxu0 %v1169
      %1182 = vmatprep.subr.mxu0 0.0
      %1183 = vmatpush1.msra.mxu0 %v1172
      %1184 = vmatprep.subr.mxu0 0.0
      %1185 = vmatpush1.msra.mxu0 0.0
      %1186 = vmatprep.subr.mxu0 0.0
      %1187 = vmatpush1.msra.mxu0 0.0
      %1188 = vmatprep.subr.mxu0 0.0
      %1189 = vmatpush1.msra.mxu0 0.0
      %1190 = vmatprep.subr.mxu0 0.0
      %1191 = vmatpush1.msra.mxu0 0.0
      %1192 = vmatprep.subr.mxu0 0.0
      %1193 = vmatpush1.msra.mxu0 0.0
      %1194 = vmatprep.subr.mxu0 0.0
      %1195 = vmatpush1.msra.mxu0 0.0
      %1196 = vmatprep.subr.mxu0 0.0
      %1197 = vmatpush1.msra.mxu0 0.0
      %1198 = vmatprep.subr.mxu0 0.0
      %1199 = vmatpush1.msra.mxu0 0.0
      %1200 = vmatprep.subr.mxu0 0.0
      %1201 = vmatpush1.msra.mxu0 0.0
      %1202 = vmatprep.subr.mxu0 0.0
      %1203 = vmatpush1.msra.mxu0 0.0
      %1204 = vmatprep.subr.mxu0 0.0
      %1205 = vmatpush1.msra.mxu0 0.0
      %1206 = vmatprep.subr.mxu0 0.0
      %1207 = vmatpush1.msra.mxu0 0.0
      %1208 = vmatprep.subr.mxu0 0.0
      %1209 = vmatpush1.msra.mxu0 0.0
      %1210 = vmatprep.subr.mxu0 0.0
      %1211 = vmatpush1.msra.mxu0 0.0
      %1212 = vmatprep.subr.mxu0 0.0
      %1213 = vmatpush1.msra.mxu0 0.0
      %1214 = vmatprep.subr.mxu0 0.0
      %1215 = vmatpush1.msra.mxu0 0.0
      %1216 = vmatprep.subr.mxu0 0.0
      %1217 = vmatpush1.msra.mxu0 0.0
      %1218 = vmatprep.subr.mxu0 0.0
      %1219 = vmatpush1.msra.mxu0 0.0
      %1220 = vmatprep.subr.mxu0 0.0
      %1221 = vmatpush1.msra.mxu0 0.0
      %1222 = vmatprep.subr.mxu0 0.0
      %1223 = vmatpush1.msra.mxu0 0.0
      %1224 = vmatprep.subr.mxu0 0.0
      %1225 = vmatpush1.msra.mxu0 0.0
      %1226 = vmatprep.subr.mxu0 0.0
      %1227 = vmatpush1.msra.mxu0 0.0
      %1228 = vmatprep.subr.mxu0 0.0
      %1229 = vmatpush1.msra.mxu0 0.0
      %1230 = vmatprep.subr.mxu0 0.0
      %1231 = vmatpush1.msra.mxu0 0.0
      %1232 = vmatprep.subr.mxu0 0.0
      %1233 = vmatpush1.msra.mxu0 0.0
      %1234 = vmatprep.subr.mxu0 0.0
      %1235 = vmatpush1.msra.mxu0 0.0
      %1236 = vmatprep.subr.mxu0 0.0
      %1237 = vmatpush1.msra.mxu0 0.0
      %1238 = vmatprep.mubr.f32.mxu0 0.0
      %1239 = vmatmul.mubr.f32.gmra.mrb[0].mxu0 %v918
      %v1240 = vpop.f32.mrb[0].mxu0
      %v1241 = vadd.f32 0.0, %v1240
      %v1242 = vpop.f32.mrb[0].mxu0
      %1243 = vdwg.mxu0
      %v1245 = vsel %vm1002, %v1241, 0
      %1247 = vmatprep.subr.mxu0 0.0
      %1248 = vmatpush1.msra.mxu0 %v994
      %1249 = vmatprep.subr.mxu0 0.0
      %1250 = vmatpush1.msra.mxu0 %v995
      %1251 = vmatprep.subr.mxu0 0.0
      %1252 = vmatpush1.msra.mxu0 %v996
      %1253 = vmatprep.subr.mxu0 0.0
      %1254 = vmatpush1.msra.mxu0 %v997
      %1255 = vmatprep.subr.mxu0 0.0
      %1256 = vmatpush1.msra.mxu0 %v998
      %1257 = vmatprep.subr.mxu0 0.0
      %1258 = vmatpush1.msra.mxu0 %v999
      %1259 = vmatprep.subr.mxu0 0.0
      %1260 = vmatpush1.msra.mxu0 %v1000
      %1261 = vmatprep.subr.mxu0 0.0
      %1262 = vmatpush1.msra.mxu0 %v1001
      %1263 = vmatprep.subr.mxu0 0.0
      %1264 = vmatpush1.msra.mxu0 0.0
      %1265 = vmatprep.subr.mxu0 0.0
      %1266 = vmatpush1.msra.mxu0 0.0
      %1267 = vmatprep.subr.mxu0 0.0
      %1268 = vmatpush1.msra.mxu0 0.0
      %1269 = vmatprep.subr.mxu0 0.0
      %1270 = vmatpush1.msra.mxu0 0.0
      %1271 = vmatprep.subr.mxu0 0.0
      %1272 = vmatpush1.msra.mxu0 0.0
      %1273 = vmatprep.subr.mxu0 0.0
      %1274 = vmatpush1.msra.mxu0 0.0
      %1275 = vmatprep.subr.mxu0 0.0
      %1276 = vmatpush1.msra.mxu0 0.0
      %1277 = vmatprep.subr.mxu0 0.0
      %1278 = vmatpush1.msra.mxu0 0.0
      %1279 = vmatprep.subr.mxu0 0.0
      %1280 = vmatpush1.msra.mxu0 0.0
      %1281 = vmatprep.subr.mxu0 0.0
      %1282 = vmatpush1.msra.mxu0 0.0
      %1283 = vmatprep.subr.mxu0 0.0
      %1284 = vmatpush1.msra.mxu0 0.0
      %1285 = vmatprep.subr.mxu0 0.0
      %1286 = vmatpush1.msra.mxu0 0.0
      %1287 = vmatprep.subr.mxu0 0.0
      %1288 = vmatpush1.msra.mxu0 0.0
      %1289 = vmatprep.subr.mxu0 0.0
      %1290 = vmatpush1.msra.mxu0 0.0
      %1291 = vmatprep.subr.mxu0 0.0
      %1292 = vmatpush1.msra.mxu0 0.0
      %1293 = vmatprep.subr.mxu0 0.0
      %1294 = vmatpush1.msra.mxu0 0.0
      %1295 = vmatprep.subr.mxu0 0.0
      %1296 = vmatpush1.msra.mxu0 0.0
      %1297 = vmatprep.subr.mxu0 0.0
      %1298 = vmatpush1.msra.mxu0 0.0
      %1299 = vmatprep.subr.mxu0 0.0
      %1300 = vmatpush1.msra.mxu0 0.0
      %1301 = vmatprep.subr.mxu0 0.0
      %1302 = vmatpush1.msra.mxu0 0.0
      %1303 = vmatprep.subr.mxu0 0.0
      %1304 = vmatpush1.msra.mxu0 0.0
      %1305 = vmatprep.subr.mxu0 0.0
      %1306 = vmatpush1.msra.mxu0 0.0
      %1307 = vmatprep.subr.mxu0 0.0
      %1308 = vmatpush1.msra.mxu0 0.0
      %1309 = vmatprep.subr.mxu0 0.0
      %1310 = vmatpush1.msra.mxu0 0.0
      %1311 = vmatprep.mubr.f32.mxu0 0.0
      %1312 = vmatmul.mubr.f32.gmra.mrb[0].mxu0 %v1245
      %v1313 = vpop.f32.mrb[0].mxu0
      %v1314 = vadd.f32 0.0, %v1313
      %v1315 = vpop.f32.mrb[0].mxu0
      %1316 = vdwg.mxu0
      %v1317 = vmul.f32 %v1314, %v1076
      %v1318 = vadd.f32 %v1317, 1e-05
      %v1319 = vrsqrt.pop %v1318
      %v1321 = vsel %vm1079, %v1319, 0
      %1323 = vmatprep.subr.mxu0 0.0
      %1324 = vmatpush1.msra.mxu0 %v1085
      %1325 = vmatprep.subr.mxu0 0.0
      %1326 = vmatpush1.msra.mxu0 0.0
      %1327 = vmatprep.subr.mxu0 0.0
      %1328 = vmatpush1.msra.mxu0 0.0
      %1329 = vmatprep.subr.mxu0 0.0
      %1330 = vmatpush1.msra.mxu0 0.0
      %1331 = vmatprep.subr.mxu0 0.0
      %1332 = vmatpush1.msra.mxu0 0.0
      %1333 = vmatprep.subr.mxu0 0.0
      %1334 = vmatpush1.msra.mxu0 0.0
      %1335 = vmatprep.subr.mxu0 0.0
      %1336 = vmatpush1.msra.mxu0 0.0
      %1337 = vmatprep.subr.mxu0 0.0
      %1338 = vmatpush1.msra.mxu0 0.0
      %1339 = vmatprep.subr.mxu0 0.0
      %1340 = vmatpush1.msra.mxu0 0.0
      %1341 = vmatprep.subr.mxu0 0.0
      %1342 = vmatpush1.msra.mxu0 0.0
      %1343 = vmatprep.subr.mxu0 0.0
      %1344 = vmatpush1.msra.mxu0 0.0
      %1345 = vmatprep.subr.mxu0 0.0
      %1346 = vmatpush1.msra.mxu0 0.0
      %1347 = vmatprep.subr.mxu0 0.0
      %1348 = vmatpush1.msra.mxu0 0.0
      %1349 = vmatprep.subr.mxu0 0.0
      %1350 = vmatpush1.msra.mxu0 0.0
      %1351 = vmatprep.subr.mxu0 0.0
      %1352 = vmatpush1.msra.mxu0 0.0
      %1353 = vmatprep.subr.mxu0 0.0
      %1354 = vmatpush1.msra.mxu0 0.0
      %1355 = vmatprep.subr.mxu0 0.0
      %1356 = vmatpush1.msra.mxu0 0.0
      %1357 = vmatprep.subr.mxu0 0.0
      %1358 = vmatpush1.msra.mxu0 0.0
      %1359 = vmatprep.subr.mxu0 0.0
      %1360 = vmatpush1.msra.mxu0 0.0
      %1361 = vmatprep.subr.mxu0 0.0
      %1362 = vmatpush1.msra.mxu0 0.0
      %1363 = vmatprep.subr.mxu0 0.0
      %1364 = vmatpush1.msra.mxu0 0.0
      %1365 = vmatprep.subr.mxu0 0.0
      %1366 = vmatpush1.msra.mxu0 0.0
      %1367 = vmatprep.subr.mxu0 0.0
      %1368 = vmatpush1.msra.mxu0 0.0
      %1369 = vmatprep.subr.mxu0 0.0
      %1370 = vmatpush1.msra.mxu0 0.0
      %1371 = vmatprep.subr.mxu0 0.0
      %1372 = vmatpush1.msra.mxu0 0.0
      %1373 = vmatprep.subr.mxu0 0.0
      %1374 = vmatpush1.msra.mxu0 0.0
      %1375 = vmatprep.subr.mxu0 0.0
      %1376 = vmatpush1.msra.mxu0 0.0
      %1377 = vmatprep.subr.mxu0 0.0
      %1378 = vmatpush1.msra.mxu0 0.0
      %1379 = vmatprep.subr.mxu0 0.0
      %1380 = vmatpush1.msra.mxu0 0.0
      %1381 = vmatprep.subr.mxu0 0.0
      %1382 = vmatpush1.msra.mxu0 0.0
      %1383 = vmatprep.subr.mxu0 0.0
      %1384 = vmatpush1.msra.mxu0 0.0
      %1385 = vmatprep.subr.mxu0 0.0
      %1386 = vmatpush1.msra.mxu0 0.0
      %1387 = vmatprep.mubr.f32.mxu0 0.0
      %1388 = vmatmul.mubr.f32.gmra.mrb[0].mxu0 %v1321
      %v1389 = vpop.f32.mrb[0].mxu0
      %v1390 = vadd.f32 0.0, %v1389
      %v1391 = vpop.f32.mrb[0].mxu0
      %1392 = vdwg.mxu0
      %v1393 = vlaneseq
      %v1394 = vshrl.u32 %v1393, 7
      %v1395 = vsub.s32 0, %v1394
      %v1396 = vrot.slane %v1390, %v1395
      %v1397 = vmul.f32 %v1161, %v1396
      %v1398 = vmul.f32 %v1162, %v1396
      %v1399 = vmul.f32 %v1163, %v1396
      %v1400 = vmul.f32 %v1164, %v1396
      %v1401 = vmul.f32 %v1165, %v1396
      %1402 = vst.msk [vmem:[#allocation2 + $0x1] sm:$0xff] %vm1002, %v1397
      %1403 = vst.msk [vmem:[#allocation2 + $0x9] sm:$0xff] %vm1002, %v1398
      %1404 = vst.msk [vmem:[#allocation2 + $0x11] sm:$0xff] %vm1002, %v1399
      %1405 = vst.msk [vmem:[#allocation2 + $0x19] sm:$0xff] %vm1002, %v1400
      %vm1406 = vcmask 517120
      %1407 = vst.msk [vmem:[#allocation2 + $0x21] sm:$0x3] %vm1406, %v1401
      %vm1408 = vcmask 517121
      %1409 = vst.msk [vmem:[#allocation2 - $0x1] sm:$0x2] %vm1408, %v1397
      %vm1410 = vcmask 522246
      %1411 = vst.msk [vmem:[#allocation2 + $0xb] sm:$0x40] %vm1410, %v1398
      %vm1412 = vcmask 519171
      %1413 = vst.msk [vmem:[#allocation2 + $0xf] sm:$0x8] %vm1412, %v1399
      %vm1414 = vcmask 516096
      %1415 = vst.msk [vmem:[#allocation2 + $0x23] sm:$0x1] %vm1414, %v1401
      %v1416 = vld [vmem:[#allocation2] sm:$0xff]
      %v1417 = vld [vmem:[#allocation2 + $0x8] sm:$0xff]
      %v1418 = vld [vmem:[#allocation2 + $0x10] sm:$0xff]
      %v1419 = vld [vmem:[#allocation2 + $0x18] sm:$0xff]
      %v1420 = vld [vmem:[#allocation2 + $0x20] sm:$0xf]
      %1426 = vrot.lane.b32.xlu0 %v1416, 60
      %v1427 = vpop.permute.xlu0 %1426
      %1428 = vrot.lane.b32.xlu0 %v1417, 60
      %v1429 = vpop.permute.xlu0 %1428
      %1430 = vrot.lane.b32.xlu0 %v1418, 60
      %v1431 = vpop.permute.xlu0 %1430
      %1432 = vrot.lane.b32.xlu0 %v1419, 60
      %v1433 = vpop.permute.xlu0 %1432
      %1434 = vrot.lane.b32.xlu0 %v1420, 60
      %v1435 = vpop.permute.xlu0 %1434
      %vm1441 = vcmask 556544
      %1442 = vst.msk [vmem:[#allocation2] sm:$0xff] %vm1441, %v1427
      %1443 = vst.msk [vmem:[#allocation2 + $0x8] sm:$0xff] %vm1441, %v1429
      %1444 = vst.msk [vmem:[#allocation2 + $0x10] sm:$0xff] %vm1441, %v1431
      %1445 = vst.msk [vmem:[#allocation2 + $0x18] sm:$0xff] %vm1441, %v1433
      %vm1446 = vcmask 552448
      %1447 = vst.msk [vmem:[#allocation2 + $0x20] sm:$0xf] %vm1446, %v1435
      %v1448 = vld [vmem:[#allocation2] sm:$0xff]
      %v1449 = vld [vmem:[#allocation2 + $0x8] sm:$0xff]
      %v1450 = vld [vmem:[#allocation2 + $0x10] sm:$0xff]
      %v1451 = vld [vmem:[#allocation2 + $0x18] sm:$0xff]
      %v1452 = vld [vmem:[#allocation2 + $0x20] sm:$0xf]
      %1458 = vrot.lane.b32.xlu0 %v1448, 12
      %v1459 = vpop.permute.xlu0 %1458
      %1460 = vrot.lane.b32.xlu0 %v1449, 12
      %v1461 = vpop.permute.xlu0 %1460
      %1462 = vrot.lane.b32.xlu0 %v1450, 12
      %v1463 = vpop.permute.xlu0 %1462
      %1464 = vrot.lane.b32.xlu0 %v1451, 12
      %v1465 = vpop.permute.xlu0 %1464
      %1466 = vrot.lane.b32.xlu0 %v1452, 12
      %v1467 = vpop.permute.xlu0 %1466
      %vm1473 = vcmask 589344
      %1474 = vst.msk [vmem:[#allocation2] sm:$0xff] %vm1473, %v1459
      %1475 = vst.msk [vmem:[#allocation2 + $0x8] sm:$0xff] %vm1473, %v1461
      %1476 = vst.msk [vmem:[#allocation2 + $0x10] sm:$0xff] %vm1473, %v1463
      %1477 = vst.msk [vmem:[#allocation2 + $0x18] sm:$0xff] %vm1473, %v1465
      %vm1478 = vcmask 585248
      %1479 = vst.msk [vmem:[#allocation2 + $0x20] sm:$0xf] %vm1478, %v1467
      %v1480 = vld [vmem:[#allocation2] sm:$0xff]
      %v1481 = vld [vmem:[#allocation2 + $0x8] sm:$0xff]
      %v1482 = vld [vmem:[#allocation2 + $0x10] sm:$0xff]
      %v1483 = vld [vmem:[#allocation2 + $0x18] sm:$0xff]
      %v1484 = vld [vmem:[#allocation2 + $0x20] sm:$0x3]
      %v1485 = vpack.c.bf16 %v1481, %v1480
      %v1486 = vpack.c.bf16 %v1483, %v1482
      %v1487 = vpack.c.bf16 %v1484, %v1484
      %v1488 = vld [vmem:[%s6] sm:$0xf]
      %v1489 = vld [vmem:[%s6 + $0x4] sm:$0xf]
      %v1490 = vld [vmem:[%s6 + $0x8] sm:$0xf]
      %v1491 = vld [vmem:[%s6 + $0xc] sm:$0xf]
      %v1492 = vld [vmem:[%s6 + $0x10] sm:$0xf]
      %v1493 = vld [vmem:[%s6 + $0x14] sm:$0xf]
      %v1494 = vld [vmem:[%s6 + $0x18] sm:$0xf]
      %v1495 = vld [vmem:[%s6 + $0x1c] sm:$0xf]
      %v1496 = vld [vmem:[%s6 + $0x20] sm:$0xf]
      %v1497 = vld [vmem:[#allocation2 + $0x1] sm:$0xff]
      %v1498 = vld [vmem:[#allocation2 + $0x9] sm:$0xff]
      %v1499 = vld [vmem:[#allocation2 + $0x11] sm:$0xff]
      %v1500 = vld [vmem:[#allocation2 + $0x19] sm:$0xff]
      %v1501 = vld [vmem:[#allocation2 + $0x21] sm:$0x3]
      %v1502 = vpack.c.bf16 %v1498, %v1497
      %v1503 = vpack.c.bf16 %v1500, %v1499
      %v1504 = vpack.c.bf16 %v1501, %v1501
      %s1505 = scalar_lea.vmem %s6, 36
      %v1506 = vld [vmem:[%s1505] sm:$0xf]
      %v1507 = vld [vmem:[%s1505 + $0x4] sm:$0xf]
      %v1508 = vld [vmem:[%s1505 + $0x8] sm:$0xf]
      %v1509 = vld [vmem:[%s1505 + $0xc] sm:$0xf]
      %v1510 = vld [vmem:[%s1505 + $0x10] sm:$0xf]
      %v1511 = vld [vmem:[%s1505 + $0x14] sm:$0xf]
      %v1512 = vld [vmem:[%s1505 + $0x18] sm:$0xf]
      %v1513 = vld [vmem:[%s1505 + $0x1c] sm:$0xf]
      %v1514 = vld [vmem:[%s1505 + $0x20] sm:$0xf]
      %v1524 = vunpack.c.l.b16 %v1506
      %v1525 = vunpack.c.l.b16 %v1507
      %v1526 = vunpack.c.l.b16 %v1508
      %v1527 = vunpack.c.l.b16 %v1509
      %v1528 = vunpack.c.l.b16 %v1510
      %v1529 = vunpack.c.l.b16 %v1511
      %v1530 = vunpack.c.l.b16 %v1512
      %v1531 = vunpack.c.l.b16 %v1513
      %v1532 = vunpack.c.l.b16 %v1514
      %v1533 = vpack.c.b16 %v1525, %v1524
      %v1534 = vpack.c.b16 %v1527, %v1526
      %v1535 = vpack.c.b16 %v1529, %v1528
      %v1536 = vpack.c.b16 %v1531, %v1530
      %v1537 = vpack.c.b16 %v1532, %v1532
      %vm1542 = vcmask 588800
      %v1544 = vsel %vm1542, %v1502, 0
      %v1547 = vsel %vm1542, %v1503, 0
      %v1550 = vsel %vm1542, %v1504, 0
      %v1553 = vsel %vm1083, %v1537, 0
      %1555 = vmatprep.subr.bf16.mxu0 0
      %1556 = vmatpush1.bf16.msra.mxu0 %v1533
      %1557 = vmatprep.subr.bf16.mxu0 0
      %1558 = vmatpush1.bf16.msra.mxu0 %v1534
      %1559 = vmatprep.subr.bf16.mxu0 0
      %1560 = vmatpush1.bf16.msra.mxu0 %v1535
      %1561 = vmatprep.subr.bf16.mxu0 0
      %1562 = vmatpush1.bf16.msra.mxu0 %v1536
      %1563 = vmatprep.subr.bf16.mxu0 0
      %1564 = vmatpush1.bf16.msra.mxu0 %v1553
      %1565 = vmatprep.subr.bf16.mxu0 0
      %1566 = vmatpush1.bf16.msra.mxu0 0
      %1567 = vmatprep.subr.bf16.mxu0 0
      %1568 = vmatpush1.bf16.msra.mxu0 0
      %1569 = vmatprep.subr.bf16.mxu0 0
      %1570 = vmatpush1.bf16.msra.mxu0 0
      %1571 = vmatprep.subr.bf16.mxu0 0
      %1572 = vmatpush1.bf16.msra.mxu0 0
      %1573 = vmatprep.subr.bf16.mxu0 0
      %1574 = vmatpush1.bf16.msra.mxu0 0
      %1575 = vmatprep.subr.bf16.mxu0 0
      %1576 = vmatpush1.bf16.msra.mxu0 0
      %1577 = vmatprep.subr.bf16.mxu0 0
      %1578 = vmatpush1.bf16.msra.mxu0 0
      %1579 = vmatprep.subr.bf16.mxu0 0
      %1580 = vmatpush1.bf16.msra.mxu0 0
      %1581 = vmatprep.subr.bf16.mxu0 0
      %1582 = vmatpush1.bf16.msra.mxu0 0
      %1583 = vmatprep.subr.bf16.mxu0 0
      %1584 = vmatpush1.bf16.msra.mxu0 0
      %1585 = vmatprep.subr.bf16.mxu0 0
      %1586 = vmatpush1.bf16.msra.mxu0 0
      %1587 = vmatprep.mubr.bf16.mxu0 0
      %1588 = vmatmul.mubr.bf16.gmra.mrb[0].mxu0 %v1544
      %v1589 = vpop.f32.mrb[0].mxu0
      %v1590 = vadd.f32 0.0, %v1589
      %v1591 = vpop.f32.mrb[0].mxu0
      %v1592 = vpop.f32.mrb[0].mxu0
      %v1593 = vadd.f32 0.0, %v1592
      %v1594 = vpop.f32.mrb[0].mxu0
      %1595 = vmatprep.mubr.bf16.mxu0 0
      %1596 = vmatmul.mubr.bf16.gmra.mrb[0].mxu0 %v1547
      %v1597 = vpop.f32.mrb[0].mxu0
      %v1598 = vadd.f32 0.0, %v1597
      %v1599 = vpop.f32.mrb[0].mxu0
      %v1600 = vpop.f32.mrb[0].mxu0
      %v1601 = vadd.f32 0.0, %v1600
      %v1602 = vpop.f32.mrb[0].mxu0
      %1603 = vmatprep.mubr.bf16.mxu0 0
      %1604 = vmatmul.mubr.bf16.gmra.mrb[0].mxu0 %v1550
      %v1605 = vpop.f32.mrb[0].mxu0
      %v1606 = vadd.f32 0.0, %v1605
      %v1607 = vpop.f32.mrb[0].mxu0
      %v1608 = vpop.f32.mrb[0].mxu0
      %v1609 = vpop.f32.mrb[0].mxu0
      %1610 = vdwg.mxu0
      %v1620 = vunpack.c.l.b16 %v1488
      %v1621 = vunpack.c.l.b16 %v1489
      %v1622 = vunpack.c.l.b16 %v1490
      %v1623 = vunpack.c.l.b16 %v1491
      %v1624 = vunpack.c.l.b16 %v1492
      %v1625 = vunpack.c.l.b16 %v1493
      %v1626 = vunpack.c.l.b16 %v1494
      %v1627 = vunpack.c.l.b16 %v1495
      %v1628 = vunpack.c.l.b16 %v1496
      %v1629 = vpack.c.b16 %v1621, %v1620
      %v1630 = vpack.c.b16 %v1623, %v1622
      %v1631 = vpack.c.b16 %v1625, %v1624
      %v1632 = vpack.c.b16 %v1627, %v1626
      %v1633 = vpack.c.b16 %v1628, %v1628
      %v1639 = vsel %vm1542, %v1485, 0
      %v1642 = vsel %vm1542, %v1486, 0
      %v1645 = vsel %vm1542, %v1487, 0
      %v1648 = vsel %vm1083, %v1633, 0
      %1650 = vmatprep.subr.bf16.mxu0 0
      %1651 = vmatpush1.bf16.msra.mxu0 %v1629
      %1652 = vmatprep.subr.bf16.mxu0 0
      %1653 = vmatpush1.bf16.msra.mxu0 %v1630
      %1654 = vmatprep.subr.bf16.mxu0 0
      %1655 = vmatpush1.bf16.msra.mxu0 %v1631
      %1656 = vmatprep.subr.bf16.mxu0 0
      %1657 = vmatpush1.bf16.msra.mxu0 %v1632
      %1658 = vmatprep.subr.bf16.mxu0 0
      %1659 = vmatpush1.bf16.msra.mxu0 %v1648
      %1660 = vmatprep.subr.bf16.mxu0 0
      %1661 = vmatpush1.bf16.msra.mxu0 0
      %1662 = vmatprep.subr.bf16.mxu0 0
      %1663 = vmatpush1.bf16.msra.mxu0 0
      %1664 = vmatprep.subr.bf16.mxu0 0
      %1665 = vmatpush1.bf16.msra.mxu0 0
      %1666 = vmatprep.subr.bf16.mxu0 0
      %1667 = vmatpush1.bf16.msra.mxu0 0
      %1668 = vmatprep.subr.bf16.mxu0 0
      %1669 = vmatpush1.bf16.msra.mxu0 0
      %1670 = vmatprep.subr.bf16.mxu0 0
      %1671 = vmatpush1.bf16.msra.mxu0 0
      %1672 = vmatprep.subr.bf16.mxu0 0
      %1673 = vmatpush1.bf16.msra.mxu0 0
      %1674 = vmatprep.subr.bf16.mxu0 0
      %1675 = vmatpush1.bf16.msra.mxu0 0
      %1676 = vmatprep.subr.bf16.mxu0 0
      %1677 = vmatpush1.bf16.msra.mxu0 0
      %1678 = vmatprep.subr.bf16.mxu0 0
      %1679 = vmatpush1.bf16.msra.mxu0 0
      %1680 = vmatprep.subr.bf16.mxu0 0
      %1681 = vmatpush1.bf16.msra.mxu0 0
      %1682 = vmatprep.mubr.bf16.mxu0 0
      %1683 = vmatmul.mubr.bf16.gmra.mrb[0].mxu0 %v1639
      %v1684 = vpop.f32.mrb[0].mxu0
      %v1685 = vadd.f32 %v1590, %v1684
      %v1686 = vpop.f32.mrb[0].mxu0
      %v1687 = vpop.f32.mrb[0].mxu0
      %v1688 = vadd.f32 %v1593, %v1687
      %v1689 = vpop.f32.mrb[0].mxu0
      %1690 = vmatprep.mubr.bf16.mxu0 0
      %1691 = vmatmul.mubr.bf16.gmra.mrb[0].mxu0 %v1642
      %v1692 = vpop.f32.mrb[0].mxu0
      %v1693 = vadd.f32 %v1598, %v1692
      %v1694 = vpop.f32.mrb[0].mxu0
      %v1695 = vpop.f32.mrb[0].mxu0
      %v1696 = vadd.f32 %v1601, %v1695
      %v1697 = vpop.f32.mrb[0].mxu0
      %1698 = vmatprep.mubr.bf16.mxu0 0
      %1699 = vmatmul.mubr.bf16.gmra.mrb[0].mxu0 %v1645
      %v1700 = vpop.f32.mrb[0].mxu0
      %v1701 = vadd.f32 %v1606, %v1700
      %v1702 = vpop.f32.mrb[0].mxu0
      %v1703 = vpop.f32.mrb[0].mxu0
      %v1704 = vpop.f32.mrb[0].mxu0
      %1705 = vdwg.mxu0
      %v1706 = vld [vmem:[#allocation2 + $0x2] sm:$0xff]
      %v1707 = vld [vmem:[#allocation2 + $0xa] sm:$0xff]
      %v1708 = vld [vmem:[#allocation2 + $0x12] sm:$0xff]
      %v1709 = vld [vmem:[#allocation2 + $0x1a] sm:$0xff]
      %v1710 = vld [vmem:[#allocation2 + $0x22] sm:$0x3]
      %v1711 = vpack.c.bf16 %v1707, %v1706
      %v1712 = vpack.c.bf16 %v1709, %v1708
      %v1713 = vpack.c.bf16 %v1710, %v1710
      %s1714 = scalar_lea.vmem %s6, 72
      %v1715 = vld [vmem:[%s1714] sm:$0xf]
      %v1716 = vld [vmem:[%s1714 + $0x4] sm:$0xf]
      %v1717 = vld [vmem:[%s1714 + $0x8] sm:$0xf]
      %v1718 = vld [vmem:[%s1714 + $0xc] sm:$0xf]
      %v1719 = vld [vmem:[%s1714 + $0x10] sm:$0xf]
      %v1720 = vld [vmem:[%s1714 + $0x14] sm:$0xf]
      %v1721 = vld [vmem:[%s1714 + $0x18] sm:$0xf]
      %v1722 = vld [vmem:[%s1714 + $0x1c] sm:$0xf]
      %v1723 = vld [vmem:[%s1714 + $0x20] sm:$0xf]
      %v1733 = vunpack.c.l.b16 %v1715
      %v1734 = vunpack.c.l.b16 %v1716
      %v1735 = vunpack.c.l.b16 %v1717
      %v1736 = vunpack.c.l.b16 %v1718
      %v1737 = vunpack.c.l.b16 %v1719
      %v1738 = vunpack.c.l.b16 %v1720
      %v1739 = vunpack.c.l.b16 %v1721
      %v1740 = vunpack.c.l.b16 %v1722
      %v1741 = vunpack.c.l.b16 %v1723
      %v1742 = vpack.c.b16 %v1734, %v1733
      %v1743 = vpack.c.b16 %v1736, %v1735
      %v1744 = vpack.c.b16 %v1738, %v1737
      %v1745 = vpack.c.b16 %v1740, %v1739
      %v1746 = vpack.c.b16 %v1741, %v1741
      %v1752 = vsel %vm1542, %v1711, 0
      %v1755 = vsel %vm1542, %v1712, 0
      %v1758 = vsel %vm1542, %v1713, 0
      %v1761 = vsel %vm1083, %v1746, 0
      %1763 = vmatprep.subr.bf16.mxu0 0
      %1764 = vmatpush1.bf16.msra.mxu0 %v1742
      %1765 = vmatprep.subr.bf16.mxu0 0
      %1766 = vmatpush1.bf16.msra.mxu0 %v1743
      %1767 = vmatprep.subr.bf16.mxu0 0
      %1768 = vmatpush1.bf16.msra.mxu0 %v1744
      %1769 = vmatprep.subr.bf16.mxu0 0
      %1770 = vmatpush1.bf16.msra.mxu0 %v1745
      %1771 = vmatprep.subr.bf16.mxu0 0
      %1772 = vmatpush1.bf16.msra.mxu0 %v1761
      %1773 = vmatprep.subr.bf16.mxu0 0
      %1774 = vmatpush1.bf16.msra.mxu0 0
      %1775 = vmatprep.subr.bf16.mxu0 0
      %1776 = vmatpush1.bf16.msra.mxu0 0
      %1777 = vmatprep.subr.bf16.mxu0 0
      %1778 = vmatpush1.bf16.msra.mxu0 0
      %1779 = vmatprep.subr.bf16.mxu0 0
      %1780 = vmatpush1.bf16.msra.mxu0 0
      %1781 = vmatprep.subr.bf16.mxu0 0
      %1782 = vmatpush1.bf16.msra.mxu0 0
      %1783 = vmatprep.subr.bf16.mxu0 0
      %1784 = vmatpush1.bf16.msra.mxu0 0
      %1785 = vmatprep.subr.bf16.mxu0 0
      %1786 = vmatpush1.bf16.msra.mxu0 0
      %1787 = vmatprep.subr.bf16.mxu0 0
      %1788 = vmatpush1.bf16.msra.mxu0 0
      %1789 = vmatprep.subr.bf16.mxu0 0
      %1790 = vmatpush1.bf16.msra.mxu0 0
      %1791 = vmatprep.subr.bf16.mxu0 0
      %1792 = vmatpush1.bf16.msra.mxu0 0
      %1793 = vmatprep.subr.bf16.mxu0 0
      %1794 = vmatpush1.bf16.msra.mxu0 0
      %1795 = vmatprep.mubr.bf16.mxu0 0
      %1796 = vmatmul.mubr.bf16.gmra.mrb[0].mxu0 %v1752
      %v1797 = vpop.f32.mrb[0].mxu0
      %v1798 = vadd.f32 0.0, %v1797
      %v1799 = vpop.f32.mrb[0].mxu0
      %v1800 = vpop.f32.mrb[0].mxu0
      %v1801 = vadd.f32 0.0, %v1800
      %v1802 = vpop.f32.mrb[0].mxu0
      %1803 = vmatprep.mubr.bf16.mxu0 0
      %1804 = vmatmul.mubr.bf16.gmra.mrb[0].mxu0 %v1755
      %v1805 = vpop.f32.mrb[0].mxu0
      %v1806 = vadd.f32 0.0, %v1805
      %v1807 = vpop.f32.mrb[0].mxu0
      %v1808 = vpop.f32.mrb[0].mxu0
      %v1809 = vadd.f32 0.0, %v1808
      %v1810 = vpop.f32.mrb[0].mxu0
      %1811 = vmatprep.mubr.bf16.mxu0 0
      %1812 = vmatmul.mubr.bf16.gmra.mrb[0].mxu0 %v1758
      %v1813 = vpop.f32.mrb[0].mxu0
      %v1814 = vadd.f32 0.0, %v1813
      %v1815 = vpop.f32.mrb[0].mxu0
      %v1816 = vpop.f32.mrb[0].mxu0
      %v1817 = vpop.f32.mrb[0].mxu0
      %1818 = vdwg.mxu0
      %v1819 = vadd.f32 %v1685, %v1798
      %v1820 = vadd.f32 %v1688, %v1801
      %v1821 = vadd.f32 %v1693, %v1806
      %v1822 = vadd.f32 %v1696, %v1809
      %v1823 = vadd.f32 %v1701, %v1814
      %v1824 = vld [vmem:[%s7] sm:$0x1]
      %v1826 = vlaneseq
      %v1827 = vshrl.u32 %v1826, 7
      %v1828 = vsub.s32 0, %v1827
      %v1829 = vrot.slane %v1824, %v1828
      %v1831 = vadd.f32 %v1819, %v1829
      %v1832 = vadd.f32 %v1820, %v1829
      %v1833 = vadd.f32 %v1821, %v1829
      %v1834 = vadd.f32 %v1822, %v1829
      %v1835 = vadd.f32 %v1823, %v1829
      %v1836 = vmax.f32 %v1831, 0.0
      %v1837 = vmax.f32 %v1832, 0.0
      %v1838 = vmax.f32 %v1833, 0.0
      %v1839 = vmax.f32 %v1834, 0.0
      %v1840 = vmax.f32 %v1835, 0.0
      %v1842 = vsel %vm920, %v1840, 0
      %1844 = vmatprep.subr.mxu0 0.0
      %1845 = vmatpush1.msra.mxu0 %v1836
      %1846 = vmatprep.subr.mxu0 0.0
      %1847 = vmatpush1.msra.mxu0 %v1837
      %1848 = vmatprep.subr.mxu0 0.0
      %1849 = vmatpush1.msra.mxu0 %v1838
      %1850 = vmatprep.subr.mxu0 0.0
      %1851 = vmatpush1.msra.mxu0 %v1839
      %1852 = vmatprep.subr.mxu0 0.0
      %1853 = vmatpush1.msra.mxu0 %v1842
      %1854 = vmatprep.subr.mxu0 0.0
      %1855 = vmatpush1.msra.mxu0 0.0
      %1856 = vmatprep.subr.mxu0 0.0
      %1857 = vmatpush1.msra.mxu0 0.0
      %1858 = vmatprep.subr.mxu0 0.0
      %1859 = vmatpush1.msra.mxu0 0.0
      %1860 = vmatprep.subr.mxu0 0.0
      %1861 = vmatpush1.msra.mxu0 0.0
      %1862 = vmatprep.subr.mxu0 0.0
      %1863 = vmatpush1.msra.mxu0 0.0
      %1864 = vmatprep.subr.mxu0 0.0
      %1865 = vmatpush1.msra.mxu0 0.0
      %1866 = vmatprep.subr.mxu0 0.0
      %1867 = vmatpush1.msra.mxu0 0.0
      %1868 = vmatprep.subr.mxu0 0.0
      %1869 = vmatpush1.msra.mxu0 0.0
      %1870 = vmatprep.subr.mxu0 0.0
      %1871 = vmatpush1.msra.mxu0 0.0
      %1872 = vmatprep.subr.mxu0 0.0
      %1873 = vmatpush1.msra.mxu0 0.0
      %1874 = vmatprep.subr.mxu0 0.0
      %1875 = vmatpush1.msra.mxu0 0.0
      %1876 = vmatprep.subr.mxu0 0.0
      %1877 = vmatpush1.msra.mxu0 0.0
      %1878 = vmatprep.subr.mxu0 0.0
      %1879 = vmatpush1.msra.mxu0 0.0
      %1880 = vmatprep.subr.mxu0 0.0
      %1881 = vmatpush1.msra.mxu0 0.0
      %1882 = vmatprep.subr.mxu0 0.0
      %1883 = vmatpush1.msra.mxu0 0.0
      %1884 = vmatprep.subr.mxu0 0.0
      %1885 = vmatpush1.msra.mxu0 0.0
      %1886 = vmatprep.subr.mxu0 0.0
      %1887 = vmatpush1.msra.mxu0 0.0
      %1888 = vmatprep.subr.mxu0 0.0
      %1889 = vmatpush1.msra.mxu0 0.0
      %1890 = vmatprep.subr.mxu0 0.0
      %1891 = vmatpush1.msra.mxu0 0.0
      %1892 = vmatprep.subr.mxu0 0.0
      %1893 = vmatpush1.msra.mxu0 0.0
      %1894 = vmatprep.subr.mxu0 0.0
      %1895 = vmatpush1.msra.mxu0 0.0
      %1896 = vmatprep.subr.mxu0 0.0
      %1897 = vmatpush1.msra.mxu0 0.0
      %1898 = vmatprep.subr.mxu0 0.0
      %1899 = vmatpush1.msra.mxu0 0.0
      %1900 = vmatprep.subr.mxu0 0.0
      %1901 = vmatpush1.msra.mxu0 0.0
      %1902 = vmatprep.subr.mxu0 0.0
      %1903 = vmatpush1.msra.mxu0 0.0
      %1904 = vmatprep.subr.mxu0 0.0
      %1905 = vmatpush1.msra.mxu0 0.0
      %1906 = vmatprep.subr.mxu0 0.0
      %1907 = vmatpush1.msra.mxu0 0.0
      %1908 = vmatprep.mubr.f32.mxu0 0.0
      %1909 = vmatmul.mubr.f32.gmra.mrb[0].mxu0 %v918
      %v1910 = vpop.f32.mrb[0].mxu0
      %v1911 = vadd.f32 0.0, %v1910
      %v1912 = vpop.f32.mrb[0].mxu0
      %1913 = vdwg.mxu0
      %v1914 = vld [vmem:[%s8] sm:$0xff]
      %v1915 = vld [vmem:[%s8 + $0x8] sm:$0xff]
      %v1916 = vld [vmem:[%s8 + $0x10] sm:$0xff]
      %v1917 = vld [vmem:[%s8 + $0x18] sm:$0xff]
      %v1918 = vld [vmem:[%s8 + $0x20] sm:$0xff]
      %v1919 = vld [vmem:[%s8 + $0x28] sm:$0xff]
      %v1920 = vld [vmem:[%s8 + $0x30] sm:$0xff]
      %v1921 = vld [vmem:[%s8 + $0x38] sm:$0xff]
      %v1922 = vld [vmem:[%s8 + $0x40] sm:$0xff]
      %v1923 = vld [vmem:[%s8 + $0x48] sm:$0xff]
      %v1924 = vld [vmem:[%s8 + $0x50] sm:$0xff]
      %v1925 = vld [vmem:[%s8 + $0x58] sm:$0xff]
      %vm1926 = vcmask 785408
      %v1928 = vsel %vm1926, %v1911, 0
      %1930 = vmatprep.subr.mxu0 0.0
      %1931 = vmatpush1.msra.mxu0 %v1914
      %1932 = vmatprep.subr.mxu0 0.0
      %1933 = vmatpush1.msra.mxu0 %v1915
      %1934 = vmatprep.subr.mxu0 0.0
      %1935 = vmatpush1.msra.mxu0 %v1916
      %1936 = vmatprep.subr.mxu0 0.0
      %1937 = vmatpush1.msra.mxu0 %v1917
      %1938 = vmatprep.subr.mxu0 0.0
      %1939 = vmatpush1.msra.mxu0 %v1918
      %1940 = vmatprep.subr.mxu0 0.0
      %1941 = vmatpush1.msra.mxu0 %v1919
      %1942 = vmatprep.subr.mxu0 0.0
      %1943 = vmatpush1.msra.mxu0 %v1920
      %1944 = vmatprep.subr.mxu0 0.0
      %1945 = vmatpush1.msra.mxu0 %v1921
      %1946 = vmatprep.subr.mxu0 0.0
      %1947 = vmatpush1.msra.mxu0 %v1922
      %1948 = vmatprep.subr.mxu0 0.0
      %1949 = vmatpush1.msra.mxu0 %v1923
      %1950 = vmatprep.subr.mxu0 0.0
      %1951 = vmatpush1.msra.mxu0 %v1924
      %1952 = vmatprep.subr.mxu0 0.0
      %1953 = vmatpush1.msra.mxu0 %v1925
      %1954 = vmatprep.subr.mxu0 0.0
      %1955 = vmatpush1.msra.mxu0 0.0
      %1956 = vmatprep.subr.mxu0 0.0
      %1957 = vmatpush1.msra.mxu0 0.0
      %1958 = vmatprep.subr.mxu0 0.0
      %1959 = vmatpush1.msra.mxu0 0.0
      %1960 = vmatprep.subr.mxu0 0.0
      %1961 = vmatpush1.msra.mxu0 0.0
      %1962 = vmatprep.subr.mxu0 0.0
      %1963 = vmatpush1.msra.mxu0 0.0
      %1964 = vmatprep.subr.mxu0 0.0
      %1965 = vmatpush1.msra.mxu0 0.0
      %1966 = vmatprep.subr.mxu0 0.0
      %1967 = vmatpush1.msra.mxu0 0.0
      %1968 = vmatprep.subr.mxu0 0.0
      %1969 = vmatpush1.msra.mxu0 0.0
      %1970 = vmatprep.subr.mxu0 0.0
      %1971 = vmatpush1.msra.mxu0 0.0
      %1972 = vmatprep.subr.mxu0 0.0
      %1973 = vmatpush1.msra.mxu0 0.0
      %1974 = vmatprep.subr.mxu0 0.0
      %1975 = vmatpush1.msra.mxu0 0.0
      %1976 = vmatprep.subr.mxu0 0.0
      %1977 = vmatpush1.msra.mxu0 0.0
      %1978 = vmatprep.subr.mxu0 0.0
      %1979 = vmatpush1.msra.mxu0 0.0
      %1980 = vmatprep.subr.mxu0 0.0
      %1981 = vmatpush1.msra.mxu0 0.0
      %1982 = vmatprep.subr.mxu0 0.0
      %1983 = vmatpush1.msra.mxu0 0.0
      %1984 = vmatprep.subr.mxu0 0.0
      %1985 = vmatpush1.msra.mxu0 0.0
      %1986 = vmatprep.subr.mxu0 0.0
      %1987 = vmatpush1.msra.mxu0 0.0
      %1988 = vmatprep.subr.mxu0 0.0
      %1989 = vmatpush1.msra.mxu0 0.0
      %1990 = vmatprep.subr.mxu0 0.0
      %1991 = vmatpush1.msra.mxu0 0.0
      %1992 = vmatprep.subr.mxu0 0.0
      %1993 = vmatpush1.msra.mxu0 0.0
      %1994 = vmatprep.mubr.f32.mxu0 0.0
      %1995 = vmatmul.mubr.f32.gmra.mrb[0].mxu0 %v1928
      %v1996 = vpop.f32.mrb[0].mxu0
      %v1997 = vadd.f32 0.0, %v1996
      %v1998 = vpop.f32.mrb[0].mxu0
      %1999 = vdwg.mxu0
      %v2000 = vmul.f32 %v1997, %v1076
      %v2001 = vld [vmem:[%s9] sm:$0x3f]
      %vm2002 = vcmask 48128
      %v2004 = vsel %vm2002, %v2000, 0
      %vm2006 = vcmask 1045504
      %v2008 = vsel %vm2006, %v2001, 0
      %2010 = vmatprep.subr.mxu0 0.0
      %2011 = vmatpush1.msra.mxu0 %v2008
      %2012 = vmatprep.subr.mxu0 0.0
      %2013 = vmatpush1.msra.mxu0 0.0
      %2014 = vmatprep.subr.mxu0 0.0
      %2015 = vmatpush1.msra.mxu0 0.0
      %2016 = vmatprep.subr.mxu0 0.0
      %2017 = vmatpush1.msra.mxu0 0.0
      %2018 = vmatprep.subr.mxu0 0.0
      %2019 = vmatpush1.msra.mxu0 0.0
      %2020 = vmatprep.subr.mxu0 0.0
      %2021 = vmatpush1.msra.mxu0 0.0
      %2022 = vmatprep.subr.mxu0 0.0
      %2023 = vmatpush1.msra.mxu0 0.0
      %2024 = vmatprep.subr.mxu0 0.0
      %2025 = vmatpush1.msra.mxu0 0.0
      %2026 = vmatprep.subr.mxu0 0.0
      %2027 = vmatpush1.msra.mxu0 0.0
      %2028 = vmatprep.subr.mxu0 0.0
      %2029 = vmatpush1.msra.mxu0 0.0
      %2030 = vmatprep.subr.mxu0 0.0
      %2031 = vmatpush1.msra.mxu0 0.0
      %2032 = vmatprep.subr.mxu0 0.0
      %2033 = vmatpush1.msra.mxu0 0.0
      %2034 = vmatprep.subr.mxu0 0.0
      %2035 = vmatpush1.msra.mxu0 0.0
      %2036 = vmatprep.subr.mxu0 0.0
      %2037 = vmatpush1.msra.mxu0 0.0
      %2038 = vmatprep.subr.mxu0 0.0
      %2039 = vmatpush1.msra.mxu0 0.0
      %2040 = vmatprep.subr.mxu0 0.0
      %2041 = vmatpush1.msra.mxu0 0.0
      %2042 = vmatprep.subr.mxu0 0.0
      %2043 = vmatpush1.msra.mxu0 0.0
      %2044 = vmatprep.subr.mxu0 0.0
      %2045 = vmatpush1.msra.mxu0 0.0
      %2046 = vmatprep.subr.mxu0 0.0
      %2047 = vmatpush1.msra.mxu0 0.0
      %2048 = vmatprep.subr.mxu0 0.0
      %2049 = vmatpush1.msra.mxu0 0.0
      %2050 = vmatprep.subr.mxu0 0.0
      %2051 = vmatpush1.msra.mxu0 0.0
      %2052 = vmatprep.subr.mxu0 0.0
      %2053 = vmatpush1.msra.mxu0 0.0
      %2054 = vmatprep.subr.mxu0 0.0
      %2055 = vmatpush1.msra.mxu0 0.0
      %2056 = vmatprep.subr.mxu0 0.0
      %2057 = vmatpush1.msra.mxu0 0.0
      %2058 = vmatprep.subr.mxu0 0.0
      %2059 = vmatpush1.msra.mxu0 0.0
      %2060 = vmatprep.subr.mxu0 0.0
      %2061 = vmatpush1.msra.mxu0 0.0
      %2062 = vmatprep.subr.mxu0 0.0
      %2063 = vmatpush1.msra.mxu0 0.0
      %2064 = vmatprep.subr.mxu0 0.0
      %2065 = vmatpush1.msra.mxu0 0.0
      %2066 = vmatprep.subr.mxu0 0.0
      %2067 = vmatpush1.msra.mxu0 0.0
      %2068 = vmatprep.subr.mxu0 0.0
      %2069 = vmatpush1.msra.mxu0 0.0
      %2070 = vmatprep.subr.mxu0 0.0
      %2071 = vmatpush1.msra.mxu0 0.0
      %2072 = vmatprep.subr.mxu0 0.0
      %2073 = vmatpush1.msra.mxu0 0.0
      %2074 = vmatprep.mubr.f32.mxu0 0.0
      %2075 = vmatmul.mubr.f32.gmra.mrb[0].mxu0 %v2004
      %v2076 = vpop.f32.mrb[0].mxu0
      %v2077 = vadd.f32 0.0, %v2076
      %v2078 = vpop.f32.mrb[0].mxu0
      %2079 = vdwg.mxu0
      %v2080 = vlaneseq
      %v2081 = vshrl.u32 %v2080, 7
      %v2082 = vsub.s32 0, %v2081
      %v2083 = vrot.slane %v2077, %v2082
      %v2084 = vsub.f32 %v1836, %v2083
      %v2085 = vsub.f32 %v1837, %v2083
      %v2086 = vsub.f32 %v1838, %v2083
      %v2087 = vsub.f32 %v1839, %v2083
      %v2088 = vsub.f32 %v1840, %v2083
      %v2089 = vmul.f32 %v2084, %v2084
      %v2090 = vmul.f32 %v2085, %v2085
      %v2091 = vmul.f32 %v2086, %v2086
      %v2092 = vmul.f32 %v2087, %v2087
      %v2093 = vmul.f32 %v2088, %v2088
      %v2095 = vsel %vm920, %v2093, 0
      %2097 = vmatprep.subr.mxu0 0.0
      %2098 = vmatpush1.msra.mxu0 %v2089
      %2099 = vmatprep.subr.mxu0 0.0
      %2100 = vmatpush1.msra.mxu0 %v2090
      %2101 = vmatprep.subr.mxu0 0.0
      %2102 = vmatpush1.msra.mxu0 %v2091
      %2103 = vmatprep.subr.mxu0 0.0
      %2104 = vmatpush1.msra.mxu0 %v2092
      %2105 = vmatprep.subr.mxu0 0.0
      %2106 = vmatpush1.msra.mxu0 %v2095
      %2107 = vmatprep.subr.mxu0 0.0
      %2108 = vmatpush1.msra.mxu0 0.0
      %2109 = vmatprep.subr.mxu0 0.0
      %2110 = vmatpush1.msra.mxu0 0.0
      %2111 = vmatprep.subr.mxu0 0.0
      %2112 = vmatpush1.msra.mxu0 0.0
      %2113 = vmatprep.subr.mxu0 0.0
      %2114 = vmatpush1.msra.mxu0 0.0
      %2115 = vmatprep.subr.mxu0 0.0
      %2116 = vmatpush1.msra.mxu0 0.0
      %2117 = vmatprep.subr.mxu0 0.0
      %2118 = vmatpush1.msra.mxu0 0.0
      %2119 = vmatprep.subr.mxu0 0.0
      %2120 = vmatpush1.msra.mxu0 0.0
      %2121 = vmatprep.subr.mxu0 0.0
      %2122 = vmatpush1.msra.mxu0 0.0
      %2123 = vmatprep.subr.mxu0 0.0
      %2124 = vmatpush1.msra.mxu0 0.0
      %2125 = vmatprep.subr.mxu0 0.0
      %2126 = vmatpush1.msra.mxu0 0.0
      %2127 = vmatprep.subr.mxu0 0.0
      %2128 = vmatpush1.msra.mxu0 0.0
      %2129 = vmatprep.subr.mxu0 0.0
      %2130 = vmatpush1.msra.mxu0 0.0
      %2131 = vmatprep.subr.mxu0 0.0
      %2132 = vmatpush1.msra.mxu0 0.0
      %2133 = vmatprep.subr.mxu0 0.0
      %2134 = vmatpush1.msra.mxu0 0.0
      %2135 = vmatprep.subr.mxu0 0.0
      %2136 = vmatpush1.msra.mxu0 0.0
      %2137 = vmatprep.subr.mxu0 0.0
      %2138 = vmatpush1.msra.mxu0 0.0
      %2139 = vmatprep.subr.mxu0 0.0
      %2140 = vmatpush1.msra.mxu0 0.0
      %2141 = vmatprep.subr.mxu0 0.0
      %2142 = vmatpush1.msra.mxu0 0.0
      %2143 = vmatprep.subr.mxu0 0.0
      %2144 = vmatpush1.msra.mxu0 0.0
      %2145 = vmatprep.subr.mxu0 0.0
      %2146 = vmatpush1.msra.mxu0 0.0
      %2147 = vmatprep.subr.mxu0 0.0
      %2148 = vmatpush1.msra.mxu0 0.0
      %2149 = vmatprep.subr.mxu0 0.0
      %2150 = vmatpush1.msra.mxu0 0.0
      %2151 = vmatprep.subr.mxu0 0.0
      %2152 = vmatpush1.msra.mxu0 0.0
      %2153 = vmatprep.subr.mxu0 0.0
      %2154 = vmatpush1.msra.mxu0 0.0
      %2155 = vmatprep.subr.mxu0 0.0
      %2156 = vmatpush1.msra.mxu0 0.0
      %2157 = vmatprep.subr.mxu0 0.0
      %2158 = vmatpush1.msra.mxu0 0.0
      %2159 = vmatprep.subr.mxu0 0.0
      %2160 = vmatpush1.msra.mxu0 0.0
      %2161 = vmatprep.mubr.f32.mxu0 0.0
      %2162 = vmatmul.mubr.f32.gmra.mrb[0].mxu0 %v918
      %v2163 = vpop.f32.mrb[0].mxu0
      %v2164 = vadd.f32 0.0, %v2163
      %v2165 = vpop.f32.mrb[0].mxu0
      %2166 = vdwg.mxu0
      %v2168 = vsel %vm1926, %v2164, 0
      %2170 = vmatprep.subr.mxu0 0.0
      %2171 = vmatpush1.msra.mxu0 %v1914
      %2172 = vmatprep.subr.mxu0 0.0
      %2173 = vmatpush1.msra.mxu0 %v1915
      %2174 = vmatprep.subr.mxu0 0.0
      %2175 = vmatpush1.msra.mxu0 %v1916
      %2176 = vmatprep.subr.mxu0 0.0
      %2177 = vmatpush1.msra.mxu0 %v1917
      %2178 = vmatprep.subr.mxu0 0.0
      %2179 = vmatpush1.msra.mxu0 %v1918
      %2180 = vmatprep.subr.mxu0 0.0
      %2181 = vmatpush1.msra.mxu0 %v1919
      %2182 = vmatprep.subr.mxu0 0.0
      %2183 = vmatpush1.msra.mxu0 %v1920
      %2184 = vmatprep.subr.mxu0 0.0
      %2185 = vmatpush1.msra.mxu0 %v1921
      %2186 = vmatprep.subr.mxu0 0.0
      %2187 = vmatpush1.msra.mxu0 %v1922
      %2188 = vmatprep.subr.mxu0 0.0
      %2189 = vmatpush1.msra.mxu0 %v1923
      %2190 = vmatprep.subr.mxu0 0.0
      %2191 = vmatpush1.msra.mxu0 %v1924
      %2192 = vmatprep.subr.mxu0 0.0
      %2193 = vmatpush1.msra.mxu0 %v1925
      %2194 = vmatprep.subr.mxu0 0.0
      %2195 = vmatpush1.msra.mxu0 0.0
      %2196 = vmatprep.subr.mxu0 0.0
      %2197 = vmatpush1.msra.mxu0 0.0
      %2198 = vmatprep.subr.mxu0 0.0
      %2199 = vmatpush1.msra.mxu0 0.0
      %2200 = vmatprep.subr.mxu0 0.0
      %2201 = vmatpush1.msra.mxu0 0.0
      %2202 = vmatprep.subr.mxu0 0.0
      %2203 = vmatpush1.msra.mxu0 0.0
      %2204 = vmatprep.subr.mxu0 0.0
      %2205 = vmatpush1.msra.mxu0 0.0
      %2206 = vmatprep.subr.mxu0 0.0
      %2207 = vmatpush1.msra.mxu0 0.0
      %2208 = vmatprep.subr.mxu0 0.0
      %2209 = vmatpush1.msra.mxu0 0.0
      %2210 = vmatprep.subr.mxu0 0.0
      %2211 = vmatpush1.msra.mxu0 0.0
      %2212 = vmatprep.subr.mxu0 0.0
      %2213 = vmatpush1.msra.mxu0 0.0
      %2214 = vmatprep.subr.mxu0 0.0
      %2215 = vmatpush1.msra.mxu0 0.0
      %2216 = vmatprep.subr.mxu0 0.0
      %2217 = vmatpush1.msra.mxu0 0.0
      %2218 = vmatprep.subr.mxu0 0.0
      %2219 = vmatpush1.msra.mxu0 0.0
      %2220 = vmatprep.subr.mxu0 0.0
      %2221 = vmatpush1.msra.mxu0 0.0
      %2222 = vmatprep.subr.mxu0 0.0
      %2223 = vmatpush1.msra.mxu0 0.0
      %2224 = vmatprep.subr.mxu0 0.0
      %2225 = vmatpush1.msra.mxu0 0.0
      %2226 = vmatprep.subr.mxu0 0.0
      %2227 = vmatpush1.msra.mxu0 0.0
      %2228 = vmatprep.subr.mxu0 0.0
      %2229 = vmatpush1.msra.mxu0 0.0
      %2230 = vmatprep.subr.mxu0 0.0
      %2231 = vmatpush1.msra.mxu0 0.0
      %2232 = vmatprep.subr.mxu0 0.0
      %2233 = vmatpush1.msra.mxu0 0.0
      %2234 = vmatprep.mubr.f32.mxu0 0.0
      %2235 = vmatmul.mubr.f32.gmra.mrb[0].mxu0 %v2168
      %v2236 = vpop.f32.mrb[0].mxu0
      %v2237 = vadd.f32 0.0, %v2236
      %v2238 = vpop.f32.mrb[0].mxu0
      %2239 = vdwg.mxu0
      %v2240 = vmul.f32 %v2237, %v1076
      %v2241 = vadd.f32 %v2240, 1e-05
      %v2242 = vrsqrt.pop %v2241
      %v2244 = vsel %vm2002, %v2242, 0
      %2246 = vmatprep.subr.mxu0 0.0
      %2247 = vmatpush1.msra.mxu0 %v2008
      %2248 = vmatprep.subr.mxu0 0.0
      %2249 = vmatpush1.msra.mxu0 0.0
      %2250 = vmatprep.subr.mxu0 0.0
      %2251 = vmatpush1.msra.mxu0 0.0
      %2252 = vmatprep.subr.mxu0 0.0
      %2253 = vmatpush1.msra.mxu0 0.0
      %2254 = vmatprep.subr.mxu0 0.0
      %2255 = vmatpush1.msra.mxu0 0.0
      %2256 = vmatprep.subr.mxu0 0.0
      %2257 = vmatpush1.msra.mxu0 0.0
      %2258 = vmatprep.subr.mxu0 0.0
      %2259 = vmatpush1.msra.mxu0 0.0
      %2260 = vmatprep.subr.mxu0 0.0
      %2261 = vmatpush1.msra.mxu0 0.0
      %2262 = vmatprep.subr.mxu0 0.0
      %2263 = vmatpush1.msra.mxu0 0.0
      %2264 = vmatprep.subr.mxu0 0.0
      %2265 = vmatpush1.msra.mxu0 0.0
      %2266 = vmatprep.subr.mxu0 0.0
      %2267 = vmatpush1.msra.mxu0 0.0
      %2268 = vmatprep.subr.mxu0 0.0
      %2269 = vmatpush1.msra.mxu0 0.0
      %2270 = vmatprep.subr.mxu0 0.0
      %2271 = vmatpush1.msra.mxu0 0.0
      %2272 = vmatprep.subr.mxu0 0.0
      %2273 = vmatpush1.msra.mxu0 0.0
      %2274 = vmatprep.subr.mxu0 0.0
      %2275 = vmatpush1.msra.mxu0 0.0
      %2276 = vmatprep.subr.mxu0 0.0
      %2277 = vmatpush1.msra.mxu0 0.0
      %2278 = vmatprep.subr.mxu0 0.0
      %2279 = vmatpush1.msra.mxu0 0.0
      %2280 = vmatprep.subr.mxu0 0.0
      %2281 = vmatpush1.msra.mxu0 0.0
      %2282 = vmatprep.subr.mxu0 0.0
      %2283 = vmatpush1.msra.mxu0 0.0
      %2284 = vmatprep.subr.mxu0 0.0
      %2285 = vmatpush1.msra.mxu0 0.0
      %2286 = vmatprep.subr.mxu0 0.0
      %2287 = vmatpush1.msra.mxu0 0.0
      %2288 = vmatprep.subr.mxu0 0.0
      %2289 = vmatpush1.msra.mxu0 0.0
      %2290 = vmatprep.subr.mxu0 0.0
      %2291 = vmatpush1.msra.mxu0 0.0
      %2292 = vmatprep.subr.mxu0 0.0
      %2293 = vmatpush1.msra.mxu0 0.0
      %2294 = vmatprep.subr.mxu0 0.0
      %2295 = vmatpush1.msra.mxu0 0.0
      %2296 = vmatprep.subr.mxu0 0.0
      %2297 = vmatpush1.msra.mxu0 0.0
      %2298 = vmatprep.subr.mxu0 0.0
      %2299 = vmatpush1.msra.mxu0 0.0
      %2300 = vmatprep.subr.mxu0 0.0
      %2301 = vmatpush1.msra.mxu0 0.0
      %2302 = vmatprep.subr.mxu0 0.0
      %2303 = vmatpush1.msra.mxu0 0.0
      %2304 = vmatprep.subr.mxu0 0.0
      %2305 = vmatpush1.msra.mxu0 0.0
      %2306 = vmatprep.subr.mxu0 0.0
      %2307 = vmatpush1.msra.mxu0 0.0
      %2308 = vmatprep.subr.mxu0 0.0
      %2309 = vmatpush1.msra.mxu0 0.0
      %2310 = vmatprep.mubr.f32.mxu0 0.0
      %2311 = vmatmul.mubr.f32.gmra.mrb[0].mxu0 %v2244
      %v2312 = vpop.f32.mrb[0].mxu0
      %v2313 = vadd.f32 0.0, %v2312
      %v2314 = vpop.f32.mrb[0].mxu0
      %2315 = vdwg.mxu0
      %v2316 = vlaneseq
      %v2317 = vshrl.u32 %v2316, 7
      %v2318 = vsub.s32 0, %v2317
      %v2319 = vrot.slane %v2313, %v2318
      %v2320 = vmul.f32 %v2084, %v2319
      %v2321 = vmul.f32 %v2085, %v2319
      %v2322 = vmul.f32 %v2086, %v2319
      %v2323 = vmul.f32 %v2087, %v2319
      %v2324 = vmul.f32 %v2088, %v2319
      %2325 = vst.msk [vmem:[#allocation3 + $0x1] sm:$0xff] %vm1926, %v2320
      %2326 = vst.msk [vmem:[#allocation3 + $0x9] sm:$0xff] %vm1926, %v2321
      %2327 = vst.msk [vmem:[#allocation3 + $0x11] sm:$0xff] %vm1926, %v2322
      %2328 = vst.msk [vmem:[#allocation3 + $0x19] sm:$0xff] %vm1926, %v2323
      %vm2329 = vcmask 779264
      %2330 = vst.msk [vmem:[#allocation3 + $0x21] sm:$0x3] %vm2329, %v2324
      %vm2331 = vcmask 779265
      %2332 = vst.msk [vmem:[#allocation3 - $0x1] sm:$0x2] %vm2331, %v2320
      %vm2333 = vcmask 784390
      %2334 = vst.msk [vmem:[#allocation3 + $0xb] sm:$0x40] %vm2333, %v2321
      %vm2335 = vcmask 781315
      %2336 = vst.msk [vmem:[#allocation3 + $0xf] sm:$0x8] %vm2335, %v2322
      %vm2337 = vcmask 778240
      %2338 = vst.msk [vmem:[#allocation3 + $0x23] sm:$0x1] %vm2337, %v2324
      %v2339 = vld [vmem:[#allocation3] sm:$0xff]
      %v2340 = vld [vmem:[#allocation3 + $0x8] sm:$0xff]
      %v2341 = vld [vmem:[#allocation3 + $0x10] sm:$0xff]
      %v2342 = vld [vmem:[#allocation3 + $0x18] sm:$0xff]
      %v2343 = vld [vmem:[#allocation3 + $0x20] sm:$0xf]
      %2349 = vrot.lane.b32.xlu0 %v2339, 90
      %v2350 = vpop.permute.xlu0 %2349
      %2351 = vrot.lane.b32.xlu0 %v2340, 90
      %v2352 = vpop.permute.xlu0 %2351
      %2353 = vrot.lane.b32.xlu0 %v2341, 90
      %v2354 = vpop.permute.xlu0 %2353
      %2355 = vrot.lane.b32.xlu0 %v2342, 90
      %v2356 = vpop.permute.xlu0 %2355
      %2357 = vrot.lane.b32.xlu0 %v2343, 90
      %v2358 = vpop.permute.xlu0 %2357
      %vm2364 = vcmask 835328
      %2365 = vst.msk [vmem:[#allocation3] sm:$0xff] %vm2364, %v2350
      %2366 = vst.msk [vmem:[#allocation3 + $0x8] sm:$0xff] %vm2364, %v2352
      %2367 = vst.msk [vmem:[#allocation3 + $0x10] sm:$0xff] %vm2364, %v2354
      %2368 = vst.msk [vmem:[#allocation3 + $0x18] sm:$0xff] %vm2364, %v2356
      %vm2369 = vcmask 831232
      %2370 = vst.msk [vmem:[#allocation3 + $0x20] sm:$0xf] %vm2369, %v2358
      %v2371 = vld [vmem:[#allocation3] sm:$0xff]
      %v2372 = vld [vmem:[#allocation3 + $0x8] sm:$0xff]
      %v2373 = vld [vmem:[#allocation3 + $0x10] sm:$0xff]
      %v2374 = vld [vmem:[#allocation3 + $0x18] sm:$0xff]
      %v2375 = vld [vmem:[#allocation3 + $0x20] sm:$0xf]
      %2381 = vrot.lane.b32.xlu0 %v2371, 18
      %v2382 = vpop.permute.xlu0 %2381
      %2383 = vrot.lane.b32.xlu0 %v2372, 18
      %v2384 = vpop.permute.xlu0 %2383
      %2385 = vrot.lane.b32.xlu0 %v2373, 18
      %v2386 = vpop.permute.xlu0 %2385
      %2387 = vrot.lane.b32.xlu0 %v2374, 18
      %v2388 = vpop.permute.xlu0 %2387
      %2389 = vrot.lane.b32.xlu0 %v2375, 18
      %v2390 = vpop.permute.xlu0 %2389
      %vm2396 = vcmask 884528
      %2397 = vst.msk [vmem:[#allocation3] sm:$0xff] %vm2396, %v2382
      %2398 = vst.msk [vmem:[#allocation3 + $0x8] sm:$0xff] %vm2396, %v2384
      %2399 = vst.msk [vmem:[#allocation3 + $0x10] sm:$0xff] %vm2396, %v2386
      %2400 = vst.msk [vmem:[#allocation3 + $0x18] sm:$0xff] %vm2396, %v2388
      %vm2401 = vcmask 880432
      %2402 = vst.msk [vmem:[#allocation3 + $0x20] sm:$0xf] %vm2401, %v2390
      %v2403 = vld [vmem:[#allocation3] sm:$0xff]
      %v2404 = vld [vmem:[#allocation3 + $0x8] sm:$0xff]
      %v2405 = vld [vmem:[#allocation3 + $0x10] sm:$0xff]
      %v2406 = vld [vmem:[#allocation3 + $0x18] sm:$0xff]
      %v2407 = vld [vmem:[#allocation3 + $0x20] sm:$0x3]
      %v2408 = vpack.c.bf16 %v2404, %v2403
      %v2409 = vpack.c.bf16 %v2406, %v2405
      %v2410 = vpack.c.bf16 %v2407, %v2407
      %v2411 = vld [vmem:[%s10] sm:$0xf]
      %v2412 = vld [vmem:[%s10 + $0x4] sm:$0xf]
      %v2413 = vld [vmem:[%s10 + $0x8] sm:$0xf]
      %v2414 = vld [vmem:[%s10 + $0xc] sm:$0xf]
      %v2415 = vld [vmem:[%s10 + $0x10] sm:$0xf]
      %v2416 = vld [vmem:[%s10 + $0x14] sm:$0xf]
      %v2417 = vld [vmem:[%s10 + $0x18] sm:$0xf]
      %v2418 = vld [vmem:[%s10 + $0x1c] sm:$0xf]
      %v2419 = vld [vmem:[%s10 + $0x20] sm:$0xf]
      %v2420 = vld [vmem:[%s10 + $0x24] sm:$0xf]
      %v2421 = vld [vmem:[%s10 + $0x28] sm:$0xf]
      %v2422 = vld [vmem:[%s10 + $0x2c] sm:$0xf]
      %v2423 = vld [vmem:[%s10 + $0x30] sm:$0xf]
      %v2424 = vld [vmem:[%s10 + $0x34] sm:$0x3]
      %v2425 = vld [vmem:[#allocation3 + $0x1] sm:$0xff]
      %v2426 = vld [vmem:[#allocation3 + $0x9] sm:$0xff]
      %v2427 = vld [vmem:[#allocation3 + $0x11] sm:$0xff]
      %v2428 = vld [vmem:[#allocation3 + $0x19] sm:$0xff]
      %v2429 = vld [vmem:[#allocation3 + $0x21] sm:$0x3]
      %v2430 = vpack.c.bf16 %v2426, %v2425
      %v2431 = vpack.c.bf16 %v2428, %v2427
      %v2432 = vpack.c.bf16 %v2429, %v2429
      %s2433 = scalar_lea.vmem %s10, 56
      %v2434 = vld [vmem:[%s2433] sm:$0xf]
      %v2435 = vld [vmem:[%s2433 + $0x4] sm:$0xf]
      %v2436 = vld [vmem:[%s2433 + $0x8] sm:$0xf]
      %v2437 = vld [vmem:[%s2433 + $0xc] sm:$0xf]
      %v2438 = vld [vmem:[%s2433 + $0x10] sm:$0xf]
      %v2439 = vld [vmem:[%s2433 + $0x14] sm:$0xf]
      %v2440 = vld [vmem:[%s2433 + $0x18] sm:$0xf]
      %v2441 = vld [vmem:[%s2433 + $0x1c] sm:$0xf]
      %v2442 = vld [vmem:[%s2433 + $0x20] sm:$0xf]
      %v2443 = vld [vmem:[%s2433 + $0x24] sm:$0xf]
      %v2444 = vld [vmem:[%s2433 + $0x28] sm:$0xf]
      %v2445 = vld [vmem:[%s2433 + $0x2c] sm:$0xf]
      %v2446 = vld [vmem:[%s2433 + $0x30] sm:$0xf]
      %v2447 = vld [vmem:[%s2433 + $0x34] sm:$0x3]
      %v2462 = vunpack.c.l.b16 %v2434
      %v2463 = vunpack.c.l.b16 %v2435
      %v2464 = vunpack.c.l.b16 %v2436
      %v2465 = vunpack.c.l.b16 %v2437
      %v2466 = vunpack.c.l.b16 %v2438
      %v2467 = vunpack.c.l.b16 %v2439
      %v2468 = vunpack.c.l.b16 %v2440
      %v2469 = vunpack.c.l.b16 %v2441
      %v2470 = vunpack.c.l.b16 %v2442
      %v2471 = vunpack.c.l.b16 %v2443
      %v2472 = vunpack.c.l.b16 %v2444
      %v2473 = vunpack.c.l.b16 %v2445
      %v2474 = vunpack.c.l.b16 %v2446
      %v2475 = vunpack.c.l.b16 %v2447
      %v2476 = vpack.c.b16 %v2463, %v2462
      %v2477 = vpack.c.b16 %v2465, %v2464
      %v2478 = vpack.c.b16 %v2467, %v2466
      %v2479 = vpack.c.b16 %v2469, %v2468
      %v2480 = vpack.c.b16 %v2471, %v2470
      %v2481 = vpack.c.b16 %v2473, %v2472
      %v2482 = vpack.c.b16 %v2475, %v2474
      %vm2489 = vcmask 883712
      %v2491 = vsel %vm2489, %v2430, 0
      %v2494 = vsel %vm2489, %v2431, 0
      %v2497 = vsel %vm2489, %v2432, 0
      %v2500 = vsel %vm2006, %v2482, 0
      %2502 = vmatprep.subr.bf16.mxu0 0
      %2503 = vmatpush1.bf16.msra.mxu0 %v2476
      %2504 = vmatprep.subr.bf16.mxu0 0
      %2505 = vmatpush1.bf16.msra.mxu0 %v2477
      %2506 = vmatprep.subr.bf16.mxu0 0
      %2507 = vmatpush1.bf16.msra.mxu0 %v2478
      %2508 = vmatprep.subr.bf16.mxu0 0
      %2509 = vmatpush1.bf16.msra.mxu0 %v2479
      %2510 = vmatprep.subr.bf16.mxu0 0
      %2511 = vmatpush1.bf16.msra.mxu0 %v2480
      %2512 = vmatprep.subr.bf16.mxu0 0
      %2513 = vmatpush1.bf16.msra.mxu0 %v2481
      %2514 = vmatprep.subr.bf16.mxu0 0
      %2515 = vmatpush1.bf16.msra.mxu0 %v2500
      %2516 = vmatprep.subr.bf16.mxu0 0
      %2517 = vmatpush1.bf16.msra.mxu0 0
      %2518 = vmatprep.subr.bf16.mxu0 0
      %2519 = vmatpush1.bf16.msra.mxu0 0
      %2520 = vmatprep.subr.bf16.mxu0 0
      %2521 = vmatpush1.bf16.msra.mxu0 0
      %2522 = vmatprep.subr.bf16.mxu0 0
      %2523 = vmatpush1.bf16.msra.mxu0 0
      %2524 = vmatprep.subr.bf16.mxu0 0
      %2525 = vmatpush1.bf16.msra.mxu0 0
      %2526 = vmatprep.subr.bf16.mxu0 0
      %2527 = vmatpush1.bf16.msra.mxu0 0
      %2528 = vmatprep.subr.bf16.mxu0 0
      %2529 = vmatpush1.bf16.msra.mxu0 0
      %2530 = vmatprep.subr.bf16.mxu0 0
      %2531 = vmatpush1.bf16.msra.mxu0 0
      %2532 = vmatprep.subr.bf16.mxu0 0
      %2533 = vmatpush1.bf16.msra.mxu0 0
      %2534 = vmatprep.mubr.bf16.mxu0 0
      %2535 = vmatmul.mubr.bf16.gmra.mrb[0].mxu0 %v2491
      %v2536 = vpop.f32.mrb[0].mxu0
      %v2537 = vadd.f32 0.0, %v2536
      %v2538 = vpop.f32.mrb[0].mxu0
      %v2539 = vpop.f32.mrb[0].mxu0
      %v2540 = vadd.f32 0.0, %v2539
      %v2541 = vpop.f32.mrb[0].mxu0
      %2542 = vmatprep.mubr.bf16.mxu0 0
      %2543 = vmatmul.mubr.bf16.gmra.mrb[0].mxu0 %v2494
      %v2544 = vpop.f32.mrb[0].mxu0
      %v2545 = vadd.f32 0.0, %v2544
      %v2546 = vpop.f32.mrb[0].mxu0
      %v2547 = vpop.f32.mrb[0].mxu0
      %v2548 = vadd.f32 0.0, %v2547
      %v2549 = vpop.f32.mrb[0].mxu0
      %2550 = vmatprep.mubr.bf16.mxu0 0
      %2551 = vmatmul.mubr.bf16.gmra.mrb[0].mxu0 %v2497
      %v2552 = vpop.f32.mrb[0].mxu0
      %v2553 = vadd.f32 0.0, %v2552
      %v2554 = vpop.f32.mrb[0].mxu0
      %v2555 = vpop.f32.mrb[0].mxu0
      %v2556 = vpop.f32.mrb[0].mxu0
      %2557 = vdwg.mxu0
      %v2572 = vunpack.c.l.b16 %v2411
      %v2573 = vunpack.c.l.b16 %v2412
      %v2574 = vunpack.c.l.b16 %v2413
      %v2575 = vunpack.c.l.b16 %v2414
      %v2576 = vunpack.c.l.b16 %v2415
      %v2577 = vunpack.c.l.b16 %v2416
      %v2578 = vunpack.c.l.b16 %v2417
      %v2579 = vunpack.c.l.b16 %v2418
      %v2580 = vunpack.c.l.b16 %v2419
      %v2581 = vunpack.c.l.b16 %v2420
      %v2582 = vunpack.c.l.b16 %v2421
      %v2583 = vunpack.c.l.b16 %v2422
      %v2584 = vunpack.c.l.b16 %v2423
      %v2585 = vunpack.c.l.b16 %v2424
      %v2586 = vpack.c.b16 %v2573, %v2572
      %v2587 = vpack.c.b16 %v2575, %v2574
      %v2588 = vpack.c.b16 %v2577, %v2576
      %v2589 = vpack.c.b16 %v2579, %v2578
      %v2590 = vpack.c.b16 %v2581, %v2580
      %v2591 = vpack.c.b16 %v2583, %v2582
      %v2592 = vpack.c.b16 %v2585, %v2584
      %v2600 = vsel %vm2489, %v2408, 0
      %v2603 = vsel %vm2489, %v2409, 0
      %v2606 = vsel %vm2489, %v2410, 0
      %v2609 = vsel %vm2006, %v2592, 0
      %2611 = vmatprep.subr.bf16.mxu0 0
      %2612 = vmatpush1.bf16.msra.mxu0 %v2586
      %2613 = vmatprep.subr.bf16.mxu0 0
      %2614 = vmatpush1.bf16.msra.mxu0 %v2587
      %2615 = vmatprep.subr.bf16.mxu0 0
      %2616 = vmatpush1.bf16.msra.mxu0 %v2588
      %2617 = vmatprep.subr.bf16.mxu0 0
      %2618 = vmatpush1.bf16.msra.mxu0 %v2589
      %2619 = vmatprep.subr.bf16.mxu0 0
      %2620 = vmatpush1.bf16.msra.mxu0 %v2590
      %2621 = vmatprep.subr.bf16.mxu0 0
      %2622 = vmatpush1.bf16.msra.mxu0 %v2591
      %2623 = vmatprep.subr.bf16.mxu0 0
      %2624 = vmatpush1.bf16.msra.mxu0 %v2609
      %2625 = vmatprep.subr.bf16.mxu0 0
      %2626 = vmatpush1.bf16.msra.mxu0 0
      %2627 = vmatprep.subr.bf16.mxu0 0
      %2628 = vmatpush1.bf16.msra.mxu0 0
      %2629 = vmatprep.subr.bf16.mxu0 0
      %2630 = vmatpush1.bf16.msra.mxu0 0
      %2631 = vmatprep.subr.bf16.mxu0 0
      %2632 = vmatpush1.bf16.msra.mxu0 0
      %2633 = vmatprep.subr.bf16.mxu0 0
      %2634 = vmatpush1.bf16.msra.mxu0 0
      %2635 = vmatprep.subr.bf16.mxu0 0
      %2636 = vmatpush1.bf16.msra.mxu0 0
      %2637 = vmatprep.subr.bf16.mxu0 0
      %2638 = vmatpush1.bf16.msra.mxu0 0
      %2639 = vmatprep.subr.bf16.mxu0 0
      %2640 = vmatpush1.bf16.msra.mxu0 0
      %2641 = vmatprep.subr.bf16.mxu0 0
      %2642 = vmatpush1.bf16.msra.mxu0 0
      %2643 = vmatprep.mubr.bf16.mxu0 0
      %2644 = vmatmul.mubr.bf16.gmra.mrb[0].mxu0 %v2600
      %v2645 = vpop.f32.mrb[0].mxu0
      %v2646 = vadd.f32 %v2537, %v2645
      %v2647 = vpop.f32.mrb[0].mxu0
      %v2648 = vpop.f32.mrb[0].mxu0
      %v2649 = vadd.f32 %v2540, %v2648
      %v2650 = vpop.f32.mrb[0].mxu0
      %2651 = vmatprep.mubr.bf16.mxu0 0
      %2652 = vmatmul.mubr.bf16.gmra.mrb[0].mxu0 %v2603
      %v2653 = vpop.f32.mrb[0].mxu0
      %v2654 = vadd.f32 %v2545, %v2653
      %v2655 = vpop.f32.mrb[0].mxu0
      %v2656 = vpop.f32.mrb[0].mxu0
      %v2657 = vadd.f32 %v2548, %v2656
      %v2658 = vpop.f32.mrb[0].mxu0
      %2659 = vmatprep.mubr.bf16.mxu0 0
      %2660 = vmatmul.mubr.bf16.gmra.mrb[0].mxu0 %v2606
      %v2661 = vpop.f32.mrb[0].mxu0
      %v2662 = vadd.f32 %v2553, %v2661
      %v2663 = vpop.f32.mrb[0].mxu0
      %v2664 = vpop.f32.mrb[0].mxu0
      %v2665 = vpop.f32.mrb[0].mxu0
      %2666 = vdwg.mxu0
      %v2667 = vld [vmem:[#allocation3 + $0x2] sm:$0xff]
      %v2668 = vld [vmem:[#allocation3 + $0xa] sm:$0xff]
      %v2669 = vld [vmem:[#allocation3 + $0x12] sm:$0xff]
      %v2670 = vld [vmem:[#allocation3 + $0x1a] sm:$0xff]
      %v2671 = vld [vmem:[#allocation3 + $0x22] sm:$0x3]
      %v2672 = vpack.c.bf16 %v2668, %v2667
      %v2673 = vpack.c.bf16 %v2670, %v2669
      %v2674 = vpack.c.bf16 %v2671, %v2671
      %s2675 = scalar_lea.vmem %s10, 112
      %v2676 = vld [vmem:[%s2675] sm:$0xf]
      %v2677 = vld [vmem:[%s2675 + $0x4] sm:$0xf]
      %v2678 = vld [vmem:[%s2675 + $0x8] sm:$0xf]
      %v2679 = vld [vmem:[%s2675 + $0xc] sm:$0xf]
      %v2680 = vld [vmem:[%s2675 + $0x10] sm:$0xf]
      %v2681 = vld [vmem:[%s2675 + $0x14] sm:$0xf]
      %v2682 = vld [vmem:[%s2675 + $0x18] sm:$0xf]
      %v2683 = vld [vmem:[%s2675 + $0x1c] sm:$0xf]
      %v2684 = vld [vmem:[%s2675 + $0x20] sm:$0xf]
      %v2685 = vld [vmem:[%s2675 + $0x24] sm:$0xf]
      %v2686 = vld [vmem:[%s2675 + $0x28] sm:$0xf]
      %v2687 = vld [vmem:[%s2675 + $0x2c] sm:$0xf]
      %v2688 = vld [vmem:[%s2675 + $0x30] sm:$0xf]
      %v2689 = vld [vmem:[%s2675 + $0x34] sm:$0x3]
      %v2704 = vunpack.c.l.b16 %v2676
      %v2705 = vunpack.c.l.b16 %v2677
      %v2706 = vunpack.c.l.b16 %v2678
      %v2707 = vunpack.c.l.b16 %v2679
      %v2708 = vunpack.c.l.b16 %v2680
      %v2709 = vunpack.c.l.b16 %v2681
      %v2710 = vunpack.c.l.b16 %v2682
      %v2711 = vunpack.c.l.b16 %v2683
      %v2712 = vunpack.c.l.b16 %v2684
      %v2713 = vunpack.c.l.b16 %v2685
      %v2714 = vunpack.c.l.b16 %v2686
      %v2715 = vunpack.c.l.b16 %v2687
      %v2716 = vunpack.c.l.b16 %v2688
      %v2717 = vunpack.c.l.b16 %v2689
      %v2718 = vpack.c.b16 %v2705, %v2704
      %v2719 = vpack.c.b16 %v2707, %v2706
      %v2720 = vpack.c.b16 %v2709, %v2708
      %v2721 = vpack.c.b16 %v2711, %v2710
      %v2722 = vpack.c.b16 %v2713, %v2712
      %v2723 = vpack.c.b16 %v2715, %v2714
      %v2724 = vpack.c.b16 %v2717, %v2716
      %v2732 = vsel %vm2489, %v2672, 0
      %v2735 = vsel %vm2489, %v2673, 0
      %v2738 = vsel %vm2489, %v2674, 0
      %v2741 = vsel %vm2006, %v2724, 0
      %2743 = vmatprep.subr.bf16.mxu0 0
      %2744 = vmatpush1.bf16.msra.mxu0 %v2718
      %2745 = vmatprep.subr.bf16.mxu0 0
      %2746 = vmatpush1.bf16.msra.mxu0 %v2719
      %2747 = vmatprep.subr.bf16.mxu0 0
      %2748 = vmatpush1.bf16.msra.mxu0 %v2720
      %2749 = vmatprep.subr.bf16.mxu0 0
      %2750 = vmatpush1.bf16.msra.mxu0 %v2721
      %2751 = vmatprep.subr.bf16.mxu0 0
      %2752 = vmatpush1.bf16.msra.mxu0 %v2722
      %2753 = vmatprep.subr.bf16.mxu0 0
      %2754 = vmatpush1.bf16.msra.mxu0 %v2723
      %2755 = vmatprep.subr.bf16.mxu0 0
      %2756 = vmatpush1.bf16.msra.mxu0 %v2741
      %2757 = vmatprep.subr.bf16.mxu0 0
      %2758 = vmatpush1.bf16.msra.mxu0 0
      %2759 = vmatprep.subr.bf16.mxu0 0
      %2760 = vmatpush1.bf16.msra.mxu0 0
      %2761 = vmatprep.subr.bf16.mxu0 0
      %2762 = vmatpush1.bf16.msra.mxu0 0
      %2763 = vmatprep.subr.bf16.mxu0 0
      %2764 = vmatpush1.bf16.msra.mxu0 0
      %2765 = vmatprep.subr.bf16.mxu0 0
      %2766 = vmatpush1.bf16.msra.mxu0 0
      %2767 = vmatprep.subr.bf16.mxu0 0
      %2768 = vmatpush1.bf16.msra.mxu0 0
      %2769 = vmatprep.subr.bf16.mxu0 0
      %2770 = vmatpush1.bf16.msra.mxu0 0
      %2771 = vmatprep.subr.bf16.mxu0 0
      %2772 = vmatpush1.bf16.msra.mxu0 0
      %2773 = vmatprep.subr.bf16.mxu0 0
      %2774 = vmatpush1.bf16.msra.mxu0 0
      %2775 = vmatprep.mubr.bf16.mxu0 0
      %2776 = vmatmul.mubr.bf16.gmra.mrb[0].mxu0 %v2732
      %v2777 = vpop.f32.mrb[0].mxu0
      %v2778 = vadd.f32 0.0, %v2777
      %v2779 = vpop.f32.mrb[0].mxu0
      %v2780 = vpop.f32.mrb[0].mxu0
      %v2781 = vadd.f32 0.0, %v2780
      %v2782 = vpop.f32.mrb[0].mxu0
      %2783 = vmatprep.mubr.bf16.mxu0 0
      %2784 = vmatmul.mubr.bf16.gmra.mrb[0].mxu0 %v2735
      %v2785 = vpop.f32.mrb[0].mxu0
      %v2786 = vadd.f32 0.0, %v2785
      %v2787 = vpop.f32.mrb[0].mxu0
      %v2788 = vpop.f32.mrb[0].mxu0
      %v2789 = vadd.f32 0.0, %v2788
      %v2790 = vpop.f32.mrb[0].mxu0
      %2791 = vmatprep.mubr.bf16.mxu0 0
      %2792 = vmatmul.mubr.bf16.gmra.mrb[0].mxu0 %v2738
      %v2793 = vpop.f32.mrb[0].mxu0
      %v2794 = vadd.f32 0.0, %v2793
      %v2795 = vpop.f32.mrb[0].mxu0
      %v2796 = vpop.f32.mrb[0].mxu0
      %v2797 = vpop.f32.mrb[0].mxu0
      %2798 = vdwg.mxu0
      %v2799 = vadd.f32 %v2646, %v2778
      %v2800 = vadd.f32 %v2649, %v2781
      %v2801 = vadd.f32 %v2654, %v2786
      %v2802 = vadd.f32 %v2657, %v2789
      %v2803 = vadd.f32 %v2662, %v2794
      %v2804 = vld [vmem:[%s11] sm:$0x1]
      %v2806 = vlaneseq
      %v2807 = vshrl.u32 %v2806, 7
      %v2808 = vsub.s32 0, %v2807
      %v2809 = vrot.slane %v2804, %v2808
      %v2811 = vadd.f32 %v2799, %v2809
      %v2812 = vadd.f32 %v2800, %v2809
      %v2813 = vadd.f32 %v2801, %v2809
      %v2814 = vadd.f32 %v2802, %v2809
      %v2815 = vadd.f32 %v2803, %v2809
      %v2817 = vsel %vm920, %v2815, 0
      %2819 = vmatprep.subr.mxu0 0.0
      %2820 = vmatpush1.msra.mxu0 %v2811
      %2821 = vmatprep.subr.mxu0 0.0
      %2822 = vmatpush1.msra.mxu0 %v2812
      %2823 = vmatprep.subr.mxu0 0.0
      %2824 = vmatpush1.msra.mxu0 %v2813
      %2825 = vmatprep.subr.mxu0 0.0
      %2826 = vmatpush1.msra.mxu0 %v2814
      %2827 = vmatprep.subr.mxu0 0.0
      %2828 = vmatpush1.msra.mxu0 %v2817
      %2829 = vmatprep.subr.mxu0 0.0
      %2830 = vmatpush1.msra.mxu0 0.0
      %2831 = vmatprep.subr.mxu0 0.0
      %2832 = vmatpush1.msra.mxu0 0.0
      %2833 = vmatprep.subr.mxu0 0.0
      %2834 = vmatpush1.msra.mxu0 0.0
      %2835 = vmatprep.subr.mxu0 0.0
      %2836 = vmatpush1.msra.mxu0 0.0
      %2837 = vmatprep.subr.mxu0 0.0
      %2838 = vmatpush1.msra.mxu0 0.0
      %2839 = vmatprep.subr.mxu0 0.0
      %2840 = vmatpush1.msra.mxu0 0.0
      %2841 = vmatprep.subr.mxu0 0.0
      %2842 = vmatpush1.msra.mxu0 0.0
      %2843 = vmatprep.subr.mxu0 0.0
      %2844 = vmatpush1.msra.mxu0 0.0
      %2845 = vmatprep.subr.mxu0 0.0
      %2846 = vmatpush1.msra.mxu0 0.0
      %2847 = vmatprep.subr.mxu0 0.0
      %2848 = vmatpush1.msra.mxu0 0.0
      %2849 = vmatprep.subr.mxu0 0.0
      %2850 = vmatpush1.msra.mxu0 0.0
      %2851 = vmatprep.subr.mxu0 0.0
      %2852 = vmatpush1.msra.mxu0 0.0
      %2853 = vmatprep.subr.mxu0 0.0
      %2854 = vmatpush1.msra.mxu0 0.0
      %2855 = vmatprep.subr.mxu0 0.0
      %2856 = vmatpush1.msra.mxu0 0.0
      %2857 = vmatprep.subr.mxu0 0.0
      %2858 = vmatpush1.msra.mxu0 0.0
      %2859 = vmatprep.subr.mxu0 0.0
      %2860 = vmatpush1.msra.mxu0 0.0
      %2861 = vmatprep.subr.mxu0 0.0
      %2862 = vmatpush1.msra.mxu0 0.0
      %2863 = vmatprep.subr.mxu0 0.0
      %2864 = vmatpush1.msra.mxu0 0.0
      %2865 = vmatprep.subr.mxu0 0.0
      %2866 = vmatpush1.msra.mxu0 0.0
      %2867 = vmatprep.subr.mxu0 0.0
      %2868 = vmatpush1.msra.mxu0 0.0
      %2869 = vmatprep.subr.mxu0 0.0
      %2870 = vmatpush1.msra.mxu0 0.0
      %2871 = vmatprep.subr.mxu0 0.0
      %2872 = vmatpush1.msra.mxu0 0.0
      %2873 = vmatprep.subr.mxu0 0.0
      %2874 = vmatpush1.msra.mxu0 0.0
      %2875 = vmatprep.subr.mxu0 0.0
      %2876 = vmatpush1.msra.mxu0 0.0
      %2877 = vmatprep.subr.mxu0 0.0
      %2878 = vmatpush1.msra.mxu0 0.0
      %2879 = vmatprep.subr.mxu0 0.0
      %2880 = vmatpush1.msra.mxu0 0.0
      %2881 = vmatprep.subr.mxu0 0.0
      %2882 = vmatpush1.msra.mxu0 0.0
      %2883 = vmatprep.mubr.f32.mxu0 0.0
      %2884 = vmatmul.mubr.f32.gmra.mrb[0].mxu0 %v918
      %v2885 = vpop.f32.mrb[0].mxu0
      %v2886 = vadd.f32 0.0, %v2885
      %v2887 = vpop.f32.mrb[0].mxu0
      %2888 = vdwg.mxu0
      %v2889 = vld [vmem:[%s12] sm:$0xff]
      %v2890 = vld [vmem:[%s12 + $0x8] sm:$0xff]
      %v2891 = vld [vmem:[%s12 + $0x10] sm:$0xff]
      %v2892 = vld [vmem:[%s12 + $0x18] sm:$0xff]
      %v2893 = vld [vmem:[%s12 + $0x20] sm:$0xff]
      %v2894 = vld [vmem:[%s12 + $0x28] sm:$0xff]
      %v2895 = vld [vmem:[%s12 + $0x30] sm:$0xff]
      %v2896 = vld [vmem:[%s12 + $0x38] sm:$0xff]
      %v2897 = vld [vmem:[%s12 + $0x40] sm:$0xff]
      %v2898 = vld [vmem:[%s12 + $0x48] sm:$0xff]
      %v2899 = vld [vmem:[%s12 + $0x50] sm:$0xff]
      %v2900 = vld [vmem:[%s12 + $0x58] sm:$0xff]
      %v2901 = vld [vmem:[%s12 + $0x60] sm:$0xff]
      %v2902 = vld [vmem:[%s12 + $0x68] sm:$0xff]
      %v2903 = vld [vmem:[%s12 + $0x70] sm:$0xff]
      %v2904 = vld [vmem:[%s12 + $0x78] sm:$0xff]
      %2905 = vmatprep.subr.mxu0 0.0
      %2906 = vmatpush1.msra.mxu0 %v2889
      %2907 = vmatprep.subr.mxu0 0.0
      %2908 = vmatpush1.msra.mxu0 %v2890
      %2909 = vmatprep.subr.mxu0 0.0
      %2910 = vmatpush1.msra.mxu0 %v2891
      %2911 = vmatprep.subr.mxu0 0.0
      %2912 = vmatpush1.msra.mxu0 %v2892
      %2913 = vmatprep.subr.mxu0 0.0
      %2914 = vmatpush1.msra.mxu0 %v2893
      %2915 = vmatprep.subr.mxu0 0.0
      %2916 = vmatpush1.msra.mxu0 %v2894
      %2917 = vmatprep.subr.mxu0 0.0
      %2918 = vmatpush1.msra.mxu0 %v2895
      %2919 = vmatprep.subr.mxu0 0.0
      %2920 = vmatpush1.msra.mxu0 %v2896
      %2921 = vmatprep.subr.mxu0 0.0
      %2922 = vmatpush1.msra.mxu0 %v2897
      %2923 = vmatprep.subr.mxu0 0.0
      %2924 = vmatpush1.msra.mxu0 %v2898
      %2925 = vmatprep.subr.mxu0 0.0
      %2926 = vmatpush1.msra.mxu0 %v2899
      %2927 = vmatprep.subr.mxu0 0.0
      %2928 = vmatpush1.msra.mxu0 %v2900
      %2929 = vmatprep.subr.mxu0 0.0
      %2930 = vmatpush1.msra.mxu0 %v2901
      %2931 = vmatprep.subr.mxu0 0.0
      %2932 = vmatpush1.msra.mxu0 %v2902
      %2933 = vmatprep.subr.mxu0 0.0
      %2934 = vmatpush1.msra.mxu0 %v2903
      %2935 = vmatprep.subr.mxu0 0.0
      %2936 = vmatpush1.msra.mxu0 %v2904
      %2937 = vmatprep.subr.mxu0 0.0
      %2938 = vmatpush1.msra.mxu0 0.0
      %2939 = vmatprep.subr.mxu0 0.0
      %2940 = vmatpush1.msra.mxu0 0.0
      %2941 = vmatprep.subr.mxu0 0.0
      %2942 = vmatpush1.msra.mxu0 0.0
      %2943 = vmatprep.subr.mxu0 0.0
      %2944 = vmatpush1.msra.mxu0 0.0
      %2945 = vmatprep.subr.mxu0 0.0
      %2946 = vmatpush1.msra.mxu0 0.0
      %2947 = vmatprep.subr.mxu0 0.0
      %2948 = vmatpush1.msra.mxu0 0.0
      %2949 = vmatprep.subr.mxu0 0.0
      %2950 = vmatpush1.msra.mxu0 0.0
      %2951 = vmatprep.subr.mxu0 0.0
      %2952 = vmatpush1.msra.mxu0 0.0
      %2953 = vmatprep.subr.mxu0 0.0
      %2954 = vmatpush1.msra.mxu0 0.0
      %2955 = vmatprep.subr.mxu0 0.0
      %2956 = vmatpush1.msra.mxu0 0.0
      %2957 = vmatprep.subr.mxu0 0.0
      %2958 = vmatpush1.msra.mxu0 0.0
      %2959 = vmatprep.subr.mxu0 0.0
      %2960 = vmatpush1.msra.mxu0 0.0
      %2961 = vmatprep.subr.mxu0 0.0
      %2962 = vmatpush1.msra.mxu0 0.0
      %2963 = vmatprep.subr.mxu0 0.0
      %2964 = vmatpush1.msra.mxu0 0.0
      %2965 = vmatprep.subr.mxu0 0.0
      %2966 = vmatpush1.msra.mxu0 0.0
      %2967 = vmatprep.subr.mxu0 0.0
      %2968 = vmatpush1.msra.mxu0 0.0
      %2969 = vmatprep.mubr.f32.mxu0 0.0
      %2970 = vmatmul.mubr.f32.gmra.mrb[0].mxu0 %v2886
      %v2971 = vpop.f32.mrb[0].mxu0
      %v2972 = vadd.f32 0.0, %v2971
      %v2973 = vpop.f32.mrb[0].mxu0
      %2974 = vdwg.mxu0
      %v2975 = vmul.f32 %v2972, %v1076
      %v2976 = vld [vmem:[%s13] sm:$0xff]
      %vm2977 = vcmask 64512
      %v2979 = vsel %vm2977, %v2975, 0
      %2981 = vmatprep.subr.mxu0 0.0
      %2982 = vmatpush1.msra.mxu0 %v2976
      %2983 = vmatprep.subr.mxu0 0.0
      %2984 = vmatpush1.msra.mxu0 0.0
      %2985 = vmatprep.subr.mxu0 0.0
      %2986 = vmatpush1.msra.mxu0 0.0
      %2987 = vmatprep.subr.mxu0 0.0
      %2988 = vmatpush1.msra.mxu0 0.0
      %2989 = vmatprep.subr.mxu0 0.0
      %2990 = vmatpush1.msra.mxu0 0.0
      %2991 = vmatprep.subr.mxu0 0.0
      %2992 = vmatpush1.msra.mxu0 0.0
      %2993 = vmatprep.subr.mxu0 0.0
      %2994 = vmatpush1.msra.mxu0 0.0
      %2995 = vmatprep.subr.mxu0 0.0
      %2996 = vmatpush1.msra.mxu0 0.0
      %2997 = vmatprep.subr.mxu0 0.0
      %2998 = vmatpush1.msra.mxu0 0.0
      %2999 = vmatprep.subr.mxu0 0.0
      %3000 = vmatpush1.msra.mxu0 0.0
      %3001 = vmatprep.subr.mxu0 0.0
      %3002 = vmatpush1.msra.mxu0 0.0
      %3003 = vmatprep.subr.mxu0 0.0
      %3004 = vmatpush1.msra.mxu0 0.0
      %3005 = vmatprep.subr.mxu0 0.0
      %3006 = vmatpush1.msra.mxu0 0.0
      %3007 = vmatprep.subr.mxu0 0.0
      %3008 = vmatpush1.msra.mxu0 0.0
      %3009 = vmatprep.subr.mxu0 0.0
      %3010 = vmatpush1.msra.mxu0 0.0
      %3011 = vmatprep.subr.mxu0 0.0
      %3012 = vmatpush1.msra.mxu0 0.0
      %3013 = vmatprep.subr.mxu0 0.0
      %3014 = vmatpush1.msra.mxu0 0.0
      %3015 = vmatprep.subr.mxu0 0.0
      %3016 = vmatpush1.msra.mxu0 0.0
      %3017 = vmatprep.subr.mxu0 0.0
      %3018 = vmatpush1.msra.mxu0 0.0
      %3019 = vmatprep.subr.mxu0 0.0
      %3020 = vmatpush1.msra.mxu0 0.0
      %3021 = vmatprep.subr.mxu0 0.0
      %3022 = vmatpush1.msra.mxu0 0.0
      %3023 = vmatprep.subr.mxu0 0.0
      %3024 = vmatpush1.msra.mxu0 0.0
      %3025 = vmatprep.subr.mxu0 0.0
      %3026 = vmatpush1.msra.mxu0 0.0
      %3027 = vmatprep.subr.mxu0 0.0
      %3028 = vmatpush1.msra.mxu0 0.0
      %3029 = vmatprep.subr.mxu0 0.0
      %3030 = vmatpush1.msra.mxu0 0.0
      %3031 = vmatprep.subr.mxu0 0.0
      %3032 = vmatpush1.msra.mxu0 0.0
      %3033 = vmatprep.subr.mxu0 0.0
      %3034 = vmatpush1.msra.mxu0 0.0
      %3035 = vmatprep.subr.mxu0 0.0
      %3036 = vmatpush1.msra.mxu0 0.0
      %3037 = vmatprep.subr.mxu0 0.0
      %3038 = vmatpush1.msra.mxu0 0.0
      %3039 = vmatprep.subr.mxu0 0.0
      %3040 = vmatpush1.msra.mxu0 0.0
      %3041 = vmatprep.subr.mxu0 0.0
      %3042 = vmatpush1.msra.mxu0 0.0
      %3043 = vmatprep.subr.mxu0 0.0
      %3044 = vmatpush1.msra.mxu0 0.0
      %3045 = vmatprep.mubr.f32.mxu0 0.0
      %3046 = vmatmul.mubr.f32.gmra.mrb[0].mxu0 %v2979
      %v3047 = vpop.f32.mrb[0].mxu0
      %v3048 = vadd.f32 0.0, %v3047
      %v3049 = vpop.f32.mrb[0].mxu0
      %3050 = vdwg.mxu0
      %v3051 = vlaneseq
      %v3052 = vshrl.u32 %v3051, 7
      %v3053 = vsub.s32 0, %v3052
      %v3054 = vrot.slane %v3048, %v3053
      %v3055 = vsub.f32 %v2811, %v3054
      %v3056 = vsub.f32 %v2812, %v3054
      %v3057 = vsub.f32 %v2813, %v3054
      %v3058 = vsub.f32 %v2814, %v3054
      %v3059 = vsub.f32 %v2815, %v3054
      %v3060 = vmul.f32 %v3055, %v3055
      %v3061 = vmul.f32 %v3056, %v3056
      %v3062 = vmul.f32 %v3057, %v3057
      %v3063 = vmul.f32 %v3058, %v3058
      %v3064 = vmul.f32 %v3059, %v3059
      %v3066 = vsel %vm920, %v3064, 0
      %3068 = vmatprep.subr.mxu0 0.0
      %3069 = vmatpush1.msra.mxu0 %v3060
      %3070 = vmatprep.subr.mxu0 0.0
      %3071 = vmatpush1.msra.mxu0 %v3061
      %3072 = vmatprep.subr.mxu0 0.0
      %3073 = vmatpush1.msra.mxu0 %v3062
      %3074 = vmatprep.subr.mxu0 0.0
      %3075 = vmatpush1.msra.mxu0 %v3063
      %3076 = vmatprep.subr.mxu0 0.0
      %3077 = vmatpush1.msra.mxu0 %v3066
      %3078 = vmatprep.subr.mxu0 0.0
      %3079 = vmatpush1.msra.mxu0 0.0
      %3080 = vmatprep.subr.mxu0 0.0
      %3081 = vmatpush1.msra.mxu0 0.0
      %3082 = vmatprep.subr.mxu0 0.0
      %3083 = vmatpush1.msra.mxu0 0.0
      %3084 = vmatprep.subr.mxu0 0.0
      %3085 = vmatpush1.msra.mxu0 0.0
      %3086 = vmatprep.subr.mxu0 0.0
      %3087 = vmatpush1.msra.mxu0 0.0
      %3088 = vmatprep.subr.mxu0 0.0
      %3089 = vmatpush1.msra.mxu0 0.0
      %3090 = vmatprep.subr.mxu0 0.0
      %3091 = vmatpush1.msra.mxu0 0.0
      %3092 = vmatprep.subr.mxu0 0.0
      %3093 = vmatpush1.msra.mxu0 0.0
      %3094 = vmatprep.subr.mxu0 0.0
      %3095 = vmatpush1.msra.mxu0 0.0
      %3096 = vmatprep.subr.mxu0 0.0
      %3097 = vmatpush1.msra.mxu0 0.0
      %3098 = vmatprep.subr.mxu0 0.0
      %3099 = vmatpush1.msra.mxu0 0.0
      %3100 = vmatprep.subr.mxu0 0.0
      %3101 = vmatpush1.msra.mxu0 0.0
      %3102 = vmatprep.subr.mxu0 0.0
      %3103 = vmatpush1.msra.mxu0 0.0
      %3104 = vmatprep.subr.mxu0 0.0
      %3105 = vmatpush1.msra.mxu0 0.0
      %3106 = vmatprep.subr.mxu0 0.0
      %3107 = vmatpush1.msra.mxu0 0.0
      %3108 = vmatprep.subr.mxu0 0.0
      %3109 = vmatpush1.msra.mxu0 0.0
      %3110 = vmatprep.subr.mxu0 0.0
      %3111 = vmatpush1.msra.mxu0 0.0
      %3112 = vmatprep.subr.mxu0 0.0
      %3113 = vmatpush1.msra.mxu0 0.0
      %3114 = vmatprep.subr.mxu0 0.0
      %3115 = vmatpush1.msra.mxu0 0.0
      %3116 = vmatprep.subr.mxu0 0.0
      %3117 = vmatpush1.msra.mxu0 0.0
      %3118 = vmatprep.subr.mxu0 0.0
      %3119 = vmatpush1.msra.mxu0 0.0
      %3120 = vmatprep.subr.mxu0 0.0
      %3121 = vmatpush1.msra.mxu0 0.0
      %3122 = vmatprep.subr.mxu0 0.0
      %3123 = vmatpush1.msra.mxu0 0.0
      %3124 = vmatprep.subr.mxu0 0.0
      %3125 = vmatpush1.msra.mxu0 0.0
      %3126 = vmatprep.subr.mxu0 0.0
      %3127 = vmatpush1.msra.mxu0 0.0
      %3128 = vmatprep.subr.mxu0 0.0
      %3129 = vmatpush1.msra.mxu0 0.0
      %3130 = vmatprep.subr.mxu0 0.0
      %3131 = vmatpush1.msra.mxu0 0.0
      %3132 = vmatprep.mubr.f32.mxu0 0.0
      %3133 = vmatmul.mubr.f32.gmra.mrb[0].mxu0 %v918
      %v3134 = vpop.f32.mrb[0].mxu0
      %v3135 = vadd.f32 0.0, %v3134
      %v3136 = vpop.f32.mrb[0].mxu0
      %3137 = vdwg.mxu0
      %3138 = vmatprep.subr.mxu0 0.0
      %3139 = vmatpush1.msra.mxu0 %v2889
      %3140 = vmatprep.subr.mxu0 0.0
      %3141 = vmatpush1.msra.mxu0 %v2890
      %3142 = vmatprep.subr.mxu0 0.0
      %3143 = vmatpush1.msra.mxu0 %v2891
      %3144 = vmatprep.subr.mxu0 0.0
      %3145 = vmatpush1.msra.mxu0 %v2892
      %3146 = vmatprep.subr.mxu0 0.0
      %3147 = vmatpush1.msra.mxu0 %v2893
      %3148 = vmatprep.subr.mxu0 0.0
      %3149 = vmatpush1.msra.mxu0 %v2894
      %3150 = vmatprep.subr.mxu0 0.0
      %3151 = vmatpush1.msra.mxu0 %v2895
      %3152 = vmatprep.subr.mxu0 0.0
      %3153 = vmatpush1.msra.mxu0 %v2896
      %3154 = vmatprep.subr.mxu0 0.0
      %3155 = vmatpush1.msra.mxu0 %v2897
      %3156 = vmatprep.subr.mxu0 0.0
      %3157 = vmatpush1.msra.mxu0 %v2898
      %3158 = vmatprep.subr.mxu0 0.0
      %3159 = vmatpush1.msra.mxu0 %v2899
      %3160 = vmatprep.subr.mxu0 0.0
      %3161 = vmatpush1.msra.mxu0 %v2900
      %3162 = vmatprep.subr.mxu0 0.0
      %3163 = vmatpush1.msra.mxu0 %v2901
      %3164 = vmatprep.subr.mxu0 0.0
      %3165 = vmatpush1.msra.mxu0 %v2902
      %3166 = vmatprep.subr.mxu0 0.0
      %3167 = vmatpush1.msra.mxu0 %v2903
      %3168 = vmatprep.subr.mxu0 0.0
      %3169 = vmatpush1.msra.mxu0 %v2904
      %3170 = vmatprep.subr.mxu0 0.0
      %3171 = vmatpush1.msra.mxu0 0.0
      %3172 = vmatprep.subr.mxu0 0.0
      %3173 = vmatpush1.msra.mxu0 0.0
      %3174 = vmatprep.subr.mxu0 0.0
      %3175 = vmatpush1.msra.mxu0 0.0
      %3176 = vmatprep.subr.mxu0 0.0
      %3177 = vmatpush1.msra.mxu0 0.0
      %3178 = vmatprep.subr.mxu0 0.0
      %3179 = vmatpush1.msra.mxu0 0.0
      %3180 = vmatprep.subr.mxu0 0.0
      %3181 = vmatpush1.msra.mxu0 0.0
      %3182 = vmatprep.subr.mxu0 0.0
      %3183 = vmatpush1.msra.mxu0 0.0
      %3184 = vmatprep.subr.mxu0 0.0
      %3185 = vmatpush1.msra.mxu0 0.0
      %3186 = vmatprep.subr.mxu0 0.0
      %3187 = vmatpush1.msra.mxu0 0.0
      %3188 = vmatprep.subr.mxu0 0.0
      %3189 = vmatpush1.msra.mxu0 0.0
      %3190 = vmatprep.subr.mxu0 0.0
      %3191 = vmatpush1.msra.mxu0 0.0
      %3192 = vmatprep.subr.mxu0 0.0
      %3193 = vmatpush1.msra.mxu0 0.0
      %3194 = vmatprep.subr.mxu0 0.0
      %3195 = vmatpush1.msra.mxu0 0.0
      %3196 = vmatprep.subr.mxu0 0.0
      %3197 = vmatpush1.msra.mxu0 0.0
      %3198 = vmatprep.subr.mxu0 0.0
      %3199 = vmatpush1.msra.mxu0 0.0
      %3200 = vmatprep.subr.mxu0 0.0
      %3201 = vmatpush1.msra.mxu0 0.0
      %3202 = vmatprep.mubr.f32.mxu0 0.0
      %3203 = vmatmul.mubr.f32.gmra.mrb[0].mxu0 %v3135
      %v3204 = vpop.f32.mrb[0].mxu0
      %v3205 = vadd.f32 0.0, %v3204
      %v3206 = vpop.f32.mrb[0].mxu0
      %3207 = vdwg.mxu0
      %v3208 = vmul.f32 %v3205, %v1076
      %v3209 = vadd.f32 %v3208, 1e-05
      %v3210 = vrsqrt.pop %v3209
      %v3212 = vsel %vm2977, %v3210, 0
      %3214 = vmatprep.subr.mxu0 0.0
      %3215 = vmatpush1.msra.mxu0 %v2976
      %3216 = vmatprep.subr.mxu0 0.0
      %3217 = vmatpush1.msra.mxu0 0.0
      %3218 = vmatprep.subr.mxu0 0.0
      %3219 = vmatpush1.msra.mxu0 0.0
      %3220 = vmatprep.subr.mxu0 0.0
      %3221 = vmatpush1.msra.mxu0 0.0
      %3222 = vmatprep.subr.mxu0 0.0
      %3223 = vmatpush1.msra.mxu0 0.0
      %3224 = vmatprep.subr.mxu0 0.0
      %3225 = vmatpush1.msra.mxu0 0.0
      %3226 = vmatprep.subr.mxu0 0.0
      %3227 = vmatpush1.msra.mxu0 0.0
      %3228 = vmatprep.subr.mxu0 0.0
      %3229 = vmatpush1.msra.mxu0 0.0
      %3230 = vmatprep.subr.mxu0 0.0
      %3231 = vmatpush1.msra.mxu0 0.0
      %3232 = vmatprep.subr.mxu0 0.0
      %3233 = vmatpush1.msra.mxu0 0.0
      %3234 = vmatprep.subr.mxu0 0.0
      %3235 = vmatpush1.msra.mxu0 0.0
      %3236 = vmatprep.subr.mxu0 0.0
      %3237 = vmatpush1.msra.mxu0 0.0
      %3238 = vmatprep.subr.mxu0 0.0
      %3239 = vmatpush1.msra.mxu0 0.0
      %3240 = vmatprep.subr.mxu0 0.0
      %3241 = vmatpush1.msra.mxu0 0.0
      %3242 = vmatprep.subr.mxu0 0.0
      %3243 = vmatpush1.msra.mxu0 0.0
      %3244 = vmatprep.subr.mxu0 0.0
      %3245 = vmatpush1.msra.mxu0 0.0
      %3246 = vmatprep.subr.mxu0 0.0
      %3247 = vmatpush1.msra.mxu0 0.0
      %3248 = vmatprep.subr.mxu0 0.0
      %3249 = vmatpush1.msra.mxu0 0.0
      %3250 = vmatprep.subr.mxu0 0.0
      %3251 = vmatpush1.msra.mxu0 0.0
      %3252 = vmatprep.subr.mxu0 0.0
      %3253 = vmatpush1.msra.mxu0 0.0
      %3254 = vmatprep.subr.mxu0 0.0
      %3255 = vmatpush1.msra.mxu0 0.0
      %3256 = vmatprep.subr.mxu0 0.0
      %3257 = vmatpush1.msra.mxu0 0.0
      %3258 = vmatprep.subr.mxu0 0.0
      %3259 = vmatpush1.msra.mxu0 0.0
      %3260 = vmatprep.subr.mxu0 0.0
      %3261 = vmatpush1.msra.mxu0 0.0
      %3262 = vmatprep.subr.mxu0 0.0
      %3263 = vmatpush1.msra.mxu0 0.0
      %3264 = vmatprep.subr.mxu0 0.0
      %3265 = vmatpush1.msra.mxu0 0.0
      %3266 = vmatprep.subr.mxu0 0.0
      %3267 = vmatpush1.msra.mxu0 0.0
      %3268 = vmatprep.subr.mxu0 0.0
      %3269 = vmatpush1.msra.mxu0 0.0
      %3270 = vmatprep.subr.mxu0 0.0
      %3271 = vmatpush1.msra.mxu0 0.0
      %3272 = vmatprep.subr.mxu0 0.0
      %3273 = vmatpush1.msra.mxu0 0.0
      %3274 = vmatprep.subr.mxu0 0.0
      %3275 = vmatpush1.msra.mxu0 0.0
      %3276 = vmatprep.subr.mxu0 0.0
      %3277 = vmatpush1.msra.mxu0 0.0
      %3278 = vmatprep.mubr.f32.mxu0 0.0
      %3279 = vmatmul.mubr.f32.gmra.mrb[0].mxu0 %v3212
      %v3280 = vpop.f32.mrb[0].mxu0
      %v3281 = vadd.f32 0.0, %v3280
      %v3282 = vpop.f32.mrb[0].mxu0
      %3283 = vdwg.mxu0
      %v3284 = vlaneseq
      %v3285 = vshrl.u32 %v3284, 7
      %v3286 = vsub.s32 0, %v3285
      %v3287 = vrot.slane %v3281, %v3286
      %v3288 = vmul.f32 %v3055, %v3287
      %v3289 = vmul.f32 %v3056, %v3287
      %v3290 = vmul.f32 %v3057, %v3287
      %v3291 = vmul.f32 %v3058, %v3287
      %v3292 = vmul.f32 %v3059, %v3287
      %v3293 = vmax.f32 %v3288, 0.0
      %v3294 = vmax.f32 %v3289, 0.0
      %v3295 = vmax.f32 %v3290, 0.0
      %v3296 = vmax.f32 %v3291, 0.0
      %v3297 = vmax.f32 %v3292, 0.0
      %vm3303 = vcmask 1040384
      %v3304 = vrot.slane %v3293, 7
      %v3305 = vrot.slane %v3294, 7
      %v3306 = vsel %vm3303, %v3304, %v3305
      %v3307 = vrot.slane %v3295, 7
      %v3308 = vsel %vm3303, %v3305, %v3307
      %v3309 = vrot.slane %v3296, 7
      %v3310 = vsel %vm3303, %v3307, %v3309
      %v3311 = vrot.slane %v3297, 7
      %v3312 = vsel %vm3303, %v3309, %v3311
      %3318 = vst [vmem:[#allocation4] sm:$0xfe] %v3304
      %3319 = vst [vmem:[#allocation4 + $0x10] sm:$0xff] %v3306
      %3320 = vst [vmem:[#allocation4 + $0x20] sm:$0xff] %v3308
      %3321 = vst [vmem:[#allocation4 + $0x30] sm:$0xff] %v3310
      %3322 = vst [vmem:[#allocation4 + $0x40] sm:$0x7] %v3312
      %v3323 = vrot.slane %v3293, 1
      %3325 = vst [vmem:[#allocation4] sm:$0x1] %v3323
      %v3326 = vrot.slane %v3294, 6
      %3328 = vst [vmem:[#allocation4 + $0x21] sm:$0x1] %v3326
      %v3329 = vrot.slane %v3295, 3
      %3331 = vst [vmem:[#allocation4 + $0x22] sm:$0x1] %v3329
      %3332 = vst [vmem:[#allocation4 + $0x43] sm:$0x1] %v3297
      %v3333 = vld [vmem:[#allocation4] sm:$0xff]
      %v3334 = vld [vmem:[#allocation4 + $0x10] sm:$0xff]
      %v3335 = vld [vmem:[#allocation4 + $0x20] sm:$0xff]
      %v3336 = vld [vmem:[#allocation4 + $0x30] sm:$0xff]
      %v3337 = vld [vmem:[#allocation4 + $0x40] sm:$0xf]
      %3343 = vrot.lane.b32.xlu0 %v3333, 120
      %v3344 = vpop.permute.xlu0 %3343
      %3345 = vrot.lane.b32.xlu0 %v3334, 120
      %v3346 = vpop.permute.xlu0 %3345
      %3347 = vrot.lane.b32.xlu0 %v3335, 120
      %v3348 = vpop.permute.xlu0 %3347
      %3349 = vrot.lane.b32.xlu0 %v3336, 120
      %v3350 = vpop.permute.xlu0 %3349
      %3351 = vrot.lane.b32.xlu0 %v3337, 120
      %v3352 = vpop.permute.xlu0 %3351
      %3358 = vst.msk [vmem:[#allocation4 + $0x8] sm:$0xff] %vm2977, %v3344
      %3359 = vst.msk [vmem:[#allocation4 + $0x18] sm:$0xff] %vm2977, %v3346
      %3360 = vst.msk [vmem:[#allocation4 + $0x28] sm:$0xff] %vm2977, %v3348
      %3361 = vst.msk [vmem:[#allocation4 + $0x38] sm:$0xff] %vm2977, %v3350
      %vm3362 = vcmask 60416
      %3363 = vst.msk [vmem:[#allocation4 + $0x48] sm:$0xf] %vm3362, %v3352
      %v3364 = vld [vmem:[#allocation4] sm:$0xff]
      %v3365 = vld [vmem:[#allocation4 + $0x10] sm:$0xff]
      %v3366 = vld [vmem:[#allocation4 + $0x20] sm:$0xff]
      %v3367 = vld [vmem:[#allocation4 + $0x30] sm:$0xff]
      %v3368 = vld [vmem:[#allocation4 + $0x40] sm:$0xf]
      %3374 = vrot.lane.b32.xlu0 %v3364, 24
      %v3375 = vpop.permute.xlu0 %3374
      %3376 = vrot.lane.b32.xlu0 %v3365, 24
      %v3377 = vpop.permute.xlu0 %3376
      %3378 = vrot.lane.b32.xlu0 %v3366, 24
      %v3379 = vpop.permute.xlu0 %3378
      %3380 = vrot.lane.b32.xlu0 %v3367, 24
      %v3381 = vpop.permute.xlu0 %3380
      %3382 = vrot.lane.b32.xlu0 %v3368, 24
      %v3383 = vpop.permute.xlu0 %3382
      %vm3389 = vcmask 130112
      %3390 = vst.msk [vmem:[#allocation4 + $0x8] sm:$0xff] %vm3389, %v3375
      %3391 = vst.msk [vmem:[#allocation4 + $0x18] sm:$0xff] %vm3389, %v3377
      %3392 = vst.msk [vmem:[#allocation4 + $0x28] sm:$0xff] %vm3389, %v3379
      %3393 = vst.msk [vmem:[#allocation4 + $0x38] sm:$0xff] %vm3389, %v3381
      %vm3394 = vcmask 126016
      %3395 = vst.msk [vmem:[#allocation4 + $0x48] sm:$0xf] %vm3394, %v3383
      %v3396 = vld [vmem:[#allocation4] sm:$0xff]
      %v3397 = vld [vmem:[#allocation4 + $0x8] sm:$0xff]
      %v3398 = vld [vmem:[#allocation4 + $0x10] sm:$0xff]
      %v3399 = vld [vmem:[#allocation4 + $0x18] sm:$0xff]
      %v3400 = vld [vmem:[#allocation4 + $0x20] sm:$0xff]
      %v3401 = vld [vmem:[#allocation4 + $0x28] sm:$0xff]
      %v3402 = vld [vmem:[#allocation4 + $0x30] sm:$0xff]
      %v3403 = vld [vmem:[#allocation4 + $0x38] sm:$0xff]
      %v3404 = vld [vmem:[#allocation4 + $0x40] sm:$0x3]
      %v3405 = vld [vmem:[#allocation4 + $0x48] sm:$0x3]
      %v3406 = vpack.c.bf16 %v3398, %v3396
      %v3407 = vpack.c.bf16 %v3399, %v3397
      %v3408 = vpack.c.bf16 %v3402, %v3400
      %v3409 = vpack.c.bf16 %v3403, %v3401
      %v3410 = vpack.c.bf16 %v3404, %v3404
      %v3411 = vpack.c.bf16 %v3405, %v3405
      %v3412 = vld [vmem:[%s14] sm:$0xf]
      %v3413 = vld [vmem:[%s14 + $0x4] sm:$0xf]
      %v3414 = vld [vmem:[%s14 + $0x8] sm:$0xf]
      %v3415 = vld [vmem:[%s14 + $0xc] sm:$0xf]
      %v3416 = vld [vmem:[%s14 + $0x10] sm:$0xf]
      %v3417 = vld [vmem:[%s14 + $0x14] sm:$0xf]
      %v3418 = vld [vmem:[%s14 + $0x18] sm:$0xf]
      %v3419 = vld [vmem:[%s14 + $0x1c] sm:$0xf]
      %v3420 = vld [vmem:[%s14 + $0x20] sm:$0xf]
      %v3421 = vld [vmem:[%s14 + $0x24] sm:$0xf]
      %v3422 = vld [vmem:[%s14 + $0x28] sm:$0xf]
      %v3423 = vld [vmem:[%s14 + $0x2c] sm:$0xf]
      %v3424 = vld [vmem:[%s14 + $0x30] sm:$0xf]
      %v3425 = vld [vmem:[%s14 + $0x34] sm:$0xf]
      %v3426 = vld [vmem:[%s14 + $0x38] sm:$0xf]
      %v3427 = vld [vmem:[%s14 + $0x3c] sm:$0xf]
      %v3428 = vld [vmem:[%s14 + $0x40] sm:$0xf]
      %v3429 = vld [vmem:[%s14 + $0x44] sm:$0xf]
      %v3430 = vld [vmem:[#allocation4] sm:$0xfe]
      %v3431 = vld [vmem:[#allocation4 + $0x8] sm:$0xfe]
      %v3432 = vld [vmem:[#allocation4 + $0x40] sm:$0x7]
      %v3433 = vld [vmem:[#allocation4 + $0x48] sm:$0x7]
      %v3434 = vpack.c.bf16 %v3398, %v3430
      %v3435 = vpack.c.bf16 %v3399, %v3431
      %v3436 = vpack.c.bf16 %v3432, %v3432
      %v3437 = vpack.c.bf16 %v3433, %v3433
      %s3438 = scalar_lea.vmem %s14, 72
      %v3439 = vld [vmem:[%s3438] sm:$0xf]
      %v3440 = vld [vmem:[%s3438 + $0x4] sm:$0xf]
      %v3441 = vld [vmem:[%s3438 + $0x8] sm:$0xf]
      %v3442 = vld [vmem:[%s3438 + $0xc] sm:$0xf]
      %v3443 = vld [vmem:[%s3438 + $0x10] sm:$0xf]
      %v3444 = vld [vmem:[%s3438 + $0x14] sm:$0xf]
      %v3445 = vld [vmem:[%s3438 + $0x18] sm:$0xf]
      %v3446 = vld [vmem:[%s3438 + $0x1c] sm:$0xf]
      %v3447 = vld [vmem:[%s3438 + $0x20] sm:$0xf]
      %v3448 = vld [vmem:[%s3438 + $0x24] sm:$0xf]
      %v3449 = vld [vmem:[%s3438 + $0x28] sm:$0xf]
      %v3450 = vld [vmem:[%s3438 + $0x2c] sm:$0xf]
      %v3451 = vld [vmem:[%s3438 + $0x30] sm:$0xf]
      %v3452 = vld [vmem:[%s3438 + $0x34] sm:$0xf]
      %v3453 = vld [vmem:[%s3438 + $0x38] sm:$0xf]
      %v3454 = vld [vmem:[%s3438 + $0x3c] sm:$0xf]
      %v3455 = vld [vmem:[%s3438 + $0x40] sm:$0xf]
      %v3456 = vld [vmem:[%s3438 + $0x44] sm:$0xf]
      %vm3457 = vsmask.f32 7424
      %v3459 = vshrl.u32 %v3434, 16
      %v3461 = vshll.u32 %v3434, 16
      %v3463 = vrot.slane %v3461, 1
      %v3464 = vor.u32 %v3459, %v3463
      %v3466 = vshll.u32 %v3408, 16
      %v3468 = vrot.slane %v3466, 1
      %v3469 = vsel %vm3457, %v3464, %v3468
      %v3471 = vshrl.u32 %v3435, 16
      %v3473 = vshll.u32 %v3435, 16
      %v3475 = vrot.slane %v3473, 1
      %v3476 = vor.u32 %v3471, %v3475
      %v3478 = vshll.u32 %v3409, 16
      %v3480 = vrot.slane %v3478, 1
      %v3481 = vsel %vm3457, %v3476, %v3480
      %v3482 = vshrl.u32 %v3408, 16
      %v3484 = vor.u32 %v3482, %v3468
      %v3486 = vshll.u32 %v3436, 16
      %v3488 = vrot.slane %v3486, 1
      %v3489 = vsel %vm3457, %v3484, %v3488
      %v3490 = vshrl.u32 %v3409, 16
      %v3492 = vor.u32 %v3490, %v3480
      %v3494 = vshll.u32 %v3437, 16
      %v3496 = vrot.slane %v3494, 1
      %v3497 = vsel %vm3457, %v3492, %v3496
      %v3498 = vshrl.u32 %v3436, 16
      %v3500 = vor.u32 %v3498, %v3488
      %v3501 = vshrl.u32 %v3437, 16
      %v3503 = vor.u32 %v3501, %v3496
      %v3525 = vunpack.c.l.b16 %v3439
      %v3526 = vunpack.c.l.b16 %v3440
      %v3527 = vunpack.c.l.b16 %v3441
      %v3528 = vunpack.c.l.b16 %v3442
      %v3529 = vunpack.c.l.b16 %v3443
      %v3530 = vunpack.c.l.b16 %v3444
      %v3531 = vunpack.c.l.b16 %v3445
      %v3532 = vunpack.c.l.b16 %v3446
      %v3533 = vunpack.c.l.b16 %v3447
      %v3534 = vunpack.c.l.b16 %v3448
      %v3535 = vunpack.c.l.b16 %v3449
      %v3536 = vunpack.c.l.b16 %v3450
      %v3537 = vunpack.c.l.b16 %v3451
      %v3538 = vunpack.c.l.b16 %v3452
      %v3539 = vunpack.c.l.b16 %v3453
      %v3540 = vunpack.c.l.b16 %v3454
      %v3541 = vunpack.c.l.b16 %v3455
      %v3542 = vunpack.c.l.b16 %v3456
      %v3543 = vpack.c.b16 %v3526, %v3525
      %v3544 = vpack.c.b16 %v3528, %v3527
      %v3545 = vpack.c.b16 %v3530, %v3529
      %v3546 = vpack.c.b16 %v3532, %v3531
      %v3547 = vpack.c.b16 %v3534, %v3533
      %v3548 = vpack.c.b16 %v3536, %v3535
      %v3549 = vpack.c.b16 %v3538, %v3537
      %v3550 = vpack.c.b16 %v3540, %v3539
      %v3551 = vpack.c.b16 %v3542, %v3541
      %vm3561 = vcmask 130048
      %v3563 = vsel %vm3561, %v3481, 0
      %v3566 = vsel %vm3561, %v3497, 0
      %v3569 = vsel %vm3561, %v3503, 0
      %3571 = vmatprep.subr.bf16.mxu0 0
      %3572 = vmatpush1.bf16.msra.mxu0 %v3543
      %3573 = vmatprep.subr.bf16.mxu0 0
      %3574 = vmatpush1.bf16.msra.mxu0 %v3544
      %3575 = vmatprep.subr.bf16.mxu0 0
      %3576 = vmatpush1.bf16.msra.mxu0 %v3545
      %3577 = vmatprep.subr.bf16.mxu0 0
      %3578 = vmatpush1.bf16.msra.mxu0 %v3546
      %3579 = vmatprep.subr.bf16.mxu0 0
      %3580 = vmatpush1.bf16.msra.mxu0 %v3547
      %3581 = vmatprep.subr.bf16.mxu0 0
      %3582 = vmatpush1.bf16.msra.mxu0 %v3548
      %3583 = vmatprep.subr.bf16.mxu0 0
      %3584 = vmatpush1.bf16.msra.mxu0 %v3549
      %3585 = vmatprep.subr.bf16.mxu0 0
      %3586 = vmatpush1.bf16.msra.mxu0 %v3550
      %3587 = vmatprep.subr.bf16.mxu0 0
      %3588 = vmatpush1.bf16.msra.mxu0 %v3551
      %3589 = vmatprep.subr.bf16.mxu0 0
      %3590 = vmatpush1.bf16.msra.mxu0 0
      %3591 = vmatprep.subr.bf16.mxu0 0
      %3592 = vmatpush1.bf16.msra.mxu0 0
      %3593 = vmatprep.subr.bf16.mxu0 0
      %3594 = vmatpush1.bf16.msra.mxu0 0
      %3595 = vmatprep.subr.bf16.mxu0 0
      %3596 = vmatpush1.bf16.msra.mxu0 0
      %3597 = vmatprep.subr.bf16.mxu0 0
      %3598 = vmatpush1.bf16.msra.mxu0 0
      %3599 = vmatprep.subr.bf16.mxu0 0
      %3600 = vmatpush1.bf16.msra.mxu0 0
      %3601 = vmatprep.subr.bf16.mxu0 0
      %3602 = vmatpush1.bf16.msra.mxu0 0
      %3603 = vmatprep.mubr.bf16.mxu0 %v3563
      %3604 = vmatmul.mubr.bf16.gmra.mrb[0].mxu0 %v3469
      %v3605 = vpop.f32.mrb[0].mxu0
      %v3606 = vadd.f32 0.0, %v3605
      %v3607 = vpop.f32.mrb[0].mxu0
      %v3608 = vpop.f32.mrb[0].mxu0
      %v3609 = vadd.f32 0.0, %v3608
      %v3610 = vpop.f32.mrb[0].mxu0
      %3611 = vmatprep.mubr.bf16.mxu0 %v3566
      %3612 = vmatmul.mubr.bf16.gmra.mrb[0].mxu0 %v3489
      %v3613 = vpop.f32.mrb[0].mxu0
      %v3614 = vadd.f32 0.0, %v3613
      %v3615 = vpop.f32.mrb[0].mxu0
      %v3616 = vpop.f32.mrb[0].mxu0
      %v3617 = vadd.f32 0.0, %v3616
      %v3618 = vpop.f32.mrb[0].mxu0
      %3619 = vmatprep.mubr.bf16.mxu0 %v3569
      %3620 = vmatmul.mubr.bf16.gmra.mrb[0].mxu0 %v3500
      %v3621 = vpop.f32.mrb[0].mxu0
      %v3622 = vadd.f32 0.0, %v3621
      %v3623 = vpop.f32.mrb[0].mxu0
      %v3624 = vpop.f32.mrb[0].mxu0
      %v3625 = vpop.f32.mrb[0].mxu0
      %3626 = vdwg.mxu0
      %v3645 = vunpack.c.l.b16 %v3412
      %v3646 = vunpack.c.l.b16 %v3413
      %v3647 = vunpack.c.l.b16 %v3414
      %v3648 = vunpack.c.l.b16 %v3415
      %v3649 = vunpack.c.l.b16 %v3416
      %v3650 = vunpack.c.l.b16 %v3417
      %v3651 = vunpack.c.l.b16 %v3418
      %v3652 = vunpack.c.l.b16 %v3419
      %v3653 = vunpack.c.l.b16 %v3420
      %v3654 = vunpack.c.l.b16 %v3421
      %v3655 = vunpack.c.l.b16 %v3422
      %v3656 = vunpack.c.l.b16 %v3423
      %v3657 = vunpack.c.l.b16 %v3424
      %v3658 = vunpack.c.l.b16 %v3425
      %v3659 = vunpack.c.l.b16 %v3426
      %v3660 = vunpack.c.l.b16 %v3427
      %v3661 = vunpack.c.l.b16 %v3428
      %v3662 = vunpack.c.l.b16 %v3429
      %v3663 = vpack.c.b16 %v3646, %v3645
      %v3664 = vpack.c.b16 %v3648, %v3647
      %v3665 = vpack.c.b16 %v3650, %v3649
      %v3666 = vpack.c.b16 %v3652, %v3651
      %v3667 = vpack.c.b16 %v3654, %v3653
      %v3668 = vpack.c.b16 %v3656, %v3655
      %v3669 = vpack.c.b16 %v3658, %v3657
      %v3670 = vpack.c.b16 %v3660, %v3659
      %v3671 = vpack.c.b16 %v3662, %v3661
      %v3682 = vsel %vm3561, %v3407, 0
      %v3684 = vsel %vm3561, %v3409, 0
      %v3687 = vsel %vm3561, %v3411, 0
      %3689 = vmatprep.subr.bf16.mxu0 0
      %3690 = vmatpush1.bf16.msra.mxu0 %v3663
      %3691 = vmatprep.subr.bf16.mxu0 0
      %3692 = vmatpush1.bf16.msra.mxu0 %v3664
      %3693 = vmatprep.subr.bf16.mxu0 0
      %3694 = vmatpush1.bf16.msra.mxu0 %v3665
      %3695 = vmatprep.subr.bf16.mxu0 0
      %3696 = vmatpush1.bf16.msra.mxu0 %v3666
      %3697 = vmatprep.subr.bf16.mxu0 0
      %3698 = vmatpush1.bf16.msra.mxu0 %v3667
      %3699 = vmatprep.subr.bf16.mxu0 0
      %3700 = vmatpush1.bf16.msra.mxu0 %v3668
      %3701 = vmatprep.subr.bf16.mxu0 0
      %3702 = vmatpush1.bf16.msra.mxu0 %v3669
      %3703 = vmatprep.subr.bf16.mxu0 0
      %3704 = vmatpush1.bf16.msra.mxu0 %v3670
      %3705 = vmatprep.subr.bf16.mxu0 0
      %3706 = vmatpush1.bf16.msra.mxu0 %v3671
      %3707 = vmatprep.subr.bf16.mxu0 0
      %3708 = vmatpush1.bf16.msra.mxu0 0
      %3709 = vmatprep.subr.bf16.mxu0 0
      %3710 = vmatpush1.bf16.msra.mxu0 0
      %3711 = vmatprep.subr.bf16.mxu0 0
      %3712 = vmatpush1.bf16.msra.mxu0 0
      %3713 = vmatprep.subr.bf16.mxu0 0
      %3714 = vmatpush1.bf16.msra.mxu0 0
      %3715 = vmatprep.subr.bf16.mxu0 0
      %3716 = vmatpush1.bf16.msra.mxu0 0
      %3717 = vmatprep.subr.bf16.mxu0 0
      %3718 = vmatpush1.bf16.msra.mxu0 0
      %3719 = vmatprep.subr.bf16.mxu0 0
      %3720 = vmatpush1.bf16.msra.mxu0 0
      %3721 = vmatprep.mubr.bf16.mxu0 %v3682
      %3722 = vmatmul.mubr.bf16.gmra.mrb[0].mxu0 %v3406
      %v3723 = vpop.f32.mrb[0].mxu0
      %v3724 = vadd.f32 %v3606, %v3723
      %v3725 = vpop.f32.mrb[0].mxu0
      %v3726 = vpop.f32.mrb[0].mxu0
      %v3727 = vadd.f32 %v3609, %v3726
      %v3728 = vpop.f32.mrb[0].mxu0
      %3729 = vmatprep.mubr.bf16.mxu0 %v3684
      %3730 = vmatmul.mubr.bf16.gmra.mrb[0].mxu0 %v3408
      %v3731 = vpop.f32.mrb[0].mxu0
      %v3732 = vadd.f32 %v3614, %v3731
      %v3733 = vpop.f32.mrb[0].mxu0
      %v3734 = vpop.f32.mrb[0].mxu0
      %v3735 = vadd.f32 %v3617, %v3734
      %v3736 = vpop.f32.mrb[0].mxu0
      %3737 = vmatprep.mubr.bf16.mxu0 %v3687
      %3738 = vmatmul.mubr.bf16.gmra.mrb[0].mxu0 %v3410
      %v3739 = vpop.f32.mrb[0].mxu0
      %v3740 = vadd.f32 %v3622, %v3739
      %v3741 = vpop.f32.mrb[0].mxu0
      %v3742 = vpop.f32.mrb[0].mxu0
      %v3743 = vpop.f32.mrb[0].mxu0
      %3744 = vdwg.mxu0
      %v3745 = vld [vmem:[#allocation4] sm:$0xfc]
      %v3746 = vld [vmem:[#allocation4 + $0x8] sm:$0xfc]
      %v3747 = vld [vmem:[#allocation4 + $0x40] sm:$0xf]
      %v3748 = vld [vmem:[#allocation4 + $0x48] sm:$0xf]
      %v3749 = vpack.c.bf16 %v3398, %v3745
      %v3750 = vpack.c.bf16 %v3399, %v3746
      %v3751 = vpack.c.bf16 %v3747, %v3747
      %v3752 = vpack.c.bf16 %v3748, %v3748
      %s3753 = scalar_lea.vmem %s14, 144
      %v3754 = vld [vmem:[%s3753] sm:$0xf]
      %v3755 = vld [vmem:[%s3753 + $0x4] sm:$0xf]
      %v3756 = vld [vmem:[%s3753 + $0x8] sm:$0xf]
      %v3757 = vld [vmem:[%s3753 + $0xc] sm:$0xf]
      %v3758 = vld [vmem:[%s3753 + $0x10] sm:$0xf]
      %v3759 = vld [vmem:[%s3753 + $0x14] sm:$0xf]
      %v3760 = vld [vmem:[%s3753 + $0x18] sm:$0xf]
      %v3761 = vld [vmem:[%s3753 + $0x1c] sm:$0xf]
      %v3762 = vld [vmem:[%s3753 + $0x20] sm:$0xf]
      %v3763 = vld [vmem:[%s3753 + $0x24] sm:$0xf]
      %v3764 = vld [vmem:[%s3753 + $0x28] sm:$0xf]
      %v3765 = vld [vmem:[%s3753 + $0x2c] sm:$0xf]
      %v3766 = vld [vmem:[%s3753 + $0x30] sm:$0xf]
      %v3767 = vld [vmem:[%s3753 + $0x34] sm:$0xf]
      %v3768 = vld [vmem:[%s3753 + $0x38] sm:$0xf]
      %v3769 = vld [vmem:[%s3753 + $0x3c] sm:$0xf]
      %v3770 = vld [vmem:[%s3753 + $0x40] sm:$0xf]
      %v3771 = vld [vmem:[%s3753 + $0x44] sm:$0xf]
      %vm3778 = vcmask 1046528
      %v3779 = vrot.slane %v3749, 1
      %v3780 = vrot.slane %v3408, 1
      %v3781 = vsel %vm3778, %v3779, %v3780
      %v3782 = vrot.slane %v3750, 1
      %v3783 = vrot.slane %v3409, 1
      %v3784 = vsel %vm3778, %v3782, %v3783
      %v3785 = vrot.slane %v3751, 1
      %v3786 = vsel %vm3778, %v3780, %v3785
      %v3787 = vrot.slane %v3752, 1
      %v3788 = vsel %vm3778, %v3783, %v3787
      %v3810 = vunpack.c.l.b16 %v3754
      %v3811 = vunpack.c.l.b16 %v3755
      %v3812 = vunpack.c.l.b16 %v3756
      %v3813 = vunpack.c.l.b16 %v3757
      %v3814 = vunpack.c.l.b16 %v3758
      %v3815 = vunpack.c.l.b16 %v3759
      %v3816 = vunpack.c.l.b16 %v3760
      %v3817 = vunpack.c.l.b16 %v3761
      %v3818 = vunpack.c.l.b16 %v3762
      %v3819 = vunpack.c.l.b16 %v3763
      %v3820 = vunpack.c.l.b16 %v3764
      %v3821 = vunpack.c.l.b16 %v3765
      %v3822 = vunpack.c.l.b16 %v3766
      %v3823 = vunpack.c.l.b16 %v3767
      %v3824 = vunpack.c.l.b16 %v3768
      %v3825 = vunpack.c.l.b16 %v3769
      %v3826 = vunpack.c.l.b16 %v3770
      %v3827 = vunpack.c.l.b16 %v3771
      %v3828 = vpack.c.b16 %v3811, %v3810
      %v3829 = vpack.c.b16 %v3813, %v3812
      %v3830 = vpack.c.b16 %v3815, %v3814
      %v3831 = vpack.c.b16 %v3817, %v3816
      %v3832 = vpack.c.b16 %v3819, %v3818
      %v3833 = vpack.c.b16 %v3821, %v3820
      %v3834 = vpack.c.b16 %v3823, %v3822
      %v3835 = vpack.c.b16 %v3825, %v3824
      %v3836 = vpack.c.b16 %v3827, %v3826
      %v3847 = vsel %vm3561, %v3784, 0
      %v3850 = vsel %vm3561, %v3788, 0
      %v3853 = vsel %vm3561, %v3787, 0
      %3855 = vmatprep.subr.bf16.mxu0 0
      %3856 = vmatpush1.bf16.msra.mxu0 %v3828
      %3857 = vmatprep.subr.bf16.mxu0 0
      %3858 = vmatpush1.bf16.msra.mxu0 %v3829
      %3859 = vmatprep.subr.bf16.mxu0 0
      %3860 = vmatpush1.bf16.msra.mxu0 %v3830
      %3861 = vmatprep.subr.bf16.mxu0 0
      %3862 = vmatpush1.bf16.msra.mxu0 %v3831
      %3863 = vmatprep.subr.bf16.mxu0 0
      %3864 = vmatpush1.bf16.msra.mxu0 %v3832
      %3865 = vmatprep.subr.bf16.mxu0 0
      %3866 = vmatpush1.bf16.msra.mxu0 %v3833
      %3867 = vmatprep.subr.bf16.mxu0 0
      %3868 = vmatpush1.bf16.msra.mxu0 %v3834
      %3869 = vmatprep.subr.bf16.mxu0 0
      %3870 = vmatpush1.bf16.msra.mxu0 %v3835
      %3871 = vmatprep.subr.bf16.mxu0 0
      %3872 = vmatpush1.bf16.msra.mxu0 %v3836
      %3873 = vmatprep.subr.bf16.mxu0 0
      %3874 = vmatpush1.bf16.msra.mxu0 0
      %3875 = vmatprep.subr.bf16.mxu0 0
      %3876 = vmatpush1.bf16.msra.mxu0 0
      %3877 = vmatprep.subr.bf16.mxu0 0
      %3878 = vmatpush1.bf16.msra.mxu0 0
      %3879 = vmatprep.subr.bf16.mxu0 0
      %3880 = vmatpush1.bf16.msra.mxu0 0
      %3881 = vmatprep.subr.bf16.mxu0 0
      %3882 = vmatpush1.bf16.msra.mxu0 0
      %3883 = vmatprep.subr.bf16.mxu0 0
      %3884 = vmatpush1.bf16.msra.mxu0 0
      %3885 = vmatprep.subr.bf16.mxu0 0
      %3886 = vmatpush1.bf16.msra.mxu0 0
      %3887 = vmatprep.mubr.bf16.mxu0 %v3847
      %3888 = vmatmul.mubr.bf16.gmra.mrb[0].mxu0 %v3781
      %v3889 = vpop.f32.mrb[0].mxu0
      %v3890 = vadd.f32 0.0, %v3889
      %v3891 = vpop.f32.mrb[0].mxu0
      %v3892 = vpop.f32.mrb[0].mxu0
      %v3893 = vadd.f32 0.0, %v3892
      %v3894 = vpop.f32.mrb[0].mxu0
      %3895 = vmatprep.mubr.bf16.mxu0 %v3850
      %3896 = vmatmul.mubr.bf16.gmra.mrb[0].mxu0 %v3786
      %v3897 = vpop.f32.mrb[0].mxu0
      %v3898 = vadd.f32 0.0, %v3897
      %v3899 = vpop.f32.mrb[0].mxu0
      %v3900 = vpop.f32.mrb[0].mxu0
      %v3901 = vadd.f32 0.0, %v3900
      %v3902 = vpop.f32.mrb[0].mxu0
      %3903 = vmatprep.mubr.bf16.mxu0 %v3853
      %3904 = vmatmul.mubr.bf16.gmra.mrb[0].mxu0 %v3785
      %v3905 = vpop.f32.mrb[0].mxu0
      %v3906 = vadd.f32 0.0, %v3905
      %v3907 = vpop.f32.mrb[0].mxu0
      %v3908 = vpop.f32.mrb[0].mxu0
      %v3909 = vpop.f32.mrb[0].mxu0
      %3910 = vdwg.mxu0
      %v3911 = vadd.f32 %v3724, %v3890
      %v3912 = vadd.f32 %v3727, %v3893
      %v3913 = vadd.f32 %v3732, %v3898
      %v3914 = vadd.f32 %v3735, %v3901
      %v3915 = vadd.f32 %v3740, %v3906
      %v3916 = vld [vmem:[%s15] sm:$0x1]
      %v3918 = vlaneseq
      %v3919 = vshrl.u32 %v3918, 7
      %v3920 = vsub.s32 0, %v3919
      %v3921 = vrot.slane %v3916, %v3920
      %v3923 = vadd.f32 %v3911, %v3921
      %v3924 = vadd.f32 %v3912, %v3921
      %v3925 = vadd.f32 %v3913, %v3921
      %v3926 = vadd.f32 %v3914, %v3921
      %v3927 = vadd.f32 %v3915, %v3921
      %v3929 = vsel %vm920, %v3927, 0
      %3931 = vmatprep.subr.mxu0 0.0
      %3932 = vmatpush1.msra.mxu0 %v3923
      %3933 = vmatprep.subr.mxu0 0.0
      %3934 = vmatpush1.msra.mxu0 %v3924
      %3935 = vmatprep.subr.mxu0 0.0
      %3936 = vmatpush1.msra.mxu0 %v3925
      %3937 = vmatprep.subr.mxu0 0.0
      %3938 = vmatpush1.msra.mxu0 %v3926
      %3939 = vmatprep.subr.mxu0 0.0
      %3940 = vmatpush1.msra.mxu0 %v3929
      %3941 = vmatprep.subr.mxu0 0.0
      %3942 = vmatpush1.msra.mxu0 0.0
      %3943 = vmatprep.subr.mxu0 0.0
      %3944 = vmatpush1.msra.mxu0 0.0
      %3945 = vmatprep.subr.mxu0 0.0
      %3946 = vmatpush1.msra.mxu0 0.0
      %3947 = vmatprep.subr.mxu0 0.0
      %3948 = vmatpush1.msra.mxu0 0.0
      %3949 = vmatprep.subr.mxu0 0.0
      %3950 = vmatpush1.msra.mxu0 0.0
      %3951 = vmatprep.subr.mxu0 0.0
      %3952 = vmatpush1.msra.mxu0 0.0
      %3953 = vmatprep.subr.mxu0 0.0
      %3954 = vmatpush1.msra.mxu0 0.0
      %3955 = vmatprep.subr.mxu0 0.0
      %3956 = vmatpush1.msra.mxu0 0.0
      %3957 = vmatprep.subr.mxu0 0.0
      %3958 = vmatpush1.msra.mxu0 0.0
      %3959 = vmatprep.subr.mxu0 0.0
      %3960 = vmatpush1.msra.mxu0 0.0
      %3961 = vmatprep.subr.mxu0 0.0
      %3962 = vmatpush1.msra.mxu0 0.0
      %3963 = vmatprep.subr.mxu0 0.0
      %3964 = vmatpush1.msra.mxu0 0.0
      %3965 = vmatprep.subr.mxu0 0.0
      %3966 = vmatpush1.msra.mxu0 0.0
      %3967 = vmatprep.subr.mxu0 0.0
      %3968 = vmatpush1.msra.mxu0 0.0
      %3969 = vmatprep.subr.mxu0 0.0
      %3970 = vmatpush1.msra.mxu0 0.0
      %3971 = vmatprep.subr.mxu0 0.0
      %3972 = vmatpush1.msra.mxu0 0.0
      %3973 = vmatprep.subr.mxu0 0.0
      %3974 = vmatpush1.msra.mxu0 0.0
      %3975 = vmatprep.subr.mxu0 0.0
      %3976 = vmatpush1.msra.mxu0 0.0
      %3977 = vmatprep.subr.mxu0 0.0
      %3978 = vmatpush1.msra.mxu0 0.0
      %3979 = vmatprep.subr.mxu0 0.0
      %3980 = vmatpush1.msra.mxu0 0.0
      %3981 = vmatprep.subr.mxu0 0.0
      %3982 = vmatpush1.msra.mxu0 0.0
      %3983 = vmatprep.subr.mxu0 0.0
      %3984 = vmatpush1.msra.mxu0 0.0
      %3985 = vmatprep.subr.mxu0 0.0
      %3986 = vmatpush1.msra.mxu0 0.0
      %3987 = vmatprep.subr.mxu0 0.0
      %3988 = vmatpush1.msra.mxu0 0.0
      %3989 = vmatprep.subr.mxu0 0.0
      %3990 = vmatpush1.msra.mxu0 0.0
      %3991 = vmatprep.subr.mxu0 0.0
      %3992 = vmatpush1.msra.mxu0 0.0
      %3993 = vmatprep.subr.mxu0 0.0
      %3994 = vmatpush1.msra.mxu0 0.0
      %3995 = vmatprep.mubr.f32.mxu0 0.0
      %3996 = vmatmul.mubr.f32.gmra.mrb[0].mxu0 %v918
      %v3997 = vpop.f32.mrb[0].mxu0
      %v3998 = vadd.f32 0.0, %v3997
      %v3999 = vpop.f32.mrb[0].mxu0
      %4000 = vdwg.mxu0
      %v4001 = vld [vmem:[%s16] sm:$0xff]
      %v4002 = vld [vmem:[%s16 + $0x8] sm:$0xff]
      %v4003 = vld [vmem:[%s16 + $0x10] sm:$0xff]
      %v4004 = vld [vmem:[%s16 + $0x18] sm:$0xff]
      %v4005 = vld [vmem:[%s16 + $0x20] sm:$0xff]
      %v4006 = vld [vmem:[%s16 + $0x28] sm:$0xff]
      %v4007 = vld [vmem:[%s16 + $0x30] sm:$0xff]
      %v4008 = vld [vmem:[%s16 + $0x38] sm:$0xff]
      %v4009 = vld [vmem:[%s16 + $0x40] sm:$0xff]
      %v4010 = vld [vmem:[%s16 + $0x48] sm:$0xff]
      %v4011 = vld [vmem:[%s16 + $0x50] sm:$0xff]
      %v4012 = vld [vmem:[%s16 + $0x58] sm:$0xff]
      %v4013 = vld [vmem:[%s16 + $0x60] sm:$0xff]
      %v4014 = vld [vmem:[%s16 + $0x68] sm:$0xff]
      %v4015 = vld [vmem:[%s16 + $0x70] sm:$0xff]
      %v4016 = vld [vmem:[%s16 + $0x78] sm:$0xff]
      %4017 = vmatprep.subr.mxu0 0.0
      %4018 = vmatpush1.msra.mxu0 %v4001
      %4019 = vmatprep.subr.mxu0 0.0
      %4020 = vmatpush1.msra.mxu0 %v4002
      %4021 = vmatprep.subr.mxu0 0.0
      %4022 = vmatpush1.msra.mxu0 %v4003
      %4023 = vmatprep.subr.mxu0 0.0
      %4024 = vmatpush1.msra.mxu0 %v4004
      %4025 = vmatprep.subr.mxu0 0.0
      %4026 = vmatpush1.msra.mxu0 %v4005
      %4027 = vmatprep.subr.mxu0 0.0
      %4028 = vmatpush1.msra.mxu0 %v4006
      %4029 = vmatprep.subr.mxu0 0.0
      %4030 = vmatpush1.msra.mxu0 %v4007
      %4031 = vmatprep.subr.mxu0 0.0
      %4032 = vmatpush1.msra.mxu0 %v4008
      %4033 = vmatprep.subr.mxu0 0.0
      %4034 = vmatpush1.msra.mxu0 %v4009
      %4035 = vmatprep.subr.mxu0 0.0
      %4036 = vmatpush1.msra.mxu0 %v4010
      %4037 = vmatprep.subr.mxu0 0.0
      %4038 = vmatpush1.msra.mxu0 %v4011
      %4039 = vmatprep.subr.mxu0 0.0
      %4040 = vmatpush1.msra.mxu0 %v4012
      %4041 = vmatprep.subr.mxu0 0.0
      %4042 = vmatpush1.msra.mxu0 %v4013
      %4043 = vmatprep.subr.mxu0 0.0
      %4044 = vmatpush1.msra.mxu0 %v4014
      %4045 = vmatprep.subr.mxu0 0.0
      %4046 = vmatpush1.msra.mxu0 %v4015
      %4047 = vmatprep.subr.mxu0 0.0
      %4048 = vmatpush1.msra.mxu0 %v4016
      %4049 = vmatprep.subr.mxu0 0.0
      %4050 = vmatpush1.msra.mxu0 0.0
      %4051 = vmatprep.subr.mxu0 0.0
      %4052 = vmatpush1.msra.mxu0 0.0
      %4053 = vmatprep.subr.mxu0 0.0
      %4054 = vmatpush1.msra.mxu0 0.0
      %4055 = vmatprep.subr.mxu0 0.0
      %4056 = vmatpush1.msra.mxu0 0.0
      %4057 = vmatprep.subr.mxu0 0.0
      %4058 = vmatpush1.msra.mxu0 0.0
      %4059 = vmatprep.subr.mxu0 0.0
      %4060 = vmatpush1.msra.mxu0 0.0
      %4061 = vmatprep.subr.mxu0 0.0
      %4062 = vmatpush1.msra.mxu0 0.0
      %4063 = vmatprep.subr.mxu0 0.0
      %4064 = vmatpush1.msra.mxu0 0.0
      %4065 = vmatprep.subr.mxu0 0.0
      %4066 = vmatpush1.msra.mxu0 0.0
      %4067 = vmatprep.subr.mxu0 0.0
      %4068 = vmatpush1.msra.mxu0 0.0
      %4069 = vmatprep.subr.mxu0 0.0
      %4070 = vmatpush1.msra.mxu0 0.0
      %4071 = vmatprep.subr.mxu0 0.0
      %4072 = vmatpush1.msra.mxu0 0.0
      %4073 = vmatprep.subr.mxu0 0.0
      %4074 = vmatpush1.msra.mxu0 0.0
      %4075 = vmatprep.subr.mxu0 0.0
      %4076 = vmatpush1.msra.mxu0 0.0
      %4077 = vmatprep.subr.mxu0 0.0
      %4078 = vmatpush1.msra.mxu0 0.0
      %4079 = vmatprep.subr.mxu0 0.0
      %4080 = vmatpush1.msra.mxu0 0.0
      %4081 = vmatprep.mubr.f32.mxu0 0.0
      %4082 = vmatmul.mubr.f32.gmra.mrb[0].mxu0 %v3998
      %v4083 = vpop.f32.mrb[0].mxu0
      %v4084 = vadd.f32 0.0, %v4083
      %v4085 = vpop.f32.mrb[0].mxu0
      %4086 = vdwg.mxu0
      %v4087 = vmul.f32 %v4084, %v1076
      %v4088 = vld [vmem:[%s17] sm:$0xff]
      %v4090 = vsel %vm2977, %v4087, 0
      %4092 = vmatprep.subr.mxu0 0.0
      %4093 = vmatpush1.msra.mxu0 %v4088
      %4094 = vmatprep.subr.mxu0 0.0
      %4095 = vmatpush1.msra.mxu0 0.0
      %4096 = vmatprep.subr.mxu0 0.0
      %4097 = vmatpush1.msra.mxu0 0.0
      %4098 = vmatprep.subr.mxu0 0.0
      %4099 = vmatpush1.msra.mxu0 0.0
      %4100 = vmatprep.subr.mxu0 0.0
      %4101 = vmatpush1.msra.mxu0 0.0
      %4102 = vmatprep.subr.mxu0 0.0
      %4103 = vmatpush1.msra.mxu0 0.0
      %4104 = vmatprep.subr.mxu0 0.0
      %4105 = vmatpush1.msra.mxu0 0.0
      %4106 = vmatprep.subr.mxu0 0.0
      %4107 = vmatpush1.msra.mxu0 0.0
      %4108 = vmatprep.subr.mxu0 0.0
      %4109 = vmatpush1.msra.mxu0 0.0
      %4110 = vmatprep.subr.mxu0 0.0
      %4111 = vmatpush1.msra.mxu0 0.0
      %4112 = vmatprep.subr.mxu0 0.0
      %4113 = vmatpush1.msra.mxu0 0.0
      %4114 = vmatprep.subr.mxu0 0.0
      %4115 = vmatpush1.msra.mxu0 0.0
      %4116 = vmatprep.subr.mxu0 0.0
      %4117 = vmatpush1.msra.mxu0 0.0
      %4118 = vmatprep.subr.mxu0 0.0
      %4119 = vmatpush1.msra.mxu0 0.0
      %4120 = vmatprep.subr.mxu0 0.0
      %4121 = vmatpush1.msra.mxu0 0.0
      %4122 = vmatprep.subr.mxu0 0.0
      %4123 = vmatpush1.msra.mxu0 0.0
      %4124 = vmatprep.subr.mxu0 0.0
      %4125 = vmatpush1.msra.mxu0 0.0
      %4126 = vmatprep.subr.mxu0 0.0
      %4127 = vmatpush1.msra.mxu0 0.0
      %4128 = vmatprep.subr.mxu0 0.0
      %4129 = vmatpush1.msra.mxu0 0.0
      %4130 = vmatprep.subr.mxu0 0.0
      %4131 = vmatpush1.msra.mxu0 0.0
      %4132 = vmatprep.subr.mxu0 0.0
      %4133 = vmatpush1.msra.mxu0 0.0
      %4134 = vmatprep.subr.mxu0 0.0
      %4135 = vmatpush1.msra.mxu0 0.0
      %4136 = vmatprep.subr.mxu0 0.0
      %4137 = vmatpush1.msra.mxu0 0.0
      %4138 = vmatprep.subr.mxu0 0.0
      %4139 = vmatpush1.msra.mxu0 0.0
      %4140 = vmatprep.subr.mxu0 0.0
      %4141 = vmatpush1.msra.mxu0 0.0
      %4142 = vmatprep.subr.mxu0 0.0
      %4143 = vmatpush1.msra.mxu0 0.0
      %4144 = vmatprep.subr.mxu0 0.0
      %4145 = vmatpush1.msra.mxu0 0.0
      %4146 = vmatprep.subr.mxu0 0.0
      %4147 = vmatpush1.msra.mxu0 0.0
      %4148 = vmatprep.subr.mxu0 0.0
      %4149 = vmatpush1.msra.mxu0 0.0
      %4150 = vmatprep.subr.mxu0 0.0
      %4151 = vmatpush1.msra.mxu0 0.0
      %4152 = vmatprep.subr.mxu0 0.0
      %4153 = vmatpush1.msra.mxu0 0.0
      %4154 = vmatprep.subr.mxu0 0.0
      %4155 = vmatpush1.msra.mxu0 0.0
      %4156 = vmatprep.mubr.f32.mxu0 0.0
      %4157 = vmatmul.mubr.f32.gmra.mrb[0].mxu0 %v4090
      %v4158 = vpop.f32.mrb[0].mxu0
      %v4159 = vadd.f32 0.0, %v4158
      %v4160 = vpop.f32.mrb[0].mxu0
      %4161 = vdwg.mxu0
      %v4162 = vlaneseq
      %v4163 = vshrl.u32 %v4162, 7
      %v4164 = vsub.s32 0, %v4163
      %v4165 = vrot.slane %v4159, %v4164
      %v4166 = vsub.f32 %v3923, %v4165
      %v4167 = vsub.f32 %v3924, %v4165
      %v4168 = vsub.f32 %v3925, %v4165
      %v4169 = vsub.f32 %v3926, %v4165
      %v4170 = vsub.f32 %v3927, %v4165
      %v4171 = vmul.f32 %v4166, %v4166
      %v4172 = vmul.f32 %v4167, %v4167
      %v4173 = vmul.f32 %v4168, %v4168
      %v4174 = vmul.f32 %v4169, %v4169
      %v4175 = vmul.f32 %v4170, %v4170
      %v4177 = vsel %vm920, %v4175, 0
      %4179 = vmatprep.subr.mxu0 0.0
      %4180 = vmatpush1.msra.mxu0 %v4171
      %4181 = vmatprep.subr.mxu0 0.0
      %4182 = vmatpush1.msra.mxu0 %v4172
      %4183 = vmatprep.subr.mxu0 0.0
      %4184 = vmatpush1.msra.mxu0 %v4173
      %4185 = vmatprep.subr.mxu0 0.0
      %4186 = vmatpush1.msra.mxu0 %v4174
      %4187 = vmatprep.subr.mxu0 0.0
      %4188 = vmatpush1.msra.mxu0 %v4177
      %4189 = vmatprep.subr.mxu0 0.0
      %4190 = vmatpush1.msra.mxu0 0.0
      %4191 = vmatprep.subr.mxu0 0.0
      %4192 = vmatpush1.msra.mxu0 0.0
      %4193 = vmatprep.subr.mxu0 0.0
      %4194 = vmatpush1.msra.mxu0 0.0
      %4195 = vmatprep.subr.mxu0 0.0
      %4196 = vmatpush1.msra.mxu0 0.0
      %4197 = vmatprep.subr.mxu0 0.0
      %4198 = vmatpush1.msra.mxu0 0.0
      %4199 = vmatprep.subr.mxu0 0.0
      %4200 = vmatpush1.msra.mxu0 0.0
      %4201 = vmatprep.subr.mxu0 0.0
      %4202 = vmatpush1.msra.mxu0 0.0
      %4203 = vmatprep.subr.mxu0 0.0
      %4204 = vmatpush1.msra.mxu0 0.0
      %4205 = vmatprep.subr.mxu0 0.0
      %4206 = vmatpush1.msra.mxu0 0.0
      %4207 = vmatprep.subr.mxu0 0.0
      %4208 = vmatpush1.msra.mxu0 0.0
      %4209 = vmatprep.subr.mxu0 0.0
      %4210 = vmatpush1.msra.mxu0 0.0
      %4211 = vmatprep.subr.mxu0 0.0
      %4212 = vmatpush1.msra.mxu0 0.0
      %4213 = vmatprep.subr.mxu0 0.0
      %4214 = vmatpush1.msra.mxu0 0.0
      %4215 = vmatprep.subr.mxu0 0.0
      %4216 = vmatpush1.msra.mxu0 0.0
      %4217 = vmatprep.subr.mxu0 0.0
      %4218 = vmatpush1.msra.mxu0 0.0
      %4219 = vmatprep.subr.mxu0 0.0
      %4220 = vmatpush1.msra.mxu0 0.0
      %4221 = vmatprep.subr.mxu0 0.0
      %4222 = vmatpush1.msra.mxu0 0.0
      %4223 = vmatprep.subr.mxu0 0.0
      %4224 = vmatpush1.msra.mxu0 0.0
      %4225 = vmatprep.subr.mxu0 0.0
      %4226 = vmatpush1.msra.mxu0 0.0
      %4227 = vmatprep.subr.mxu0 0.0
      %4228 = vmatpush1.msra.mxu0 0.0
      %4229 = vmatprep.subr.mxu0 0.0
      %4230 = vmatpush1.msra.mxu0 0.0
      %4231 = vmatprep.subr.mxu0 0.0
      %4232 = vmatpush1.msra.mxu0 0.0
      %4233 = vmatprep.subr.mxu0 0.0
      %4234 = vmatpush1.msra.mxu0 0.0
      %4235 = vmatprep.subr.mxu0 0.0
      %4236 = vmatpush1.msra.mxu0 0.0
      %4237 = vmatprep.subr.mxu0 0.0
      %4238 = vmatpush1.msra.mxu0 0.0
      %4239 = vmatprep.subr.mxu0 0.0
      %4240 = vmatpush1.msra.mxu0 0.0
      %4241 = vmatprep.subr.mxu0 0.0
      %4242 = vmatpush1.msra.mxu0 0.0
      %4243 = vmatprep.mubr.f32.mxu0 0.0
      %4244 = vmatmul.mubr.f32.gmra.mrb[0].mxu0 %v918
      %v4245 = vpop.f32.mrb[0].mxu0
      %v4246 = vadd.f32 0.0, %v4245
      %v4247 = vpop.f32.mrb[0].mxu0
      %4248 = vdwg.mxu0
      %4249 = vmatprep.subr.mxu0 0.0
      %4250 = vmatpush1.msra.mxu0 %v4001
      %4251 = vmatprep.subr.mxu0 0.0
      %4252 = vmatpush1.msra.mxu0 %v4002
      %4253 = vmatprep.subr.mxu0 0.0
      %4254 = vmatpush1.msra.mxu0 %v4003
      %4255 = vmatprep.subr.mxu0 0.0
      %4256 = vmatpush1.msra.mxu0 %v4004
      %4257 = vmatprep.subr.mxu0 0.0
      %4258 = vmatpush1.msra.mxu0 %v4005
      %4259 = vmatprep.subr.mxu0 0.0
      %4260 = vmatpush1.msra.mxu0 %v4006
      %4261 = vmatprep.subr.mxu0 0.0
      %4262 = vmatpush1.msra.mxu0 %v4007
      %4263 = vmatprep.subr.mxu0 0.0
      %4264 = vmatpush1.msra.mxu0 %v4008
      %4265 = vmatprep.subr.mxu0 0.0
      %4266 = vmatpush1.msra.mxu0 %v4009
      %4267 = vmatprep.subr.mxu0 0.0
      %4268 = vmatpush1.msra.mxu0 %v4010
      %4269 = vmatprep.subr.mxu0 0.0
      %4270 = vmatpush1.msra.mxu0 %v4011
      %4271 = vmatprep.subr.mxu0 0.0
      %4272 = vmatpush1.msra.mxu0 %v4012
      %4273 = vmatprep.subr.mxu0 0.0
      %4274 = vmatpush1.msra.mxu0 %v4013
      %4275 = vmatprep.subr.mxu0 0.0
      %4276 = vmatpush1.msra.mxu0 %v4014
      %4277 = vmatprep.subr.mxu0 0.0
      %4278 = vmatpush1.msra.mxu0 %v4015
      %4279 = vmatprep.subr.mxu0 0.0
      %4280 = vmatpush1.msra.mxu0 %v4016
      %4281 = vmatprep.subr.mxu0 0.0
      %4282 = vmatpush1.msra.mxu0 0.0
      %4283 = vmatprep.subr.mxu0 0.0
      %4284 = vmatpush1.msra.mxu0 0.0
      %4285 = vmatprep.subr.mxu0 0.0
      %4286 = vmatpush1.msra.mxu0 0.0
      %4287 = vmatprep.subr.mxu0 0.0
      %4288 = vmatpush1.msra.mxu0 0.0
      %4289 = vmatprep.subr.mxu0 0.0
      %4290 = vmatpush1.msra.mxu0 0.0
      %4291 = vmatprep.subr.mxu0 0.0
      %4292 = vmatpush1.msra.mxu0 0.0
      %4293 = vmatprep.subr.mxu0 0.0
      %4294 = vmatpush1.msra.mxu0 0.0
      %4295 = vmatprep.subr.mxu0 0.0
      %4296 = vmatpush1.msra.mxu0 0.0
      %4297 = vmatprep.subr.mxu0 0.0
      %4298 = vmatpush1.msra.mxu0 0.0
      %4299 = vmatprep.subr.mxu0 0.0
      %4300 = vmatpush1.msra.mxu0 0.0
      %4301 = vmatprep.subr.mxu0 0.0
      %4302 = vmatpush1.msra.mxu0 0.0
      %4303 = vmatprep.subr.mxu0 0.0
      %4304 = vmatpush1.msra.mxu0 0.0
      %4305 = vmatprep.subr.mxu0 0.0
      %4306 = vmatpush1.msra.mxu0 0.0
      %4307 = vmatprep.subr.mxu0 0.0
      %4308 = vmatpush1.msra.mxu0 0.0
      %4309 = vmatprep.subr.mxu0 0.0
      %4310 = vmatpush1.msra.mxu0 0.0
      %4311 = vmatprep.subr.mxu0 0.0
      %4312 = vmatpush1.msra.mxu0 0.0
      %4313 = vmatprep.mubr.f32.mxu0 0.0
      %4314 = vmatmul.mubr.f32.gmra.mrb[0].mxu0 %v4246
      %v4315 = vpop.f32.mrb[0].mxu0
      %v4316 = vadd.f32 0.0, %v4315
      %v4317 = vpop.f32.mrb[0].mxu0
      %4318 = vdwg.mxu0
      %v4319 = vmul.f32 %v4316, %v1076
      %v4320 = vadd.f32 %v4319, 1e-05
      %v4321 = vrsqrt.pop %v4320
      %v4323 = vsel %vm2977, %v4321, 0
      %4325 = vmatprep.subr.mxu0 0.0
      %4326 = vmatpush1.msra.mxu0 %v4088
      %4327 = vmatprep.subr.mxu0 0.0
      %4328 = vmatpush1.msra.mxu0 0.0
      %4329 = vmatprep.subr.mxu0 0.0
      %4330 = vmatpush1.msra.mxu0 0.0
      %4331 = vmatprep.subr.mxu0 0.0
      %4332 = vmatpush1.msra.mxu0 0.0
      %4333 = vmatprep.subr.mxu0 0.0
      %4334 = vmatpush1.msra.mxu0 0.0
      %4335 = vmatprep.subr.mxu0 0.0
      %4336 = vmatpush1.msra.mxu0 0.0
      %4337 = vmatprep.subr.mxu0 0.0
      %4338 = vmatpush1.msra.mxu0 0.0
      %4339 = vmatprep.subr.mxu0 0.0
      %4340 = vmatpush1.msra.mxu0 0.0
      %4341 = vmatprep.subr.mxu0 0.0
      %4342 = vmatpush1.msra.mxu0 0.0
      %4343 = vmatprep.subr.mxu0 0.0
      %4344 = vmatpush1.msra.mxu0 0.0
      %4345 = vmatprep.subr.mxu0 0.0
      %4346 = vmatpush1.msra.mxu0 0.0
      %4347 = vmatprep.subr.mxu0 0.0
      %4348 = vmatpush1.msra.mxu0 0.0
      %4349 = vmatprep.subr.mxu0 0.0
      %4350 = vmatpush1.msra.mxu0 0.0
      %4351 = vmatprep.subr.mxu0 0.0
      %4352 = vmatpush1.msra.mxu0 0.0
      %4353 = vmatprep.subr.mxu0 0.0
      %4354 = vmatpush1.msra.mxu0 0.0
      %4355 = vmatprep.subr.mxu0 0.0
      %4356 = vmatpush1.msra.mxu0 0.0
      %4357 = vmatprep.subr.mxu0 0.0
      %4358 = vmatpush1.msra.mxu0 0.0
      %4359 = vmatprep.subr.mxu0 0.0
      %4360 = vmatpush1.msra.mxu0 0.0
      %4361 = vmatprep.subr.mxu0 0.0
      %4362 = vmatpush1.msra.mxu0 0.0
      %4363 = vmatprep.subr.mxu0 0.0
      %4364 = vmatpush1.msra.mxu0 0.0
      %4365 = vmatprep.subr.mxu0 0.0
      %4366 = vmatpush1.msra.mxu0 0.0
      %4367 = vmatprep.subr.mxu0 0.0
      %4368 = vmatpush1.msra.mxu0 0.0
      %4369 = vmatprep.subr.mxu0 0.0
      %4370 = vmatpush1.msra.mxu0 0.0
      %4371 = vmatprep.subr.mxu0 0.0
      %4372 = vmatpush1.msra.mxu0 0.0
      %4373 = vmatprep.subr.mxu0 0.0
      %4374 = vmatpush1.msra.mxu0 0.0
      %4375 = vmatprep.subr.mxu0 0.0
      %4376 = vmatpush1.msra.mxu0 0.0
      %4377 = vmatprep.subr.mxu0 0.0
      %4378 = vmatpush1.msra.mxu0 0.0
      %4379 = vmatprep.subr.mxu0 0.0
      %4380 = vmatpush1.msra.mxu0 0.0
      %4381 = vmatprep.subr.mxu0 0.0
      %4382 = vmatpush1.msra.mxu0 0.0
      %4383 = vmatprep.subr.mxu0 0.0
      %4384 = vmatpush1.msra.mxu0 0.0
      %4385 = vmatprep.subr.mxu0 0.0
      %4386 = vmatpush1.msra.mxu0 0.0
      %4387 = vmatprep.subr.mxu0 0.0
      %4388 = vmatpush1.msra.mxu0 0.0
      %4389 = vmatprep.mubr.f32.mxu0 0.0
      %4390 = vmatmul.mubr.f32.gmra.mrb[0].mxu0 %v4323
      %v4391 = vpop.f32.mrb[0].mxu0
      %v4392 = vadd.f32 0.0, %v4391
      %v4393 = vpop.f32.mrb[0].mxu0
      %4394 = vdwg.mxu0
      %v4395 = vlaneseq
      %v4396 = vshrl.u32 %v4395, 7
      %v4397 = vsub.s32 0, %v4396
      %v4398 = vrot.slane %v4392, %v4397
      %v4399 = vmul.f32 %v4166, %v4398
      %v4400 = vmul.f32 %v4167, %v4398
      %v4401 = vmul.f32 %v4168, %v4398
      %v4402 = vmul.f32 %v4169, %v4398
      %v4403 = vmul.f32 %v4170, %v4398
      %v4404 = vmax.f32 %v4399, 0.0
      %v4405 = vmax.f32 %v4400, 0.0
      %v4406 = vmax.f32 %v4401, 0.0
      %v4407 = vmax.f32 %v4402, 0.0
      %v4408 = vmax.f32 %v4403, 0.0
      %4409 = vst [vmem:[%s575] sm:$0xff] %v4404
      %4410 = vst [vmem:[%s575 + $0x8] sm:$0xff] %v4405
      %4411 = vst [vmem:[%s575 + $0xe] sm:$0xfc] %v4406
      %4412 = vst [vmem:[%s575 + $0x16] sm:$0xff] %v4407
      %4413 = vst [vmem:[%s575 + $0x1e] sm:$0x3] %v4408
      %p4414 = scmp.lt.s32.totalorder %s29, 1
      %s4415 = scalar_select %p4414, %s29, 1
      %s4416 = smul.addr %s4415, 4
      %s4417 = smul.addr %s4416, 8
      %s4418 = scalar_lea.vmem %s18, %s4417
      // Predicated region
      $region93: #{siamese_forward.2} parent=91 // pred_check
        %p4419 = pneg %p430
      $region94: #{siamese_forward.2} parent=91 // pred_check_branch
        %4421 = sbr.rel (%p4419) target = $region96
      $region95: #{siamese_forward.2} parent=91 // pred_region
        _
      $region96: #{siamese_forward.2} parent=91 // pred_fallthru
        _
    $region92: #{siamese_forward.2} parent=5 // pred_fallthru
      _
    %p4422 = scmp.le.s32.totalorder 2, %s24
    // Predicated region
    $region97: #{siamese_forward.2} parent=5 // pred_check
      %p4423 = pneg %p4422
    $region98: #{siamese_forward.2} parent=5 // pred_check_branch
      %4425 = sbr.rel (%p4423) target = $region100
    $region99: #{siamese_forward.2} parent=5 // pred_region
      %s4426 = ssub.s32 %s24, 2
      // Predicated region
      $region101: #{siamese_forward.2} parent=99 // pred_check
        %p4427 = pneg %p436
      $region102: #{siamese_forward.2} parent=99 // pred_check_branch
        %4429 = sbr.rel (%p4427) target = $region104
      $region103: #{siamese_forward.2} parent=99 // pred_region
        %p4430 = scmp.lt.s32.totalorder %s30, 1
        %s4431 = scalar_select %p4430, %s30, 1
        %s4432 = smul.addr %s4431, 4
        %s4433 = smul.addr %s4432, 8
        %s4434 = scalar_lea.vmem %s18, %s4433
      $region104: #{siamese_forward.2} parent=99 // pred_fallthru
        _
    $region100: #{siamese_forward.2} parent=5 // pred_fallthru
      _
  $region6: #{siamese_forward.2} parent=0 // loop_footer
    %s28 = sadd.s32 1, %s24
  $region7: #{siamese_forward.2} parent=0 // loop_footer_branch
    %23 = sbr.rel target = $region3
  $region8: #{siamese_forward.2} parent=0 // loop_exit
    _

// kernel: siamese_forward.3
$region0: #{siamese_forward.3}
  #allocation0 [shape = 'u32[]', space=smem, size = 0x4, offset = 0x4, fixed_abs, tag = 'smem constant byte address 0x4 - core index']
  #allocation1 [shape = 'u32[144,128]{1,0:T(1,128)}', space=vmem, size = 0x12000, scoped, tag = 'internal scratch']
  #allocation2 [shape = 'f32[4,512]{1,0:T(4,128)}', space=vmem, size = 0x2000, scoped, tag = 'scratch operand']
  %s0 = inlined_call_operand.vmem [shape: f32[4,2048], index: 0, kind: input, shape index: {}]
  %s1 = inlined_call_operand.vmem [shape: bf16[2048,512], index: 1, kind: input, shape index: {}]
  %s2 = inlined_call_operand.vmem [shape: f32[1,512], index: 2, kind: input, shape index: {}]
  %s3 = inlined_call_operand.vmem [shape: bf16[512,512], index: 3, kind: input, shape index: {}]
  %s4 = inlined_call_operand.vmem [shape: f32[1,512], index: 4, kind: input, shape index: {}]
  %s5 = inlined_call_operand.vmem [shape: bf16[512,128], index: 5, kind: input, shape index: {}]
  %s6 = inlined_call_operand.vmem [shape: f32[1,128], index: 6, kind: input, shape index: {}]
  %s7 = inlined_call_operand.vmem [shape: f32[4,128], index: 7, kind: output, shape index: {}]
  %s8 = sld [smem:[#allocation0]]
  $region46: #{siamese_forward.3} parent=0
    _
  %s10 = ssub.s32 1, %s8
  %s11 = scalar_select 0, %s10, %s8
  // Predicated region
  $region2: #{siamese_forward.3} parent=0 // pred_check
    _
  $region3: #{siamese_forward.3} parent=0 // pred_check_branch
    %13 = sbr.rel (0) target = $region5
  $region4: #{siamese_forward.3} parent=0 // pred_region
    _
  $region5: #{siamese_forward.3} parent=0 // pred_fallthru
    _
  // Predicated region
  $region6: #{siamese_forward.3} parent=0 // pred_check
    _
  $region7: #{siamese_forward.3} parent=0 // pred_check_branch
    %15 = sbr.rel (0) target = $region9
  $region8: #{siamese_forward.3} parent=0 // pred_region
    _
  $region9: #{siamese_forward.3} parent=0 // pred_fallthru
    _
  // Predicated region
  $region10: #{siamese_forward.3} parent=0 // pred_check
    _
  $region11: #{siamese_forward.3} parent=0 // pred_check_branch
    %17 = sbr.rel (0) target = $region13
  $region12: #{siamese_forward.3} parent=0 // pred_region
    _
  $region13: #{siamese_forward.3} parent=0 // pred_fallthru
    _
  // Predicated region
  $region14: #{siamese_forward.3} parent=0 // pred_check
    _
  $region15: #{siamese_forward.3} parent=0 // pred_check_branch
    %19 = sbr.rel (0) target = $region17
  $region16: #{siamese_forward.3} parent=0 // pred_region
    _
  $region17: #{siamese_forward.3} parent=0 // pred_fallthru
    _
  // Predicated region
  $region18: #{siamese_forward.3} parent=0 // pred_check
    _
  $region19: #{siamese_forward.3} parent=0 // pred_check_branch
    %21 = sbr.rel (0) target = $region21
  $region20: #{siamese_forward.3} parent=0 // pred_region
    _
  $region21: #{siamese_forward.3} parent=0 // pred_fallthru
    _
  // Predicated region
  $region22: #{siamese_forward.3} parent=0 // pred_check
    _
  $region23: #{siamese_forward.3} parent=0 // pred_check_branch
    %23 = sbr.rel (0) target = $region25
  $region24: #{siamese_forward.3} parent=0 // pred_region
    _
  $region25: #{siamese_forward.3} parent=0 // pred_fallthru
    _
  // Predicated region
  $region26: #{siamese_forward.3} parent=0 // pred_check
    _
  $region27: #{siamese_forward.3} parent=0 // pred_check_branch
    %25 = sbr.rel (0) target = $region29
  $region28: #{siamese_forward.3} parent=0 // pred_region
    _
  $region29: #{siamese_forward.3} parent=0 // pred_fallthru
    _
  %p27 = scmp.eq.s32.totalorder 0, 0
  // Predicated region
  $region30: #{siamese_forward.3} parent=0 // pred_check
    %p28 = pneg %p27
  $region31: #{siamese_forward.3} parent=0 // pred_check_branch
    %30 = sbr.rel (%p28) target = $region33
  $region32: #{siamese_forward.3} parent=0 // pred_region
    %31 = vst [vmem:[#allocation2] sm:$0xff] 0.0
    %32 = vst [vmem:[#allocation2 + $0x8] sm:$0xff] 0.0
  $region33: #{siamese_forward.3} parent=0 // pred_fallthru
    _
  %v33 = vld [vmem:[#allocation2] sm:$0xff]
  %v34 = vld [vmem:[#allocation2 + $0x8] sm:$0xff]
  %v35 = vld [vmem:[%s0] sm:$0xff]
  %v36 = vld [vmem:[%s0 + $0x8] sm:$0xff]
  %v37 = vld [vmem:[%s0 + $0x10] sm:$0xff]
  %v38 = vld [vmem:[%s0 + $0x18] sm:$0xff]
  %v39 = vld [vmem:[%s0 + $0x20] sm:$0xff]
  %v40 = vld [vmem:[%s0 + $0x28] sm:$0xff]
  %v41 = vld [vmem:[%s0 + $0x30] sm:$0xff]
  %v42 = vld [vmem:[%s0 + $0x38] sm:$0xff]
  %v51 = vcombine.high %v35, %v35
  %v52 = vcombine.high %v36, %v36
  %v53 = vcombine.high %v37, %v37
  %v54 = vcombine.high %v38, %v38
  %v55 = vcombine.high %v39, %v39
  %v56 = vcombine.high %v40, %v40
  %v57 = vcombine.high %v41, %v41
  %v58 = vcombine.high %v42, %v42
  %v67 = vpack.c.bf16 %v35, %v35
  %v68 = vpack.c.bf16 %v51, %v51
  %v69 = vpack.c.bf16 %v36, %v36
  %v70 = vpack.c.bf16 %v52, %v52
  %v71 = vpack.c.bf16 %v37, %v37
  %v72 = vpack.c.bf16 %v53, %v53
  %v73 = vpack.c.bf16 %v38, %v38
  %v74 = vpack.c.bf16 %v54, %v54
  %v75 = vpack.c.bf16 %v39, %v39
  %v76 = vpack.c.bf16 %v55, %v55
  %v77 = vpack.c.bf16 %v40, %v40
  %v78 = vpack.c.bf16 %v56, %v56
  %v79 = vpack.c.bf16 %v41, %v41
  %v80 = vpack.c.bf16 %v57, %v57
  %v81 = vpack.c.bf16 %v42, %v42
  %v82 = vpack.c.bf16 %v58, %v58
  %v83 = vld [vmem:[%s1] sm:$0xff]
  %v84 = vld [vmem:[%s1 + $0x8] sm:$0xff]
  %v85 = vld [vmem:[%s1 + $0x10] sm:$0xff]
  %v86 = vld [vmem:[%s1 + $0x18] sm:$0xff]
  %v87 = vld [vmem:[%s1 + $0x20] sm:$0xff]
  %v88 = vld [vmem:[%s1 + $0x28] sm:$0xff]
  %v89 = vld [vmem:[%s1 + $0x30] sm:$0xff]
  %v90 = vld [vmem:[%s1 + $0x38] sm:$0xff]
  %v91 = vld [vmem:[%s1 + $0x40] sm:$0xff]
  %v92 = vld [vmem:[%s1 + $0x48] sm:$0xff]
  %v93 = vld [vmem:[%s1 + $0x50] sm:$0xff]
  %v94 = vld [vmem:[%s1 + $0x58] sm:$0xff]
  %v95 = vld [vmem:[%s1 + $0x60] sm:$0xff]
  %v96 = vld [vmem:[%s1 + $0x68] sm:$0xff]
  %v97 = vld [vmem:[%s1 + $0x70] sm:$0xff]
  %v98 = vld [vmem:[%s1 + $0x78] sm:$0xff]
  %v99 = vld [vmem:[%s1 + $0x80] sm:$0xff]
  %v100 = vld [vmem:[%s1 + $0x88] sm:$0xff]
  %v101 = vld [vmem:[%s1 + $0x90] sm:$0xff]
  %v102 = vld [vmem:[%s1 + $0x98] sm:$0xff]
  %v103 = vld [vmem:[%s1 + $0xa0] sm:$0xff]
  %v104 = vld [vmem:[%s1 + $0xa8] sm:$0xff]
  %v105 = vld [vmem:[%s1 + $0xb0] sm:$0xff]
  %v106 = vld [vmem:[%s1 + $0xb8] sm:$0xff]
  %v107 = vld [vmem:[%s1 + $0xc0] sm:$0xff]
  %v108 = vld [vmem:[%s1 + $0xc8] sm:$0xff]
  %v109 = vld [vmem:[%s1 + $0xd0] sm:$0xff]
  %v110 = vld [vmem:[%s1 + $0xd8] sm:$0xff]
  %v111 = vld [vmem:[%s1 + $0xe0] sm:$0xff]
  %v112 = vld [vmem:[%s1 + $0xe8] sm:$0xff]
  %v113 = vld [vmem:[%s1 + $0xf0] sm:$0xff]
  %v114 = vld [vmem:[%s1 + $0xf8] sm:$0xff]
  %v115 = vld [vmem:[%s1 + $0x100] sm:$0xff]
  %v116 = vld [vmem:[%s1 + $0x108] sm:$0xff]
  %v117 = vld [vmem:[%s1 + $0x110] sm:$0xff]
  %v118 = vld [vmem:[%s1 + $0x118] sm:$0xff]
  %v119 = vld [vmem:[%s1 + $0x120] sm:$0xff]
  %v120 = vld [vmem:[%s1 + $0x128] sm:$0xff]
  %v121 = vld [vmem:[%s1 + $0x130] sm:$0xff]
  %v122 = vld [vmem:[%s1 + $0x138] sm:$0xff]
  %v123 = vld [vmem:[%s1 + $0x140] sm:$0xff]
  %v124 = vld [vmem:[%s1 + $0x148] sm:$0xff]
  %v125 = vld [vmem:[%s1 + $0x150] sm:$0xff]
  %v126 = vld [vmem:[%s1 + $0x158] sm:$0xff]
  %v127 = vld [vmem:[%s1 + $0x160] sm:$0xff]
  %v128 = vld [vmem:[%s1 + $0x168] sm:$0xff]
  %v129 = vld [vmem:[%s1 + $0x170] sm:$0xff]
  %v130 = vld [vmem:[%s1 + $0x178] sm:$0xff]
  %v131 = vld [vmem:[%s1 + $0x180] sm:$0xff]
  %v132 = vld [vmem:[%s1 + $0x188] sm:$0xff]
  %v133 = vld [vmem:[%s1 + $0x190] sm:$0xff]
  %v134 = vld [vmem:[%s1 + $0x198] sm:$0xff]
  %v135 = vld [vmem:[%s1 + $0x1a0] sm:$0xff]
  %v136 = vld [vmem:[%s1 + $0x1a8] sm:$0xff]
  %v137 = vld [vmem:[%s1 + $0x1b0] sm:$0xff]
  %v138 = vld [vmem:[%s1 + $0x1b8] sm:$0xff]
  %v139 = vld [vmem:[%s1 + $0x1c0] sm:$0xff]
  %v140 = vld [vmem:[%s1 + $0x1c8] sm:$0xff]
  %v141 = vld [vmem:[%s1 + $0x1d0] sm:$0xff]
  %v142 = vld [vmem:[%s1 + $0x1d8] sm:$0xff]
  %v143 = vld [vmem:[%s1 + $0x1e0] sm:$0xff]
  %v144 = vld [vmem:[%s1 + $0x1e8] sm:$0xff]
  %v145 = vld [vmem:[%s1 + $0x1f0] sm:$0xff]
  %v146 = vld [vmem:[%s1 + $0x1f8] sm:$0xff]
  %v147 = vld [vmem:[%s1 + $0x200] sm:$0xff]
  %v148 = vld [vmem:[%s1 + $0x208] sm:$0xff]
  %v149 = vld [vmem:[%s1 + $0x210] sm:$0xff]
  %v150 = vld [vmem:[%s1 + $0x218] sm:$0xff]
  %v151 = vld [vmem:[%s1 + $0x220] sm:$0xff]
  %v152 = vld [vmem:[%s1 + $0x228] sm:$0xff]
  %v153 = vld [vmem:[%s1 + $0x230] sm:$0xff]
  %v154 = vld [vmem:[%s1 + $0x238] sm:$0xff]
  %v155 = vld [vmem:[%s1 + $0x240] sm:$0xff]
  %v156 = vld [vmem:[%s1 + $0x248] sm:$0xff]
  %v157 = vld [vmem:[%s1 + $0x250] sm:$0xff]
  %v158 = vld [vmem:[%s1 + $0x258] sm:$0xff]
  %v159 = vld [vmem:[%s1 + $0x260] sm:$0xff]
  %v160 = vld [vmem:[%s1 + $0x268] sm:$0xff]
  %v161 = vld [vmem:[%s1 + $0x270] sm:$0xff]
  %v162 = vld [vmem:[%s1 + $0x278] sm:$0xff]
  %v163 = vld [vmem:[%s1 + $0x280] sm:$0xff]
  %v164 = vld [vmem:[%s1 + $0x288] sm:$0xff]
  %v165 = vld [vmem:[%s1 + $0x290] sm:$0xff]
  %v166 = vld [vmem:[%s1 + $0x298] sm:$0xff]
  %v167 = vld [vmem:[%s1 + $0x2a0] sm:$0xff]
  %v168 = vld [vmem:[%s1 + $0x2a8] sm:$0xff]
  %v169 = vld [vmem:[%s1 + $0x2b0] sm:$0xff]
  %v170 = vld [vmem:[%s1 + $0x2b8] sm:$0xff]
  %v171 = vld [vmem:[%s1 + $0x2c0] sm:$0xff]
  %v172 = vld [vmem:[%s1 + $0x2c8] sm:$0xff]
  %v173 = vld [vmem:[%s1 + $0x2d0] sm:$0xff]
  %v174 = vld [vmem:[%s1 + $0x2d8] sm:$0xff]
  %v175 = vld [vmem:[%s1 + $0x2e0] sm:$0xff]
  %v176 = vld [vmem:[%s1 + $0x2e8] sm:$0xff]
  %v177 = vld [vmem:[%s1 + $0x2f0] sm:$0xff]
  %v178 = vld [vmem:[%s1 + $0x2f8] sm:$0xff]
  %v179 = vld [vmem:[%s1 + $0x300] sm:$0xff]
  %v180 = vld [vmem:[%s1 + $0x308] sm:$0xff]
  %v181 = vld [vmem:[%s1 + $0x310] sm:$0xff]
  %v182 = vld [vmem:[%s1 + $0x318] sm:$0xff]
  %v183 = vld [vmem:[%s1 + $0x320] sm:$0xff]
  %v184 = vld [vmem:[%s1 + $0x328] sm:$0xff]
  %v185 = vld [vmem:[%s1 + $0x330] sm:$0xff]
  %v186 = vld [vmem:[%s1 + $0x338] sm:$0xff]
  %v187 = vld [vmem:[%s1 + $0x340] sm:$0xff]
  %v188 = vld [vmem:[%s1 + $0x348] sm:$0xff]
  %v189 = vld [vmem:[%s1 + $0x350] sm:$0xff]
  %v190 = vld [vmem:[%s1 + $0x358] sm:$0xff]
  %v191 = vld [vmem:[%s1 + $0x360] sm:$0xff]
  %v192 = vld [vmem:[%s1 + $0x368] sm:$0xff]
  %v193 = vld [vmem:[%s1 + $0x370] sm:$0xff]
  %v194 = vld [vmem:[%s1 + $0x378] sm:$0xff]
  %v195 = vld [vmem:[%s1 + $0x380] sm:$0xff]
  %v196 = vld [vmem:[%s1 + $0x388] sm:$0xff]
  %v197 = vld [vmem:[%s1 + $0x390] sm:$0xff]
  %v198 = vld [vmem:[%s1 + $0x398] sm:$0xff]
  %v199 = vld [vmem:[%s1 + $0x3a0] sm:$0xff]
  %v200 = vld [vmem:[%s1 + $0x3a8] sm:$0xff]
  %v201 = vld [vmem:[%s1 + $0x3b0] sm:$0xff]
  %v202 = vld [vmem:[%s1 + $0x3b8] sm:$0xff]
  %v203 = vld [vmem:[%s1 + $0x3c0] sm:$0xff]
  %v204 = vld [vmem:[%s1 + $0x3c8] sm:$0xff]
  %v205 = vld [vmem:[%s1 + $0x3d0] sm:$0xff]
  %v206 = vld [vmem:[%s1 + $0x3d8] sm:$0xff]
  %v207 = vld [vmem:[%s1 + $0x3e0] sm:$0xff]
  %v208 = vld [vmem:[%s1 + $0x3e8] sm:$0xff]
  %v209 = vld [vmem:[%s1 + $0x3f0] sm:$0xff]
  %v210 = vld [vmem:[%s1 + $0x3f8] sm:$0xff]
  %v211 = vld [vmem:[%s1 + $0x400] sm:$0xff]
  %v212 = vld [vmem:[%s1 + $0x408] sm:$0xff]
  %v213 = vld [vmem:[%s1 + $0x410] sm:$0xff]
  %v214 = vld [vmem:[%s1 + $0x418] sm:$0xff]
  %v215 = vld [vmem:[%s1 + $0x420] sm:$0xff]
  %v216 = vld [vmem:[%s1 + $0x428] sm:$0xff]
  %v217 = vld [vmem:[%s1 + $0x430] sm:$0xff]
  %v218 = vld [vmem:[%s1 + $0x438] sm:$0xff]
  %v219 = vld [vmem:[%s1 + $0x440] sm:$0xff]
  %v220 = vld [vmem:[%s1 + $0x448] sm:$0xff]
  %v221 = vld [vmem:[%s1 + $0x450] sm:$0xff]
  %v222 = vld [vmem:[%s1 + $0x458] sm:$0xff]
  %v223 = vld [vmem:[%s1 + $0x460] sm:$0xff]
  %v224 = vld [vmem:[%s1 + $0x468] sm:$0xff]
  %v225 = vld [vmem:[%s1 + $0x470] sm:$0xff]
  %v226 = vld [vmem:[%s1 + $0x478] sm:$0xff]
  %v227 = vld [vmem:[%s1 + $0x480] sm:$0xff]
  %v228 = vld [vmem:[%s1 + $0x488] sm:$0xff]
  %v229 = vld [vmem:[%s1 + $0x490] sm:$0xff]
  %v230 = vld [vmem:[%s1 + $0x498] sm:$0xff]
  %v231 = vld [vmem:[%s1 + $0x4a0] sm:$0xff]
  %v232 = vld [vmem:[%s1 + $0x4a8] sm:$0xff]
  %v233 = vld [vmem:[%s1 + $0x4b0] sm:$0xff]
  %v234 = vld [vmem:[%s1 + $0x4b8] sm:$0xff]
  %v235 = vld [vmem:[%s1 + $0x4c0] sm:$0xff]
  %v236 = vld [vmem:[%s1 + $0x4c8] sm:$0xff]
  %v237 = vld [vmem:[%s1 + $0x4d0] sm:$0xff]
  %v238 = vld [vmem:[%s1 + $0x4d8] sm:$0xff]
  %v239 = vld [vmem:[%s1 + $0x4e0] sm:$0xff]
  %v240 = vld [vmem:[%s1 + $0x4e8] sm:$0xff]
  %v241 = vld [vmem:[%s1 + $0x4f0] sm:$0xff]
  %v242 = vld [vmem:[%s1 + $0x4f8] sm:$0xff]
  %v243 = vld [vmem:[%s1 + $0x500] sm:$0xff]
  %v244 = vld [vmem:[%s1 + $0x508] sm:$0xff]
  %v245 = vld [vmem:[%s1 + $0x510] sm:$0xff]
  %v246 = vld [vmem:[%s1 + $0x518] sm:$0xff]
  %v247 = vld [vmem:[%s1 + $0x520] sm:$0xff]
  %v248 = vld [vmem:[%s1 + $0x528] sm:$0xff]
  %v249 = vld [vmem:[%s1 + $0x530] sm:$0xff]
  %v250 = vld [vmem:[%s1 + $0x538] sm:$0xff]
  %v251 = vld [vmem:[%s1 + $0x540] sm:$0xff]
  %v252 = vld [vmem:[%s1 + $0x548] sm:$0xff]
  %v253 = vld [vmem:[%s1 + $0x550] sm:$0xff]
  %v254 = vld [vmem:[%s1 + $0x558] sm:$0xff]
  %v255 = vld [vmem:[%s1 + $0x560] sm:$0xff]
  %v256 = vld [vmem:[%s1 + $0x568] sm:$0xff]
  %v257 = vld [vmem:[%s1 + $0x570] sm:$0xff]
  %v258 = vld [vmem:[%s1 + $0x578] sm:$0xff]
  %v259 = vld [vmem:[%s1 + $0x580] sm:$0xff]
  %v260 = vld [vmem:[%s1 + $0x588] sm:$0xff]
  %v261 = vld [vmem:[%s1 + $0x590] sm:$0xff]
  %v262 = vld [vmem:[%s1 + $0x598] sm:$0xff]
  %v263 = vld [vmem:[%s1 + $0x5a0] sm:$0xff]
  %v264 = vld [vmem:[%s1 + $0x5a8] sm:$0xff]
  %v265 = vld [vmem:[%s1 + $0x5b0] sm:$0xff]
  %v266 = vld [vmem:[%s1 + $0x5b8] sm:$0xff]
  %v267 = vld [vmem:[%s1 + $0x5c0] sm:$0xff]
  %v268 = vld [vmem:[%s1 + $0x5c8] sm:$0xff]
  %v269 = vld [vmem:[%s1 + $0x5d0] sm:$0xff]
  %v270 = vld [vmem:[%s1 + $0x5d8] sm:$0xff]
  %v271 = vld [vmem:[%s1 + $0x5e0] sm:$0xff]
  %v272 = vld [vmem:[%s1 + $0x5e8] sm:$0xff]
  %v273 = vld [vmem:[%s1 + $0x5f0] sm:$0xff]
  %v274 = vld [vmem:[%s1 + $0x5f8] sm:$0xff]
  %v275 = vld [vmem:[%s1 + $0x600] sm:$0xff]
  %v276 = vld [vmem:[%s1 + $0x608] sm:$0xff]
  %v277 = vld [vmem:[%s1 + $0x610] sm:$0xff]
  %v278 = vld [vmem:[%s1 + $0x618] sm:$0xff]
  %v279 = vld [vmem:[%s1 + $0x620] sm:$0xff]
  %v280 = vld [vmem:[%s1 + $0x628] sm:$0xff]
  %v281 = vld [vmem:[%s1 + $0x630] sm:$0xff]
  %v282 = vld [vmem:[%s1 + $0x638] sm:$0xff]
  %v283 = vld [vmem:[%s1 + $0x640] sm:$0xff]
  %v284 = vld [vmem:[%s1 + $0x648] sm:$0xff]
  %v285 = vld [vmem:[%s1 + $0x650] sm:$0xff]
  %v286 = vld [vmem:[%s1 + $0x658] sm:$0xff]
  %v287 = vld [vmem:[%s1 + $0x660] sm:$0xff]
  %v288 = vld [vmem:[%s1 + $0x668] sm:$0xff]
  %v289 = vld [vmem:[%s1 + $0x670] sm:$0xff]
  %v290 = vld [vmem:[%s1 + $0x678] sm:$0xff]
  %v291 = vld [vmem:[%s1 + $0x680] sm:$0xff]
  %v292 = vld [vmem:[%s1 + $0x688] sm:$0xff]
  %v293 = vld [vmem:[%s1 + $0x690] sm:$0xff]
  %v294 = vld [vmem:[%s1 + $0x698] sm:$0xff]
  %v295 = vld [vmem:[%s1 + $0x6a0] sm:$0xff]
  %v296 = vld [vmem:[%s1 + $0x6a8] sm:$0xff]
  %v297 = vld [vmem:[%s1 + $0x6b0] sm:$0xff]
  %v298 = vld [vmem:[%s1 + $0x6b8] sm:$0xff]
  %v299 = vld [vmem:[%s1 + $0x6c0] sm:$0xff]
  %v300 = vld [vmem:[%s1 + $0x6c8] sm:$0xff]
  %v301 = vld [vmem:[%s1 + $0x6d0] sm:$0xff]
  %v302 = vld [vmem:[%s1 + $0x6d8] sm:$0xff]
  %v303 = vld [vmem:[%s1 + $0x6e0] sm:$0xff]
  %v304 = vld [vmem:[%s1 + $0x6e8] sm:$0xff]
  %v305 = vld [vmem:[%s1 + $0x6f0] sm:$0xff]
  %v306 = vld [vmem:[%s1 + $0x6f8] sm:$0xff]
  %v307 = vld [vmem:[%s1 + $0x700] sm:$0xff]
  %v308 = vld [vmem:[%s1 + $0x708] sm:$0xff]
  %v309 = vld [vmem:[%s1 + $0x710] sm:$0xff]
  %v310 = vld [vmem:[%s1 + $0x718] sm:$0xff]
  %v311 = vld [vmem:[%s1 + $0x720] sm:$0xff]
  %v312 = vld [vmem:[%s1 + $0x728] sm:$0xff]
  %v313 = vld [vmem:[%s1 + $0x730] sm:$0xff]
  %v314 = vld [vmem:[%s1 + $0x738] sm:$0xff]
  %v315 = vld [vmem:[%s1 + $0x740] sm:$0xff]
  %v316 = vld [vmem:[%s1 + $0x748] sm:$0xff]
  %v317 = vld [vmem:[%s1 + $0x750] sm:$0xff]
  %v318 = vld [vmem:[%s1 + $0x758] sm:$0xff]
  %v319 = vld [vmem:[%s1 + $0x760] sm:$0xff]
  %v320 = vld [vmem:[%s1 + $0x768] sm:$0xff]
  %v321 = vld [vmem:[%s1 + $0x770] sm:$0xff]
  %v322 = vld [vmem:[%s1 + $0x778] sm:$0xff]
  %v323 = vld [vmem:[%s1 + $0x780] sm:$0xff]
  %v324 = vld [vmem:[%s1 + $0x788] sm:$0xff]
  %v325 = vld [vmem:[%s1 + $0x790] sm:$0xff]
  %v326 = vld [vmem:[%s1 + $0x798] sm:$0xff]
  %v327 = vld [vmem:[%s1 + $0x7a0] sm:$0xff]
  %v328 = vld [vmem:[%s1 + $0x7a8] sm:$0xff]
  %v329 = vld [vmem:[%s1 + $0x7b0] sm:$0xff]
  %v330 = vld [vmem:[%s1 + $0x7b8] sm:$0xff]
  %v331 = vld [vmem:[%s1 + $0x7c0] sm:$0xff]
  %v332 = vld [vmem:[%s1 + $0x7c8] sm:$0xff]
  %v333 = vld [vmem:[%s1 + $0x7d0] sm:$0xff]
  %v334 = vld [vmem:[%s1 + $0x7d8] sm:$0xff]
  %v335 = vld [vmem:[%s1 + $0x7e0] sm:$0xff]
  %v336 = vld [vmem:[%s1 + $0x7e8] sm:$0xff]
  %v337 = vld [vmem:[%s1 + $0x7f0] sm:$0xff]
  %v338 = vld [vmem:[%s1 + $0x7f8] sm:$0xff]
  %v339 = vld [vmem:[%s1 + $0x800] sm:$0xff]
  %v340 = vld [vmem:[%s1 + $0x808] sm:$0xff]
  %v341 = vld [vmem:[%s1 + $0x810] sm:$0xff]
  %v342 = vld [vmem:[%s1 + $0x818] sm:$0xff]
  %v343 = vld [vmem:[%s1 + $0x820] sm:$0xff]
  %v344 = vld [vmem:[%s1 + $0x828] sm:$0xff]
  %v345 = vld [vmem:[%s1 + $0x830] sm:$0xff]
  %v346 = vld [vmem:[%s1 + $0x838] sm:$0xff]
  %v347 = vld [vmem:[%s1 + $0x840] sm:$0xff]
  %v348 = vld [vmem:[%s1 + $0x848] sm:$0xff]
  %v349 = vld [vmem:[%s1 + $0x850] sm:$0xff]
  %v350 = vld [vmem:[%s1 + $0x858] sm:$0xff]
  %v351 = vld [vmem:[%s1 + $0x860] sm:$0xff]
  %v352 = vld [vmem:[%s1 + $0x868] sm:$0xff]
  %v353 = vld [vmem:[%s1 + $0x870] sm:$0xff]
  %v354 = vld [vmem:[%s1 + $0x878] sm:$0xff]
  %v355 = vld [vmem:[%s1 + $0x880] sm:$0xff]
  %v356 = vld [vmem:[%s1 + $0x888] sm:$0xff]
  %v357 = vld [vmem:[%s1 + $0x890] sm:$0xff]
  %v358 = vld [vmem:[%s1 + $0x898] sm:$0xff]
  %v359 = vld [vmem:[%s1 + $0x8a0] sm:$0xff]
  %v360 = vld [vmem:[%s1 + $0x8a8] sm:$0xff]
  %v361 = vld [vmem:[%s1 + $0x8b0] sm:$0xff]
  %v362 = vld [vmem:[%s1 + $0x8b8] sm:$0xff]
  %v363 = vld [vmem:[%s1 + $0x8c0] sm:$0xff]
  %v364 = vld [vmem:[%s1 + $0x8c8] sm:$0xff]
  %v365 = vld [vmem:[%s1 + $0x8d0] sm:$0xff]
  %v366 = vld [vmem:[%s1 + $0x8d8] sm:$0xff]
  %v367 = vld [vmem:[%s1 + $0x8e0] sm:$0xff]
  %v368 = vld [vmem:[%s1 + $0x8e8] sm:$0xff]
  %v369 = vld [vmem:[%s1 + $0x8f0] sm:$0xff]
  %v370 = vld [vmem:[%s1 + $0x8f8] sm:$0xff]
  %v371 = vld [vmem:[%s1 + $0x900] sm:$0xff]
  %v372 = vld [vmem:[%s1 + $0x908] sm:$0xff]
  %v373 = vld [vmem:[%s1 + $0x910] sm:$0xff]
  %v374 = vld [vmem:[%s1 + $0x918] sm:$0xff]
  %v375 = vld [vmem:[%s1 + $0x920] sm:$0xff]
  %v376 = vld [vmem:[%s1 + $0x928] sm:$0xff]
  %v377 = vld [vmem:[%s1 + $0x930] sm:$0xff]
  %v378 = vld [vmem:[%s1 + $0x938] sm:$0xff]
  %v379 = vld [vmem:[%s1 + $0x940] sm:$0xff]
  %v380 = vld [vmem:[%s1 + $0x948] sm:$0xff]
  %v381 = vld [vmem:[%s1 + $0x950] sm:$0xff]
  %v382 = vld [vmem:[%s1 + $0x958] sm:$0xff]
  %v383 = vld [vmem:[%s1 + $0x960] sm:$0xff]
  %v384 = vld [vmem:[%s1 + $0x968] sm:$0xff]
  %v385 = vld [vmem:[%s1 + $0x970] sm:$0xff]
  %v386 = vld [vmem:[%s1 + $0x978] sm:$0xff]
  %v387 = vld [vmem:[%s1 + $0x980] sm:$0xff]
  %v388 = vld [vmem:[%s1 + $0x988] sm:$0xff]
  %v389 = vld [vmem:[%s1 + $0x990] sm:$0xff]
  %v390 = vld [vmem:[%s1 + $0x998] sm:$0xff]
  %v391 = vld [vmem:[%s1 + $0x9a0] sm:$0xff]
  %v392 = vld [vmem:[%s1 + $0x9a8] sm:$0xff]
  %v393 = vld [vmem:[%s1 + $0x9b0] sm:$0xff]
  %v394 = vld [vmem:[%s1 + $0x9b8] sm:$0xff]
  %v395 = vld [vmem:[%s1 + $0x9c0] sm:$0xff]
  %v396 = vld [vmem:[%s1 + $0x9c8] sm:$0xff]
  %v397 = vld [vmem:[%s1 + $0x9d0] sm:$0xff]
  %v398 = vld [vmem:[%s1 + $0x9d8] sm:$0xff]
  %v399 = vld [vmem:[%s1 + $0x9e0] sm:$0xff]
  %v400 = vld [vmem:[%s1 + $0x9e8] sm:$0xff]
  %v401 = vld [vmem:[%s1 + $0x9f0] sm:$0xff]
  %v402 = vld [vmem:[%s1 + $0x9f8] sm:$0xff]
  %v403 = vld [vmem:[%s1 + $0xa00] sm:$0xff]
  %v404 = vld [vmem:[%s1 + $0xa08] sm:$0xff]
  %v405 = vld [vmem:[%s1 + $0xa10] sm:$0xff]
  %v406 = vld [vmem:[%s1 + $0xa18] sm:$0xff]
  %v407 = vld [vmem:[%s1 + $0xa20] sm:$0xff]
  %v408 = vld [vmem:[%s1 + $0xa28] sm:$0xff]
  %v409 = vld [vmem:[%s1 + $0xa30] sm:$0xff]
  %v410 = vld [vmem:[%s1 + $0xa38] sm:$0xff]
  %v411 = vld [vmem:[%s1 + $0xa40] sm:$0xff]
  %v412 = vld [vmem:[%s1 + $0xa48] sm:$0xff]
  %v413 = vld [vmem:[%s1 + $0xa50] sm:$0xff]
  %v414 = vld [vmem:[%s1 + $0xa58] sm:$0xff]
  %v415 = vld [vmem:[%s1 + $0xa60] sm:$0xff]
  %v416 = vld [vmem:[%s1 + $0xa68] sm:$0xff]
  %v417 = vld [vmem:[%s1 + $0xa70] sm:$0xff]
  %v418 = vld [vmem:[%s1 + $0xa78] sm:$0xff]
  %v419 = vld [vmem:[%s1 + $0xa80] sm:$0xff]
  %v420 = vld [vmem:[%s1 + $0xa88] sm:$0xff]
  %v421 = vld [vmem:[%s1 + $0xa90] sm:$0xff]
  %v422 = vld [vmem:[%s1 + $0xa98] sm:$0xff]
  %v423 = vld [vmem:[%s1 + $0xaa0] sm:$0xff]
  %v424 = vld [vmem:[%s1 + $0xaa8] sm:$0xff]
  %v425 = vld [vmem:[%s1 + $0xab0] sm:$0xff]
  %v426 = vld [vmem:[%s1 + $0xab8] sm:$0xff]
  %v427 = vld [vmem:[%s1 + $0xac0] sm:$0xff]
  %v428 = vld [vmem:[%s1 + $0xac8] sm:$0xff]
  %v429 = vld [vmem:[%s1 + $0xad0] sm:$0xff]
  %v430 = vld [vmem:[%s1 + $0xad8] sm:$0xff]
  %v431 = vld [vmem:[%s1 + $0xae0] sm:$0xff]
  %v432 = vld [vmem:[%s1 + $0xae8] sm:$0xff]
  %v433 = vld [vmem:[%s1 + $0xaf0] sm:$0xff]
  %v434 = vld [vmem:[%s1 + $0xaf8] sm:$0xff]
  %v435 = vld [vmem:[%s1 + $0xb00] sm:$0xff]
  %v436 = vld [vmem:[%s1 + $0xb08] sm:$0xff]
  %v437 = vld [vmem:[%s1 + $0xb10] sm:$0xff]
  %v438 = vld [vmem:[%s1 + $0xb18] sm:$0xff]
  %v439 = vld [vmem:[%s1 + $0xb20] sm:$0xff]
  %v440 = vld [vmem:[%s1 + $0xb28] sm:$0xff]
  %v441 = vld [vmem:[%s1 + $0xb30] sm:$0xff]
  %v442 = vld [vmem:[%s1 + $0xb38] sm:$0xff]
  %v443 = vld [vmem:[%s1 + $0xb40] sm:$0xff]
  %v444 = vld [vmem:[%s1 + $0xb48] sm:$0xff]
  %v445 = vld [vmem:[%s1 + $0xb50] sm:$0xff]
  %v446 = vld [vmem:[%s1 + $0xb58] sm:$0xff]
  %v447 = vld [vmem:[%s1 + $0xb60] sm:$0xff]
  %v448 = vld [vmem:[%s1 + $0xb68] sm:$0xff]
  %v449 = vld [vmem:[%s1 + $0xb70] sm:$0xff]
  %v450 = vld [vmem:[%s1 + $0xb78] sm:$0xff]
  %v451 = vld [vmem:[%s1 + $0xb80] sm:$0xff]
  %v452 = vld [vmem:[%s1 + $0xb88] sm:$0xff]
  %v453 = vld [vmem:[%s1 + $0xb90] sm:$0xff]
  %v454 = vld [vmem:[%s1 + $0xb98] sm:$0xff]
  %v455 = vld [vmem:[%s1 + $0xba0] sm:$0xff]
  %v456 = vld [vmem:[%s1 + $0xba8] sm:$0xff]
  %v457 = vld [vmem:[%s1 + $0xbb0] sm:$0xff]
  %v458 = vld [vmem:[%s1 + $0xbb8] sm:$0xff]
  %v459 = vld [vmem:[%s1 + $0xbc0] sm:$0xff]
  %v460 = vld [vmem:[%s1 + $0xbc8] sm:$0xff]
  %v461 = vld [vmem:[%s1 + $0xbd0] sm:$0xff]
  %v462 = vld [vmem:[%s1 + $0xbd8] sm:$0xff]
  %v463 = vld [vmem:[%s1 + $0xbe0] sm:$0xff]
  %v464 = vld [vmem:[%s1 + $0xbe8] sm:$0xff]
  %v465 = vld [vmem:[%s1 + $0xbf0] sm:$0xff]
  %v466 = vld [vmem:[%s1 + $0xbf8] sm:$0xff]
  %v467 = vld [vmem:[%s1 + $0xc00] sm:$0xff]
  %v468 = vld [vmem:[%s1 + $0xc08] sm:$0xff]
  %v469 = vld [vmem:[%s1 + $0xc10] sm:$0xff]
  %v470 = vld [vmem:[%s1 + $0xc18] sm:$0xff]
  %v471 = vld [vmem:[%s1 + $0xc20] sm:$0xff]
  %v472 = vld [vmem:[%s1 + $0xc28] sm:$0xff]
  %v473 = vld [vmem:[%s1 + $0xc30] sm:$0xff]
  %v474 = vld [vmem:[%s1 + $0xc38] sm:$0xff]
  %v475 = vld [vmem:[%s1 + $0xc40] sm:$0xff]
  %v476 = vld [vmem:[%s1 + $0xc48] sm:$0xff]
  %v477 = vld [vmem:[%s1 + $0xc50] sm:$0xff]
  %v478 = vld [vmem:[%s1 + $0xc58] sm:$0xff]
  %v479 = vld [vmem:[%s1 + $0xc60] sm:$0xff]
  %v480 = vld [vmem:[%s1 + $0xc68] sm:$0xff]
  %v481 = vld [vmem:[%s1 + $0xc70] sm:$0xff]
  %v482 = vld [vmem:[%s1 + $0xc78] sm:$0xff]
  %v483 = vld [vmem:[%s1 + $0xc80] sm:$0xff]
  %v484 = vld [vmem:[%s1 + $0xc88] sm:$0xff]
  %v485 = vld [vmem:[%s1 + $0xc90] sm:$0xff]
  %v486 = vld [vmem:[%s1 + $0xc98] sm:$0xff]
  %v487 = vld [vmem:[%s1 + $0xca0] sm:$0xff]
  %v488 = vld [vmem:[%s1 + $0xca8] sm:$0xff]
  %v489 = vld [vmem:[%s1 + $0xcb0] sm:$0xff]
  %v490 = vld [vmem:[%s1 + $0xcb8] sm:$0xff]
  %v491 = vld [vmem:[%s1 + $0xcc0] sm:$0xff]
  %v492 = vld [vmem:[%s1 + $0xcc8] sm:$0xff]
  %v493 = vld [vmem:[%s1 + $0xcd0] sm:$0xff]
  %v494 = vld [vmem:[%s1 + $0xcd8] sm:$0xff]
  %v495 = vld [vmem:[%s1 + $0xce0] sm:$0xff]
  %v496 = vld [vmem:[%s1 + $0xce8] sm:$0xff]
  %v497 = vld [vmem:[%s1 + $0xcf0] sm:$0xff]
  %v498 = vld [vmem:[%s1 + $0xcf8] sm:$0xff]
  %v499 = vld [vmem:[%s1 + $0xd00] sm:$0xff]
  %v500 = vld [vmem:[%s1 + $0xd08] sm:$0xff]
  %v501 = vld [vmem:[%s1 + $0xd10] sm:$0xff]
  %v502 = vld [vmem:[%s1 + $0xd18] sm:$0xff]
  %v503 = vld [vmem:[%s1 + $0xd20] sm:$0xff]
  %v504 = vld [vmem:[%s1 + $0xd28] sm:$0xff]
  %v505 = vld [vmem:[%s1 + $0xd30] sm:$0xff]
  %v506 = vld [vmem:[%s1 + $0xd38] sm:$0xff]
  %v507 = vld [vmem:[%s1 + $0xd40] sm:$0xff]
  %v508 = vld [vmem:[%s1 + $0xd48] sm:$0xff]
  %v509 = vld [vmem:[%s1 + $0xd50] sm:$0xff]
  %v510 = vld [vmem:[%s1 + $0xd58] sm:$0xff]
  %v511 = vld [vmem:[%s1 + $0xd60] sm:$0xff]
  %v512 = vld [vmem:[%s1 + $0xd68] sm:$0xff]
  %v513 = vld [vmem:[%s1 + $0xd70] sm:$0xff]
  %v514 = vld [vmem:[%s1 + $0xd78] sm:$0xff]
  %v515 = vld [vmem:[%s1 + $0xd80] sm:$0xff]
  %v516 = vld [vmem:[%s1 + $0xd88] sm:$0xff]
  %v517 = vld [vmem:[%s1 + $0xd90] sm:$0xff]
  %v518 = vld [vmem:[%s1 + $0xd98] sm:$0xff]
  %v519 = vld [vmem:[%s1 + $0xda0] sm:$0xff]
  %v520 = vld [vmem:[%s1 + $0xda8] sm:$0xff]
  %v521 = vld [vmem:[%s1 + $0xdb0] sm:$0xff]
  %v522 = vld [vmem:[%s1 + $0xdb8] sm:$0xff]
  %v523 = vld [vmem:[%s1 + $0xdc0] sm:$0xff]
  %v524 = vld [vmem:[%s1 + $0xdc8] sm:$0xff]
  %v525 = vld [vmem:[%s1 + $0xdd0] sm:$0xff]
  %v526 = vld [vmem:[%s1 + $0xdd8] sm:$0xff]
  %v527 = vld [vmem:[%s1 + $0xde0] sm:$0xff]
  %v528 = vld [vmem:[%s1 + $0xde8] sm:$0xff]
  %v529 = vld [vmem:[%s1 + $0xdf0] sm:$0xff]
  %v530 = vld [vmem:[%s1 + $0xdf8] sm:$0xff]
  %v531 = vld [vmem:[%s1 + $0xe00] sm:$0xff]
  %v532 = vld [vmem:[%s1 + $0xe08] sm:$0xff]
  %v533 = vld [vmem:[%s1 + $0xe10] sm:$0xff]
  %v534 = vld [vmem:[%s1 + $0xe18] sm:$0xff]
  %v535 = vld [vmem:[%s1 + $0xe20] sm:$0xff]
  %v536 = vld [vmem:[%s1 + $0xe28] sm:$0xff]
  %v537 = vld [vmem:[%s1 + $0xe30] sm:$0xff]
  %v538 = vld [vmem:[%s1 + $0xe38] sm:$0xff]
  %v539 = vld [vmem:[%s1 + $0xe40] sm:$0xff]
  %v540 = vld [vmem:[%s1 + $0xe48] sm:$0xff]
  %v541 = vld [vmem:[%s1 + $0xe50] sm:$0xff]
  %v542 = vld [vmem:[%s1 + $0xe58] sm:$0xff]
  %v543 = vld [vmem:[%s1 + $0xe60] sm:$0xff]
  %v544 = vld [vmem:[%s1 + $0xe68] sm:$0xff]
  %v545 = vld [vmem:[%s1 + $0xe70] sm:$0xff]
  %v546 = vld [vmem:[%s1 + $0xe78] sm:$0xff]
  %v547 = vld [vmem:[%s1 + $0xe80] sm:$0xff]
  %v548 = vld [vmem:[%s1 + $0xe88] sm:$0xff]
  %v549 = vld [vmem:[%s1 + $0xe90] sm:$0xff]
  %v550 = vld [vmem:[%s1 + $0xe98] sm:$0xff]
  %v551 = vld [vmem:[%s1 + $0xea0] sm:$0xff]
  %v552 = vld [vmem:[%s1 + $0xea8] sm:$0xff]
  %v553 = vld [vmem:[%s1 + $0xeb0] sm:$0xff]
  %v554 = vld [vmem:[%s1 + $0xeb8] sm:$0xff]
  %v555 = vld [vmem:[%s1 + $0xec0] sm:$0xff]
  %v556 = vld [vmem:[%s1 + $0xec8] sm:$0xff]
  %v557 = vld [vmem:[%s1 + $0xed0] sm:$0xff]
  %v558 = vld [vmem:[%s1 + $0xed8] sm:$0xff]
  %v559 = vld [vmem:[%s1 + $0xee0] sm:$0xff]
  %v560 = vld [vmem:[%s1 + $0xee8] sm:$0xff]
  %v561 = vld [vmem:[%s1 + $0xef0] sm:$0xff]
  %v562 = vld [vmem:[%s1 + $0xef8] sm:$0xff]
  %v563 = vld [vmem:[%s1 + $0xf00] sm:$0xff]
  %v564 = vld [vmem:[%s1 + $0xf08] sm:$0xff]
  %v565 = vld [vmem:[%s1 + $0xf10] sm:$0xff]
  %v566 = vld [vmem:[%s1 + $0xf18] sm:$0xff]
  %v567 = vld [vmem:[%s1 + $0xf20] sm:$0xff]
  %v568 = vld [vmem:[%s1 + $0xf28] sm:$0xff]
  %v569 = vld [vmem:[%s1 + $0xf30] sm:$0xff]
  %v570 = vld [vmem:[%s1 + $0xf38] sm:$0xff]
  %v571 = vld [vmem:[%s1 + $0xf40] sm:$0xff]
  %v572 = vld [vmem:[%s1 + $0xf48] sm:$0xff]
  %v573 = vld [vmem:[%s1 + $0xf50] sm:$0xff]
  %v574 = vld [vmem:[%s1 + $0xf58] sm:$0xff]
  %v575 = vld [vmem:[%s1 + $0xf60] sm:$0xff]
  %v576 = vld [vmem:[%s1 + $0xf68] sm:$0xff]
  %v577 = vld [vmem:[%s1 + $0xf70] sm:$0xff]
  %v578 = vld [vmem:[%s1 + $0xf78] sm:$0xff]
  %v579 = vld [vmem:[%s1 + $0xf80] sm:$0xff]
  %v580 = vld [vmem:[%s1 + $0xf88] sm:$0xff]
  %v581 = vld [vmem:[%s1 + $0xf90] sm:$0xff]
  %v582 = vld [vmem:[%s1 + $0xf98] sm:$0xff]
  %v583 = vld [vmem:[%s1 + $0xfa0] sm:$0xff]
  %v584 = vld [vmem:[%s1 + $0xfa8] sm:$0xff]
  %v585 = vld [vmem:[%s1 + $0xfb0] sm:$0xff]
  %v586 = vld [vmem:[%s1 + $0xfb8] sm:$0xff]
  %v587 = vld [vmem:[%s1 + $0xfc0] sm:$0xff]
  %v588 = vld [vmem:[%s1 + $0xfc8] sm:$0xff]
  %v589 = vld [vmem:[%s1 + $0xfd0] sm:$0xff]
  %v590 = vld [vmem:[%s1 + $0xfd8] sm:$0xff]
  %v591 = vld [vmem:[%s1 + $0xfe0] sm:$0xff]
  %v592 = vld [vmem:[%s1 + $0xfe8] sm:$0xff]
  %v593 = vld [vmem:[%s1 + $0xff0] sm:$0xff]
  %v594 = vld [vmem:[%s1 + $0xff8] sm:$0xff]
  %v1107 = vunpack.c.l.b16 %v83
  %v1108 = vunpack.c.h.b16 %v83
  %v1109 = vunpack.c.l.b16 %v84
  %v1110 = vunpack.c.h.b16 %v84
  %v1111 = vunpack.c.l.b16 %v85
  %v1112 = vunpack.c.h.b16 %v85
  %v1113 = vunpack.c.l.b16 %v86
  %v1114 = vunpack.c.h.b16 %v86
  %v1115 = vunpack.c.l.b16 %v87
  %v1116 = vunpack.c.h.b16 %v87
  %v1117 = vunpack.c.l.b16 %v88
  %v1118 = vunpack.c.h.b16 %v88
  %v1119 = vunpack.c.l.b16 %v89
  %v1120 = vunpack.c.h.b16 %v89
  %v1121 = vunpack.c.l.b16 %v90
  %v1122 = vunpack.c.h.b16 %v90
  %v1123 = vunpack.c.l.b16 %v91
  %v1124 = vunpack.c.h.b16 %v91
  %v1125 = vunpack.c.l.b16 %v92
  %v1126 = vunpack.c.h.b16 %v92
  %v1127 = vunpack.c.l.b16 %v93
  %v1128 = vunpack.c.h.b16 %v93
  %v1129 = vunpack.c.l.b16 %v94
  %v1130 = vunpack.c.h.b16 %v94
  %v1131 = vunpack.c.l.b16 %v95
  %v1132 = vunpack.c.h.b16 %v95
  %v1133 = vunpack.c.l.b16 %v96
  %v1134 = vunpack.c.h.b16 %v96
  %v1135 = vunpack.c.l.b16 %v97
  %v1136 = vunpack.c.h.b16 %v97
  %v1137 = vunpack.c.l.b16 %v98
  %v1138 = vunpack.c.h.b16 %v98
  %v1139 = vunpack.c.l.b16 %v99
  %v1140 = vunpack.c.h.b16 %v99
  %v1141 = vunpack.c.l.b16 %v100
  %v1142 = vunpack.c.h.b16 %v100
  %v1143 = vunpack.c.l.b16 %v101
  %v1144 = vunpack.c.h.b16 %v101
  %v1145 = vunpack.c.l.b16 %v102
  %v1146 = vunpack.c.h.b16 %v102
  %v1147 = vunpack.c.l.b16 %v103
  %v1148 = vunpack.c.h.b16 %v103
  %v1149 = vunpack.c.l.b16 %v104
  %v1150 = vunpack.c.h.b16 %v104
  %v1151 = vunpack.c.l.b16 %v105
  %v1152 = vunpack.c.h.b16 %v105
  %v1153 = vunpack.c.l.b16 %v106
  %v1154 = vunpack.c.h.b16 %v106
  %v1155 = vunpack.c.l.b16 %v107
  %v1156 = vunpack.c.h.b16 %v107
  %v1157 = vunpack.c.l.b16 %v108
  %v1158 = vunpack.c.h.b16 %v108
  %v1159 = vunpack.c.l.b16 %v109
  %v1160 = vunpack.c.h.b16 %v109
  %v1161 = vunpack.c.l.b16 %v110
  %v1162 = vunpack.c.h.b16 %v110
  %v1163 = vunpack.c.l.b16 %v111
  %v1164 = vunpack.c.h.b16 %v111
  %v1165 = vunpack.c.l.b16 %v112
  %v1166 = vunpack.c.h.b16 %v112
  %v1167 = vunpack.c.l.b16 %v113
  %v1168 = vunpack.c.h.b16 %v113
  %v1169 = vunpack.c.l.b16 %v114
  %v1170 = vunpack.c.h.b16 %v114
  %v1171 = vunpack.c.l.b16 %v115
  %v1172 = vunpack.c.h.b16 %v115
  %v1173 = vunpack.c.l.b16 %v116
  %v1174 = vunpack.c.h.b16 %v116
  %v1175 = vunpack.c.l.b16 %v117
  %v1176 = vunpack.c.h.b16 %v117
  %v1177 = vunpack.c.l.b16 %v118
  %v1178 = vunpack.c.h.b16 %v118
  %v1179 = vunpack.c.l.b16 %v119
  %v1180 = vunpack.c.h.b16 %v119
  %v1181 = vunpack.c.l.b16 %v120
  %v1182 = vunpack.c.h.b16 %v120
  %v1183 = vunpack.c.l.b16 %v121
  %v1184 = vunpack.c.h.b16 %v121
  %v1185 = vunpack.c.l.b16 %v122
  %v1186 = vunpack.c.h.b16 %v122
  %v1187 = vunpack.c.l.b16 %v123
  %v1188 = vunpack.c.h.b16 %v123
  %v1189 = vunpack.c.l.b16 %v124
  %v1190 = vunpack.c.h.b16 %v124
  %v1191 = vunpack.c.l.b16 %v125
  %v1192 = vunpack.c.h.b16 %v125
  %v1193 = vunpack.c.l.b16 %v126
  %v1194 = vunpack.c.h.b16 %v126
  %v1195 = vunpack.c.l.b16 %v127
  %v1196 = vunpack.c.h.b16 %v127
  %v1197 = vunpack.c.l.b16 %v128
  %v1198 = vunpack.c.h.b16 %v128
  %v1199 = vunpack.c.l.b16 %v129
  %v1200 = vunpack.c.h.b16 %v129
  %v1201 = vunpack.c.l.b16 %v130
  %v1202 = vunpack.c.h.b16 %v130
  %v1203 = vunpack.c.l.b16 %v131
  %v1204 = vunpack.c.h.b16 %v131
  %v1205 = vunpack.c.l.b16 %v132
  %v1206 = vunpack.c.h.b16 %v132
  %v1207 = vunpack.c.l.b16 %v133
  %v1208 = vunpack.c.h.b16 %v133
  %v1209 = vunpack.c.l.b16 %v134
  %v1210 = vunpack.c.h.b16 %v134
  %v1211 = vunpack.c.l.b16 %v135
  %v1212 = vunpack.c.h.b16 %v135
  %v1213 = vunpack.c.l.b16 %v136
  %v1214 = vunpack.c.h.b16 %v136
  %v1215 = vunpack.c.l.b16 %v137
  %v1216 = vunpack.c.h.b16 %v137
  %v1217 = vunpack.c.l.b16 %v138
  %v1218 = vunpack.c.h.b16 %v138
  %v1219 = vunpack.c.l.b16 %v139
  %v1220 = vunpack.c.h.b16 %v139
  %v1221 = vunpack.c.l.b16 %v140
  %v1222 = vunpack.c.h.b16 %v140
  %v1223 = vunpack.c.l.b16 %v141
  %v1224 = vunpack.c.h.b16 %v141
  %v1225 = vunpack.c.l.b16 %v142
  %v1226 = vunpack.c.h.b16 %v142
  %v1227 = vunpack.c.l.b16 %v143
  %v1228 = vunpack.c.h.b16 %v143
  %v1229 = vunpack.c.l.b16 %v144
  %v1230 = vunpack.c.h.b16 %v144
  %v1231 = vunpack.c.l.b16 %v145
  %v1232 = vunpack.c.h.b16 %v145
  %v1233 = vunpack.c.l.b16 %v146
  %v1234 = vunpack.c.h.b16 %v146
  %v1235 = vunpack.c.l.b16 %v147
  %v1236 = vunpack.c.h.b16 %v147
  %v1237 = vunpack.c.l.b16 %v148
  %v1238 = vunpack.c.h.b16 %v148
  %v1239 = vunpack.c.l.b16 %v149
  %v1240 = vunpack.c.h.b16 %v149
  %v1241 = vunpack.c.l.b16 %v150
  %v1242 = vunpack.c.h.b16 %v150
  %v1243 = vunpack.c.l.b16 %v151
  %v1244 = vunpack.c.h.b16 %v151
  %v1245 = vunpack.c.l.b16 %v152
  %v1246 = vunpack.c.h.b16 %v152
  %v1247 = vunpack.c.l.b16 %v153
  %v1248 = vunpack.c.h.b16 %v153
  %v1249 = vunpack.c.l.b16 %v154
  %v1250 = vunpack.c.h.b16 %v154
  %v1251 = vunpack.c.l.b16 %v155
  %v1252 = vunpack.c.h.b16 %v155
  %v1253 = vunpack.c.l.b16 %v156
  %v1254 = vunpack.c.h.b16 %v156
  %v1255 = vunpack.c.l.b16 %v157
  %v1256 = vunpack.c.h.b16 %v157
  %v1257 = vunpack.c.l.b16 %v158
  %v1258 = vunpack.c.h.b16 %v158
  %v1259 = vunpack.c.l.b16 %v159
  %v1260 = vunpack.c.h.b16 %v159
  %v1261 = vunpack.c.l.b16 %v160
  %v1262 = vunpack.c.h.b16 %v160
  %v1263 = vunpack.c.l.b16 %v161
  %v1264 = vunpack.c.h.b16 %v161
  %v1265 = vunpack.c.l.b16 %v162
  %v1266 = vunpack.c.h.b16 %v162
  %v1267 = vunpack.c.l.b16 %v163
  %v1268 = vunpack.c.h.b16 %v163
  %v1269 = vunpack.c.l.b16 %v164
  %v1270 = vunpack.c.h.b16 %v164
  %v1271 = vunpack.c.l.b16 %v165
  %v1272 = vunpack.c.h.b16 %v165
  %v1273 = vunpack.c.l.b16 %v166
  %v1274 = vunpack.c.h.b16 %v166
  %v1275 = vunpack.c.l.b16 %v167
  %v1276 = vunpack.c.h.b16 %v167
  %v1277 = vunpack.c.l.b16 %v168
  %v1278 = vunpack.c.h.b16 %v168
  %v1279 = vunpack.c.l.b16 %v169
  %v1280 = vunpack.c.h.b16 %v169
  %v1281 = vunpack.c.l.b16 %v170
  %v1282 = vunpack.c.h.b16 %v170
  %v1283 = vunpack.c.l.b16 %v171
  %v1284 = vunpack.c.h.b16 %v171
  %v1285 = vunpack.c.l.b16 %v172
  %v1286 = vunpack.c.h.b16 %v172
  %v1287 = vunpack.c.l.b16 %v173
  %v1288 = vunpack.c.h.b16 %v173
  %v1289 = vunpack.c.l.b16 %v174
  %v1290 = vunpack.c.h.b16 %v174
  %v1291 = vunpack.c.l.b16 %v175
  %v1292 = vunpack.c.h.b16 %v175
  %v1293 = vunpack.c.l.b16 %v176
  %v1294 = vunpack.c.h.b16 %v176
  %v1295 = vunpack.c.l.b16 %v177
  %v1296 = vunpack.c.h.b16 %v177
  %v1297 = vunpack.c.l.b16 %v178
  %v1298 = vunpack.c.h.b16 %v178
  %v1299 = vunpack.c.l.b16 %v179
  %v1300 = vunpack.c.h.b16 %v179
  %v1301 = vunpack.c.l.b16 %v180
  %v1302 = vunpack.c.h.b16 %v180
  %v1303 = vunpack.c.l.b16 %v181
  %v1304 = vunpack.c.h.b16 %v181
  %v1305 = vunpack.c.l.b16 %v182
  %v1306 = vunpack.c.h.b16 %v182
  %v1307 = vunpack.c.l.b16 %v183
  %v1308 = vunpack.c.h.b16 %v183
  %v1309 = vunpack.c.l.b16 %v184
  %v1310 = vunpack.c.h.b16 %v184
  %v1311 = vunpack.c.l.b16 %v185
  %v1312 = vunpack.c.h.b16 %v185
  %v1313 = vunpack.c.l.b16 %v186
  %v1314 = vunpack.c.h.b16 %v186
  %v1315 = vunpack.c.l.b16 %v187
  %v1316 = vunpack.c.h.b16 %v187
  %v1317 = vunpack.c.l.b16 %v188
  %v1318 = vunpack.c.h.b16 %v188
  %v1319 = vunpack.c.l.b16 %v189
  %v1320 = vunpack.c.h.b16 %v189
  %v1321 = vunpack.c.l.b16 %v190
  %v1322 = vunpack.c.h.b16 %v190
  %v1323 = vunpack.c.l.b16 %v191
  %v1324 = vunpack.c.h.b16 %v191
  %v1325 = vunpack.c.l.b16 %v192
  %v1326 = vunpack.c.h.b16 %v192
  %v1327 = vunpack.c.l.b16 %v193
  %v1328 = vunpack.c.h.b16 %v193
  %v1329 = vunpack.c.l.b16 %v194
  %v1330 = vunpack.c.h.b16 %v194
  %v1331 = vunpack.c.l.b16 %v195
  %v1332 = vunpack.c.h.b16 %v195
  %v1333 = vunpack.c.l.b16 %v196
  %v1334 = vunpack.c.h.b16 %v196
  %v1335 = vunpack.c.l.b16 %v197
  %v1336 = vunpack.c.h.b16 %v197
  %v1337 = vunpack.c.l.b16 %v198
  %v1338 = vunpack.c.h.b16 %v198
  %v1339 = vunpack.c.l.b16 %v199
  %v1340 = vunpack.c.h.b16 %v199
  %v1341 = vunpack.c.l.b16 %v200
  %v1342 = vunpack.c.h.b16 %v200
  %v1343 = vunpack.c.l.b16 %v201
  %v1344 = vunpack.c.h.b16 %v201
  %v1345 = vunpack.c.l.b16 %v202
  %v1346 = vunpack.c.h.b16 %v202
  %v1347 = vunpack.c.l.b16 %v203
  %v1348 = vunpack.c.h.b16 %v203
  %v1349 = vunpack.c.l.b16 %v204
  %v1350 = vunpack.c.h.b16 %v204
  %v1351 = vunpack.c.l.b16 %v205
  %v1352 = vunpack.c.h.b16 %v205
  %v1353 = vunpack.c.l.b16 %v206
  %v1354 = vunpack.c.h.b16 %v206
  %v1355 = vunpack.c.l.b16 %v207
  %v1356 = vunpack.c.h.b16 %v207
  %v1357 = vunpack.c.l.b16 %v208
  %v1358 = vunpack.c.h.b16 %v208
  %v1359 = vunpack.c.l.b16 %v209
  %v1360 = vunpack.c.h.b16 %v209
  %v1361 = vunpack.c.l.b16 %v210
  %v1362 = vunpack.c.h.b16 %v210
  %v1363 = vunpack.c.l.b16 %v211
  %v1364 = vunpack.c.h.b16 %v211
  %v1365 = vunpack.c.l.b16 %v212
  %v1366 = vunpack.c.h.b16 %v212
  %v1367 = vunpack.c.l.b16 %v213
  %v1368 = vunpack.c.h.b16 %v213
  %v1369 = vunpack.c.l.b16 %v214
  %v1370 = vunpack.c.h.b16 %v214
  %v1371 = vunpack.c.l.b16 %v215
  %v1372 = vunpack.c.h.b16 %v215
  %v1373 = vunpack.c.l.b16 %v216
  %v1374 = vunpack.c.h.b16 %v216
  %v1375 = vunpack.c.l.b16 %v217
  %v1376 = vunpack.c.h.b16 %v217
  %v1377 = vunpack.c.l.b16 %v218
  %v1378 = vunpack.c.h.b16 %v218
  %v1379 = vunpack.c.l.b16 %v219
  %v1380 = vunpack.c.h.b16 %v219
  %v1381 = vunpack.c.l.b16 %v220
  %v1382 = vunpack.c.h.b16 %v220
  %v1383 = vunpack.c.l.b16 %v221
  %v1384 = vunpack.c.h.b16 %v221
  %v1385 = vunpack.c.l.b16 %v222
  %v1386 = vunpack.c.h.b16 %v222
  %v1387 = vunpack.c.l.b16 %v223
  %v1388 = vunpack.c.h.b16 %v223
  %v1389 = vunpack.c.l.b16 %v224
  %v1390 = vunpack.c.h.b16 %v224
  %v1391 = vunpack.c.l.b16 %v225
  %v1392 = vunpack.c.h.b16 %v225
  %v1393 = vunpack.c.l.b16 %v226
  %v1394 = vunpack.c.h.b16 %v226
  %v1395 = vunpack.c.l.b16 %v227
  %v1396 = vunpack.c.h.b16 %v227
  %v1397 = vunpack.c.l.b16 %v228
  %v1398 = vunpack.c.h.b16 %v228
  %v1399 = vunpack.c.l.b16 %v229
  %v1400 = vunpack.c.h.b16 %v229
  %v1401 = vunpack.c.l.b16 %v230
  %v1402 = vunpack.c.h.b16 %v230
  %v1403 = vunpack.c.l.b16 %v231
  %v1404 = vunpack.c.h.b16 %v231
  %v1405 = vunpack.c.l.b16 %v232
  %v1406 = vunpack.c.h.b16 %v232
  %v1407 = vunpack.c.l.b16 %v233
  %v1408 = vunpack.c.h.b16 %v233
  %v1409 = vunpack.c.l.b16 %v234
  %v1410 = vunpack.c.h.b16 %v234
  %v1411 = vunpack.c.l.b16 %v235
  %v1412 = vunpack.c.h.b16 %v235
  %v1413 = vunpack.c.l.b16 %v236
  %v1414 = vunpack.c.h.b16 %v236
  %v1415 = vunpack.c.l.b16 %v237
  %v1416 = vunpack.c.h.b16 %v237
  %v1417 = vunpack.c.l.b16 %v238
  %v1418 = vunpack.c.h.b16 %v238
  %v1419 = vunpack.c.l.b16 %v239
  %v1420 = vunpack.c.h.b16 %v239
  %v1421 = vunpack.c.l.b16 %v240
  %v1422 = vunpack.c.h.b16 %v240
  %v1423 = vunpack.c.l.b16 %v241
  %v1424 = vunpack.c.h.b16 %v241
  %v1425 = vunpack.c.l.b16 %v242
  %v1426 = vunpack.c.h.b16 %v242
  %v1427 = vunpack.c.l.b16 %v243
  %v1428 = vunpack.c.h.b16 %v243
  %v1429 = vunpack.c.l.b16 %v244
  %v1430 = vunpack.c.h.b16 %v244
  %v1431 = vunpack.c.l.b16 %v245
  %v1432 = vunpack.c.h.b16 %v245
  %v1433 = vunpack.c.l.b16 %v246
  %v1434 = vunpack.c.h.b16 %v246
  %v1435 = vunpack.c.l.b16 %v247
  %v1436 = vunpack.c.h.b16 %v247
  %v1437 = vunpack.c.l.b16 %v248
  %v1438 = vunpack.c.h.b16 %v248
  %v1439 = vunpack.c.l.b16 %v249
  %v1440 = vunpack.c.h.b16 %v249
  %v1441 = vunpack.c.l.b16 %v250
  %v1442 = vunpack.c.h.b16 %v250
  %v1443 = vunpack.c.l.b16 %v251
  %v1444 = vunpack.c.h.b16 %v251
  %v1445 = vunpack.c.l.b16 %v252
  %v1446 = vunpack.c.h.b16 %v252
  %v1447 = vunpack.c.l.b16 %v253
  %v1448 = vunpack.c.h.b16 %v253
  %v1449 = vunpack.c.l.b16 %v254
  %v1450 = vunpack.c.h.b16 %v254
  %v1451 = vunpack.c.l.b16 %v255
  %v1452 = vunpack.c.h.b16 %v255
  %v1453 = vunpack.c.l.b16 %v256
  %v1454 = vunpack.c.h.b16 %v256
  %v1455 = vunpack.c.l.b16 %v257
  %v1456 = vunpack.c.h.b16 %v257
  %v1457 = vunpack.c.l.b16 %v258
  %v1458 = vunpack.c.h.b16 %v258
  %v1459 = vunpack.c.l.b16 %v259
  %v1460 = vunpack.c.h.b16 %v259
  %v1461 = vunpack.c.l.b16 %v260
  %v1462 = vunpack.c.h.b16 %v260
  %v1463 = vunpack.c.l.b16 %v261
  %v1464 = vunpack.c.h.b16 %v261
  %v1465 = vunpack.c.l.b16 %v262
  %v1466 = vunpack.c.h.b16 %v262
  %v1467 = vunpack.c.l.b16 %v263
  %v1468 = vunpack.c.h.b16 %v263
  %v1469 = vunpack.c.l.b16 %v264
  %v1470 = vunpack.c.h.b16 %v264
  %v1471 = vunpack.c.l.b16 %v265
  %v1472 = vunpack.c.h.b16 %v265
  %v1473 = vunpack.c.l.b16 %v266
  %v1474 = vunpack.c.h.b16 %v266
  %v1475 = vunpack.c.l.b16 %v267
  %v1476 = vunpack.c.h.b16 %v267
  %v1477 = vunpack.c.l.b16 %v268
  %v1478 = vunpack.c.h.b16 %v268
  %v1479 = vunpack.c.l.b16 %v269
  %v1480 = vunpack.c.h.b16 %v269
  %v1481 = vunpack.c.l.b16 %v270
  %v1482 = vunpack.c.h.b16 %v270
  %v1483 = vunpack.c.l.b16 %v271
  %v1484 = vunpack.c.h.b16 %v271
  %v1485 = vunpack.c.l.b16 %v272
  %v1486 = vunpack.c.h.b16 %v272
  %v1487 = vunpack.c.l.b16 %v273
  %v1488 = vunpack.c.h.b16 %v273
  %v1489 = vunpack.c.l.b16 %v274
  %v1490 = vunpack.c.h.b16 %v274
  %v1491 = vunpack.c.l.b16 %v275
  %v1492 = vunpack.c.h.b16 %v275
  %v1493 = vunpack.c.l.b16 %v276
  %v1494 = vunpack.c.h.b16 %v276
  %v1495 = vunpack.c.l.b16 %v277
  %v1496 = vunpack.c.h.b16 %v277
  %v1497 = vunpack.c.l.b16 %v278
  %v1498 = vunpack.c.h.b16 %v278
  %v1499 = vunpack.c.l.b16 %v279
  %v1500 = vunpack.c.h.b16 %v279
  %v1501 = vunpack.c.l.b16 %v280
  %v1502 = vunpack.c.h.b16 %v280
  %v1503 = vunpack.c.l.b16 %v281
  %v1504 = vunpack.c.h.b16 %v281
  %v1505 = vunpack.c.l.b16 %v282
  %v1506 = vunpack.c.h.b16 %v282
  %v1507 = vunpack.c.l.b16 %v283
  %v1508 = vunpack.c.h.b16 %v283
  %v1509 = vunpack.c.l.b16 %v284
  %v1510 = vunpack.c.h.b16 %v284
  %v1511 = vunpack.c.l.b16 %v285
  %v1512 = vunpack.c.h.b16 %v285
  %v1513 = vunpack.c.l.b16 %v286
  %v1514 = vunpack.c.h.b16 %v286
  %v1515 = vunpack.c.l.b16 %v287
  %v1516 = vunpack.c.h.b16 %v287
  %v1517 = vunpack.c.l.b16 %v288
  %v1518 = vunpack.c.h.b16 %v288
  %v1519 = vunpack.c.l.b16 %v289
  %v1520 = vunpack.c.h.b16 %v289
  %v1521 = vunpack.c.l.b16 %v290
  %v1522 = vunpack.c.h.b16 %v290
  %v1523 = vunpack.c.l.b16 %v291
  %v1524 = vunpack.c.h.b16 %v291
  %v1525 = vunpack.c.l.b16 %v292
  %v1526 = vunpack.c.h.b16 %v292
  %v1527 = vunpack.c.l.b16 %v293
  %v1528 = vunpack.c.h.b16 %v293
  %v1529 = vunpack.c.l.b16 %v294
  %v1530 = vunpack.c.h.b16 %v294
  %v1531 = vunpack.c.l.b16 %v295
  %v1532 = vunpack.c.h.b16 %v295
  %v1533 = vunpack.c.l.b16 %v296
  %v1534 = vunpack.c.h.b16 %v296
  %v1535 = vunpack.c.l.b16 %v297
  %v1536 = vunpack.c.h.b16 %v297
  %v1537 = vunpack.c.l.b16 %v298
  %v1538 = vunpack.c.h.b16 %v298
  %v1539 = vunpack.c.l.b16 %v299
  %v1540 = vunpack.c.h.b16 %v299
  %v1541 = vunpack.c.l.b16 %v300
  %v1542 = vunpack.c.h.b16 %v300
  %v1543 = vunpack.c.l.b16 %v301
  %v1544 = vunpack.c.h.b16 %v301
  %v1545 = vunpack.c.l.b16 %v302
  %v1546 = vunpack.c.h.b16 %v302
  %v1547 = vunpack.c.l.b16 %v303
  %v1548 = vunpack.c.h.b16 %v303
  %v1549 = vunpack.c.l.b16 %v304
  %v1550 = vunpack.c.h.b16 %v304
  %v1551 = vunpack.c.l.b16 %v305
  %v1552 = vunpack.c.h.b16 %v305
  %v1553 = vunpack.c.l.b16 %v306
  %v1554 = vunpack.c.h.b16 %v306
  %v1555 = vunpack.c.l.b16 %v307
  %v1556 = vunpack.c.h.b16 %v307
  %v1557 = vunpack.c.l.b16 %v308
  %v1558 = vunpack.c.h.b16 %v308
  %v1559 = vunpack.c.l.b16 %v309
  %v1560 = vunpack.c.h.b16 %v309
  %v1561 = vunpack.c.l.b16 %v310
  %v1562 = vunpack.c.h.b16 %v310
  %v1563 = vunpack.c.l.b16 %v311
  %v1564 = vunpack.c.h.b16 %v311
  %v1565 = vunpack.c.l.b16 %v312
  %v1566 = vunpack.c.h.b16 %v312
  %v1567 = vunpack.c.l.b16 %v313
  %v1568 = vunpack.c.h.b16 %v313
  %v1569 = vunpack.c.l.b16 %v314
  %v1570 = vunpack.c.h.b16 %v314
  %v1571 = vunpack.c.l.b16 %v315
  %v1572 = vunpack.c.h.b16 %v315
  %v1573 = vunpack.c.l.b16 %v316
  %v1574 = vunpack.c.h.b16 %v316
  %v1575 = vunpack.c.l.b16 %v317
  %v1576 = vunpack.c.h.b16 %v317
  %v1577 = vunpack.c.l.b16 %v318
  %v1578 = vunpack.c.h.b16 %v318
  %v1579 = vunpack.c.l.b16 %v319
  %v1580 = vunpack.c.h.b16 %v319
  %v1581 = vunpack.c.l.b16 %v320
  %v1582 = vunpack.c.h.b16 %v320
  %v1583 = vunpack.c.l.b16 %v321
  %v1584 = vunpack.c.h.b16 %v321
  %v1585 = vunpack.c.l.b16 %v322
  %v1586 = vunpack.c.h.b16 %v322
  %v1587 = vunpack.c.l.b16 %v323
  %v1588 = vunpack.c.h.b16 %v323
  %v1589 = vunpack.c.l.b16 %v324
  %v1590 = vunpack.c.h.b16 %v324
  %v1591 = vunpack.c.l.b16 %v325
  %v1592 = vunpack.c.h.b16 %v325
  %v1593 = vunpack.c.l.b16 %v326
  %v1594 = vunpack.c.h.b16 %v326
  %v1595 = vunpack.c.l.b16 %v327
  %v1596 = vunpack.c.h.b16 %v327
  %v1597 = vunpack.c.l.b16 %v328
  %v1598 = vunpack.c.h.b16 %v328
  %v1599 = vunpack.c.l.b16 %v329
  %v1600 = vunpack.c.h.b16 %v329
  %v1601 = vunpack.c.l.b16 %v330
  %v1602 = vunpack.c.h.b16 %v330
  %v1603 = vunpack.c.l.b16 %v331
  %v1604 = vunpack.c.h.b16 %v331
  %v1605 = vunpack.c.l.b16 %v332
  %v1606 = vunpack.c.h.b16 %v332
  %v1607 = vunpack.c.l.b16 %v333
  %v1608 = vunpack.c.h.b16 %v333
  %v1609 = vunpack.c.l.b16 %v334
  %v1610 = vunpack.c.h.b16 %v334
  %v1611 = vunpack.c.l.b16 %v335
  %v1612 = vunpack.c.h.b16 %v335
  %v1613 = vunpack.c.l.b16 %v336
  %v1614 = vunpack.c.h.b16 %v336
  %v1615 = vunpack.c.l.b16 %v337
  %v1616 = vunpack.c.h.b16 %v337
  %v1617 = vunpack.c.l.b16 %v338
  %v1618 = vunpack.c.h.b16 %v338
  %v1619 = vunpack.c.l.b16 %v339
  %v1620 = vunpack.c.h.b16 %v339
  %v1621 = vunpack.c.l.b16 %v340
  %v1622 = vunpack.c.h.b16 %v340
  %v1623 = vunpack.c.l.b16 %v341
  %v1624 = vunpack.c.h.b16 %v341
  %v1625 = vunpack.c.l.b16 %v342
  %v1626 = vunpack.c.h.b16 %v342
  %v1627 = vunpack.c.l.b16 %v343
  %v1628 = vunpack.c.h.b16 %v343
  %v1629 = vunpack.c.l.b16 %v344
  %v1630 = vunpack.c.h.b16 %v344
  %v1631 = vunpack.c.l.b16 %v345
  %v1632 = vunpack.c.h.b16 %v345
  %v1633 = vunpack.c.l.b16 %v346
  %v1634 = vunpack.c.h.b16 %v346
  %v1635 = vunpack.c.l.b16 %v347
  %v1636 = vunpack.c.h.b16 %v347
  %v1637 = vunpack.c.l.b16 %v348
  %v1638 = vunpack.c.h.b16 %v348
  %v1639 = vunpack.c.l.b16 %v349
  %v1640 = vunpack.c.h.b16 %v349
  %v1641 = vunpack.c.l.b16 %v350
  %v1642 = vunpack.c.h.b16 %v350
  %v1643 = vunpack.c.l.b16 %v351
  %v1644 = vunpack.c.h.b16 %v351
  %v1645 = vunpack.c.l.b16 %v352
  %v1646 = vunpack.c.h.b16 %v352
  %v1647 = vunpack.c.l.b16 %v353
  %v1648 = vunpack.c.h.b16 %v353
  %v1649 = vunpack.c.l.b16 %v354
  %v1650 = vunpack.c.h.b16 %v354
  %v1651 = vunpack.c.l.b16 %v355
  %v1652 = vunpack.c.h.b16 %v355
  %v1653 = vunpack.c.l.b16 %v356
  %v1654 = vunpack.c.h.b16 %v356
  %v1655 = vunpack.c.l.b16 %v357
  %v1656 = vunpack.c.h.b16 %v357
  %v1657 = vunpack.c.l.b16 %v358
  %v1658 = vunpack.c.h.b16 %v358
  %v1659 = vunpack.c.l.b16 %v359
  %v1660 = vunpack.c.h.b16 %v359
  %v1661 = vunpack.c.l.b16 %v360
  %v1662 = vunpack.c.h.b16 %v360
  %v1663 = vunpack.c.l.b16 %v361
  %v1664 = vunpack.c.h.b16 %v361
  %v1665 = vunpack.c.l.b16 %v362
  %v1666 = vunpack.c.h.b16 %v362
  %v1667 = vunpack.c.l.b16 %v363
  %v1668 = vunpack.c.h.b16 %v363
  %v1669 = vunpack.c.l.b16 %v364
  %v1670 = vunpack.c.h.b16 %v364
  %v1671 = vunpack.c.l.b16 %v365
  %v1672 = vunpack.c.h.b16 %v365
  %v1673 = vunpack.c.l.b16 %v366
  %v1674 = vunpack.c.h.b16 %v366
  %v1675 = vunpack.c.l.b16 %v367
  %v1676 = vunpack.c.h.b16 %v367
  %v1677 = vunpack.c.l.b16 %v368
  %v1678 = vunpack.c.h.b16 %v368
  %v1679 = vunpack.c.l.b16 %v369
  %v1680 = vunpack.c.h.b16 %v369
  %v1681 = vunpack.c.l.b16 %v370
  %v1682 = vunpack.c.h.b16 %v370
  %v1683 = vunpack.c.l.b16 %v371
  %v1684 = vunpack.c.h.b16 %v371
  %v1685 = vunpack.c.l.b16 %v372
  %v1686 = vunpack.c.h.b16 %v372
  %v1687 = vunpack.c.l.b16 %v373
  %v1688 = vunpack.c.h.b16 %v373
  %v1689 = vunpack.c.l.b16 %v374
  %v1690 = vunpack.c.h.b16 %v374
  %v1691 = vunpack.c.l.b16 %v375
  %v1692 = vunpack.c.h.b16 %v375
  %v1693 = vunpack.c.l.b16 %v376
  %v1694 = vunpack.c.h.b16 %v376
  %v1695 = vunpack.c.l.b16 %v377
  %v1696 = vunpack.c.h.b16 %v377
  %v1697 = vunpack.c.l.b16 %v378
  %v1698 = vunpack.c.h.b16 %v378
  %v1699 = vunpack.c.l.b16 %v379
  %v1700 = vunpack.c.h.b16 %v379
  %v1701 = vunpack.c.l.b16 %v380
  %v1702 = vunpack.c.h.b16 %v380
  %v1703 = vunpack.c.l.b16 %v381
  %v1704 = vunpack.c.h.b16 %v381
  %v1705 = vunpack.c.l.b16 %v382
  %v1706 = vunpack.c.h.b16 %v382
  %v1707 = vunpack.c.l.b16 %v383
  %v1708 = vunpack.c.h.b16 %v383
  %v1709 = vunpack.c.l.b16 %v384
  %v1710 = vunpack.c.h.b16 %v384
  %v1711 = vunpack.c.l.b16 %v385
  %v1712 = vunpack.c.h.b16 %v385
  %v1713 = vunpack.c.l.b16 %v386
  %v1714 = vunpack.c.h.b16 %v386
  %v1715 = vunpack.c.l.b16 %v387
  %v1716 = vunpack.c.h.b16 %v387
  %v1717 = vunpack.c.l.b16 %v388
  %v1718 = vunpack.c.h.b16 %v388
  %v1719 = vunpack.c.l.b16 %v389
  %v1720 = vunpack.c.h.b16 %v389
  %v1721 = vunpack.c.l.b16 %v390
  %v1722 = vunpack.c.h.b16 %v390
  %v1723 = vunpack.c.l.b16 %v391
  %v1724 = vunpack.c.h.b16 %v391
  %v1725 = vunpack.c.l.b16 %v392
  %v1726 = vunpack.c.h.b16 %v392
  %v1727 = vunpack.c.l.b16 %v393
  %v1728 = vunpack.c.h.b16 %v393
  %v1729 = vunpack.c.l.b16 %v394
  %v1730 = vunpack.c.h.b16 %v394
  %v1731 = vunpack.c.l.b16 %v395
  %v1732 = vunpack.c.h.b16 %v395
  %v1733 = vunpack.c.l.b16 %v396
  %v1734 = vunpack.c.h.b16 %v396
  %v1735 = vunpack.c.l.b16 %v397
  %v1736 = vunpack.c.h.b16 %v397
  %v1737 = vunpack.c.l.b16 %v398
  %v1738 = vunpack.c.h.b16 %v398
  %v1739 = vunpack.c.l.b16 %v399
  %v1740 = vunpack.c.h.b16 %v399
  %v1741 = vunpack.c.l.b16 %v400
  %v1742 = vunpack.c.h.b16 %v400
  %v1743 = vunpack.c.l.b16 %v401
  %v1744 = vunpack.c.h.b16 %v401
  %v1745 = vunpack.c.l.b16 %v402
  %v1746 = vunpack.c.h.b16 %v402
  %v1747 = vunpack.c.l.b16 %v403
  %v1748 = vunpack.c.h.b16 %v403
  %v1749 = vunpack.c.l.b16 %v404
  %v1750 = vunpack.c.h.b16 %v404
  %v1751 = vunpack.c.l.b16 %v405
  %v1752 = vunpack.c.h.b16 %v405
  %v1753 = vunpack.c.l.b16 %v406
  %v1754 = vunpack.c.h.b16 %v406
  %v1755 = vunpack.c.l.b16 %v407
  %v1756 = vunpack.c.h.b16 %v407
  %v1757 = vunpack.c.l.b16 %v408
  %v1758 = vunpack.c.h.b16 %v408
  %v1759 = vunpack.c.l.b16 %v409
  %v1760 = vunpack.c.h.b16 %v409
  %v1761 = vunpack.c.l.b16 %v410
  %v1762 = vunpack.c.h.b16 %v410
  %v1763 = vunpack.c.l.b16 %v411
  %v1764 = vunpack.c.h.b16 %v411
  %v1765 = vunpack.c.l.b16 %v412
  %v1766 = vunpack.c.h.b16 %v412
  %v1767 = vunpack.c.l.b16 %v413
  %v1768 = vunpack.c.h.b16 %v413
  %v1769 = vunpack.c.l.b16 %v414
  %v1770 = vunpack.c.h.b16 %v414
  %v1771 = vunpack.c.l.b16 %v415
  %v1772 = vunpack.c.h.b16 %v415
  %v1773 = vunpack.c.l.b16 %v416
  %v1774 = vunpack.c.h.b16 %v416
  %v1775 = vunpack.c.l.b16 %v417
  %v1776 = vunpack.c.h.b16 %v417
  %v1777 = vunpack.c.l.b16 %v418
  %v1778 = vunpack.c.h.b16 %v418
  %v1779 = vunpack.c.l.b16 %v419
  %v1780 = vunpack.c.h.b16 %v419
  %v1781 = vunpack.c.l.b16 %v420
  %v1782 = vunpack.c.h.b16 %v420
  %v1783 = vunpack.c.l.b16 %v421
  %v1784 = vunpack.c.h.b16 %v421
  %v1785 = vunpack.c.l.b16 %v422
  %v1786 = vunpack.c.h.b16 %v422
  %v1787 = vunpack.c.l.b16 %v423
  %v1788 = vunpack.c.h.b16 %v423
  %v1789 = vunpack.c.l.b16 %v424
  %v1790 = vunpack.c.h.b16 %v424
  %v1791 = vunpack.c.l.b16 %v425
  %v1792 = vunpack.c.h.b16 %v425
  %v1793 = vunpack.c.l.b16 %v426
  %v1794 = vunpack.c.h.b16 %v426
  %v1795 = vunpack.c.l.b16 %v427
  %v1796 = vunpack.c.h.b16 %v427
  %v1797 = vunpack.c.l.b16 %v428
  %v1798 = vunpack.c.h.b16 %v428
  %v1799 = vunpack.c.l.b16 %v429
  %v1800 = vunpack.c.h.b16 %v429
  %v1801 = vunpack.c.l.b16 %v430
  %v1802 = vunpack.c.h.b16 %v430
  %v1803 = vunpack.c.l.b16 %v431
  %v1804 = vunpack.c.h.b16 %v431
  %v1805 = vunpack.c.l.b16 %v432
  %v1806 = vunpack.c.h.b16 %v432
  %v1807 = vunpack.c.l.b16 %v433
  %v1808 = vunpack.c.h.b16 %v433
  %v1809 = vunpack.c.l.b16 %v434
  %v1810 = vunpack.c.h.b16 %v434
  %v1811 = vunpack.c.l.b16 %v435
  %v1812 = vunpack.c.h.b16 %v435
  %v1813 = vunpack.c.l.b16 %v436
  %v1814 = vunpack.c.h.b16 %v436
  %v1815 = vunpack.c.l.b16 %v437
  %v1816 = vunpack.c.h.b16 %v437
  %v1817 = vunpack.c.l.b16 %v438
  %v1818 = vunpack.c.h.b16 %v438
  %v1819 = vunpack.c.l.b16 %v439
  %v1820 = vunpack.c.h.b16 %v439
  %v1821 = vunpack.c.l.b16 %v440
  %v1822 = vunpack.c.h.b16 %v440
  %v1823 = vunpack.c.l.b16 %v441
  %v1824 = vunpack.c.h.b16 %v441
  %v1825 = vunpack.c.l.b16 %v442
  %v1826 = vunpack.c.h.b16 %v442
  %v1827 = vunpack.c.l.b16 %v443
  %v1828 = vunpack.c.h.b16 %v443
  %v1829 = vunpack.c.l.b16 %v444
  %v1830 = vunpack.c.h.b16 %v444
  %v1831 = vunpack.c.l.b16 %v445
  %v1832 = vunpack.c.h.b16 %v445
  %v1833 = vunpack.c.l.b16 %v446
  %v1834 = vunpack.c.h.b16 %v446
  %v1835 = vunpack.c.l.b16 %v447
  %v1836 = vunpack.c.h.b16 %v447
  %v1837 = vunpack.c.l.b16 %v448
  %v1838 = vunpack.c.h.b16 %v448
  %v1839 = vunpack.c.l.b16 %v449
  %v1840 = vunpack.c.h.b16 %v449
  %v1841 = vunpack.c.l.b16 %v450
  %v1842 = vunpack.c.h.b16 %v450
  %v1843 = vunpack.c.l.b16 %v451
  %v1844 = vunpack.c.h.b16 %v451
  %v1845 = vunpack.c.l.b16 %v452
  %v1846 = vunpack.c.h.b16 %v452
  %v1847 = vunpack.c.l.b16 %v453
  %v1848 = vunpack.c.h.b16 %v453
  %v1849 = vunpack.c.l.b16 %v454
  %v1850 = vunpack.c.h.b16 %v454
  %v1851 = vunpack.c.l.b16 %v455
  %v1852 = vunpack.c.h.b16 %v455
  %v1853 = vunpack.c.l.b16 %v456
  %v1854 = vunpack.c.h.b16 %v456
  %v1855 = vunpack.c.l.b16 %v457
  %v1856 = vunpack.c.h.b16 %v457
  %v1857 = vunpack.c.l.b16 %v458
  %v1858 = vunpack.c.h.b16 %v458
  %v1859 = vunpack.c.l.b16 %v459
  %v1860 = vunpack.c.h.b16 %v459
  %v1861 = vunpack.c.l.b16 %v460
  %v1862 = vunpack.c.h.b16 %v460
  %v1863 = vunpack.c.l.b16 %v461
  %v1864 = vunpack.c.h.b16 %v461
  %v1865 = vunpack.c.l.b16 %v462
  %v1866 = vunpack.c.h.b16 %v462
  %v1867 = vunpack.c.l.b16 %v463
  %v1868 = vunpack.c.h.b16 %v463
  %v1869 = vunpack.c.l.b16 %v464
  %v1870 = vunpack.c.h.b16 %v464
  %v1871 = vunpack.c.l.b16 %v465
  %v1872 = vunpack.c.h.b16 %v465
  %v1873 = vunpack.c.l.b16 %v466
  %v1874 = vunpack.c.h.b16 %v466
  %v1875 = vunpack.c.l.b16 %v467
  %v1876 = vunpack.c.h.b16 %v467
  %v1877 = vunpack.c.l.b16 %v468
  %v1878 = vunpack.c.h.b16 %v468
  %v1879 = vunpack.c.l.b16 %v469
  %v1880 = vunpack.c.h.b16 %v469
  %v1881 = vunpack.c.l.b16 %v470
  %v1882 = vunpack.c.h.b16 %v470
  %v1883 = vunpack.c.l.b16 %v471
  %v1884 = vunpack.c.h.b16 %v471
  %v1885 = vunpack.c.l.b16 %v472
  %v1886 = vunpack.c.h.b16 %v472
  %v1887 = vunpack.c.l.b16 %v473
  %v1888 = vunpack.c.h.b16 %v473
  %v1889 = vunpack.c.l.b16 %v474
  %v1890 = vunpack.c.h.b16 %v474
  %v1891 = vunpack.c.l.b16 %v475
  %v1892 = vunpack.c.h.b16 %v475
  %v1893 = vunpack.c.l.b16 %v476
  %v1894 = vunpack.c.h.b16 %v476
  %v1895 = vunpack.c.l.b16 %v477
  %v1896 = vunpack.c.h.b16 %v477
  %v1897 = vunpack.c.l.b16 %v478
  %v1898 = vunpack.c.h.b16 %v478
  %v1899 = vunpack.c.l.b16 %v479
  %v1900 = vunpack.c.h.b16 %v479
  %v1901 = vunpack.c.l.b16 %v480
  %v1902 = vunpack.c.h.b16 %v480
  %v1903 = vunpack.c.l.b16 %v481
  %v1904 = vunpack.c.h.b16 %v481
  %v1905 = vunpack.c.l.b16 %v482
  %v1906 = vunpack.c.h.b16 %v482
  %v1907 = vunpack.c.l.b16 %v483
  %v1908 = vunpack.c.h.b16 %v483
  %v1909 = vunpack.c.l.b16 %v484
  %v1910 = vunpack.c.h.b16 %v484
  %v1911 = vunpack.c.l.b16 %v485
  %v1912 = vunpack.c.h.b16 %v485
  %v1913 = vunpack.c.l.b16 %v486
  %v1914 = vunpack.c.h.b16 %v486
  %v1915 = vunpack.c.l.b16 %v487
  %v1916 = vunpack.c.h.b16 %v487
  %v1917 = vunpack.c.l.b16 %v488
  %v1918 = vunpack.c.h.b16 %v488
  %v1919 = vunpack.c.l.b16 %v489
  %v1920 = vunpack.c.h.b16 %v489
  %v1921 = vunpack.c.l.b16 %v490
  %v1922 = vunpack.c.h.b16 %v490
  %v1923 = vunpack.c.l.b16 %v491
  %v1924 = vunpack.c.h.b16 %v491
  %v1925 = vunpack.c.l.b16 %v492
  %v1926 = vunpack.c.h.b16 %v492
  %v1927 = vunpack.c.l.b16 %v493
  %v1928 = vunpack.c.h.b16 %v493
  %v1929 = vunpack.c.l.b16 %v494
  %v1930 = vunpack.c.h.b16 %v494
  %v1931 = vunpack.c.l.b16 %v495
  %v1932 = vunpack.c.h.b16 %v495
  %v1933 = vunpack.c.l.b16 %v496
  %v1934 = vunpack.c.h.b16 %v496
  %v1935 = vunpack.c.l.b16 %v497
  %v1936 = vunpack.c.h.b16 %v497
  %v1937 = vunpack.c.l.b16 %v498
  %v1938 = vunpack.c.h.b16 %v498
  %v1939 = vunpack.c.l.b16 %v499
  %v1940 = vunpack.c.h.b16 %v499
  %v1941 = vunpack.c.l.b16 %v500
  %v1942 = vunpack.c.h.b16 %v500
  %v1943 = vunpack.c.l.b16 %v501
  %v1944 = vunpack.c.h.b16 %v501
  %v1945 = vunpack.c.l.b16 %v502
  %v1946 = vunpack.c.h.b16 %v502
  %v1947 = vunpack.c.l.b16 %v503
  %v1948 = vunpack.c.h.b16 %v503
  %v1949 = vunpack.c.l.b16 %v504
  %v1950 = vunpack.c.h.b16 %v504
  %v1951 = vunpack.c.l.b16 %v505
  %v1952 = vunpack.c.h.b16 %v505
  %v1953 = vunpack.c.l.b16 %v506
  %v1954 = vunpack.c.h.b16 %v506
  %v1955 = vunpack.c.l.b16 %v507
  %v1956 = vunpack.c.h.b16 %v507
  %v1957 = vunpack.c.l.b16 %v508
  %v1958 = vunpack.c.h.b16 %v508
  %v1959 = vunpack.c.l.b16 %v509
  %v1960 = vunpack.c.h.b16 %v509
  %v1961 = vunpack.c.l.b16 %v510
  %v1962 = vunpack.c.h.b16 %v510
  %v1963 = vunpack.c.l.b16 %v511
  %v1964 = vunpack.c.h.b16 %v511
  %v1965 = vunpack.c.l.b16 %v512
  %v1966 = vunpack.c.h.b16 %v512
  %v1967 = vunpack.c.l.b16 %v513
  %v1968 = vunpack.c.h.b16 %v513
  %v1969 = vunpack.c.l.b16 %v514
  %v1970 = vunpack.c.h.b16 %v514
  %v1971 = vunpack.c.l.b16 %v515
  %v1972 = vunpack.c.h.b16 %v515
  %v1973 = vunpack.c.l.b16 %v516
  %v1974 = vunpack.c.h.b16 %v516
  %v1975 = vunpack.c.l.b16 %v517
  %v1976 = vunpack.c.h.b16 %v517
  %v1977 = vunpack.c.l.b16 %v518
  %v1978 = vunpack.c.h.b16 %v518
  %v1979 = vunpack.c.l.b16 %v519
  %v1980 = vunpack.c.h.b16 %v519
  %v1981 = vunpack.c.l.b16 %v520
  %v1982 = vunpack.c.h.b16 %v520
  %v1983 = vunpack.c.l.b16 %v521
  %v1984 = vunpack.c.h.b16 %v521
  %v1985 = vunpack.c.l.b16 %v522
  %v1986 = vunpack.c.h.b16 %v522
  %v1987 = vunpack.c.l.b16 %v523
  %v1988 = vunpack.c.h.b16 %v523
  %v1989 = vunpack.c.l.b16 %v524
  %v1990 = vunpack.c.h.b16 %v524
  %v1991 = vunpack.c.l.b16 %v525
  %v1992 = vunpack.c.h.b16 %v525
  %v1993 = vunpack.c.l.b16 %v526
  %v1994 = vunpack.c.h.b16 %v526
  %v1995 = vunpack.c.l.b16 %v527
  %v1996 = vunpack.c.h.b16 %v527
  %v1997 = vunpack.c.l.b16 %v528
  %v1998 = vunpack.c.h.b16 %v528
  %v1999 = vunpack.c.l.b16 %v529
  %v2000 = vunpack.c.h.b16 %v529
  %v2001 = vunpack.c.l.b16 %v530
  %v2002 = vunpack.c.h.b16 %v530
  %v2003 = vunpack.c.l.b16 %v531
  %v2004 = vunpack.c.h.b16 %v531
  %v2005 = vunpack.c.l.b16 %v532
  %v2006 = vunpack.c.h.b16 %v532
  %v2007 = vunpack.c.l.b16 %v533
  %v2008 = vunpack.c.h.b16 %v533
  %v2009 = vunpack.c.l.b16 %v534
  %v2010 = vunpack.c.h.b16 %v534
  %v2011 = vunpack.c.l.b16 %v535
  %v2012 = vunpack.c.h.b16 %v535
  %v2013 = vunpack.c.l.b16 %v536
  %v2014 = vunpack.c.h.b16 %v536
  %v2015 = vunpack.c.l.b16 %v537
  %v2016 = vunpack.c.h.b16 %v537
  %v2017 = vunpack.c.l.b16 %v538
  %v2018 = vunpack.c.h.b16 %v538
  %v2019 = vunpack.c.l.b16 %v539
  %v2020 = vunpack.c.h.b16 %v539
  %v2021 = vunpack.c.l.b16 %v540
  %v2022 = vunpack.c.h.b16 %v540
  %v2023 = vunpack.c.l.b16 %v541
  %v2024 = vunpack.c.h.b16 %v541
  %v2025 = vunpack.c.l.b16 %v542
  %v2026 = vunpack.c.h.b16 %v542
  %v2027 = vunpack.c.l.b16 %v543
  %v2028 = vunpack.c.h.b16 %v543
  %v2029 = vunpack.c.l.b16 %v544
  %v2030 = vunpack.c.h.b16 %v544
  %v2031 = vunpack.c.l.b16 %v545
  %v2032 = vunpack.c.h.b16 %v545
  %v2033 = vunpack.c.l.b16 %v546
  %v2034 = vunpack.c.h.b16 %v546
  %v2035 = vunpack.c.l.b16 %v547
  %v2036 = vunpack.c.h.b16 %v547
  %v2037 = vunpack.c.l.b16 %v548
  %v2038 = vunpack.c.h.b16 %v548
  %v2039 = vunpack.c.l.b16 %v549
  %v2040 = vunpack.c.h.b16 %v549
  %v2041 = vunpack.c.l.b16 %v550
  %v2042 = vunpack.c.h.b16 %v550
  %v2043 = vunpack.c.l.b16 %v551
  %v2044 = vunpack.c.h.b16 %v551
  %v2045 = vunpack.c.l.b16 %v552
  %v2046 = vunpack.c.h.b16 %v552
  %v2047 = vunpack.c.l.b16 %v553
  %v2048 = vunpack.c.h.b16 %v553
  %v2049 = vunpack.c.l.b16 %v554
  %v2050 = vunpack.c.h.b16 %v554
  %v2051 = vunpack.c.l.b16 %v555
  %v2052 = vunpack.c.h.b16 %v555
  %v2053 = vunpack.c.l.b16 %v556
  %v2054 = vunpack.c.h.b16 %v556
  %v2055 = vunpack.c.l.b16 %v557
  %v2056 = vunpack.c.h.b16 %v557
  %v2057 = vunpack.c.l.b16 %v558
  %v2058 = vunpack.c.h.b16 %v558
  %v2059 = vunpack.c.l.b16 %v559
  %v2060 = vunpack.c.h.b16 %v559
  %v2061 = vunpack.c.l.b16 %v560
  %v2062 = vunpack.c.h.b16 %v560
  %v2063 = vunpack.c.l.b16 %v561
  %v2064 = vunpack.c.h.b16 %v561
  %v2065 = vunpack.c.l.b16 %v562
  %v2066 = vunpack.c.h.b16 %v562
  %v2067 = vunpack.c.l.b16 %v563
  %v2068 = vunpack.c.h.b16 %v563
  %v2069 = vunpack.c.l.b16 %v564
  %v2070 = vunpack.c.h.b16 %v564
  %v2071 = vunpack.c.l.b16 %v565
  %v2072 = vunpack.c.h.b16 %v565
  %v2073 = vunpack.c.l.b16 %v566
  %v2074 = vunpack.c.h.b16 %v566
  %v2075 = vunpack.c.l.b16 %v567
  %v2076 = vunpack.c.h.b16 %v567
  %v2077 = vunpack.c.l.b16 %v568
  %v2078 = vunpack.c.h.b16 %v568
  %v2079 = vunpack.c.l.b16 %v569
  %v2080 = vunpack.c.h.b16 %v569
  %v2081 = vunpack.c.l.b16 %v570
  %v2082 = vunpack.c.h.b16 %v570
  %v2083 = vunpack.c.l.b16 %v571
  %v2084 = vunpack.c.h.b16 %v571
  %v2085 = vunpack.c.l.b16 %v572
  %v2086 = vunpack.c.h.b16 %v572
  %v2087 = vunpack.c.l.b16 %v573
  %v2088 = vunpack.c.h.b16 %v573
  %v2089 = vunpack.c.l.b16 %v574
  %v2090 = vunpack.c.h.b16 %v574
  %v2091 = vunpack.c.l.b16 %v575
  %v2092 = vunpack.c.h.b16 %v575
  %v2093 = vunpack.c.l.b16 %v576
  %v2094 = vunpack.c.h.b16 %v576
  %v2095 = vunpack.c.l.b16 %v577
  %v2096 = vunpack.c.h.b16 %v577
  %v2097 = vunpack.c.l.b16 %v578
  %v2098 = vunpack.c.h.b16 %v578
  %v2099 = vunpack.c.l.b16 %v579
  %v2100 = vunpack.c.h.b16 %v579
  %v2101 = vunpack.c.l.b16 %v580
  %v2102 = vunpack.c.h.b16 %v580
  %v2103 = vunpack.c.l.b16 %v581
  %v2104 = vunpack.c.h.b16 %v581
  %v2105 = vunpack.c.l.b16 %v582
  %v2106 = vunpack.c.h.b16 %v582
  %v2107 = vunpack.c.l.b16 %v583
  %v2108 = vunpack.c.h.b16 %v583
  %v2109 = vunpack.c.l.b16 %v584
  %v2110 = vunpack.c.h.b16 %v584
  %v2111 = vunpack.c.l.b16 %v585
  %v2112 = vunpack.c.h.b16 %v585
  %v2113 = vunpack.c.l.b16 %v586
  %v2114 = vunpack.c.h.b16 %v586
  %v2115 = vunpack.c.l.b16 %v587
  %v2116 = vunpack.c.h.b16 %v587
  %v2117 = vunpack.c.l.b16 %v588
  %v2118 = vunpack.c.h.b16 %v588
  %v2119 = vunpack.c.l.b16 %v589
  %v2120 = vunpack.c.h.b16 %v589
  %v2121 = vunpack.c.l.b16 %v590
  %v2122 = vunpack.c.h.b16 %v590
  %v2123 = vunpack.c.l.b16 %v591
  %v2124 = vunpack.c.h.b16 %v591
  %v2125 = vunpack.c.l.b16 %v592
  %v2126 = vunpack.c.h.b16 %v592
  %v2127 = vunpack.c.l.b16 %v593
  %v2128 = vunpack.c.h.b16 %v593
  %v2129 = vunpack.c.l.b16 %v594
  %v2130 = vunpack.c.h.b16 %v594
  %v2131 = vpack.c.b16 %v1111, %v1107
  %v2132 = vpack.c.b16 %v1112, %v1108
  %v2133 = vpack.c.b16 %v1113, %v1109
  %v2134 = vpack.c.b16 %v1114, %v1110
  %v2135 = vpack.c.b16 %v1119, %v1115
  %v2136 = vpack.c.b16 %v1120, %v1116
  %v2137 = vpack.c.b16 %v1121, %v1117
  %v2138 = vpack.c.b16 %v1122, %v1118
  %v2139 = vpack.c.b16 %v1127, %v1123
  %v2140 = vpack.c.b16 %v1128, %v1124
  %v2141 = vpack.c.b16 %v1129, %v1125
  %v2142 = vpack.c.b16 %v1130, %v1126
  %v2143 = vpack.c.b16 %v1135, %v1131
  %v2144 = vpack.c.b16 %v1136, %v1132
  %v2145 = vpack.c.b16 %v1137, %v1133
  %v2146 = vpack.c.b16 %v1138, %v1134
  %v2147 = vpack.c.b16 %v1143, %v1139
  %v2148 = vpack.c.b16 %v1144, %v1140
  %v2149 = vpack.c.b16 %v1145, %v1141
  %v2150 = vpack.c.b16 %v1146, %v1142
  %v2151 = vpack.c.b16 %v1151, %v1147
  %v2152 = vpack.c.b16 %v1152, %v1148
  %v2153 = vpack.c.b16 %v1153, %v1149
  %v2154 = vpack.c.b16 %v1154, %v1150
  %v2155 = vpack.c.b16 %v1159, %v1155
  %v2156 = vpack.c.b16 %v1160, %v1156
  %v2157 = vpack.c.b16 %v1161, %v1157
  %v2158 = vpack.c.b16 %v1162, %v1158
  %v2159 = vpack.c.b16 %v1167, %v1163
  %v2160 = vpack.c.b16 %v1168, %v1164
  %v2161 = vpack.c.b16 %v1169, %v1165
  %v2162 = vpack.c.b16 %v1170, %v1166
  %v2163 = vpack.c.b16 %v1175, %v1171
  %v2164 = vpack.c.b16 %v1176, %v1172
  %v2165 = vpack.c.b16 %v1177, %v1173
  %v2166 = vpack.c.b16 %v1178, %v1174
  %v2167 = vpack.c.b16 %v1183, %v1179
  %v2168 = vpack.c.b16 %v1184, %v1180
  %v2169 = vpack.c.b16 %v1185, %v1181
  %v2170 = vpack.c.b16 %v1186, %v1182
  %v2171 = vpack.c.b16 %v1191, %v1187
  %v2172 = vpack.c.b16 %v1192, %v1188
  %v2173 = vpack.c.b16 %v1193, %v1189
  %v2174 = vpack.c.b16 %v1194, %v1190
  %v2175 = vpack.c.b16 %v1199, %v1195
  %v2176 = vpack.c.b16 %v1200, %v1196
  %v2177 = vpack.c.b16 %v1201, %v1197
  %v2178 = vpack.c.b16 %v1202, %v1198
  %v2179 = vpack.c.b16 %v1207, %v1203
  %v2180 = vpack.c.b16 %v1208, %v1204
  %v2181 = vpack.c.b16 %v1209, %v1205
  %v2182 = vpack.c.b16 %v1210, %v1206
  %v2183 = vpack.c.b16 %v1215, %v1211
  %v2184 = vpack.c.b16 %v1216, %v1212
  %v2185 = vpack.c.b16 %v1217, %v1213
  %v2186 = vpack.c.b16 %v1218, %v1214
  %v2187 = vpack.c.b16 %v1223, %v1219
  %v2188 = vpack.c.b16 %v1224, %v1220
  %v2189 = vpack.c.b16 %v1225, %v1221
  %v2190 = vpack.c.b16 %v1226, %v1222
  %v2191 = vpack.c.b16 %v1231, %v1227
  %v2192 = vpack.c.b16 %v1232, %v1228
  %v2193 = vpack.c.b16 %v1233, %v1229
  %v2194 = vpack.c.b16 %v1234, %v1230
  %v2195 = vpack.c.b16 %v1239, %v1235
  %v2196 = vpack.c.b16 %v1240, %v1236
  %v2197 = vpack.c.b16 %v1241, %v1237
  %v2198 = vpack.c.b16 %v1242, %v1238
  %v2199 = vpack.c.b16 %v1247, %v1243
  %v2200 = vpack.c.b16 %v1248, %v1244
  %v2201 = vpack.c.b16 %v1249, %v1245
  %v2202 = vpack.c.b16 %v1250, %v1246
  %v2203 = vpack.c.b16 %v1255, %v1251
  %v2204 = vpack.c.b16 %v1256, %v1252
  %v2205 = vpack.c.b16 %v1257, %v1253
  %v2206 = vpack.c.b16 %v1258, %v1254
  %v2207 = vpack.c.b16 %v1263, %v1259
  %v2208 = vpack.c.b16 %v1264, %v1260
  %v2209 = vpack.c.b16 %v1265, %v1261
  %v2210 = vpack.c.b16 %v1266, %v1262
  %v2211 = vpack.c.b16 %v1271, %v1267
  %v2212 = vpack.c.b16 %v1272, %v1268
  %v2213 = vpack.c.b16 %v1273, %v1269
  %v2214 = vpack.c.b16 %v1274, %v1270
  %v2215 = vpack.c.b16 %v1279, %v1275
  %v2216 = vpack.c.b16 %v1280, %v1276
  %v2217 = vpack.c.b16 %v1281, %v1277
  %v2218 = vpack.c.b16 %v1282, %v1278
  %v2219 = vpack.c.b16 %v1287, %v1283
  %v2220 = vpack.c.b16 %v1288, %v1284
  %v2221 = vpack.c.b16 %v1289, %v1285
  %v2222 = vpack.c.b16 %v1290, %v1286
  %v2223 = vpack.c.b16 %v1295, %v1291
  %v2224 = vpack.c.b16 %v1296, %v1292
  %v2225 = vpack.c.b16 %v1297, %v1293
  %v2226 = vpack.c.b16 %v1298, %v1294
  %v2227 = vpack.c.b16 %v1303, %v1299
  %v2228 = vpack.c.b16 %v1304, %v1300
  %v2229 = vpack.c.b16 %v1305, %v1301
  %v2230 = vpack.c.b16 %v1306, %v1302
  %v2231 = vpack.c.b16 %v1311, %v1307
  %v2232 = vpack.c.b16 %v1312, %v1308
  %v2233 = vpack.c.b16 %v1313, %v1309
  %v2234 = vpack.c.b16 %v1314, %v1310
  %v2235 = vpack.c.b16 %v1319, %v1315
  %v2236 = vpack.c.b16 %v1320, %v1316
  %v2237 = vpack.c.b16 %v1321, %v1317
  %v2238 = vpack.c.b16 %v1322, %v1318
  %v2239 = vpack.c.b16 %v1327, %v1323
  %v2240 = vpack.c.b16 %v1328, %v1324
  %v2241 = vpack.c.b16 %v1329, %v1325
  %v2242 = vpack.c.b16 %v1330, %v1326
  %v2243 = vpack.c.b16 %v1335, %v1331
  %v2244 = vpack.c.b16 %v1336, %v1332
  %v2245 = vpack.c.b16 %v1337, %v1333
  %v2246 = vpack.c.b16 %v1338, %v1334
  %v2247 = vpack.c.b16 %v1343, %v1339
  %v2248 = vpack.c.b16 %v1344, %v1340
  %v2249 = vpack.c.b16 %v1345, %v1341
  %v2250 = vpack.c.b16 %v1346, %v1342
  %v2251 = vpack.c.b16 %v1351, %v1347
  %v2252 = vpack.c.b16 %v1352, %v1348
  %v2253 = vpack.c.b16 %v1353, %v1349
  %v2254 = vpack.c.b16 %v1354, %v1350
  %v2255 = vpack.c.b16 %v1359, %v1355
  %v2256 = vpack.c.b16 %v1360, %v1356
  %v2257 = vpack.c.b16 %v1361, %v1357
  %v2258 = vpack.c.b16 %v1362, %v1358
  %v2259 = vpack.c.b16 %v1367, %v1363
  %v2260 = vpack.c.b16 %v1368, %v1364
  %v2261 = vpack.c.b16 %v1369, %v1365
  %v2262 = vpack.c.b16 %v1370, %v1366
  %v2263 = vpack.c.b16 %v1375, %v1371
  %v2264 = vpack.c.b16 %v1376, %v1372
  %v2265 = vpack.c.b16 %v1377, %v1373
  %v2266 = vpack.c.b16 %v1378, %v1374
  %v2267 = vpack.c.b16 %v1383, %v1379
  %v2268 = vpack.c.b16 %v1384, %v1380
  %v2269 = vpack.c.b16 %v1385, %v1381
  %v2270 = vpack.c.b16 %v1386, %v1382
  %v2271 = vpack.c.b16 %v1391, %v1387
  %v2272 = vpack.c.b16 %v1392, %v1388
  %v2273 = vpack.c.b16 %v1393, %v1389
  %v2274 = vpack.c.b16 %v1394, %v1390
  %v2275 = vpack.c.b16 %v1399, %v1395
  %v2276 = vpack.c.b16 %v1400, %v1396
  %v2277 = vpack.c.b16 %v1401, %v1397
  %v2278 = vpack.c.b16 %v1402, %v1398
  %v2279 = vpack.c.b16 %v1407, %v1403
  %v2280 = vpack.c.b16 %v1408, %v1404
  %v2281 = vpack.c.b16 %v1409, %v1405
  %v2282 = vpack.c.b16 %v1410, %v1406
  %v2283 = vpack.c.b16 %v1415, %v1411
  %v2284 = vpack.c.b16 %v1416, %v1412
  %v2285 = vpack.c.b16 %v1417, %v1413
  %v2286 = vpack.c.b16 %v1418, %v1414
  %v2287 = vpack.c.b16 %v1423, %v1419
  %v2288 = vpack.c.b16 %v1424, %v1420
  %v2289 = vpack.c.b16 %v1425, %v1421
  %v2290 = vpack.c.b16 %v1426, %v1422
  %v2291 = vpack.c.b16 %v1431, %v1427
  %v2292 = vpack.c.b16 %v1432, %v1428
  %v2293 = vpack.c.b16 %v1433, %v1429
  %v2294 = vpack.c.b16 %v1434, %v1430
  %v2295 = vpack.c.b16 %v1439, %v1435
  %v2296 = vpack.c.b16 %v1440, %v1436
  %v2297 = vpack.c.b16 %v1441, %v1437
  %v2298 = vpack.c.b16 %v1442, %v1438
  %v2299 = vpack.c.b16 %v1447, %v1443
  %v2300 = vpack.c.b16 %v1448, %v1444
  %v2301 = vpack.c.b16 %v1449, %v1445
  %v2302 = vpack.c.b16 %v1450, %v1446
  %v2303 = vpack.c.b16 %v1455, %v1451
  %v2304 = vpack.c.b16 %v1456, %v1452
  %v2305 = vpack.c.b16 %v1457, %v1453
  %v2306 = vpack.c.b16 %v1458, %v1454
  %v2307 = vpack.c.b16 %v1463, %v1459
  %v2308 = vpack.c.b16 %v1464, %v1460
  %v2309 = vpack.c.b16 %v1465, %v1461
  %v2310 = vpack.c.b16 %v1466, %v1462
  %v2311 = vpack.c.b16 %v1471, %v1467
  %v2312 = vpack.c.b16 %v1472, %v1468
  %v2313 = vpack.c.b16 %v1473, %v1469
  %v2314 = vpack.c.b16 %v1474, %v1470
  %v2315 = vpack.c.b16 %v1479, %v1475
  %v2316 = vpack.c.b16 %v1480, %v1476
  %v2317 = vpack.c.b16 %v1481, %v1477
  %v2318 = vpack.c.b16 %v1482, %v1478
  %v2319 = vpack.c.b16 %v1487, %v1483
  %v2320 = vpack.c.b16 %v1488, %v1484
  %v2321 = vpack.c.b16 %v1489, %v1485
  %v2322 = vpack.c.b16 %v1490, %v1486
  %v2323 = vpack.c.b16 %v1495, %v1491
  %v2324 = vpack.c.b16 %v1496, %v1492
  %v2325 = vpack.c.b16 %v1497, %v1493
  %v2326 = vpack.c.b16 %v1498, %v1494
  %v2327 = vpack.c.b16 %v1503, %v1499
  %v2328 = vpack.c.b16 %v1504, %v1500
  %v2329 = vpack.c.b16 %v1505, %v1501
  %v2330 = vpack.c.b16 %v1506, %v1502
  %v2331 = vpack.c.b16 %v1511, %v1507
  %v2332 = vpack.c.b16 %v1512, %v1508
  %v2333 = vpack.c.b16 %v1513, %v1509
  %v2334 = vpack.c.b16 %v1514, %v1510
  %v2335 = vpack.c.b16 %v1519, %v1515
  %v2336 = vpack.c.b16 %v1520, %v1516
  %v2337 = vpack.c.b16 %v1521, %v1517
  %v2338 = vpack.c.b16 %v1522, %v1518
  %v2339 = vpack.c.b16 %v1527, %v1523
  %v2340 = vpack.c.b16 %v1528, %v1524
  %v2341 = vpack.c.b16 %v1529, %v1525
  %v2342 = vpack.c.b16 %v1530, %v1526
  %v2343 = vpack.c.b16 %v1535, %v1531
  %v2344 = vpack.c.b16 %v1536, %v1532
  %v2345 = vpack.c.b16 %v1537, %v1533
  %v2346 = vpack.c.b16 %v1538, %v1534
  %v2347 = vpack.c.b16 %v1543, %v1539
  %v2348 = vpack.c.b16 %v1544, %v1540
  %v2349 = vpack.c.b16 %v1545, %v1541
  %v2350 = vpack.c.b16 %v1546, %v1542
  %v2351 = vpack.c.b16 %v1551, %v1547
  %v2352 = vpack.c.b16 %v1552, %v1548
  %v2353 = vpack.c.b16 %v1553, %v1549
  %v2354 = vpack.c.b16 %v1554, %v1550
  %v2355 = vpack.c.b16 %v1559, %v1555
  %v2356 = vpack.c.b16 %v1560, %v1556
  %v2357 = vpack.c.b16 %v1561, %v1557
  %v2358 = vpack.c.b16 %v1562, %v1558
  %v2359 = vpack.c.b16 %v1567, %v1563
  %v2360 = vpack.c.b16 %v1568, %v1564
  %v2361 = vpack.c.b16 %v1569, %v1565
  %v2362 = vpack.c.b16 %v1570, %v1566
  %v2363 = vpack.c.b16 %v1575, %v1571
  %v2364 = vpack.c.b16 %v1576, %v1572
  %v2365 = vpack.c.b16 %v1577, %v1573
  %v2366 = vpack.c.b16 %v1578, %v1574
  %v2367 = vpack.c.b16 %v1583, %v1579
  %v2368 = vpack.c.b16 %v1584, %v1580
  %v2369 = vpack.c.b16 %v1585, %v1581
  %v2370 = vpack.c.b16 %v1586, %v1582
  %v2371 = vpack.c.b16 %v1591, %v1587
  %v2372 = vpack.c.b16 %v1592, %v1588
  %v2373 = vpack.c.b16 %v1593, %v1589
  %v2374 = vpack.c.b16 %v1594, %v1590
  %v2375 = vpack.c.b16 %v1599, %v1595
  %v2376 = vpack.c.b16 %v1600, %v1596
  %v2377 = vpack.c.b16 %v1601, %v1597
  %v2378 = vpack.c.b16 %v1602, %v1598
  %v2379 = vpack.c.b16 %v1607, %v1603
  %v2380 = vpack.c.b16 %v1608, %v1604
  %v2381 = vpack.c.b16 %v1609, %v1605
  %v2382 = vpack.c.b16 %v1610, %v1606
  %v2383 = vpack.c.b16 %v1615, %v1611
  %v2384 = vpack.c.b16 %v1616, %v1612
  %v2385 = vpack.c.b16 %v1617, %v1613
  %v2386 = vpack.c.b16 %v1618, %v1614
  %v2387 = vpack.c.b16 %v1623, %v1619
  %v2388 = vpack.c.b16 %v1624, %v1620
  %v2389 = vpack.c.b16 %v1625, %v1621
  %v2390 = vpack.c.b16 %v1626, %v1622
  %v2391 = vpack.c.b16 %v1631, %v1627
  %v2392 = vpack.c.b16 %v1632, %v1628
  %v2393 = vpack.c.b16 %v1633, %v1629
  %v2394 = vpack.c.b16 %v1634, %v1630
  %v2395 = vpack.c.b16 %v1639, %v1635
  %v2396 = vpack.c.b16 %v1640, %v1636
  %v2397 = vpack.c.b16 %v1641, %v1637
  %v2398 = vpack.c.b16 %v1642, %v1638
  %v2399 = vpack.c.b16 %v1647, %v1643
  %v2400 = vpack.c.b16 %v1648, %v1644
  %v2401 = vpack.c.b16 %v1649, %v1645
  %v2402 = vpack.c.b16 %v1650, %v1646
  %v2403 = vpack.c.b16 %v1655, %v1651
  %v2404 = vpack.c.b16 %v1656, %v1652
  %v2405 = vpack.c.b16 %v1657, %v1653
  %v2406 = vpack.c.b16 %v1658, %v1654
  %v2407 = vpack.c.b16 %v1663, %v1659
  %v2408 = vpack.c.b16 %v1664, %v1660
  %v2409 = vpack.c.b16 %v1665, %v1661
  %v2410 = vpack.c.b16 %v1666, %v1662
  %v2411 = vpack.c.b16 %v1671, %v1667
  %v2412 = vpack.c.b16 %v1672, %v1668
  %v2413 = vpack.c.b16 %v1673, %v1669
  %v2414 = vpack.c.b16 %v1674, %v1670
  %v2415 = vpack.c.b16 %v1679, %v1675
  %v2416 = vpack.c.b16 %v1680, %v1676
  %v2417 = vpack.c.b16 %v1681, %v1677
  %v2418 = vpack.c.b16 %v1682, %v1678
  %v2419 = vpack.c.b16 %v1687, %v1683
  %v2420 = vpack.c.b16 %v1688, %v1684
  %v2421 = vpack.c.b16 %v1689, %v1685
  %v2422 = vpack.c.b16 %v1690, %v1686
  %v2423 = vpack.c.b16 %v1695, %v1691
  %v2424 = vpack.c.b16 %v1696, %v1692
  %v2425 = vpack.c.b16 %v1697, %v1693
  %v2426 = vpack.c.b16 %v1698, %v1694
  %v2427 = vpack.c.b16 %v1703, %v1699
  %v2428 = vpack.c.b16 %v1704, %v1700
  %v2429 = vpack.c.b16 %v1705, %v1701
  %v2430 = vpack.c.b16 %v1706, %v1702
  %v2431 = vpack.c.b16 %v1711, %v1707
  %v2432 = vpack.c.b16 %v1712, %v1708
  %v2433 = vpack.c.b16 %v1713, %v1709
  %v2434 = vpack.c.b16 %v1714, %v1710
  %v2435 = vpack.c.b16 %v1719, %v1715
  %v2436 = vpack.c.b16 %v1720, %v1716
  %v2437 = vpack.c.b16 %v1721, %v1717
  %v2438 = vpack.c.b16 %v1722, %v1718
  %v2439 = vpack.c.b16 %v1727, %v1723
  %v2440 = vpack.c.b16 %v1728, %v1724
  %v2441 = vpack.c.b16 %v1729, %v1725
  %v2442 = vpack.c.b16 %v1730, %v1726
  %v2443 = vpack.c.b16 %v1735, %v1731
  %v2444 = vpack.c.b16 %v1736, %v1732
  %v2445 = vpack.c.b16 %v1737, %v1733
  %v2446 = vpack.c.b16 %v1738, %v1734
  %v2447 = vpack.c.b16 %v1743, %v1739
  %v2448 = vpack.c.b16 %v1744, %v1740
  %v2449 = vpack.c.b16 %v1745, %v1741
  %v2450 = vpack.c.b16 %v1746, %v1742
  %v2451 = vpack.c.b16 %v1751, %v1747
  %v2452 = vpack.c.b16 %v1752, %v1748
  %v2453 = vpack.c.b16 %v1753, %v1749
  %v2454 = vpack.c.b16 %v1754, %v1750
  %v2455 = vpack.c.b16 %v1759, %v1755
  %v2456 = vpack.c.b16 %v1760, %v1756
  %v2457 = vpack.c.b16 %v1761, %v1757
  %v2458 = vpack.c.b16 %v1762, %v1758
  %v2459 = vpack.c.b16 %v1767, %v1763
  %v2460 = vpack.c.b16 %v1768, %v1764
  %v2461 = vpack.c.b16 %v1769, %v1765
  %v2462 = vpack.c.b16 %v1770, %v1766
  %v2463 = vpack.c.b16 %v1775, %v1771
  %v2464 = vpack.c.b16 %v1776, %v1772
  %v2465 = vpack.c.b16 %v1777, %v1773
  %v2466 = vpack.c.b16 %v1778, %v1774
  %v2467 = vpack.c.b16 %v1783, %v1779
  %v2468 = vpack.c.b16 %v1784, %v1780
  %v2469 = vpack.c.b16 %v1785, %v1781
  %v2470 = vpack.c.b16 %v1786, %v1782
  %v2471 = vpack.c.b16 %v1791, %v1787
  %v2472 = vpack.c.b16 %v1792, %v1788
  %v2473 = vpack.c.b16 %v1793, %v1789
  %v2474 = vpack.c.b16 %v1794, %v1790
  %v2475 = vpack.c.b16 %v1799, %v1795
  %v2476 = vpack.c.b16 %v1800, %v1796
  %v2477 = vpack.c.b16 %v1801, %v1797
  %v2478 = vpack.c.b16 %v1802, %v1798
  %v2479 = vpack.c.b16 %v1807, %v1803
  %v2480 = vpack.c.b16 %v1808, %v1804
  %v2481 = vpack.c.b16 %v1809, %v1805
  %v2482 = vpack.c.b16 %v1810, %v1806
  %v2483 = vpack.c.b16 %v1815, %v1811
  %v2484 = vpack.c.b16 %v1816, %v1812
  %v2485 = vpack.c.b16 %v1817, %v1813
  %v2486 = vpack.c.b16 %v1818, %v1814
  %v2487 = vpack.c.b16 %v1823, %v1819
  %v2488 = vpack.c.b16 %v1824, %v1820
  %v2489 = vpack.c.b16 %v1825, %v1821
  %v2490 = vpack.c.b16 %v1826, %v1822
  %v2491 = vpack.c.b16 %v1831, %v1827
  %v2492 = vpack.c.b16 %v1832, %v1828
  %v2493 = vpack.c.b16 %v1833, %v1829
  %v2494 = vpack.c.b16 %v1834, %v1830
  %v2495 = vpack.c.b16 %v1839, %v1835
  %v2496 = vpack.c.b16 %v1840, %v1836
  %v2497 = vpack.c.b16 %v1841, %v1837
  %v2498 = vpack.c.b16 %v1842, %v1838
  %v2499 = vpack.c.b16 %v1847, %v1843
  %v2500 = vpack.c.b16 %v1848, %v1844
  %v2501 = vpack.c.b16 %v1849, %v1845
  %v2502 = vpack.c.b16 %v1850, %v1846
  %v2503 = vpack.c.b16 %v1855, %v1851
  %v2504 = vpack.c.b16 %v1856, %v1852
  %v2505 = vpack.c.b16 %v1857, %v1853
  %v2506 = vpack.c.b16 %v1858, %v1854
  %v2507 = vpack.c.b16 %v1863, %v1859
  %v2508 = vpack.c.b16 %v1864, %v1860
  %v2509 = vpack.c.b16 %v1865, %v1861
  %v2510 = vpack.c.b16 %v1866, %v1862
  %v2511 = vpack.c.b16 %v1871, %v1867
  %v2512 = vpack.c.b16 %v1872, %v1868
  %v2513 = vpack.c.b16 %v1873, %v1869
  %v2514 = vpack.c.b16 %v1874, %v1870
  %v2515 = vpack.c.b16 %v1879, %v1875
  %v2516 = vpack.c.b16 %v1880, %v1876
  %v2517 = vpack.c.b16 %v1881, %v1877
  %v2518 = vpack.c.b16 %v1882, %v1878
  %v2519 = vpack.c.b16 %v1887, %v1883
  %v2520 = vpack.c.b16 %v1888, %v1884
  %v2521 = vpack.c.b16 %v1889, %v1885
  %v2522 = vpack.c.b16 %v1890, %v1886
  %v2523 = vpack.c.b16 %v1895, %v1891
  %v2524 = vpack.c.b16 %v1896, %v1892
  %v2525 = vpack.c.b16 %v1897, %v1893
  %v2526 = vpack.c.b16 %v1898, %v1894
  %v2527 = vpack.c.b16 %v1903, %v1899
  %v2528 = vpack.c.b16 %v1904, %v1900
  %v2529 = vpack.c.b16 %v1905, %v1901
  %v2530 = vpack.c.b16 %v1906, %v1902
  %v2531 = vpack.c.b16 %v1911, %v1907
  %v2532 = vpack.c.b16 %v1912, %v1908
  %v2533 = vpack.c.b16 %v1913, %v1909
  %v2534 = vpack.c.b16 %v1914, %v1910
  %v2535 = vpack.c.b16 %v1919, %v1915
  %v2536 = vpack.c.b16 %v1920, %v1916
  %v2537 = vpack.c.b16 %v1921, %v1917
  %v2538 = vpack.c.b16 %v1922, %v1918
  %v2539 = vpack.c.b16 %v1927, %v1923
  %v2540 = vpack.c.b16 %v1928, %v1924
  %v2541 = vpack.c.b16 %v1929, %v1925
  %v2542 = vpack.c.b16 %v1930, %v1926
  %v2543 = vpack.c.b16 %v1935, %v1931
  %v2544 = vpack.c.b16 %v1936, %v1932
  %v2545 = vpack.c.b16 %v1937, %v1933
  %v2546 = vpack.c.b16 %v1938, %v1934
  %v2547 = vpack.c.b16 %v1943, %v1939
  %v2548 = vpack.c.b16 %v1944, %v1940
  %v2549 = vpack.c.b16 %v1945, %v1941
  %v2550 = vpack.c.b16 %v1946, %v1942
  %v2551 = vpack.c.b16 %v1951, %v1947
  %v2552 = vpack.c.b16 %v1952, %v1948
  %v2553 = vpack.c.b16 %v1953, %v1949
  %v2554 = vpack.c.b16 %v1954, %v1950
  %v2555 = vpack.c.b16 %v1959, %v1955
  %v2556 = vpack.c.b16 %v1960, %v1956
  %v2557 = vpack.c.b16 %v1961, %v1957
  %v2558 = vpack.c.b16 %v1962, %v1958
  %v2559 = vpack.c.b16 %v1967, %v1963
  %v2560 = vpack.c.b16 %v1968, %v1964
  %v2561 = vpack.c.b16 %v1969, %v1965
  %v2562 = vpack.c.b16 %v1970, %v1966
  %v2563 = vpack.c.b16 %v1975, %v1971
  %v2564 = vpack.c.b16 %v1976, %v1972
  %v2565 = vpack.c.b16 %v1977, %v1973
  %v2566 = vpack.c.b16 %v1978, %v1974
  %v2567 = vpack.c.b16 %v1983, %v1979
  %v2568 = vpack.c.b16 %v1984, %v1980
  %v2569 = vpack.c.b16 %v1985, %v1981
  %v2570 = vpack.c.b16 %v1986, %v1982
  %v2571 = vpack.c.b16 %v1991, %v1987
  %v2572 = vpack.c.b16 %v1992, %v1988
  %v2573 = vpack.c.b16 %v1993, %v1989
  %v2574 = vpack.c.b16 %v1994, %v1990
  %v2575 = vpack.c.b16 %v1999, %v1995
  %v2576 = vpack.c.b16 %v2000, %v1996
  %v2577 = vpack.c.b16 %v2001, %v1997
  %v2578 = vpack.c.b16 %v2002, %v1998
  %v2579 = vpack.c.b16 %v2007, %v2003
  %v2580 = vpack.c.b16 %v2008, %v2004
  %v2581 = vpack.c.b16 %v2009, %v2005
  %v2582 = vpack.c.b16 %v2010, %v2006
  %v2583 = vpack.c.b16 %v2015, %v2011
  %v2584 = vpack.c.b16 %v2016, %v2012
  %v2585 = vpack.c.b16 %v2017, %v2013
  %v2586 = vpack.c.b16 %v2018, %v2014
  %v2587 = vpack.c.b16 %v2023, %v2019
  %v2588 = vpack.c.b16 %v2024, %v2020
  %v2589 = vpack.c.b16 %v2025, %v2021
  %v2590 = vpack.c.b16 %v2026, %v2022
  %v2591 = vpack.c.b16 %v2031, %v2027
  %v2592 = vpack.c.b16 %v2032, %v2028
  %v2593 = vpack.c.b16 %v2033, %v2029
  %v2594 = vpack.c.b16 %v2034, %v2030
  %v2595 = vpack.c.b16 %v2039, %v2035
  %v2596 = vpack.c.b16 %v2040, %v2036
  %v2597 = vpack.c.b16 %v2041, %v2037
  %v2598 = vpack.c.b16 %v2042, %v2038
  %v2599 = vpack.c.b16 %v2047, %v2043
  %v2600 = vpack.c.b16 %v2048, %v2044
  %v2601 = vpack.c.b16 %v2049, %v2045
  %v2602 = vpack.c.b16 %v2050, %v2046
  %v2603 = vpack.c.b16 %v2055, %v2051
  %v2604 = vpack.c.b16 %v2056, %v2052
  %v2605 = vpack.c.b16 %v2057, %v2053
  %v2606 = vpack.c.b16 %v2058, %v2054
  %v2607 = vpack.c.b16 %v2063, %v2059
  %v2608 = vpack.c.b16 %v2064, %v2060
  %v2609 = vpack.c.b16 %v2065, %v2061
  %v2610 = vpack.c.b16 %v2066, %v2062
  %v2611 = vpack.c.b16 %v2071, %v2067
  %v2612 = vpack.c.b16 %v2072, %v2068
  %v2613 = vpack.c.b16 %v2073, %v2069
  %v2614 = vpack.c.b16 %v2074, %v2070
  %v2615 = vpack.c.b16 %v2079, %v2075
  %v2616 = vpack.c.b16 %v2080, %v2076
  %v2617 = vpack.c.b16 %v2081, %v2077
  %v2618 = vpack.c.b16 %v2082, %v2078
  %v2619 = vpack.c.b16 %v2087, %v2083
  %v2620 = vpack.c.b16 %v2088, %v2084
  %v2621 = vpack.c.b16 %v2089, %v2085
  %v2622 = vpack.c.b16 %v2090, %v2086
  %v2623 = vpack.c.b16 %v2095, %v2091
  %v2624 = vpack.c.b16 %v2096, %v2092
  %v2625 = vpack.c.b16 %v2097, %v2093
  %v2626 = vpack.c.b16 %v2098, %v2094
  %v2627 = vpack.c.b16 %v2103, %v2099
  %v2628 = vpack.c.b16 %v2104, %v2100
  %v2629 = vpack.c.b16 %v2105, %v2101
  %v2630 = vpack.c.b16 %v2106, %v2102
  %v2631 = vpack.c.b16 %v2111, %v2107
  %v2632 = vpack.c.b16 %v2112, %v2108
  %v2633 = vpack.c.b16 %v2113, %v2109
  %v2634 = vpack.c.b16 %v2114, %v2110
  %v2635 = vpack.c.b16 %v2119, %v2115
  %v2636 = vpack.c.b16 %v2120, %v2116
  %v2637 = vpack.c.b16 %v2121, %v2117
  %v2638 = vpack.c.b16 %v2122, %v2118
  %v2639 = vpack.c.b16 %v2127, %v2123
  %v2640 = vpack.c.b16 %v2128, %v2124
  %v2641 = vpack.c.b16 %v2129, %v2125
  %v2642 = vpack.c.b16 %v2130, %v2126
  %3155 = vmatprep.subr.bf16.mxu0 %v2132
  %3156 = vmatpush1.bf16.msra.mxu0 %v2131
  %3157 = vmatprep.subr.bf16.mxu0 %v2136
  %3158 = vmatpush1.bf16.msra.mxu0 %v2135
  %3159 = vmatprep.subr.bf16.mxu0 %v2140
  %3160 = vmatpush1.bf16.msra.mxu0 %v2139
  %3161 = vmatprep.subr.bf16.mxu0 %v2144
  %3162 = vmatpush1.bf16.msra.mxu0 %v2143
  %3163 = vmatprep.subr.bf16.mxu0 %v2148
  %3164 = vmatpush1.bf16.msra.mxu0 %v2147
  %3165 = vmatprep.subr.bf16.mxu0 %v2152
  %3166 = vmatpush1.bf16.msra.mxu0 %v2151
  %3167 = vmatprep.subr.bf16.mxu0 %v2156
  %3168 = vmatpush1.bf16.msra.mxu0 %v2155
  %3169 = vmatprep.subr.bf16.mxu0 %v2160
  %3170 = vmatpush1.bf16.msra.mxu0 %v2159
  %3171 = vmatprep.subr.bf16.mxu0 %v2164
  %3172 = vmatpush1.bf16.msra.mxu0 %v2163
  %3173 = vmatprep.subr.bf16.mxu0 %v2168
  %3174 = vmatpush1.bf16.msra.mxu0 %v2167
  %3175 = vmatprep.subr.bf16.mxu0 %v2172
  %3176 = vmatpush1.bf16.msra.mxu0 %v2171
  %3177 = vmatprep.subr.bf16.mxu0 %v2176
  %3178 = vmatpush1.bf16.msra.mxu0 %v2175
  %3179 = vmatprep.subr.bf16.mxu0 %v2180
  %3180 = vmatpush1.bf16.msra.mxu0 %v2179
  %3181 = vmatprep.subr.bf16.mxu0 %v2184
  %3182 = vmatpush1.bf16.msra.mxu0 %v2183
  %3183 = vmatprep.subr.bf16.mxu0 %v2188
  %3184 = vmatpush1.bf16.msra.mxu0 %v2187
  %3185 = vmatprep.subr.bf16.mxu0 %v2192
  %3186 = vmatpush1.bf16.msra.mxu0 %v2191
  %3187 = vmatprep.mubr.bf16.mxu0 %v68
  %3188 = vmatmul.mubr.bf16.gmra.mrb[0].mxu0 %v67
  %v3189 = vpop.f32.mrb[0].mxu0
  %v3190 = vadd.f32 0.0, %v3189
  %v3191 = vpop.f32.mrb[0].mxu0
  %v3192 = vadd.f32 0.0, %v3191
  %v3193 = vpop.f32.mrb[0].mxu0
  %v3194 = vpop.f32.mrb[0].mxu0
  %3195 = vdwg.mxu0
  %3196 = vmatprep.subr.bf16.mxu0 %v2196
  %3197 = vmatpush1.bf16.msra.mxu0 %v2195
  %3198 = vmatprep.subr.bf16.mxu0 %v2200
  %3199 = vmatpush1.bf16.msra.mxu0 %v2199
  %3200 = vmatprep.subr.bf16.mxu0 %v2204
  %3201 = vmatpush1.bf16.msra.mxu0 %v2203
  %3202 = vmatprep.subr.bf16.mxu0 %v2208
  %3203 = vmatpush1.bf16.msra.mxu0 %v2207
  %3204 = vmatprep.subr.bf16.mxu0 %v2212
  %3205 = vmatpush1.bf16.msra.mxu0 %v2211
  %3206 = vmatprep.subr.bf16.mxu0 %v2216
  %3207 = vmatpush1.bf16.msra.mxu0 %v2215
  %3208 = vmatprep.subr.bf16.mxu0 %v2220
  %3209 = vmatpush1.bf16.msra.mxu0 %v2219
  %3210 = vmatprep.subr.bf16.mxu0 %v2224
  %3211 = vmatpush1.bf16.msra.mxu0 %v2223
  %3212 = vmatprep.subr.bf16.mxu0 %v2228
  %3213 = vmatpush1.bf16.msra.mxu0 %v2227
  %3214 = vmatprep.subr.bf16.mxu0 %v2232
  %3215 = vmatpush1.bf16.msra.mxu0 %v2231
  %3216 = vmatprep.subr.bf16.mxu0 %v2236
  %3217 = vmatpush1.bf16.msra.mxu0 %v2235
  %3218 = vmatprep.subr.bf16.mxu0 %v2240
  %3219 = vmatpush1.bf16.msra.mxu0 %v2239
  %3220 = vmatprep.subr.bf16.mxu0 %v2244
  %3221 = vmatpush1.bf16.msra.mxu0 %v2243
  %3222 = vmatprep.subr.bf16.mxu0 %v2248
  %3223 = vmatpush1.bf16.msra.mxu0 %v2247
  %3224 = vmatprep.subr.bf16.mxu0 %v2252
  %3225 = vmatpush1.bf16.msra.mxu0 %v2251
  %3226 = vmatprep.subr.bf16.mxu0 %v2256
  %3227 = vmatpush1.bf16.msra.mxu0 %v2255
  %3228 = vmatprep.mubr.bf16.mxu0 %v70
  %3229 = vmatmul.mubr.bf16.gmra.mrb[0].mxu0 %v69
  %v3230 = vpop.f32.mrb[0].mxu0
  %v3231 = vadd.f32 %v3190, %v3230
  %v3232 = vpop.f32.mrb[0].mxu0
  %v3233 = vadd.f32 %v3192, %v3232
  %v3234 = vpop.f32.mrb[0].mxu0
  %v3235 = vpop.f32.mrb[0].mxu0
  %3236 = vdwg.mxu0
  %3237 = vmatprep.subr.bf16.mxu0 %v2260
  %3238 = vmatpush1.bf16.msra.mxu0 %v2259
  %3239 = vmatprep.subr.bf16.mxu0 %v2264
  %3240 = vmatpush1.bf16.msra.mxu0 %v2263
  %3241 = vmatprep.subr.bf16.mxu0 %v2268
  %3242 = vmatpush1.bf16.msra.mxu0 %v2267
  %3243 = vmatprep.subr.bf16.mxu0 %v2272
  %3244 = vmatpush1.bf16.msra.mxu0 %v2271
  %3245 = vmatprep.subr.bf16.mxu0 %v2276
  %3246 = vmatpush1.bf16.msra.mxu0 %v2275
  %3247 = vmatprep.subr.bf16.mxu0 %v2280
  %3248 = vmatpush1.bf16.msra.mxu0 %v2279
  %3249 = vmatprep.subr.bf16.mxu0 %v2284
  %3250 = vmatpush1.bf16.msra.mxu0 %v2283
  %3251 = vmatprep.subr.bf16.mxu0 %v2288
  %3252 = vmatpush1.bf16.msra.mxu0 %v2287
  %3253 = vmatprep.subr.bf16.mxu0 %v2292
  %3254 = vmatpush1.bf16.msra.mxu0 %v2291
  %3255 = vmatprep.subr.bf16.mxu0 %v2296
  %3256 = vmatpush1.bf16.msra.mxu0 %v2295
  %3257 = vmatprep.subr.bf16.mxu0 %v2300
  %3258 = vmatpush1.bf16.msra.mxu0 %v2299
  %3259 = vmatprep.subr.bf16.mxu0 %v2304
  %3260 = vmatpush1.bf16.msra.mxu0 %v2303
  %3261 = vmatprep.subr.bf16.mxu0 %v2308
  %3262 = vmatpush1.bf16.msra.mxu0 %v2307
  %3263 = vmatprep.subr.bf16.mxu0 %v2312
  %3264 = vmatpush1.bf16.msra.mxu0 %v2311
  %3265 = vmatprep.subr.bf16.mxu0 %v2316
  %3266 = vmatpush1.bf16.msra.mxu0 %v2315
  %3267 = vmatprep.subr.bf16.mxu0 %v2320
  %3268 = vmatpush1.bf16.msra.mxu0 %v2319
  %3269 = vmatprep.mubr.bf16.mxu0 %v72
  %3270 = vmatmul.mubr.bf16.gmra.mrb[0].mxu0 %v71
  %v3271 = vpop.f32.mrb[0].mxu0
  %v3272 = vadd.f32 %v3231, %v3271
  %v3273 = vpop.f32.mrb[0].mxu0
  %v3274 = vadd.f32 %v3233, %v3273
  %v3275 = vpop.f32.mrb[0].mxu0
  %v3276 = vpop.f32.mrb[0].mxu0
  %3277 = vdwg.mxu0
  %3278 = vmatprep.subr.bf16.mxu0 %v2324
  %3279 = vmatpush1.bf16.msra.mxu0 %v2323
  %3280 = vmatprep.subr.bf16.mxu0 %v2328
  %3281 = vmatpush1.bf16.msra.mxu0 %v2327
  %3282 = vmatprep.subr.bf16.mxu0 %v2332
  %3283 = vmatpush1.bf16.msra.mxu0 %v2331
  %3284 = vmatprep.subr.bf16.mxu0 %v2336
  %3285 = vmatpush1.bf16.msra.mxu0 %v2335
  %3286 = vmatprep.subr.bf16.mxu0 %v2340
  %3287 = vmatpush1.bf16.msra.mxu0 %v2339
  %3288 = vmatprep.subr.bf16.mxu0 %v2344
  %3289 = vmatpush1.bf16.msra.mxu0 %v2343
  %3290 = vmatprep.subr.bf16.mxu0 %v2348
  %3291 = vmatpush1.bf16.msra.mxu0 %v2347
  %3292 = vmatprep.subr.bf16.mxu0 %v2352
  %3293 = vmatpush1.bf16.msra.mxu0 %v2351
  %3294 = vmatprep.subr.bf16.mxu0 %v2356
  %3295 = vmatpush1.bf16.msra.mxu0 %v2355
  %3296 = vmatprep.subr.bf16.mxu0 %v2360
  %3297 = vmatpush1.bf16.msra.mxu0 %v2359
  %3298 = vmatprep.subr.bf16.mxu0 %v2364
  %3299 = vmatpush1.bf16.msra.mxu0 %v2363
  %3300 = vmatprep.subr.bf16.mxu0 %v2368
  %3301 = vmatpush1.bf16.msra.mxu0 %v2367
  %3302 = vmatprep.subr.bf16.mxu0 %v2372
  %3303 = vmatpush1.bf16.msra.mxu0 %v2371
  %3304 = vmatprep.subr.bf16.mxu0 %v2376
  %3305 = vmatpush1.bf16.msra.mxu0 %v2375
  %3306 = vmatprep.subr.bf16.mxu0 %v2380
  %3307 = vmatpush1.bf16.msra.mxu0 %v2379
  %3308 = vmatprep.subr.bf16.mxu0 %v2384
  %3309 = vmatpush1.bf16.msra.mxu0 %v2383
  %3310 = vmatprep.mubr.bf16.mxu0 %v74
  %3311 = vmatmul.mubr.bf16.gmra.mrb[0].mxu0 %v73
  %v3312 = vpop.f32.mrb[0].mxu0
  %v3313 = vadd.f32 %v3272, %v3312
  %v3314 = vpop.f32.mrb[0].mxu0
  %v3315 = vadd.f32 %v3274, %v3314
  %v3316 = vpop.f32.mrb[0].mxu0
  %v3317 = vpop.f32.mrb[0].mxu0
  %3318 = vdwg.mxu0
  %3319 = vmatprep.subr.bf16.mxu0 %v2388
  %3320 = vmatpush1.bf16.msra.mxu0 %v2387
  %3321 = vmatprep.subr.bf16.mxu0 %v2392
  %3322 = vmatpush1.bf16.msra.mxu0 %v2391
  %3323 = vmatprep.subr.bf16.mxu0 %v2396
  %3324 = vmatpush1.bf16.msra.mxu0 %v2395
  %3325 = vmatprep.subr.bf16.mxu0 %v2400
  %3326 = vmatpush1.bf16.msra.mxu0 %v2399
  %3327 = vmatprep.subr.bf16.mxu0 %v2404
  %3328 = vmatpush1.bf16.msra.mxu0 %v2403
  %3329 = vmatprep.subr.bf16.mxu0 %v2408
  %3330 = vmatpush1.bf16.msra.mxu0 %v2407
  %3331 = vmatprep.subr.bf16.mxu0 %v2412
  %3332 = vmatpush1.bf16.msra.mxu0 %v2411
  %3333 = vmatprep.subr.bf16.mxu0 %v2416
  %3334 = vmatpush1.bf16.msra.mxu0 %v2415
  %3335 = vmatprep.subr.bf16.mxu0 %v2420
  %3336 = vmatpush1.bf16.msra.mxu0 %v2419
  %3337 = vmatprep.subr.bf16.mxu0 %v2424
  %3338 = vmatpush1.bf16.msra.mxu0 %v2423
  %3339 = vmatprep.subr.bf16.mxu0 %v2428
  %3340 = vmatpush1.bf16.msra.mxu0 %v2427
  %3341 = vmatprep.subr.bf16.mxu0 %v2432
  %3342 = vmatpush1.bf16.msra.mxu0 %v2431
  %3343 = vmatprep.subr.bf16.mxu0 %v2436
  %3344 = vmatpush1.bf16.msra.mxu0 %v2435
  %3345 = vmatprep.subr.bf16.mxu0 %v2440
  %3346 = vmatpush1.bf16.msra.mxu0 %v2439
  %3347 = vmatprep.subr.bf16.mxu0 %v2444
  %3348 = vmatpush1.bf16.msra.mxu0 %v2443
  %3349 = vmatprep.subr.bf16.mxu0 %v2448
  %3350 = vmatpush1.bf16.msra.mxu0 %v2447
  %3351 = vmatprep.mubr.bf16.mxu0 %v76
  %3352 = vmatmul.mubr.bf16.gmra.mrb[0].mxu0 %v75
  %v3353 = vpop.f32.mrb[0].mxu0
  %v3354 = vadd.f32 %v3313, %v3353
  %v3355 = vpop.f32.mrb[0].mxu0
  %v3356 = vadd.f32 %v3315, %v3355
  %v3357 = vpop.f32.mrb[0].mxu0
  %v3358 = vpop.f32.mrb[0].mxu0
  %3359 = vdwg.mxu0
  %3360 = vmatprep.subr.bf16.mxu0 %v2452
  %3361 = vmatpush1.bf16.msra.mxu0 %v2451
  %3362 = vmatprep.subr.bf16.mxu0 %v2456
  %3363 = vmatpush1.bf16.msra.mxu0 %v2455
  %3364 = vmatprep.subr.bf16.mxu0 %v2460
  %3365 = vmatpush1.bf16.msra.mxu0 %v2459
  %3366 = vmatprep.subr.bf16.mxu0 %v2464
  %3367 = vmatpush1.bf16.msra.mxu0 %v2463
  %3368 = vmatprep.subr.bf16.mxu0 %v2468
  %3369 = vmatpush1.bf16.msra.mxu0 %v2467
  %3370 = vmatprep.subr.bf16.mxu0 %v2472
  %3371 = vmatpush1.bf16.msra.mxu0 %v2471
  %3372 = vmatprep.subr.bf16.mxu0 %v2476
  %3373 = vmatpush1.bf16.msra.mxu0 %v2475
  %3374 = vmatprep.subr.bf16.mxu0 %v2480
  %3375 = vmatpush1.bf16.msra.mxu0 %v2479
  %3376 = vmatprep.subr.bf16.mxu0 %v2484
  %3377 = vmatpush1.bf16.msra.mxu0 %v2483
  %3378 = vmatprep.subr.bf16.mxu0 %v2488
  %3379 = vmatpush1.bf16.msra.mxu0 %v2487
  %3380 = vmatprep.subr.bf16.mxu0 %v2492
  %3381 = vmatpush1.bf16.msra.mxu0 %v2491
  %3382 = vmatprep.subr.bf16.mxu0 %v2496
  %3383 = vmatpush1.bf16.msra.mxu0 %v2495
  %3384 = vmatprep.subr.bf16.mxu0 %v2500
  %3385 = vmatpush1.bf16.msra.mxu0 %v2499
  %3386 = vmatprep.subr.bf16.mxu0 %v2504
  %3387 = vmatpush1.bf16.msra.mxu0 %v2503
  %3388 = vmatprep.subr.bf16.mxu0 %v2508
  %3389 = vmatpush1.bf16.msra.mxu0 %v2507
  %3390 = vmatprep.subr.bf16.mxu0 %v2512
  %3391 = vmatpush1.bf16.msra.mxu0 %v2511
  %3392 = vmatprep.mubr.bf16.mxu0 %v78
  %3393 = vmatmul.mubr.bf16.gmra.mrb[0].mxu0 %v77
  %v3394 = vpop.f32.mrb[0].mxu0
  %v3395 = vadd.f32 %v3354, %v3394
  %v3396 = vpop.f32.mrb[0].mxu0
  %v3397 = vadd.f32 %v3356, %v3396
  %v3398 = vpop.f32.mrb[0].mxu0
  %v3399 = vpop.f32.mrb[0].mxu0
  %3400 = vdwg.mxu0
  %3401 = vmatprep.subr.bf16.mxu0 %v2516
  %3402 = vmatpush1.bf16.msra.mxu0 %v2515
  %3403 = vmatprep.subr.bf16.mxu0 %v2520
  %3404 = vmatpush1.bf16.msra.mxu0 %v2519
  %3405 = vmatprep.subr.bf16.mxu0 %v2524
  %3406 = vmatpush1.bf16.msra.mxu0 %v2523
  %3407 = vmatprep.subr.bf16.mxu0 %v2528
  %3408 = vmatpush1.bf16.msra.mxu0 %v2527
  %3409 = vmatprep.subr.bf16.mxu0 %v2532
  %3410 = vmatpush1.bf16.msra.mxu0 %v2531
  %3411 = vmatprep.subr.bf16.mxu0 %v2536
  %3412 = vmatpush1.bf16.msra.mxu0 %v2535
  %3413 = vmatprep.subr.bf16.mxu0 %v2540
  %3414 = vmatpush1.bf16.msra.mxu0 %v2539
  %3415 = vmatprep.subr.bf16.mxu0 %v2544
  %3416 = vmatpush1.bf16.msra.mxu0 %v2543
  %3417 = vmatprep.subr.bf16.mxu0 %v2548
  %3418 = vmatpush1.bf16.msra.mxu0 %v2547
  %3419 = vmatprep.subr.bf16.mxu0 %v2552
  %3420 = vmatpush1.bf16.msra.mxu0 %v2551
  %3421 = vmatprep.subr.bf16.mxu0 %v2556
  %3422 = vmatpush1.bf16.msra.mxu0 %v2555
  %3423 = vmatprep.subr.bf16.mxu0 %v2560
  %3424 = vmatpush1.bf16.msra.mxu0 %v2559
  %3425 = vmatprep.subr.bf16.mxu0 %v2564
  %3426 = vmatpush1.bf16.msra.mxu0 %v2563
  %3427 = vmatprep.subr.bf16.mxu0 %v2568
  %3428 = vmatpush1.bf16.msra.mxu0 %v2567
  %3429 = vmatprep.subr.bf16.mxu0 %v2572
  %3430 = vmatpush1.bf16.msra.mxu0 %v2571
  %3431 = vmatprep.subr.bf16.mxu0 %v2576
  %3432 = vmatpush1.bf16.msra.mxu0 %v2575
  %3433 = vmatprep.mubr.bf16.mxu0 %v80
  %3434 = vmatmul.mubr.bf16.gmra.mrb[0].mxu0 %v79
  %v3435 = vpop.f32.mrb[0].mxu0
  %v3436 = vadd.f32 %v3395, %v3435
  %v3437 = vpop.f32.mrb[0].mxu0
  %v3438 = vadd.f32 %v3397, %v3437
  %v3439 = vpop.f32.mrb[0].mxu0
  %v3440 = vpop.f32.mrb[0].mxu0
  %3441 = vdwg.mxu0
  %3442 = vmatprep.subr.bf16.mxu0 %v2580
  %3443 = vmatpush1.bf16.msra.mxu0 %v2579
  %3444 = vmatprep.subr.bf16.mxu0 %v2584
  %3445 = vmatpush1.bf16.msra.mxu0 %v2583
  %3446 = vmatprep.subr.bf16.mxu0 %v2588
  %3447 = vmatpush1.bf16.msra.mxu0 %v2587
  %3448 = vmatprep.subr.bf16.mxu0 %v2592
  %3449 = vmatpush1.bf16.msra.mxu0 %v2591
  %3450 = vmatprep.subr.bf16.mxu0 %v2596
  %3451 = vmatpush1.bf16.msra.mxu0 %v2595
  %3452 = vmatprep.subr.bf16.mxu0 %v2600
  %3453 = vmatpush1.bf16.msra.mxu0 %v2599
  %3454 = vmatprep.subr.bf16.mxu0 %v2604
  %3455 = vmatpush1.bf16.msra.mxu0 %v2603
  %3456 = vmatprep.subr.bf16.mxu0 %v2608
  %3457 = vmatpush1.bf16.msra.mxu0 %v2607
  %3458 = vmatprep.subr.bf16.mxu0 %v2612
  %3459 = vmatpush1.bf16.msra.mxu0 %v2611
  %3460 = vmatprep.subr.bf16.mxu0 %v2616
  %3461 = vmatpush1.bf16.msra.mxu0 %v2615
  %3462 = vmatprep.subr.bf16.mxu0 %v2620
  %3463 = vmatpush1.bf16.msra.mxu0 %v2619
  %3464 = vmatprep.subr.bf16.mxu0 %v2624
  %3465 = vmatpush1.bf16.msra.mxu0 %v2623
  %3466 = vmatprep.subr.bf16.mxu0 %v2628
  %3467 = vmatpush1.bf16.msra.mxu0 %v2627
  %3468 = vmatprep.subr.bf16.mxu0 %v2632
  %3469 = vmatpush1.bf16.msra.mxu0 %v2631
  %3470 = vmatprep.subr.bf16.mxu0 %v2636
  %3471 = vmatpush1.bf16.msra.mxu0 %v2635
  %3472 = vmatprep.subr.bf16.mxu0 %v2640
  %3473 = vmatpush1.bf16.msra.mxu0 %v2639
  %3474 = vmatprep.mubr.bf16.mxu0 %v82
  %3475 = vmatmul.mubr.bf16.gmra.mrb[0].mxu0 %v81
  %v3476 = vpop.f32.mrb[0].mxu0
  %v3477 = vadd.f32 %v3436, %v3476
  %v3478 = vpop.f32.mrb[0].mxu0
  %v3479 = vadd.f32 %v3438, %v3478
  %v3480 = vpop.f32.mrb[0].mxu0
  %v3481 = vpop.f32.mrb[0].mxu0
  %3482 = vdwg.mxu0
  %3483 = vmatprep.subr.bf16.mxu0 %v2134
  %3484 = vmatpush1.bf16.msra.mxu0 %v2133
  %3485 = vmatprep.subr.bf16.mxu0 %v2138
  %3486 = vmatpush1.bf16.msra.mxu0 %v2137
  %3487 = vmatprep.subr.bf16.mxu0 %v2142
  %3488 = vmatpush1.bf16.msra.mxu0 %v2141
  %3489 = vmatprep.subr.bf16.mxu0 %v2146
  %3490 = vmatpush1.bf16.msra.mxu0 %v2145
  %3491 = vmatprep.subr.bf16.mxu0 %v2150
  %3492 = vmatpush1.bf16.msra.mxu0 %v2149
  %3493 = vmatprep.subr.bf16.mxu0 %v2154
  %3494 = vmatpush1.bf16.msra.mxu0 %v2153
  %3495 = vmatprep.subr.bf16.mxu0 %v2158
  %3496 = vmatpush1.bf16.msra.mxu0 %v2157
  %3497 = vmatprep.subr.bf16.mxu0 %v2162
  %3498 = vmatpush1.bf16.msra.mxu0 %v2161
  %3499 = vmatprep.subr.bf16.mxu0 %v2166
  %3500 = vmatpush1.bf16.msra.mxu0 %v2165
  %3501 = vmatprep.subr.bf16.mxu0 %v2170
  %3502 = vmatpush1.bf16.msra.mxu0 %v2169
  %3503 = vmatprep.subr.bf16.mxu0 %v2174
  %3504 = vmatpush1.bf16.msra.mxu0 %v2173
  %3505 = vmatprep.subr.bf16.mxu0 %v2178
  %3506 = vmatpush1.bf16.msra.mxu0 %v2177
  %3507 = vmatprep.subr.bf16.mxu0 %v2182
  %3508 = vmatpush1.bf16.msra.mxu0 %v2181
  %3509 = vmatprep.subr.bf16.mxu0 %v2186
  %3510 = vmatpush1.bf16.msra.mxu0 %v2185
  %3511 = vmatprep.subr.bf16.mxu0 %v2190
  %3512 = vmatpush1.bf16.msra.mxu0 %v2189
  %3513 = vmatprep.subr.bf16.mxu0 %v2194
  %3514 = vmatpush1.bf16.msra.mxu0 %v2193
  %3515 = vmatprep.mubr.bf16.mxu0 %v68
  %3516 = vmatmul.mubr.bf16.gmra.mrb[0].mxu0 %v67
  %v3517 = vpop.f32.mrb[0].mxu0
  %v3518 = vadd.f32 0.0, %v3517
  %v3519 = vpop.f32.mrb[0].mxu0
  %v3520 = vadd.f32 0.0, %v3519
  %v3521 = vpop.f32.mrb[0].mxu0
  %v3522 = vpop.f32.mrb[0].mxu0
  %3523 = vdwg.mxu0
  %3524 = vmatprep.subr.bf16.mxu0 %v2198
  %3525 = vmatpush1.bf16.msra.mxu0 %v2197
  %3526 = vmatprep.subr.bf16.mxu0 %v2202
  %3527 = vmatpush1.bf16.msra.mxu0 %v2201
  %3528 = vmatprep.subr.bf16.mxu0 %v2206
  %3529 = vmatpush1.bf16.msra.mxu0 %v2205
  %3530 = vmatprep.subr.bf16.mxu0 %v2210
  %3531 = vmatpush1.bf16.msra.mxu0 %v2209
  %3532 = vmatprep.subr.bf16.mxu0 %v2214
  %3533 = vmatpush1.bf16.msra.mxu0 %v2213
  %3534 = vmatprep.subr.bf16.mxu0 %v2218
  %3535 = vmatpush1.bf16.msra.mxu0 %v2217
  %3536 = vmatprep.subr.bf16.mxu0 %v2222
  %3537 = vmatpush1.bf16.msra.mxu0 %v2221
  %3538 = vmatprep.subr.bf16.mxu0 %v2226
  %3539 = vmatpush1.bf16.msra.mxu0 %v2225
  %3540 = vmatprep.subr.bf16.mxu0 %v2230
  %3541 = vmatpush1.bf16.msra.mxu0 %v2229
  %3542 = vmatprep.subr.bf16.mxu0 %v2234
  %3543 = vmatpush1.bf16.msra.mxu0 %v2233
  %3544 = vmatprep.subr.bf16.mxu0 %v2238
  %3545 = vmatpush1.bf16.msra.mxu0 %v2237
  %3546 = vmatprep.subr.bf16.mxu0 %v2242
  %3547 = vmatpush1.bf16.msra.mxu0 %v2241
  %3548 = vmatprep.subr.bf16.mxu0 %v2246
  %3549 = vmatpush1.bf16.msra.mxu0 %v2245
  %3550 = vmatprep.subr.bf16.mxu0 %v2250
  %3551 = vmatpush1.bf16.msra.mxu0 %v2249
  %3552 = vmatprep.subr.bf16.mxu0 %v2254
  %3553 = vmatpush1.bf16.msra.mxu0 %v2253
  %3554 = vmatprep.subr.bf16.mxu0 %v2258
  %3555 = vmatpush1.bf16.msra.mxu0 %v2257
  %3556 = vmatprep.mubr.bf16.mxu0 %v70
  %3557 = vmatmul.mubr.bf16.gmra.mrb[0].mxu0 %v69
  %v3558 = vpop.f32.mrb[0].mxu0
  %v3559 = vadd.f32 %v3518, %v3558
  %v3560 = vpop.f32.mrb[0].mxu0
  %v3561 = vadd.f32 %v3520, %v3560
  %v3562 = vpop.f32.mrb[0].mxu0
  %v3563 = vpop.f32.mrb[0].mxu0
  %3564 = vdwg.mxu0
  %3565 = vmatprep.subr.bf16.mxu0 %v2262
  %3566 = vmatpush1.bf16.msra.mxu0 %v2261
  %3567 = vmatprep.subr.bf16.mxu0 %v2266
  %3568 = vmatpush1.bf16.msra.mxu0 %v2265
  %3569 = vmatprep.subr.bf16.mxu0 %v2270
  %3570 = vmatpush1.bf16.msra.mxu0 %v2269
  %3571 = vmatprep.subr.bf16.mxu0 %v2274
  %3572 = vmatpush1.bf16.msra.mxu0 %v2273
  %3573 = vmatprep.subr.bf16.mxu0 %v2278
  %3574 = vmatpush1.bf16.msra.mxu0 %v2277
  %3575 = vmatprep.subr.bf16.mxu0 %v2282
  %3576 = vmatpush1.bf16.msra.mxu0 %v2281
  %3577 = vmatprep.subr.bf16.mxu0 %v2286
  %3578 = vmatpush1.bf16.msra.mxu0 %v2285
  %3579 = vmatprep.subr.bf16.mxu0 %v2290
  %3580 = vmatpush1.bf16.msra.mxu0 %v2289
  %3581 = vmatprep.subr.bf16.mxu0 %v2294
  %3582 = vmatpush1.bf16.msra.mxu0 %v2293
  %3583 = vmatprep.subr.bf16.mxu0 %v2298
  %3584 = vmatpush1.bf16.msra.mxu0 %v2297
  %3585 = vmatprep.subr.bf16.mxu0 %v2302
  %3586 = vmatpush1.bf16.msra.mxu0 %v2301
  %3587 = vmatprep.subr.bf16.mxu0 %v2306
  %3588 = vmatpush1.bf16.msra.mxu0 %v2305
  %3589 = vmatprep.subr.bf16.mxu0 %v2310
  %3590 = vmatpush1.bf16.msra.mxu0 %v2309
  %3591 = vmatprep.subr.bf16.mxu0 %v2314
  %3592 = vmatpush1.bf16.msra.mxu0 %v2313
  %3593 = vmatprep.subr.bf16.mxu0 %v2318
  %3594 = vmatpush1.bf16.msra.mxu0 %v2317
  %3595 = vmatprep.subr.bf16.mxu0 %v2322
  %3596 = vmatpush1.bf16.msra.mxu0 %v2321
  %3597 = vmatprep.mubr.bf16.mxu0 %v72
  %3598 = vmatmul.mubr.bf16.gmra.mrb[0].mxu0 %v71
  %v3599 = vpop.f32.mrb[0].mxu0
  %v3600 = vadd.f32 %v3559, %v3599
  %v3601 = vpop.f32.mrb[0].mxu0
  %v3602 = vadd.f32 %v3561, %v3601
  %v3603 = vpop.f32.mrb[0].mxu0
  %v3604 = vpop.f32.mrb[0].mxu0
  %3605 = vdwg.mxu0
  %3606 = vmatprep.subr.bf16.mxu0 %v2326
  %3607 = vmatpush1.bf16.msra.mxu0 %v2325
  %3608 = vmatprep.subr.bf16.mxu0 %v2330
  %3609 = vmatpush1.bf16.msra.mxu0 %v2329
  %3610 = vmatprep.subr.bf16.mxu0 %v2334
  %3611 = vmatpush1.bf16.msra.mxu0 %v2333
  %3612 = vmatprep.subr.bf16.mxu0 %v2338
  %3613 = vmatpush1.bf16.msra.mxu0 %v2337
  %3614 = vmatprep.subr.bf16.mxu0 %v2342
  %3615 = vmatpush1.bf16.msra.mxu0 %v2341
  %3616 = vmatprep.subr.bf16.mxu0 %v2346
  %3617 = vmatpush1.bf16.msra.mxu0 %v2345
  %3618 = vmatprep.subr.bf16.mxu0 %v2350
  %3619 = vmatpush1.bf16.msra.mxu0 %v2349
  %3620 = vmatprep.subr.bf16.mxu0 %v2354
  %3621 = vmatpush1.bf16.msra.mxu0 %v2353
  %3622 = vmatprep.subr.bf16.mxu0 %v2358
  %3623 = vmatpush1.bf16.msra.mxu0 %v2357
  %3624 = vmatprep.subr.bf16.mxu0 %v2362
  %3625 = vmatpush1.bf16.msra.mxu0 %v2361
  %3626 = vmatprep.subr.bf16.mxu0 %v2366
  %3627 = vmatpush1.bf16.msra.mxu0 %v2365
  %3628 = vmatprep.subr.bf16.mxu0 %v2370
  %3629 = vmatpush1.bf16.msra.mxu0 %v2369
  %3630 = vmatprep.subr.bf16.mxu0 %v2374
  %3631 = vmatpush1.bf16.msra.mxu0 %v2373
  %3632 = vmatprep.subr.bf16.mxu0 %v2378
  %3633 = vmatpush1.bf16.msra.mxu0 %v2377
  %3634 = vmatprep.subr.bf16.mxu0 %v2382
  %3635 = vmatpush1.bf16.msra.mxu0 %v2381
  %3636 = vmatprep.subr.bf16.mxu0 %v2386
  %3637 = vmatpush1.bf16.msra.mxu0 %v2385
  %3638 = vmatprep.mubr.bf16.mxu0 %v74
  %3639 = vmatmul.mubr.bf16.gmra.mrb[0].mxu0 %v73
  %v3640 = vpop.f32.mrb[0].mxu0
  %v3641 = vadd.f32 %v3600, %v3640
  %v3642 = vpop.f32.mrb[0].mxu0
  %v3643 = vadd.f32 %v3602, %v3642
  %v3644 = vpop.f32.mrb[0].mxu0
  %v3645 = vpop.f32.mrb[0].mxu0
  %3646 = vdwg.mxu0
  %3647 = vmatprep.subr.bf16.mxu0 %v2390
  %3648 = vmatpush1.bf16.msra.mxu0 %v2389
  %3649 = vmatprep.subr.bf16.mxu0 %v2394
  %3650 = vmatpush1.bf16.msra.mxu0 %v2393
  %3651 = vmatprep.subr.bf16.mxu0 %v2398
  %3652 = vmatpush1.bf16.msra.mxu0 %v2397
  %3653 = vmatprep.subr.bf16.mxu0 %v2402
  %3654 = vmatpush1.bf16.msra.mxu0 %v2401
  %3655 = vmatprep.subr.bf16.mxu0 %v2406
  %3656 = vmatpush1.bf16.msra.mxu0 %v2405
  %3657 = vmatprep.subr.bf16.mxu0 %v2410
  %3658 = vmatpush1.bf16.msra.mxu0 %v2409
  %3659 = vmatprep.subr.bf16.mxu0 %v2414
  %3660 = vmatpush1.bf16.msra.mxu0 %v2413
  %3661 = vmatprep.subr.bf16.mxu0 %v2418
  %3662 = vmatpush1.bf16.msra.mxu0 %v2417
  %3663 = vmatprep.subr.bf16.mxu0 %v2422
  %3664 = vmatpush1.bf16.msra.mxu0 %v2421
  %3665 = vmatprep.subr.bf16.mxu0 %v2426
  %3666 = vmatpush1.bf16.msra.mxu0 %v2425
  %3667 = vmatprep.subr.bf16.mxu0 %v2430
  %3668 = vmatpush1.bf16.msra.mxu0 %v2429
  %3669 = vmatprep.subr.bf16.mxu0 %v2434
  %3670 = vmatpush1.bf16.msra.mxu0 %v2433
  %3671 = vmatprep.subr.bf16.mxu0 %v2438
  %3672 = vmatpush1.bf16.msra.mxu0 %v2437
  %3673 = vmatprep.subr.bf16.mxu0 %v2442
  %3674 = vmatpush1.bf16.msra.mxu0 %v2441
  %3675 = vmatprep.subr.bf16.mxu0 %v2446
  %3676 = vmatpush1.bf16.msra.mxu0 %v2445
  %3677 = vmatprep.subr.bf16.mxu0 %v2450
  %3678 = vmatpush1.bf16.msra.mxu0 %v2449
  %3679 = vmatprep.mubr.bf16.mxu0 %v76
  %3680 = vmatmul.mubr.bf16.gmra.mrb[0].mxu0 %v75
  %v3681 = vpop.f32.mrb[0].mxu0
  %v3682 = vadd.f32 %v3641, %v3681
  %v3683 = vpop.f32.mrb[0].mxu0
  %v3684 = vadd.f32 %v3643, %v3683
  %v3685 = vpop.f32.mrb[0].mxu0
  %v3686 = vpop.f32.mrb[0].mxu0
  %3687 = vdwg.mxu0
  %3688 = vmatprep.subr.bf16.mxu0 %v2454
  %3689 = vmatpush1.bf16.msra.mxu0 %v2453
  %3690 = vmatprep.subr.bf16.mxu0 %v2458
  %3691 = vmatpush1.bf16.msra.mxu0 %v2457
  %3692 = vmatprep.subr.bf16.mxu0 %v2462
  %3693 = vmatpush1.bf16.msra.mxu0 %v2461
  %3694 = vmatprep.subr.bf16.mxu0 %v2466
  %3695 = vmatpush1.bf16.msra.mxu0 %v2465
  %3696 = vmatprep.subr.bf16.mxu0 %v2470
  %3697 = vmatpush1.bf16.msra.mxu0 %v2469
  %3698 = vmatprep.subr.bf16.mxu0 %v2474
  %3699 = vmatpush1.bf16.msra.mxu0 %v2473
  %3700 = vmatprep.subr.bf16.mxu0 %v2478
  %3701 = vmatpush1.bf16.msra.mxu0 %v2477
  %3702 = vmatprep.subr.bf16.mxu0 %v2482
  %3703 = vmatpush1.bf16.msra.mxu0 %v2481
  %3704 = vmatprep.subr.bf16.mxu0 %v2486
  %3705 = vmatpush1.bf16.msra.mxu0 %v2485
  %3706 = vmatprep.subr.bf16.mxu0 %v2490
  %3707 = vmatpush1.bf16.msra.mxu0 %v2489
  %3708 = vmatprep.subr.bf16.mxu0 %v2494
  %3709 = vmatpush1.bf16.msra.mxu0 %v2493
  %3710 = vmatprep.subr.bf16.mxu0 %v2498
  %3711 = vmatpush1.bf16.msra.mxu0 %v2497
  %3712 = vmatprep.subr.bf16.mxu0 %v2502
  %3713 = vmatpush1.bf16.msra.mxu0 %v2501
  %3714 = vmatprep.subr.bf16.mxu0 %v2506
  %3715 = vmatpush1.bf16.msra.mxu0 %v2505
  %3716 = vmatprep.subr.bf16.mxu0 %v2510
  %3717 = vmatpush1.bf16.msra.mxu0 %v2509
  %3718 = vmatprep.subr.bf16.mxu0 %v2514
  %3719 = vmatpush1.bf16.msra.mxu0 %v2513
  %3720 = vmatprep.mubr.bf16.mxu0 %v78
  %3721 = vmatmul.mubr.bf16.gmra.mrb[0].mxu0 %v77
  %v3722 = vpop.f32.mrb[0].mxu0
  %v3723 = vadd.f32 %v3682, %v3722
  %v3724 = vpop.f32.mrb[0].mxu0
  %v3725 = vadd.f32 %v3684, %v3724
  %v3726 = vpop.f32.mrb[0].mxu0
  %v3727 = vpop.f32.mrb[0].mxu0
  %3728 = vdwg.mxu0
  %3729 = vmatprep.subr.bf16.mxu0 %v2518
  %3730 = vmatpush1.bf16.msra.mxu0 %v2517
  %3731 = vmatprep.subr.bf16.mxu0 %v2522
  %3732 = vmatpush1.bf16.msra.mxu0 %v2521
  %3733 = vmatprep.subr.bf16.mxu0 %v2526
  %3734 = vmatpush1.bf16.msra.mxu0 %v2525
  %3735 = vmatprep.subr.bf16.mxu0 %v2530
  %3736 = vmatpush1.bf16.msra.mxu0 %v2529
  %3737 = vmatprep.subr.bf16.mxu0 %v2534
  %3738 = vmatpush1.bf16.msra.mxu0 %v2533
  %3739 = vmatprep.subr.bf16.mxu0 %v2538
  %3740 = vmatpush1.bf16.msra.mxu0 %v2537
  %3741 = vmatprep.subr.bf16.mxu0 %v2542
  %3742 = vmatpush1.bf16.msra.mxu0 %v2541
  %3743 = vmatprep.subr.bf16.mxu0 %v2546
  %3744 = vmatpush1.bf16.msra.mxu0 %v2545
  %3745 = vmatprep.subr.bf16.mxu0 %v2550
  %3746 = vmatpush1.bf16.msra.mxu0 %v2549
  %3747 = vmatprep.subr.bf16.mxu0 %v2554
  %3748 = vmatpush1.bf16.msra.mxu0 %v2553
  %3749 = vmatprep.subr.bf16.mxu0 %v2558
  %3750 = vmatpush1.bf16.msra.mxu0 %v2557
  %3751 = vmatprep.subr.bf16.mxu0 %v2562
  %3752 = vmatpush1.bf16.msra.mxu0 %v2561
  %3753 = vmatprep.subr.bf16.mxu0 %v2566
  %3754 = vmatpush1.bf16.msra.mxu0 %v2565
  %3755 = vmatprep.subr.bf16.mxu0 %v2570
  %3756 = vmatpush1.bf16.msra.mxu0 %v2569
  %3757 = vmatprep.subr.bf16.mxu0 %v2574
  %3758 = vmatpush1.bf16.msra.mxu0 %v2573
  %3759 = vmatprep.subr.bf16.mxu0 %v2578
  %3760 = vmatpush1.bf16.msra.mxu0 %v2577
  %3761 = vmatprep.mubr.bf16.mxu0 %v80
  %3762 = vmatmul.mubr.bf16.gmra.mrb[0].mxu0 %v79
  %v3763 = vpop.f32.mrb[0].mxu0
  %v3764 = vadd.f32 %v3723, %v3763
  %v3765 = vpop.f32.mrb[0].mxu0
  %v3766 = vadd.f32 %v3725, %v3765
  %v3767 = vpop.f32.mrb[0].mxu0
  %v3768 = vpop.f32.mrb[0].mxu0
  %3769 = vdwg.mxu0
  %3770 = vmatprep.subr.bf16.mxu0 %v2582
  %3771 = vmatpush1.bf16.msra.mxu0 %v2581
  %3772 = vmatprep.subr.bf16.mxu0 %v2586
  %3773 = vmatpush1.bf16.msra.mxu0 %v2585
  %3774 = vmatprep.subr.bf16.mxu0 %v2590
  %3775 = vmatpush1.bf16.msra.mxu0 %v2589
  %3776 = vmatprep.subr.bf16.mxu0 %v2594
  %3777 = vmatpush1.bf16.msra.mxu0 %v2593
  %3778 = vmatprep.subr.bf16.mxu0 %v2598
  %3779 = vmatpush1.bf16.msra.mxu0 %v2597
  %3780 = vmatprep.subr.bf16.mxu0 %v2602
  %3781 = vmatpush1.bf16.msra.mxu0 %v2601
  %3782 = vmatprep.subr.bf16.mxu0 %v2606
  %3783 = vmatpush1.bf16.msra.mxu0 %v2605
  %3784 = vmatprep.subr.bf16.mxu0 %v2610
  %3785 = vmatpush1.bf16.msra.mxu0 %v2609
  %3786 = vmatprep.subr.bf16.mxu0 %v2614
  %3787 = vmatpush1.bf16.msra.mxu0 %v2613
  %3788 = vmatprep.subr.bf16.mxu0 %v2618
  %3789 = vmatpush1.bf16.msra.mxu0 %v2617
  %3790 = vmatprep.subr.bf16.mxu0 %v2622
  %3791 = vmatpush1.bf16.msra.mxu0 %v2621
  %3792 = vmatprep.subr.bf16.mxu0 %v2626
  %3793 = vmatpush1.bf16.msra.mxu0 %v2625
  %3794 = vmatprep.subr.bf16.mxu0 %v2630
  %3795 = vmatpush1.bf16.msra.mxu0 %v2629
  %3796 = vmatprep.subr.bf16.mxu0 %v2634
  %3797 = vmatpush1.bf16.msra.mxu0 %v2633
  %3798 = vmatprep.subr.bf16.mxu0 %v2638
  %3799 = vmatpush1.bf16.msra.mxu0 %v2637
  %3800 = vmatprep.subr.bf16.mxu0 %v2642
  %3801 = vmatpush1.bf16.msra.mxu0 %v2641
  %3802 = vmatprep.mubr.bf16.mxu0 %v82
  %3803 = vmatmul.mubr.bf16.gmra.mrb[0].mxu0 %v81
  %v3804 = vpop.f32.mrb[0].mxu0
  %v3805 = vadd.f32 %v3764, %v3804
  %v3806 = vpop.f32.mrb[0].mxu0
  %v3807 = vadd.f32 %v3766, %v3806
  %v3808 = vpop.f32.mrb[0].mxu0
  %v3809 = vpop.f32.mrb[0].mxu0
  %3810 = vdwg.mxu0
  %v3815 = vcombine.low %v3477, %v3479
  %v3816 = vcombine.low %v3805, %v3807
  %v3819 = vadd.f32 %v33, %v3815
  %v3820 = vadd.f32 %v34, %v3816
  %3821 = vst [vmem:[#allocation2] sm:$0xff] %v3819
  %3822 = vst [vmem:[#allocation2 + $0x8] sm:$0xff] %v3820
  // Predicated region
  $region34: #{siamese_forward.3} parent=0 // pred_check
    %p3823 = pneg %p27
  $region35: #{siamese_forward.3} parent=0 // pred_check_branch
    %3825 = sbr.rel (%p3823) target = $region37
  $region36: #{siamese_forward.3} parent=0 // pred_region
    %v3826 = vld [vmem:[#allocation2] sm:$0xff]
    %v3827 = vld [vmem:[#allocation2 + $0x8] sm:$0xff]
    %v3828 = vld [vmem:[%s2] sm:$0xf]
    %v3830 = vlaneseq
    %v3831 = vshrl.u32 %v3830, 7
    %v3832 = vsub.s32 0, %v3831
    %v3833 = vrot.slane %v3828, %v3832
    %v3834 = vlaneseq
    %v3835 = vshrl.u32 %v3834, 7
    %v3836 = vsub.s32 1, %v3835
    %v3837 = vrot.slane %v3828, %v3836
    %v3838 = vlaneseq
    %v3839 = vshrl.u32 %v3838, 7
    %v3840 = vsub.s32 2, %v3839
    %v3841 = vrot.slane %v3828, %v3840
    %v3842 = vlaneseq
    %v3843 = vshrl.u32 %v3842, 7
    %v3844 = vsub.s32 3, %v3843
    %v3845 = vrot.slane %v3828, %v3844
    %v3846 = vcombine.low %v3833, %v3837
    %v3847 = vcombine.low %v3841, %v3845
    %v3850 = vadd.f32 %v3826, %v3846
    %v3851 = vadd.f32 %v3827, %v3847
    %v3852 = vmax.f32 %v3850, 0.0
    %v3853 = vmax.f32 %v3851, 0.0
    %v3856 = vcombine.high %v3852, %v3852
    %v3857 = vcombine.high %v3853, %v3853
    %v3860 = vpack.c.bf16 %v3852, %v3852
    %v3861 = vpack.c.bf16 %v3856, %v3856
    %v3862 = vpack.c.bf16 %v3853, %v3853
    %v3863 = vpack.c.bf16 %v3857, %v3857
    %v3864 = vld [vmem:[%s3] sm:$0xff]
    %v3865 = vld [vmem:[%s3 + $0x8] sm:$0xff]
    %v3866 = vld [vmem:[%s3 + $0x10] sm:$0xff]
    %v3867 = vld [vmem:[%s3 + $0x18] sm:$0xff]
    %v3868 = vld [vmem:[%s3 + $0x20] sm:$0xff]
    %v3869 = vld [vmem:[%s3 + $0x28] sm:$0xff]
    %v3870 = vld [vmem:[%s3 + $0x30] sm:$0xff]
    %v3871 = vld [vmem:[%s3 + $0x38] sm:$0xff]
    %v3872 = vld [vmem:[%s3 + $0x40] sm:$0xff]
    %v3873 = vld [vmem:[%s3 + $0x48] sm:$0xff]
    %v3874 = vld [vmem:[%s3 + $0x50] sm:$0xff]
    %v3875 = vld [vmem:[%s3 + $0x58] sm:$0xff]
    %v3876 = vld [vmem:[%s3 + $0x60] sm:$0xff]
    %v3877 = vld [vmem:[%s3 + $0x68] sm:$0xff]
    %v3878 = vld [vmem:[%s3 + $0x70] sm:$0xff]
    %v3879 = vld [vmem:[%s3 + $0x78] sm:$0xff]
    %v3880 = vld [vmem:[%s3 + $0x80] sm:$0xff]
    %v3881 = vld [vmem:[%s3 + $0x88] sm:$0xff]
    %v3882 = vld [vmem:[%s3 + $0x90] sm:$0xff]
    %v3883 = vld [vmem:[%s3 + $0x98] sm:$0xff]
    %v3884 = vld [vmem:[%s3 + $0xa0] sm:$0xff]
    %v3885 = vld [vmem:[%s3 + $0xa8] sm:$0xff]
    %v3886 = vld [vmem:[%s3 + $0xb0] sm:$0xff]
    %v3887 = vld [vmem:[%s3 + $0xb8] sm:$0xff]
    %v3888 = vld [vmem:[%s3 + $0xc0] sm:$0xff]
    %v3889 = vld [vmem:[%s3 + $0xc8] sm:$0xff]
    %v3890 = vld [vmem:[%s3 + $0xd0] sm:$0xff]
    %v3891 = vld [vmem:[%s3 + $0xd8] sm:$0xff]
    %v3892 = vld [vmem:[%s3 + $0xe0] sm:$0xff]
    %v3893 = vld [vmem:[%s3 + $0xe8] sm:$0xff]
    %v3894 = vld [vmem:[%s3 + $0xf0] sm:$0xff]
    %v3895 = vld [vmem:[%s3 + $0xf8] sm:$0xff]
    %v3896 = vld [vmem:[%s3 + $0x100] sm:$0xff]
    %v3897 = vld [vmem:[%s3 + $0x108] sm:$0xff]
    %v3898 = vld [vmem:[%s3 + $0x110] sm:$0xff]
    %v3899 = vld [vmem:[%s3 + $0x118] sm:$0xff]
    %v3900 = vld [vmem:[%s3 + $0x120] sm:$0xff]
    %v3901 = vld [vmem:[%s3 + $0x128] sm:$0xff]
    %v3902 = vld [vmem:[%s3 + $0x130] sm:$0xff]
    %v3903 = vld [vmem:[%s3 + $0x138] sm:$0xff]
    %v3904 = vld [vmem:[%s3 + $0x140] sm:$0xff]
    %v3905 = vld [vmem:[%s3 + $0x148] sm:$0xff]
    %v3906 = vld [vmem:[%s3 + $0x150] sm:$0xff]
    %v3907 = vld [vmem:[%s3 + $0x158] sm:$0xff]
    %v3908 = vld [vmem:[%s3 + $0x160] sm:$0xff]
    %v3909 = vld [vmem:[%s3 + $0x168] sm:$0xff]
    %v3910 = vld [vmem:[%s3 + $0x170] sm:$0xff]
    %v3911 = vld [vmem:[%s3 + $0x178] sm:$0xff]
    %v3912 = vld [vmem:[%s3 + $0x180] sm:$0xff]
    %v3913 = vld [vmem:[%s3 + $0x188] sm:$0xff]
    %v3914 = vld [vmem:[%s3 + $0x190] sm:$0xff]
    %v3915 = vld [vmem:[%s3 + $0x198] sm:$0xff]
    %v3916 = vld [vmem:[%s3 + $0x1a0] sm:$0xff]
    %v3917 = vld [vmem:[%s3 + $0x1a8] sm:$0xff]
    %v3918 = vld [vmem:[%s3 + $0x1b0] sm:$0xff]
    %v3919 = vld [vmem:[%s3 + $0x1b8] sm:$0xff]
    %v3920 = vld [vmem:[%s3 + $0x1c0] sm:$0xff]
    %v3921 = vld [vmem:[%s3 + $0x1c8] sm:$0xff]
    %v3922 = vld [vmem:[%s3 + $0x1d0] sm:$0xff]
    %v3923 = vld [vmem:[%s3 + $0x1d8] sm:$0xff]
    %v3924 = vld [vmem:[%s3 + $0x1e0] sm:$0xff]
    %v3925 = vld [vmem:[%s3 + $0x1e8] sm:$0xff]
    %v3926 = vld [vmem:[%s3 + $0x1f0] sm:$0xff]
    %v3927 = vld [vmem:[%s3 + $0x1f8] sm:$0xff]
    %v3928 = vld [vmem:[%s3 + $0x200] sm:$0xff]
    %v3929 = vld [vmem:[%s3 + $0x208] sm:$0xff]
    %v3930 = vld [vmem:[%s3 + $0x210] sm:$0xff]
    %v3931 = vld [vmem:[%s3 + $0x218] sm:$0xff]
    %v3932 = vld [vmem:[%s3 + $0x220] sm:$0xff]
    %v3933 = vld [vmem:[%s3 + $0x228] sm:$0xff]
    %v3934 = vld [vmem:[%s3 + $0x230] sm:$0xff]
    %v3935 = vld [vmem:[%s3 + $0x238] sm:$0xff]
    %v3936 = vld [vmem:[%s3 + $0x240] sm:$0xff]
    %v3937 = vld [vmem:[%s3 + $0x248] sm:$0xff]
    %v3938 = vld [vmem:[%s3 + $0x250] sm:$0xff]
    %v3939 = vld [vmem:[%s3 + $0x258] sm:$0xff]
    %v3940 = vld [vmem:[%s3 + $0x260] sm:$0xff]
    %v3941 = vld [vmem:[%s3 + $0x268] sm:$0xff]
    %v3942 = vld [vmem:[%s3 + $0x270] sm:$0xff]
    %v3943 = vld [vmem:[%s3 + $0x278] sm:$0xff]
    %v3944 = vld [vmem:[%s3 + $0x280] sm:$0xff]
    %v3945 = vld [vmem:[%s3 + $0x288] sm:$0xff]
    %v3946 = vld [vmem:[%s3 + $0x290] sm:$0xff]
    %v3947 = vld [vmem:[%s3 + $0x298] sm:$0xff]
    %v3948 = vld [vmem:[%s3 + $0x2a0] sm:$0xff]
    %v3949 = vld [vmem:[%s3 + $0x2a8] sm:$0xff]
    %v3950 = vld [vmem:[%s3 + $0x2b0] sm:$0xff]
    %v3951 = vld [vmem:[%s3 + $0x2b8] sm:$0xff]
    %v3952 = vld [vmem:[%s3 + $0x2c0] sm:$0xff]
    %v3953 = vld [vmem:[%s3 + $0x2c8] sm:$0xff]
    %v3954 = vld [vmem:[%s3 + $0x2d0] sm:$0xff]
    %v3955 = vld [vmem:[%s3 + $0x2d8] sm:$0xff]
    %v3956 = vld [vmem:[%s3 + $0x2e0] sm:$0xff]
    %v3957 = vld [vmem:[%s3 + $0x2e8] sm:$0xff]
    %v3958 = vld [vmem:[%s3 + $0x2f0] sm:$0xff]
    %v3959 = vld [vmem:[%s3 + $0x2f8] sm:$0xff]
    %v3960 = vld [vmem:[%s3 + $0x300] sm:$0xff]
    %v3961 = vld [vmem:[%s3 + $0x308] sm:$0xff]
    %v3962 = vld [vmem:[%s3 + $0x310] sm:$0xff]
    %v3963 = vld [vmem:[%s3 + $0x318] sm:$0xff]
    %v3964 = vld [vmem:[%s3 + $0x320] sm:$0xff]
    %v3965 = vld [vmem:[%s3 + $0x328] sm:$0xff]
    %v3966 = vld [vmem:[%s3 + $0x330] sm:$0xff]
    %v3967 = vld [vmem:[%s3 + $0x338] sm:$0xff]
    %v3968 = vld [vmem:[%s3 + $0x340] sm:$0xff]
    %v3969 = vld [vmem:[%s3 + $0x348] sm:$0xff]
    %v3970 = vld [vmem:[%s3 + $0x350] sm:$0xff]
    %v3971 = vld [vmem:[%s3 + $0x358] sm:$0xff]
    %v3972 = vld [vmem:[%s3 + $0x360] sm:$0xff]
    %v3973 = vld [vmem:[%s3 + $0x368] sm:$0xff]
    %v3974 = vld [vmem:[%s3 + $0x370] sm:$0xff]
    %v3975 = vld [vmem:[%s3 + $0x378] sm:$0xff]
    %v3976 = vld [vmem:[%s3 + $0x380] sm:$0xff]
    %v3977 = vld [vmem:[%s3 + $0x388] sm:$0xff]
    %v3978 = vld [vmem:[%s3 + $0x390] sm:$0xff]
    %v3979 = vld [vmem:[%s3 + $0x398] sm:$0xff]
    %v3980 = vld [vmem:[%s3 + $0x3a0] sm:$0xff]
    %v3981 = vld [vmem:[%s3 + $0x3a8] sm:$0xff]
    %v3982 = vld [vmem:[%s3 + $0x3b0] sm:$0xff]
    %v3983 = vld [vmem:[%s3 + $0x3b8] sm:$0xff]
    %v3984 = vld [vmem:[%s3 + $0x3c0] sm:$0xff]
    %v3985 = vld [vmem:[%s3 + $0x3c8] sm:$0xff]
    %v3986 = vld [vmem:[%s3 + $0x3d0] sm:$0xff]
    %v3987 = vld [vmem:[%s3 + $0x3d8] sm:$0xff]
    %v3988 = vld [vmem:[%s3 + $0x3e0] sm:$0xff]
    %v3989 = vld [vmem:[%s3 + $0x3e8] sm:$0xff]
    %v3990 = vld [vmem:[%s3 + $0x3f0] sm:$0xff]
    %v3991 = vld [vmem:[%s3 + $0x3f8] sm:$0xff]
    %v3992 = vld [vmem:[%s4] sm:$0xf]
    %v3994 = vlaneseq
    %v3995 = vshrl.u32 %v3994, 7
    %v3996 = vsub.s32 0, %v3995
    %v3997 = vrot.slane %v3992, %v3996
    %v3998 = vlaneseq
    %v3999 = vshrl.u32 %v3998, 7
    %v4000 = vsub.s32 1, %v3999
    %v4001 = vrot.slane %v3992, %v4000
    %v4002 = vlaneseq
    %v4003 = vshrl.u32 %v4002, 7
    %v4004 = vsub.s32 2, %v4003
    %v4005 = vrot.slane %v3992, %v4004
    %v4006 = vlaneseq
    %v4007 = vshrl.u32 %v4006, 7
    %v4008 = vsub.s32 3, %v4007
    %v4009 = vrot.slane %v3992, %v4008
    %v4142 = vunpack.c.l.b16 %v3864
    %v4143 = vunpack.c.h.b16 %v3864
    %v4144 = vunpack.c.l.b16 %v3865
    %v4145 = vunpack.c.h.b16 %v3865
    %v4146 = vunpack.c.l.b16 %v3866
    %v4147 = vunpack.c.h.b16 %v3866
    %v4148 = vunpack.c.l.b16 %v3867
    %v4149 = vunpack.c.h.b16 %v3867
    %v4150 = vunpack.c.l.b16 %v3868
    %v4151 = vunpack.c.h.b16 %v3868
    %v4152 = vunpack.c.l.b16 %v3869
    %v4153 = vunpack.c.h.b16 %v3869
    %v4154 = vunpack.c.l.b16 %v3870
    %v4155 = vunpack.c.h.b16 %v3870
    %v4156 = vunpack.c.l.b16 %v3871
    %v4157 = vunpack.c.h.b16 %v3871
    %v4158 = vunpack.c.l.b16 %v3872
    %v4159 = vunpack.c.h.b16 %v3872
    %v4160 = vunpack.c.l.b16 %v3873
    %v4161 = vunpack.c.h.b16 %v3873
    %v4162 = vunpack.c.l.b16 %v3874
    %v4163 = vunpack.c.h.b16 %v3874
    %v4164 = vunpack.c.l.b16 %v3875
    %v4165 = vunpack.c.h.b16 %v3875
    %v4166 = vunpack.c.l.b16 %v3876
    %v4167 = vunpack.c.h.b16 %v3876
    %v4168 = vunpack.c.l.b16 %v3877
    %v4169 = vunpack.c.h.b16 %v3877
    %v4170 = vunpack.c.l.b16 %v3878
    %v4171 = vunpack.c.h.b16 %v3878
    %v4172 = vunpack.c.l.b16 %v3879
    %v4173 = vunpack.c.h.b16 %v3879
    %v4174 = vunpack.c.l.b16 %v3880
    %v4175 = vunpack.c.h.b16 %v3880
    %v4176 = vunpack.c.l.b16 %v3881
    %v4177 = vunpack.c.h.b16 %v3881
    %v4178 = vunpack.c.l.b16 %v3882
    %v4179 = vunpack.c.h.b16 %v3882
    %v4180 = vunpack.c.l.b16 %v3883
    %v4181 = vunpack.c.h.b16 %v3883
    %v4182 = vunpack.c.l.b16 %v3884
    %v4183 = vunpack.c.h.b16 %v3884
    %v4184 = vunpack.c.l.b16 %v3885
    %v4185 = vunpack.c.h.b16 %v3885
    %v4186 = vunpack.c.l.b16 %v3886
    %v4187 = vunpack.c.h.b16 %v3886
    %v4188 = vunpack.c.l.b16 %v3887
    %v4189 = vunpack.c.h.b16 %v3887
    %v4190 = vunpack.c.l.b16 %v3888
    %v4191 = vunpack.c.h.b16 %v3888
    %v4192 = vunpack.c.l.b16 %v3889
    %v4193 = vunpack.c.h.b16 %v3889
    %v4194 = vunpack.c.l.b16 %v3890
    %v4195 = vunpack.c.h.b16 %v3890
    %v4196 = vunpack.c.l.b16 %v3891
    %v4197 = vunpack.c.h.b16 %v3891
    %v4198 = vunpack.c.l.b16 %v3892
    %v4199 = vunpack.c.h.b16 %v3892
    %v4200 = vunpack.c.l.b16 %v3893
    %v4201 = vunpack.c.h.b16 %v3893
    %v4202 = vunpack.c.l.b16 %v3894
    %v4203 = vunpack.c.h.b16 %v3894
    %v4204 = vunpack.c.l.b16 %v3895
    %v4205 = vunpack.c.h.b16 %v3895
    %v4206 = vunpack.c.l.b16 %v3896
    %v4207 = vunpack.c.h.b16 %v3896
    %v4208 = vunpack.c.l.b16 %v3897
    %v4209 = vunpack.c.h.b16 %v3897
    %v4210 = vunpack.c.l.b16 %v3898
    %v4211 = vunpack.c.h.b16 %v3898
    %v4212 = vunpack.c.l.b16 %v3899
    %v4213 = vunpack.c.h.b16 %v3899
    %v4214 = vunpack.c.l.b16 %v3900
    %v4215 = vunpack.c.h.b16 %v3900
    %v4216 = vunpack.c.l.b16 %v3901
    %v4217 = vunpack.c.h.b16 %v3901
    %v4218 = vunpack.c.l.b16 %v3902
    %v4219 = vunpack.c.h.b16 %v3902
    %v4220 = vunpack.c.l.b16 %v3903
    %v4221 = vunpack.c.h.b16 %v3903
    %v4222 = vunpack.c.l.b16 %v3904
    %v4223 = vunpack.c.h.b16 %v3904
    %v4224 = vunpack.c.l.b16 %v3905
    %v4225 = vunpack.c.h.b16 %v3905
    %v4226 = vunpack.c.l.b16 %v3906
    %v4227 = vunpack.c.h.b16 %v3906
    %v4228 = vunpack.c.l.b16 %v3907
    %v4229 = vunpack.c.h.b16 %v3907
    %v4230 = vunpack.c.l.b16 %v3908
    %v4231 = vunpack.c.h.b16 %v3908
    %v4232 = vunpack.c.l.b16 %v3909
    %v4233 = vunpack.c.h.b16 %v3909
    %v4234 = vunpack.c.l.b16 %v3910
    %v4235 = vunpack.c.h.b16 %v3910
    %v4236 = vunpack.c.l.b16 %v3911
    %v4237 = vunpack.c.h.b16 %v3911
    %v4238 = vunpack.c.l.b16 %v3912
    %v4239 = vunpack.c.h.b16 %v3912
    %v4240 = vunpack.c.l.b16 %v3913
    %v4241 = vunpack.c.h.b16 %v3913
    %v4242 = vunpack.c.l.b16 %v3914
    %v4243 = vunpack.c.h.b16 %v3914
    %v4244 = vunpack.c.l.b16 %v3915
    %v4245 = vunpack.c.h.b16 %v3915
    %v4246 = vunpack.c.l.b16 %v3916
    %v4247 = vunpack.c.h.b16 %v3916
    %v4248 = vunpack.c.l.b16 %v3917
    %v4249 = vunpack.c.h.b16 %v3917
    %v4250 = vunpack.c.l.b16 %v3918
    %v4251 = vunpack.c.h.b16 %v3918
    %v4252 = vunpack.c.l.b16 %v3919
    %v4253 = vunpack.c.h.b16 %v3919
    %v4254 = vunpack.c.l.b16 %v3920
    %v4255 = vunpack.c.h.b16 %v3920
    %v4256 = vunpack.c.l.b16 %v3921
    %v4257 = vunpack.c.h.b16 %v3921
    %v4258 = vunpack.c.l.b16 %v3922
    %v4259 = vunpack.c.h.b16 %v3922
    %v4260 = vunpack.c.l.b16 %v3923
    %v4261 = vunpack.c.h.b16 %v3923
    %v4262 = vunpack.c.l.b16 %v3924
    %v4263 = vunpack.c.h.b16 %v3924
    %v4264 = vunpack.c.l.b16 %v3925
    %v4265 = vunpack.c.h.b16 %v3925
    %v4266 = vunpack.c.l.b16 %v3926
    %v4267 = vunpack.c.h.b16 %v3926
    %v4268 = vunpack.c.l.b16 %v3927
    %v4269 = vunpack.c.h.b16 %v3927
    %v4270 = vunpack.c.l.b16 %v3928
    %v4271 = vunpack.c.h.b16 %v3928
    %v4272 = vunpack.c.l.b16 %v3929
    %v4273 = vunpack.c.h.b16 %v3929
    %v4274 = vunpack.c.l.b16 %v3930
    %v4275 = vunpack.c.h.b16 %v3930
    %v4276 = vunpack.c.l.b16 %v3931
    %v4277 = vunpack.c.h.b16 %v3931
    %v4278 = vunpack.c.l.b16 %v3932
    %v4279 = vunpack.c.h.b16 %v3932
    %v4280 = vunpack.c.l.b16 %v3933
    %v4281 = vunpack.c.h.b16 %v3933
    %v4282 = vunpack.c.l.b16 %v3934
    %v4283 = vunpack.c.h.b16 %v3934
    %v4284 = vunpack.c.l.b16 %v3935
    %v4285 = vunpack.c.h.b16 %v3935
    %v4286 = vunpack.c.l.b16 %v3936
    %v4287 = vunpack.c.h.b16 %v3936
    %v4288 = vunpack.c.l.b16 %v3937
    %v4289 = vunpack.c.h.b16 %v3937
    %v4290 = vunpack.c.l.b16 %v3938
    %v4291 = vunpack.c.h.b16 %v3938
    %v4292 = vunpack.c.l.b16 %v3939
    %v4293 = vunpack.c.h.b16 %v3939
    %v4294 = vunpack.c.l.b16 %v3940
    %v4295 = vunpack.c.h.b16 %v3940
    %v4296 = vunpack.c.l.b16 %v3941
    %v4297 = vunpack.c.h.b16 %v3941
    %v4298 = vunpack.c.l.b16 %v3942
    %v4299 = vunpack.c.h.b16 %v3942
    %v4300 = vunpack.c.l.b16 %v3943
    %v4301 = vunpack.c.h.b16 %v3943
    %v4302 = vunpack.c.l.b16 %v3944
    %v4303 = vunpack.c.h.b16 %v3944
    %v4304 = vunpack.c.l.b16 %v3945
    %v4305 = vunpack.c.h.b16 %v3945
    %v4306 = vunpack.c.l.b16 %v3946
    %v4307 = vunpack.c.h.b16 %v3946
    %v4308 = vunpack.c.l.b16 %v3947
    %v4309 = vunpack.c.h.b16 %v3947
    %v4310 = vunpack.c.l.b16 %v3948
    %v4311 = vunpack.c.h.b16 %v3948
    %v4312 = vunpack.c.l.b16 %v3949
    %v4313 = vunpack.c.h.b16 %v3949
    %v4314 = vunpack.c.l.b16 %v3950
    %v4315 = vunpack.c.h.b16 %v3950
    %v4316 = vunpack.c.l.b16 %v3951
    %v4317 = vunpack.c.h.b16 %v3951
    %v4318 = vunpack.c.l.b16 %v3952
    %v4319 = vunpack.c.h.b16 %v3952
    %v4320 = vunpack.c.l.b16 %v3953
    %v4321 = vunpack.c.h.b16 %v3953
    %v4322 = vunpack.c.l.b16 %v3954
    %v4323 = vunpack.c.h.b16 %v3954
    %v4324 = vunpack.c.l.b16 %v3955
    %v4325 = vunpack.c.h.b16 %v3955
    %v4326 = vunpack.c.l.b16 %v3956
    %v4327 = vunpack.c.h.b16 %v3956
    %v4328 = vunpack.c.l.b16 %v3957
    %v4329 = vunpack.c.h.b16 %v3957
    %v4330 = vunpack.c.l.b16 %v3958
    %v4331 = vunpack.c.h.b16 %v3958
    %v4332 = vunpack.c.l.b16 %v3959
    %v4333 = vunpack.c.h.b16 %v3959
    %v4334 = vunpack.c.l.b16 %v3960
    %v4335 = vunpack.c.h.b16 %v3960
    %v4336 = vunpack.c.l.b16 %v3961
    %v4337 = vunpack.c.h.b16 %v3961
    %v4338 = vunpack.c.l.b16 %v3962
    %v4339 = vunpack.c.h.b16 %v3962
    %v4340 = vunpack.c.l.b16 %v3963
    %v4341 = vunpack.c.h.b16 %v3963
    %v4342 = vunpack.c.l.b16 %v3964
    %v4343 = vunpack.c.h.b16 %v3964
    %v4344 = vunpack.c.l.b16 %v3965
    %v4345 = vunpack.c.h.b16 %v3965
    %v4346 = vunpack.c.l.b16 %v3966
    %v4347 = vunpack.c.h.b16 %v3966
    %v4348 = vunpack.c.l.b16 %v3967
    %v4349 = vunpack.c.h.b16 %v3967
    %v4350 = vunpack.c.l.b16 %v3968
    %v4351 = vunpack.c.h.b16 %v3968
    %v4352 = vunpack.c.l.b16 %v3969
    %v4353 = vunpack.c.h.b16 %v3969
    %v4354 = vunpack.c.l.b16 %v3970
    %v4355 = vunpack.c.h.b16 %v3970
    %v4356 = vunpack.c.l.b16 %v3971
    %v4357 = vunpack.c.h.b16 %v3971
    %v4358 = vunpack.c.l.b16 %v3972
    %v4359 = vunpack.c.h.b16 %v3972
    %v4360 = vunpack.c.l.b16 %v3973
    %v4361 = vunpack.c.h.b16 %v3973
    %v4362 = vunpack.c.l.b16 %v3974
    %v4363 = vunpack.c.h.b16 %v3974
    %v4364 = vunpack.c.l.b16 %v3975
    %v4365 = vunpack.c.h.b16 %v3975
    %v4366 = vunpack.c.l.b16 %v3976
    %v4367 = vunpack.c.h.b16 %v3976
    %v4368 = vunpack.c.l.b16 %v3977
    %v4369 = vunpack.c.h.b16 %v3977
    %v4370 = vunpack.c.l.b16 %v3978
    %v4371 = vunpack.c.h.b16 %v3978
    %v4372 = vunpack.c.l.b16 %v3979
    %v4373 = vunpack.c.h.b16 %v3979
    %v4374 = vunpack.c.l.b16 %v3980
    %v4375 = vunpack.c.h.b16 %v3980
    %v4376 = vunpack.c.l.b16 %v3981
    %v4377 = vunpack.c.h.b16 %v3981
    %v4378 = vunpack.c.l.b16 %v3982
    %v4379 = vunpack.c.h.b16 %v3982
    %v4380 = vunpack.c.l.b16 %v3983
    %v4381 = vunpack.c.h.b16 %v3983
    %v4382 = vunpack.c.l.b16 %v3984
    %v4383 = vunpack.c.h.b16 %v3984
    %v4384 = vunpack.c.l.b16 %v3985
    %v4385 = vunpack.c.h.b16 %v3985
    %v4386 = vunpack.c.l.b16 %v3986
    %v4387 = vunpack.c.h.b16 %v3986
    %v4388 = vunpack.c.l.b16 %v3987
    %v4389 = vunpack.c.h.b16 %v3987
    %v4390 = vunpack.c.l.b16 %v3988
    %v4391 = vunpack.c.h.b16 %v3988
    %v4392 = vunpack.c.l.b16 %v3989
    %v4393 = vunpack.c.h.b16 %v3989
    %v4394 = vunpack.c.l.b16 %v3990
    %v4395 = vunpack.c.h.b16 %v3990
    %v4396 = vunpack.c.l.b16 %v3991
    %v4397 = vunpack.c.h.b16 %v3991
    %v4398 = vpack.c.b16 %v4146, %v4142
    %v4399 = vpack.c.b16 %v4147, %v4143
    %v4400 = vpack.c.b16 %v4148, %v4144
    %v4401 = vpack.c.b16 %v4149, %v4145
    %v4402 = vpack.c.b16 %v4154, %v4150
    %v4403 = vpack.c.b16 %v4155, %v4151
    %v4404 = vpack.c.b16 %v4156, %v4152
    %v4405 = vpack.c.b16 %v4157, %v4153
    %v4406 = vpack.c.b16 %v4162, %v4158
    %v4407 = vpack.c.b16 %v4163, %v4159
    %v4408 = vpack.c.b16 %v4164, %v4160
    %v4409 = vpack.c.b16 %v4165, %v4161
    %v4410 = vpack.c.b16 %v4170, %v4166
    %v4411 = vpack.c.b16 %v4171, %v4167
    %v4412 = vpack.c.b16 %v4172, %v4168
    %v4413 = vpack.c.b16 %v4173, %v4169
    %v4414 = vpack.c.b16 %v4178, %v4174
    %v4415 = vpack.c.b16 %v4179, %v4175
    %v4416 = vpack.c.b16 %v4180, %v4176
    %v4417 = vpack.c.b16 %v4181, %v4177
    %v4418 = vpack.c.b16 %v4186, %v4182
    %v4419 = vpack.c.b16 %v4187, %v4183
    %v4420 = vpack.c.b16 %v4188, %v4184
    %v4421 = vpack.c.b16 %v4189, %v4185
    %v4422 = vpack.c.b16 %v4194, %v4190
    %v4423 = vpack.c.b16 %v4195, %v4191
    %v4424 = vpack.c.b16 %v4196, %v4192
    %v4425 = vpack.c.b16 %v4197, %v4193
    %v4426 = vpack.c.b16 %v4202, %v4198
    %v4427 = vpack.c.b16 %v4203, %v4199
    %v4428 = vpack.c.b16 %v4204, %v4200
    %v4429 = vpack.c.b16 %v4205, %v4201
    %v4430 = vpack.c.b16 %v4210, %v4206
    %v4431 = vpack.c.b16 %v4211, %v4207
    %v4432 = vpack.c.b16 %v4212, %v4208
    %v4433 = vpack.c.b16 %v4213, %v4209
    %v4434 = vpack.c.b16 %v4218, %v4214
    %v4435 = vpack.c.b16 %v4219, %v4215
    %v4436 = vpack.c.b16 %v4220, %v4216
    %v4437 = vpack.c.b16 %v4221, %v4217
    %v4438 = vpack.c.b16 %v4226, %v4222
    %v4439 = vpack.c.b16 %v4227, %v4223
    %v4440 = vpack.c.b16 %v4228, %v4224
    %v4441 = vpack.c.b16 %v4229, %v4225
    %v4442 = vpack.c.b16 %v4234, %v4230
    %v4443 = vpack.c.b16 %v4235, %v4231
    %v4444 = vpack.c.b16 %v4236, %v4232
    %v4445 = vpack.c.b16 %v4237, %v4233
    %v4446 = vpack.c.b16 %v4242, %v4238
    %v4447 = vpack.c.b16 %v4243, %v4239
    %v4448 = vpack.c.b16 %v4244, %v4240
    %v4449 = vpack.c.b16 %v4245, %v4241
    %v4450 = vpack.c.b16 %v4250, %v4246
    %v4451 = vpack.c.b16 %v4251, %v4247
    %v4452 = vpack.c.b16 %v4252, %v4248
    %v4453 = vpack.c.b16 %v4253, %v4249
    %v4454 = vpack.c.b16 %v4258, %v4254
    %v4455 = vpack.c.b16 %v4259, %v4255
    %v4456 = vpack.c.b16 %v4260, %v4256
    %v4457 = vpack.c.b16 %v4261, %v4257
    %v4458 = vpack.c.b16 %v4266, %v4262
    %v4459 = vpack.c.b16 %v4267, %v4263
    %v4460 = vpack.c.b16 %v4268, %v4264
    %v4461 = vpack.c.b16 %v4269, %v4265
    %v4462 = vpack.c.b16 %v4274, %v4270
    %v4463 = vpack.c.b16 %v4275, %v4271
    %v4464 = vpack.c.b16 %v4276, %v4272
    %v4465 = vpack.c.b16 %v4277, %v4273
    %v4466 = vpack.c.b16 %v4282, %v4278
    %v4467 = vpack.c.b16 %v4283, %v4279
    %v4468 = vpack.c.b16 %v4284, %v4280
    %v4469 = vpack.c.b16 %v4285, %v4281
    %v4470 = vpack.c.b16 %v4290, %v4286
    %v4471 = vpack.c.b16 %v4291, %v4287
    %v4472 = vpack.c.b16 %v4292, %v4288
    %v4473 = vpack.c.b16 %v4293, %v4289
    %v4474 = vpack.c.b16 %v4298, %v4294
    %v4475 = vpack.c.b16 %v4299, %v4295
    %v4476 = vpack.c.b16 %v4300, %v4296
    %v4477 = vpack.c.b16 %v4301, %v4297
    %v4478 = vpack.c.b16 %v4306, %v4302
    %v4479 = vpack.c.b16 %v4307, %v4303
    %v4480 = vpack.c.b16 %v4308, %v4304
    %v4481 = vpack.c.b16 %v4309, %v4305
    %v4482 = vpack.c.b16 %v4314, %v4310
    %v4483 = vpack.c.b16 %v4315, %v4311
    %v4484 = vpack.c.b16 %v4316, %v4312
    %v4485 = vpack.c.b16 %v4317, %v4313
    %v4486 = vpack.c.b16 %v4322, %v4318
    %v4487 = vpack.c.b16 %v4323, %v4319
    %v4488 = vpack.c.b16 %v4324, %v4320
    %v4489 = vpack.c.b16 %v4325, %v4321
    %v4490 = vpack.c.b16 %v4330, %v4326
    %v4491 = vpack.c.b16 %v4331, %v4327
    %v4492 = vpack.c.b16 %v4332, %v4328
    %v4493 = vpack.c.b16 %v4333, %v4329
    %v4494 = vpack.c.b16 %v4338, %v4334
    %v4495 = vpack.c.b16 %v4339, %v4335
    %v4496 = vpack.c.b16 %v4340, %v4336
    %v4497 = vpack.c.b16 %v4341, %v4337
    %v4498 = vpack.c.b16 %v4346, %v4342
    %v4499 = vpack.c.b16 %v4347, %v4343
    %v4500 = vpack.c.b16 %v4348, %v4344
    %v4501 = vpack.c.b16 %v4349, %v4345
    %v4502 = vpack.c.b16 %v4354, %v4350
    %v4503 = vpack.c.b16 %v4355, %v4351
    %v4504 = vpack.c.b16 %v4356, %v4352
    %v4505 = vpack.c.b16 %v4357, %v4353
    %v4506 = vpack.c.b16 %v4362, %v4358
    %v4507 = vpack.c.b16 %v4363, %v4359
    %v4508 = vpack.c.b16 %v4364, %v4360
    %v4509 = vpack.c.b16 %v4365, %v4361
    %v4510 = vpack.c.b16 %v4370, %v4366
    %v4511 = vpack.c.b16 %v4371, %v4367
    %v4512 = vpack.c.b16 %v4372, %v4368
    %v4513 = vpack.c.b16 %v4373, %v4369
    %v4514 = vpack.c.b16 %v4378, %v4374
    %v4515 = vpack.c.b16 %v4379, %v4375
    %v4516 = vpack.c.b16 %v4380, %v4376
    %v4517 = vpack.c.b16 %v4381, %v4377
    %v4518 = vpack.c.b16 %v4386, %v4382
    %v4519 = vpack.c.b16 %v4387, %v4383
    %v4520 = vpack.c.b16 %v4388, %v4384
    %v4521 = vpack.c.b16 %v4389, %v4385
    %v4522 = vpack.c.b16 %v4394, %v4390
    %v4523 = vpack.c.b16 %v4395, %v4391
    %v4524 = vpack.c.b16 %v4396, %v4392
    %v4525 = vpack.c.b16 %v4397, %v4393
    %4654 = vmatprep.subr.bf16.mxu0 %v4399
    %4655 = vmatpush1.bf16.msra.mxu0 %v4398
    %4656 = vmatprep.subr.bf16.mxu0 %v4403
    %4657 = vmatpush1.bf16.msra.mxu0 %v4402
    %4658 = vmatprep.subr.bf16.mxu0 %v4407
    %4659 = vmatpush1.bf16.msra.mxu0 %v4406
    %4660 = vmatprep.subr.bf16.mxu0 %v4411
    %4661 = vmatpush1.bf16.msra.mxu0 %v4410
    %4662 = vmatprep.subr.bf16.mxu0 %v4415
    %4663 = vmatpush1.bf16.msra.mxu0 %v4414
    %4664 = vmatprep.subr.bf16.mxu0 %v4419
    %4665 = vmatpush1.bf16.msra.mxu0 %v4418
    %4666 = vmatprep.subr.bf16.mxu0 %v4423
    %4667 = vmatpush1.bf16.msra.mxu0 %v4422
    %4668 = vmatprep.subr.bf16.mxu0 %v4427
    %4669 = vmatpush1.bf16.msra.mxu0 %v4426
    %4670 = vmatprep.subr.bf16.mxu0 %v4431
    %4671 = vmatpush1.bf16.msra.mxu0 %v4430
    %4672 = vmatprep.subr.bf16.mxu0 %v4435
    %4673 = vmatpush1.bf16.msra.mxu0 %v4434
    %4674 = vmatprep.subr.bf16.mxu0 %v4439
    %4675 = vmatpush1.bf16.msra.mxu0 %v4438
    %4676 = vmatprep.subr.bf16.mxu0 %v4443
    %4677 = vmatpush1.bf16.msra.mxu0 %v4442
    %4678 = vmatprep.subr.bf16.mxu0 %v4447
    %4679 = vmatpush1.bf16.msra.mxu0 %v4446
    %4680 = vmatprep.subr.bf16.mxu0 %v4451
    %4681 = vmatpush1.bf16.msra.mxu0 %v4450
    %4682 = vmatprep.subr.bf16.mxu0 %v4455
    %4683 = vmatpush1.bf16.msra.mxu0 %v4454
    %4684 = vmatprep.subr.bf16.mxu0 %v4459
    %4685 = vmatpush1.bf16.msra.mxu0 %v4458
    %4686 = vmatprep.mubr.bf16.mxu0 %v3861
    %4687 = vmatmul.mubr.bf16.gmra.mrb[0].mxu0 %v3860
    %v4688 = vpop.f32.mrb[0].mxu0
    %v4689 = vadd.f32 %v3997, %v4688
    %v4690 = vpop.f32.mrb[0].mxu0
    %v4691 = vadd.f32 %v4001, %v4690
    %v4692 = vpop.f32.mrb[0].mxu0
    %v4693 = vpop.f32.mrb[0].mxu0
    %4694 = vdwg.mxu0
    %4695 = vmatprep.subr.bf16.mxu0 %v4463
    %4696 = vmatpush1.bf16.msra.mxu0 %v4462
    %4697 = vmatprep.subr.bf16.mxu0 %v4467
    %4698 = vmatpush1.bf16.msra.mxu0 %v4466
    %4699 = vmatprep.subr.bf16.mxu0 %v4471
    %4700 = vmatpush1.bf16.msra.mxu0 %v4470
    %4701 = vmatprep.subr.bf16.mxu0 %v4475
    %4702 = vmatpush1.bf16.msra.mxu0 %v4474
    %4703 = vmatprep.subr.bf16.mxu0 %v4479
    %4704 = vmatpush1.bf16.msra.mxu0 %v4478
    %4705 = vmatprep.subr.bf16.mxu0 %v4483
    %4706 = vmatpush1.bf16.msra.mxu0 %v4482
    %4707 = vmatprep.subr.bf16.mxu0 %v4487
    %4708 = vmatpush1.bf16.msra.mxu0 %v4486
    %4709 = vmatprep.subr.bf16.mxu0 %v4491
    %4710 = vmatpush1.bf16.msra.mxu0 %v4490
    %4711 = vmatprep.subr.bf16.mxu0 %v4495
    %4712 = vmatpush1.bf16.msra.mxu0 %v4494
    %4713 = vmatprep.subr.bf16.mxu0 %v4499
    %4714 = vmatpush1.bf16.msra.mxu0 %v4498
    %4715 = vmatprep.subr.bf16.mxu0 %v4503
    %4716 = vmatpush1.bf16.msra.mxu0 %v4502
    %4717 = vmatprep.subr.bf16.mxu0 %v4507
    %4718 = vmatpush1.bf16.msra.mxu0 %v4506
    %4719 = vmatprep.subr.bf16.mxu0 %v4511
    %4720 = vmatpush1.bf16.msra.mxu0 %v4510
    %4721 = vmatprep.subr.bf16.mxu0 %v4515
    %4722 = vmatpush1.bf16.msra.mxu0 %v4514
    %4723 = vmatprep.subr.bf16.mxu0 %v4519
    %4724 = vmatpush1.bf16.msra.mxu0 %v4518
    %4725 = vmatprep.subr.bf16.mxu0 %v4523
    %4726 = vmatpush1.bf16.msra.mxu0 %v4522
    %4727 = vmatprep.mubr.bf16.mxu0 %v3863
    %4728 = vmatmul.mubr.bf16.gmra.mrb[0].mxu0 %v3862
    %v4729 = vpop.f32.mrb[0].mxu0
    %v4730 = vadd.f32 %v4689, %v4729
    %v4731 = vpop.f32.mrb[0].mxu0
    %v4732 = vadd.f32 %v4691, %v4731
    %v4733 = vpop.f32.mrb[0].mxu0
    %v4734 = vpop.f32.mrb[0].mxu0
    %4735 = vdwg.mxu0
    %4736 = vmatprep.subr.bf16.mxu0 %v4401
    %4737 = vmatpush1.bf16.msra.mxu0 %v4400
    %4738 = vmatprep.subr.bf16.mxu0 %v4405
    %4739 = vmatpush1.bf16.msra.mxu0 %v4404
    %4740 = vmatprep.subr.bf16.mxu0 %v4409
    %4741 = vmatpush1.bf16.msra.mxu0 %v4408
    %4742 = vmatprep.subr.bf16.mxu0 %v4413
    %4743 = vmatpush1.bf16.msra.mxu0 %v4412
    %4744 = vmatprep.subr.bf16.mxu0 %v4417
    %4745 = vmatpush1.bf16.msra.mxu0 %v4416
    %4746 = vmatprep.subr.bf16.mxu0 %v4421
    %4747 = vmatpush1.bf16.msra.mxu0 %v4420
    %4748 = vmatprep.subr.bf16.mxu0 %v4425
    %4749 = vmatpush1.bf16.msra.mxu0 %v4424
    %4750 = vmatprep.subr.bf16.mxu0 %v4429
    %4751 = vmatpush1.bf16.msra.mxu0 %v4428
    %4752 = vmatprep.subr.bf16.mxu0 %v4433
    %4753 = vmatpush1.bf16.msra.mxu0 %v4432
    %4754 = vmatprep.subr.bf16.mxu0 %v4437
    %4755 = vmatpush1.bf16.msra.mxu0 %v4436
    %4756 = vmatprep.subr.bf16.mxu0 %v4441
    %4757 = vmatpush1.bf16.msra.mxu0 %v4440
    %4758 = vmatprep.subr.bf16.mxu0 %v4445
    %4759 = vmatpush1.bf16.msra.mxu0 %v4444
    %4760 = vmatprep.subr.bf16.mxu0 %v4449
    %4761 = vmatpush1.bf16.msra.mxu0 %v4448
    %4762 = vmatprep.subr.bf16.mxu0 %v4453
    %4763 = vmatpush1.bf16.msra.mxu0 %v4452
    %4764 = vmatprep.subr.bf16.mxu0 %v4457
    %4765 = vmatpush1.bf16.msra.mxu0 %v4456
    %4766 = vmatprep.subr.bf16.mxu0 %v4461
    %4767 = vmatpush1.bf16.msra.mxu0 %v4460
    %4768 = vmatprep.mubr.bf16.mxu0 %v3861
    %4769 = vmatmul.mubr.bf16.gmra.mrb[0].mxu0 %v3860
    %v4770 = vpop.f32.mrb[0].mxu0
    %v4771 = vadd.f32 %v4005, %v4770
    %v4772 = vpop.f32.mrb[0].mxu0
    %v4773 = vadd.f32 %v4009, %v4772
    %v4774 = vpop.f32.mrb[0].mxu0
    %v4775 = vpop.f32.mrb[0].mxu0
    %4776 = vdwg.mxu0
    %4777 = vmatprep.subr.bf16.mxu0 %v4465
    %4778 = vmatpush1.bf16.msra.mxu0 %v4464
    %4779 = vmatprep.subr.bf16.mxu0 %v4469
    %4780 = vmatpush1.bf16.msra.mxu0 %v4468
    %4781 = vmatprep.subr.bf16.mxu0 %v4473
    %4782 = vmatpush1.bf16.msra.mxu0 %v4472
    %4783 = vmatprep.subr.bf16.mxu0 %v4477
    %4784 = vmatpush1.bf16.msra.mxu0 %v4476
    %4785 = vmatprep.subr.bf16.mxu0 %v4481
    %4786 = vmatpush1.bf16.msra.mxu0 %v4480
    %4787 = vmatprep.subr.bf16.mxu0 %v4485
    %4788 = vmatpush1.bf16.msra.mxu0 %v4484
    %4789 = vmatprep.subr.bf16.mxu0 %v4489
    %4790 = vmatpush1.bf16.msra.mxu0 %v4488
    %4791 = vmatprep.subr.bf16.mxu0 %v4493
    %4792 = vmatpush1.bf16.msra.mxu0 %v4492
    %4793 = vmatprep.subr.bf16.mxu0 %v4497
    %4794 = vmatpush1.bf16.msra.mxu0 %v4496
    %4795 = vmatprep.subr.bf16.mxu0 %v4501
    %4796 = vmatpush1.bf16.msra.mxu0 %v4500
    %4797 = vmatprep.subr.bf16.mxu0 %v4505
    %4798 = vmatpush1.bf16.msra.mxu0 %v4504
    %4799 = vmatprep.subr.bf16.mxu0 %v4509
    %4800 = vmatpush1.bf16.msra.mxu0 %v4508
    %4801 = vmatprep.subr.bf16.mxu0 %v4513
    %4802 = vmatpush1.bf16.msra.mxu0 %v4512
    %4803 = vmatprep.subr.bf16.mxu0 %v4517
    %4804 = vmatpush1.bf16.msra.mxu0 %v4516
    %4805 = vmatprep.subr.bf16.mxu0 %v4521
    %4806 = vmatpush1.bf16.msra.mxu0 %v4520
    %4807 = vmatprep.subr.bf16.mxu0 %v4525
    %4808 = vmatpush1.bf16.msra.mxu0 %v4524
    %4809 = vmatprep.mubr.bf16.mxu0 %v3863
    %4810 = vmatmul.mubr.bf16.gmra.mrb[0].mxu0 %v3862
    %v4811 = vpop.f32.mrb[0].mxu0
    %v4812 = vadd.f32 %v4771, %v4811
    %v4813 = vpop.f32.mrb[0].mxu0
    %v4814 = vadd.f32 %v4773, %v4813
    %v4815 = vpop.f32.mrb[0].mxu0
    %v4816 = vpop.f32.mrb[0].mxu0
    %4817 = vdwg.mxu0
    %v4818 = vmax.f32 %v4730, 0.0
    %v4819 = vmax.f32 %v4732, 0.0
    %v4820 = vmax.f32 %v4812, 0.0
    %v4821 = vmax.f32 %v4814, 0.0
    %v4822 = vpack.c.bf16 %v4818, %v4818
    %v4823 = vpack.c.bf16 %v4819, %v4819
    %v4824 = vpack.c.bf16 %v4820, %v4820
    %v4825 = vpack.c.bf16 %v4821, %v4821
    %v4826 = vld [vmem:[%s5] sm:$0xf]
    %v4827 = vld [vmem:[%s5 + $0x4] sm:$0xf]
    %v4828 = vld [vmem:[%s5 + $0x8] sm:$0xf]
    %v4829 = vld [vmem:[%s5 + $0xc] sm:$0xf]
    %v4830 = vld [vmem:[%s5 + $0x10] sm:$0xf]
    %v4831 = vld [vmem:[%s5 + $0x14] sm:$0xf]
    %v4832 = vld [vmem:[%s5 + $0x18] sm:$0xf]
    %v4833 = vld [vmem:[%s5 + $0x1c] sm:$0xf]
    %v4834 = vld [vmem:[%s5 + $0x20] sm:$0xf]
    %v4835 = vld [vmem:[%s5 + $0x24] sm:$0xf]
    %v4836 = vld [vmem:[%s5 + $0x28] sm:$0xf]
    %v4837 = vld [vmem:[%s5 + $0x2c] sm:$0xf]
    %v4838 = vld [vmem:[%s5 + $0x30] sm:$0xf]
    %v4839 = vld [vmem:[%s5 + $0x34] sm:$0xf]
    %v4840 = vld [vmem:[%s5 + $0x38] sm:$0xf]
    %v4841 = vld [vmem:[%s5 + $0x3c] sm:$0xf]
    %v4842 = vld [vmem:[%s5 + $0x40] sm:$0xf]
    %v4843 = vld [vmem:[%s5 + $0x44] sm:$0xf]
    %v4844 = vld [vmem:[%s5 + $0x48] sm:$0xf]
    %v4845 = vld [vmem:[%s5 + $0x4c] sm:$0xf]
    %v4846 = vld [vmem:[%s5 + $0x50] sm:$0xf]
    %v4847 = vld [vmem:[%s5 + $0x54] sm:$0xf]
    %v4848 = vld [vmem:[%s5 + $0x58] sm:$0xf]
    %v4849 = vld [vmem:[%s5 + $0x5c] sm:$0xf]
    %v4850 = vld [vmem:[%s5 + $0x60] sm:$0xf]
    %v4851 = vld [vmem:[%s5 + $0x64] sm:$0xf]
    %v4852 = vld [vmem:[%s5 + $0x68] sm:$0xf]
    %v4853 = vld [vmem:[%s5 + $0x6c] sm:$0xf]
    %v4854 = vld [vmem:[%s5 + $0x70] sm:$0xf]
    %v4855 = vld [vmem:[%s5 + $0x74] sm:$0xf]
    %v4856 = vld [vmem:[%s5 + $0x78] sm:$0xf]
    %v4857 = vld [vmem:[%s5 + $0x7c] sm:$0xf]
    %v4858 = vld [vmem:[%s5 + $0x80] sm:$0xf]
    %v4859 = vld [vmem:[%s5 + $0x84] sm:$0xf]
    %v4860 = vld [vmem:[%s5 + $0x88] sm:$0xf]
    %v4861 = vld [vmem:[%s5 + $0x8c] sm:$0xf]
    %v4862 = vld [vmem:[%s5 + $0x90] sm:$0xf]
    %v4863 = vld [vmem:[%s5 + $0x94] sm:$0xf]
    %v4864 = vld [vmem:[%s5 + $0x98] sm:$0xf]
    %v4865 = vld [vmem:[%s5 + $0x9c] sm:$0xf]
    %v4866 = vld [vmem:[%s5 + $0xa0] sm:$0xf]
    %v4867 = vld [vmem:[%s5 + $0xa4] sm:$0xf]
    %v4868 = vld [vmem:[%s5 + $0xa8] sm:$0xf]
    %v4869 = vld [vmem:[%s5 + $0xac] sm:$0xf]
    %v4870 = vld [vmem:[%s5 + $0xb0] sm:$0xf]
    %v4871 = vld [vmem:[%s5 + $0xb4] sm:$0xf]
    %v4872 = vld [vmem:[%s5 + $0xb8] sm:$0xf]
    %v4873 = vld [vmem:[%s5 + $0xbc] sm:$0xf]
    %v4874 = vld [vmem:[%s5 + $0xc0] sm:$0xf]
    %v4875 = vld [vmem:[%s5 + $0xc4] sm:$0xf]
    %v4876 = vld [vmem:[%s5 + $0xc8] sm:$0xf]
    %v4877 = vld [vmem:[%s5 + $0xcc] sm:$0xf]
    %v4878 = vld [vmem:[%s5 + $0xd0] sm:$0xf]
    %v4879 = vld [vmem:[%s5 + $0xd4] sm:$0xf]
    %v4880 = vld [vmem:[%s5 + $0xd8] sm:$0xf]
    %v4881 = vld [vmem:[%s5 + $0xdc] sm:$0xf]
    %v4882 = vld [vmem:[%s5 + $0xe0] sm:$0xf]
    %v4883 = vld [vmem:[%s5 + $0xe4] sm:$0xf]
    %v4884 = vld [vmem:[%s5 + $0xe8] sm:$0xf]
    %v4885 = vld [vmem:[%s5 + $0xec] sm:$0xf]
    %v4886 = vld [vmem:[%s5 + $0xf0] sm:$0xf]
    %v4887 = vld [vmem:[%s5 + $0xf4] sm:$0xf]
    %v4888 = vld [vmem:[%s5 + $0xf8] sm:$0xf]
    %v4889 = vld [vmem:[%s5 + $0xfc] sm:$0xf]
    %v4890 = vld [vmem:[%s6] sm:$0x1]
    %v4892 = vlaneseq
    %v4893 = vshrl.u32 %v4892, 7
    %v4894 = vsub.s32 0, %v4893
    %v4895 = vrot.slane %v4890, %v4894
    %v4961 = vunpack.c.l.b16 %v4826
    %v4962 = vunpack.c.l.b16 %v4827
    %v4963 = vunpack.c.l.b16 %v4828
    %v4964 = vunpack.c.l.b16 %v4829
    %v4965 = vunpack.c.l.b16 %v4830
    %v4966 = vunpack.c.l.b16 %v4831
    %v4967 = vunpack.c.l.b16 %v4832
    %v4968 = vunpack.c.l.b16 %v4833
    %v4969 = vunpack.c.l.b16 %v4834
    %v4970 = vunpack.c.l.b16 %v4835
    %v4971 = vunpack.c.l.b16 %v4836
    %v4972 = vunpack.c.l.b16 %v4837
    %v4973 = vunpack.c.l.b16 %v4838
    %v4974 = vunpack.c.l.b16 %v4839
    %v4975 = vunpack.c.l.b16 %v4840
    %v4976 = vunpack.c.l.b16 %v4841
    %v4977 = vunpack.c.l.b16 %v4842
    %v4978 = vunpack.c.l.b16 %v4843
    %v4979 = vunpack.c.l.b16 %v4844
    %v4980 = vunpack.c.l.b16 %v4845
    %v4981 = vunpack.c.l.b16 %v4846
    %v4982 = vunpack.c.l.b16 %v4847
    %v4983 = vunpack.c.l.b16 %v4848
    %v4984 = vunpack.c.l.b16 %v4849
    %v4985 = vunpack.c.l.b16 %v4850
    %v4986 = vunpack.c.l.b16 %v4851
    %v4987 = vunpack.c.l.b16 %v4852
    %v4988 = vunpack.c.l.b16 %v4853
    %v4989 = vunpack.c.l.b16 %v4854
    %v4990 = vunpack.c.l.b16 %v4855
    %v4991 = vunpack.c.l.b16 %v4856
    %v4992 = vunpack.c.l.b16 %v4857
    %v4993 = vunpack.c.l.b16 %v4858
    %v4994 = vunpack.c.l.b16 %v4859
    %v4995 = vunpack.c.l.b16 %v4860
    %v4996 = vunpack.c.l.b16 %v4861
    %v4997 = vunpack.c.l.b16 %v4862
    %v4998 = vunpack.c.l.b16 %v4863
    %v4999 = vunpack.c.l.b16 %v4864
    %v5000 = vunpack.c.l.b16 %v4865
    %v5001 = vunpack.c.l.b16 %v4866
    %v5002 = vunpack.c.l.b16 %v4867
    %v5003 = vunpack.c.l.b16 %v4868
    %v5004 = vunpack.c.l.b16 %v4869
    %v5005 = vunpack.c.l.b16 %v4870
    %v5006 = vunpack.c.l.b16 %v4871
    %v5007 = vunpack.c.l.b16 %v4872
    %v5008 = vunpack.c.l.b16 %v4873
    %v5009 = vunpack.c.l.b16 %v4874
    %v5010 = vunpack.c.l.b16 %v4875
    %v5011 = vunpack.c.l.b16 %v4876
    %v5012 = vunpack.c.l.b16 %v4877
    %v5013 = vunpack.c.l.b16 %v4878
    %v5014 = vunpack.c.l.b16 %v4879
    %v5015 = vunpack.c.l.b16 %v4880
    %v5016 = vunpack.c.l.b16 %v4881
    %v5017 = vunpack.c.l.b16 %v4882
    %v5018 = vunpack.c.l.b16 %v4883
    %v5019 = vunpack.c.l.b16 %v4884
    %v5020 = vunpack.c.l.b16 %v4885
    %v5021 = vunpack.c.l.b16 %v4886
    %v5022 = vunpack.c.l.b16 %v4887
    %v5023 = vunpack.c.l.b16 %v4888
    %v5024 = vunpack.c.l.b16 %v4889
    %v5025 = vpack.c.b16 %v4962, %v4961
    %v5026 = vpack.c.b16 %v4964, %v4963
    %v5027 = vpack.c.b16 %v4966, %v4965
    %v5028 = vpack.c.b16 %v4968, %v4967
    %v5029 = vpack.c.b16 %v4970, %v4969
    %v5030 = vpack.c.b16 %v4972, %v4971
    %v5031 = vpack.c.b16 %v4974, %v4973
    %v5032 = vpack.c.b16 %v4976, %v4975
    %v5033 = vpack.c.b16 %v4978, %v4977
    %v5034 = vpack.c.b16 %v4980, %v4979
    %v5035 = vpack.c.b16 %v4982, %v4981
    %v5036 = vpack.c.b16 %v4984, %v4983
    %v5037 = vpack.c.b16 %v4986, %v4985
    %v5038 = vpack.c.b16 %v4988, %v4987
    %v5039 = vpack.c.b16 %v4990, %v4989
    %v5040 = vpack.c.b16 %v4992, %v4991
    %v5041 = vpack.c.b16 %v4994, %v4993
    %v5042 = vpack.c.b16 %v4996, %v4995
    %v5043 = vpack.c.b16 %v4998, %v4997
    %v5044 = vpack.c.b16 %v5000, %v4999
    %v5045 = vpack.c.b16 %v5002, %v5001
    %v5046 = vpack.c.b16 %v5004, %v5003
    %v5047 = vpack.c.b16 %v5006, %v5005
    %v5048 = vpack.c.b16 %v5008, %v5007
    %v5049 = vpack.c.b16 %v5010, %v5009
    %v5050 = vpack.c.b16 %v5012, %v5011
    %v5051 = vpack.c.b16 %v5014, %v5013
    %v5052 = vpack.c.b16 %v5016, %v5015
    %v5053 = vpack.c.b16 %v5018, %v5017
    %v5054 = vpack.c.b16 %v5020, %v5019
    %v5055 = vpack.c.b16 %v5022, %v5021
    %v5056 = vpack.c.b16 %v5024, %v5023
    %5089 = vmatprep.subr.bf16.mxu0 0
    %5090 = vmatpush1.bf16.msra.mxu0 %v5025
    %5091 = vmatprep.subr.bf16.mxu0 0
    %5092 = vmatpush1.bf16.msra.mxu0 %v5026
    %5093 = vmatprep.subr.bf16.mxu0 0
    %5094 = vmatpush1.bf16.msra.mxu0 %v5027
    %5095 = vmatprep.subr.bf16.mxu0 0
    %5096 = vmatpush1.bf16.msra.mxu0 %v5028
    %5097 = vmatprep.subr.bf16.mxu0 0
    %5098 = vmatpush1.bf16.msra.mxu0 %v5029
    %5099 = vmatprep.subr.bf16.mxu0 0
    %5100 = vmatpush1.bf16.msra.mxu0 %v5030
    %5101 = vmatprep.subr.bf16.mxu0 0
    %5102 = vmatpush1.bf16.msra.mxu0 %v5031
    %5103 = vmatprep.subr.bf16.mxu0 0
    %5104 = vmatpush1.bf16.msra.mxu0 %v5032
    %5105 = vmatprep.subr.bf16.mxu0 0
    %5106 = vmatpush1.bf16.msra.mxu0 %v5033
    %5107 = vmatprep.subr.bf16.mxu0 0
    %5108 = vmatpush1.bf16.msra.mxu0 %v5034
    %5109 = vmatprep.subr.bf16.mxu0 0
    %5110 = vmatpush1.bf16.msra.mxu0 %v5035
    %5111 = vmatprep.subr.bf16.mxu0 0
    %5112 = vmatpush1.bf16.msra.mxu0 %v5036
    %5113 = vmatprep.subr.bf16.mxu0 0
    %5114 = vmatpush1.bf16.msra.mxu0 %v5037
    %5115 = vmatprep.subr.bf16.mxu0 0
    %5116 = vmatpush1.bf16.msra.mxu0 %v5038
    %5117 = vmatprep.subr.bf16.mxu0 0
    %5118 = vmatpush1.bf16.msra.mxu0 %v5039
    %5119 = vmatprep.subr.bf16.mxu0 0
    %5120 = vmatpush1.bf16.msra.mxu0 %v5040
    %5121 = vmatprep.mubr.bf16.mxu0 %v4823
    %5122 = vmatmul.mubr.bf16.gmra.mrb[0].mxu0 %v4822
    %v5123 = vpop.f32.mrb[0].mxu0
    %v5124 = vadd.f32 %v4895, %v5123
    %v5125 = vpop.f32.mrb[0].mxu0
    %v5126 = vpop.f32.mrb[0].mxu0
    %v5127 = vpop.f32.mrb[0].mxu0
    %5128 = vdwg.mxu0
    %5129 = vmatprep.subr.bf16.mxu0 0
    %5130 = vmatpush1.bf16.msra.mxu0 %v5041
    %5131 = vmatprep.subr.bf16.mxu0 0
    %5132 = vmatpush1.bf16.msra.mxu0 %v5042
    %5133 = vmatprep.subr.bf16.mxu0 0
    %5134 = vmatpush1.bf16.msra.mxu0 %v5043
    %5135 = vmatprep.subr.bf16.mxu0 0
    %5136 = vmatpush1.bf16.msra.mxu0 %v5044
    %5137 = vmatprep.subr.bf16.mxu0 0
    %5138 = vmatpush1.bf16.msra.mxu0 %v5045
    %5139 = vmatprep.subr.bf16.mxu0 0
    %5140 = vmatpush1.bf16.msra.mxu0 %v5046
    %5141 = vmatprep.subr.bf16.mxu0 0
    %5142 = vmatpush1.bf16.msra.mxu0 %v5047
    %5143 = vmatprep.subr.bf16.mxu0 0
    %5144 = vmatpush1.bf16.msra.mxu0 %v5048
    %5145 = vmatprep.subr.bf16.mxu0 0
    %5146 = vmatpush1.bf16.msra.mxu0 %v5049
    %5147 = vmatprep.subr.bf16.mxu0 0
    %5148 = vmatpush1.bf16.msra.mxu0 %v5050
    %5149 = vmatprep.subr.bf16.mxu0 0
    %5150 = vmatpush1.bf16.msra.mxu0 %v5051
    %5151 = vmatprep.subr.bf16.mxu0 0
    %5152 = vmatpush1.bf16.msra.mxu0 %v5052
    %5153 = vmatprep.subr.bf16.mxu0 0
    %5154 = vmatpush1.bf16.msra.mxu0 %v5053
    %5155 = vmatprep.subr.bf16.mxu0 0
    %5156 = vmatpush1.bf16.msra.mxu0 %v5054
    %5157 = vmatprep.subr.bf16.mxu0 0
    %5158 = vmatpush1.bf16.msra.mxu0 %v5055
    %5159 = vmatprep.subr.bf16.mxu0 0
    %5160 = vmatpush1.bf16.msra.mxu0 %v5056
    %5161 = vmatprep.mubr.bf16.mxu0 %v4825
    %5162 = vmatmul.mubr.bf16.gmra.mrb[0].mxu0 %v4824
    %v5163 = vpop.f32.mrb[0].mxu0
    %v5164 = vadd.f32 %v5124, %v5163
    %v5165 = vpop.f32.mrb[0].mxu0
    %v5166 = vpop.f32.mrb[0].mxu0
    %v5167 = vpop.f32.mrb[0].mxu0
    %5168 = vdwg.mxu0
    %5169 = vst [vmem:[%s7] sm:$0xf] %v5164
  $region37: #{siamese_forward.3} parent=0 // pred_fallthru
    _
  // Predicated region
  $region38: #{siamese_forward.3} parent=0 // pred_check
    _
  $region39: #{siamese_forward.3} parent=0 // pred_check_branch
    %5171 = sbr.rel (0) target = $region41
  $region40: #{siamese_forward.3} parent=0 // pred_region
    _
  $region41: #{siamese_forward.3} parent=0 // pred_fallthru
    _
  // Predicated region
  $region42: #{siamese_forward.3} parent=0 // pred_check
    _
  $region43: #{siamese_forward.3} parent=0 // pred_check_branch
    %5173 = sbr.rel (0) target = $region45
  $region44: #{siamese_forward.3} parent=0 // pred_region
    _
  $region45: #{siamese_forward.3} parent=0 // pred_fallthru
    _

</llo_original>
